<compile_context>
chip_gen: v5e
topology: v5e:2x2
jax: 0.10.0
libtpu: 0.0.40
codegen_flags: <defaults>
</compile_context>

<pallas_src>
import functools
import math

import jax
import jax.numpy as jnp
from jax import lax
from jax.experimental import pallas as pl
from jax.experimental.pallas import tpu as pltpu


# ----------------------------------------------------------------------------
# VMEM budget helpers (per-generation: v5e/v6e 128 MiB physical, v7x 64 MiB)
# ----------------------------------------------------------------------------
def _vmem_limit_bytes():
    try:
        cap = int(pltpu.get_tpu_info().vmem_capacity_bytes)
        if cap > 0:
            return int(min(cap * 3 // 4, 96 * 1024 * 1024))
    except Exception:
        pass
    return 64 * 1024 * 1024


_VMEM_LIMIT = _vmem_limit_bytes()


def _pick_row_tile(Ho, Wo, Cin, Cout, Hh, Wh, planes, kt, kh, kw,
                   fuse_residual, budget_bytes):
    """Largest divisor of Ho whose per-step VMEM residency fits the budget."""
    fixed = 2 * planes * Hh * Wh * Cin * 2        # double-buffered bf16 frame
    fixed += 2 * kt * kh * kw * Cin * Cout * 2    # resident bf16 weights (2 bufs)
    fixed += 8 * Cout * 4                         # bias + stats blocks (tiny)

    def tile_cost(tr):
        t = tr * Wo * Cout
        cost = 4 * t                              # f32 accumulator scratch
        cost += 2 * 2 * t                         # double-buffered bf16 output
        if fuse_residual:
            cost += 2 * 2 * t
        return cost

    divs = [d for d in range(Ho, 0, -1) if Ho % d == 0]
    # (tr*Wo, Cout) must satisfy the (8, 128) block rule unless it is the full dim.
    valid = [d for d in divs if d == Ho or (d * Wo) % 8 == 0] or [Ho]
    for tr in valid:
        if fixed + tile_cost(tr) <= budget_bytes:
            return tr
    return valid[-1]                              # smallest valid; best effort


def _pick_s_tile(S, C, budget_bytes):
    """Pick a GN-apply tile size; divisor of S if possible, else pad S."""
    # ~12 bytes/elem: double-buffered bf16 in + out plus f32 temporaries.
    max_tile = max(8, min(4096, budget_bytes // (12 * max(C, 1))))
    max_tile -= max_tile % 8
    if S <= max_tile:
        return S, 1, S
    for cand in range(max_tile, 7, -8):
        if S % cand == 0:
            return cand, S // cand, S
    tS = max_tile
    S_pad = (-(-S // tS)) * tS
    return tS, S_pad // tS, S_pad


# ----------------------------------------------------------------------------
# Pallas kernel 1: direct causal 3-D convolution (tap accumulation on the MXU)
#   grid = (N, To, nR, kt); kt is the reduction axis (f32 VMEM accumulator);
#   the kh*kw spatial taps are in-kernel slices of the resident padded frame.
#   Optional fused residual add and fused GroupNorm pass-1 statistics.
# ----------------------------------------------------------------------------
def _causal_conv_kernel(*refs, kt, kh, kw, sh, sw, tr, wo,
                        fuse_residual, with_stats):
    x_ref, w_ref, b_ref = refs[0], refs[1], refs[2]
    pos = 3
    res_ref = None
    if fuse_residual:
        res_ref = refs[pos]
        pos += 1
    o_ref = refs[pos]
    pos += 1
    sum_ref = sq_ref = None
    if with_stats:
        sum_ref, sq_ref = refs[pos], refs[pos + 1]
        pos += 2
    acc_ref = refs[pos]

    t = pl.program_id(1)
    r = pl.program_id(2)
    dt = pl.program_id(3)          # time tap = reduction grid axis

    @pl.when(dt == 0)
    def _():
        acc_ref[...] = jnp.zeros_like(acc_ref)
        if with_stats:
            @pl.when(jnp.logical_and(t == 0, r == 0))
            def _():
                sum_ref[...] = jnp.zeros_like(sum_ref)
                sq_ref[...] = jnp.zeros_like(sq_ref)

    # Spatial taps: slices of the parity-reorganized padded frame, each feeding
    # a bf16 MXU matmul with f32 accumulation.  Weights are indexed in-kernel
    # (w_ref[dt, ...]) so the full weight block stays VMEM-resident.
    # TODO(synk): express the W-shift (j0) as a pltpu.roll (XLU) instead of a
    # sublane slice if a bundle dump shows the ld/st slots binding.
    r0 = pl.multiple_of(r * tr, tr)
    contrib = None
    for dh in range(kh):
        for dw in range(kw):
            p = (dh % sh) * sw + (dw % sw)          # parity plane index
            i0, j0 = dh // sh, dw // sw
            patch = x_ref[0, 0, p, pl.ds(r0 + i0, tr), j0:j0 + wo, :]
            patch = patch.reshape(tr * wo, patch.shape[-1])
            d = jnp.dot(patch, w_ref[dt, dh * kw + dw],
                        preferred_element_type=jnp.float32)
            contrib = d if contrib is None else contrib + d
    acc_ref[...] += contrib

    @pl.when(dt == kt - 1)
    def _():
        y = acc_ref[...] + b_ref[...]                          # + bias (f32)
        if fuse_residual:
            y = y + res_ref[0, 0].astype(jnp.float32)          # fused skip add
        o_ref[0, 0] = y.astype(o_ref.dtype)
        if with_stats:
            # Fused GroupNorm pass-1: per-channel sum / sum-of-squares of the
            # conv output, accumulated across (To, nR) grid steps.
            sum_ref[0] += jnp.sum(y, axis=0, keepdims=True)
            sq_ref[0] += jnp.sum(y * y, axis=0, keepdims=True)


def causal_conv3d(x, w, b, stride, residual=None, with_stats=False,
                  out_dtype=jnp.bfloat16):
    """Causal 3-D conv, channels-last.

    x: (N, T, H, W, Cin) bf16; w: (Cout, Cin, kt, kh, kw) f32 (PyTorch layout);
    b: (Cout,) f32; stride = (st, sh, sw).  Optional `residual` (same shape as
    the conv output) is added in the kernel epilogue.  With `with_stats=True`
    also returns per-channel (sum, sum_sq) of the output (fused GN pass-1).
    """
    N, T, H, W, Cin = x.shape
    Cout, Cin_w, kt, kh, kw = w.shape
    assert Cin_w == Cin
    st, sh, sw = stride
    ph, pw = kh // 2, kw // 2
    Tp, Hp, Wp = T + kt - 1, H + 2 * ph, W + 2 * pw
    To = (Tp - kt) // st + 1
    Ho = (Hp - kh) // sh + 1
    Wo = (Wp - kw) // sw + 1
    Hh, Wh = -(-Hp // sh), -(-Wp // sw)        # parity-plane extents (ceil div)

    # Causal time pad, symmetric spatial pad (+ bottom/right pad to stride mult),
    # then parity (space-to-depth) reorg so every tap is a contiguous slice.
    # TODO(synk): fold these pads/reorg into the kernel index_map (masked edge
    # taps) to remove this XLA full-tensor copy per conv.
    xp = jnp.pad(x, ((0, 0), (kt - 1, 0),
                     (ph, ph + Hh * sh - Hp), (pw, pw + Wh * sw - Wp), (0, 0)))
    xr = xp.reshape(N, Tp, Hh, sh, Wh, sw, Cin)
    xr = xr.transpose(0, 1, 3, 5, 2, 4, 6).reshape(N, Tp, sh * sw, Hh, Wh, Cin)

    wr = jnp.transpose(w, (2, 3, 4, 1, 0)).reshape(kt, kh * kw, Cin, Cout)
    wr = wr.astype(x.dtype)                    # bf16 into the MXU
    bias = b.reshape(1, Cout).astype(jnp.float32)

    fuse_residual = residual is not None
    tr = _pick_row_tile(Ho, Wo, Cin, Cout, Hh, Wh, sh * sw, kt, kh, kw,
                        fuse_residual, int(_VMEM_LIMIT * 0.8))
    nR = Ho // tr

    # TODO(synk): kt-slot VMEM ring buffer (pl.ANY + make_async_copy) to avoid
    # the kt x re-read of input frames for stride-1 convs, and halo-tiled input
    # blocks for very large frames.
    # TODO(synk): for small Cin (stem conv) pack the kh*kw taps into K
    # (im2col-in-kernel) for better MXU utilization; per-tap K=Cin is tiny there.
    in_specs = [
        pl.BlockSpec((1, 1, sh * sw, Hh, Wh, Cin),
                     lambda n, t, r, dt: (n, t * st + dt, 0, 0, 0, 0)),
        # Full weight block, constant index_map -> fetched once, VMEM-resident.
        pl.BlockSpec((kt, kh * kw, Cin, Cout), lambda n, t, r, dt: (0, 0, 0, 0)),
        pl.BlockSpec((1, Cout), lambda n, t, r, dt: (0, 0)),
    ]
    args = [xr, wr, bias]
    if fuse_residual:
        res = residual.reshape(N, To, Ho * Wo, Cout).astype(x.dtype)
        in_specs.append(pl.BlockSpec((1, 1, tr * Wo, Cout),
                                     lambda n, t, r, dt: (n, t, r, 0)))
        args.append(res)

    out_shapes = [jax.ShapeDtypeStruct((N, To, Ho * Wo, Cout), out_dtype)]
    out_specs = [pl.BlockSpec((1, 1, tr * Wo, Cout),
                              lambda n, t, r, dt: (n, t, r, 0))]
    if with_stats:
        out_shapes += [jax.ShapeDtypeStruct((N, 1, Cout), jnp.float32)] * 2
        out_specs += [pl.BlockSpec((1, 1, Cout),
                                   lambda n, t, r, dt: (n, 0, 0))] * 2

    # Stats outputs accumulate across (To, nR, kt) -> those axes are "arbitrary".
    if with_stats:
        dims = ("parallel", "arbitrary", "arbitrary", "arbitrary")
    else:
        dims = ("parallel", "parallel", "parallel", "arbitrary")

    result = pl.pallas_call(
        functools.partial(_causal_conv_kernel, kt=kt, kh=kh, kw=kw, sh=sh, sw=sw,
                          tr=tr, wo=Wo, fuse_residual=fuse_residual,
                          with_stats=with_stats),
        out_shape=tuple(out_shapes) if with_stats else out_shapes[0],
        grid=(N, To, nR, kt),
        in_specs=in_specs,
        out_specs=tuple(out_specs) if with_stats else out_specs[0],
        scratch_shapes=[pltpu.VMEM((tr * Wo, Cout), jnp.float32)],
        compiler_params=pltpu.CompilerParams(
            dimension_semantics=dims,
            vmem_limit_bytes=_VMEM_LIMIT),
    )(*args)

    if with_stats:
        out, sums, sqs = result
        return out.reshape(N, To, Ho, Wo, Cout), sums, sqs
    return result.reshape(N, To, Ho, Wo, Cout)


# ----------------------------------------------------------------------------
# Pallas kernel 2: GroupNorm affine + SiLU apply (stats come from the conv)
# ----------------------------------------------------------------------------
def _gn_apply_silu_kernel(x_ref, a_ref, b_ref, o_ref):
    x = x_ref[...].astype(jnp.float32)                      # (1, tS, C)
    y = x * a_ref[...] + b_ref[...]                         # fused GN affine
    o_ref[...] = (y * jax.nn.sigmoid(y)).astype(o_ref.dtype)


def groupnorm_silu_apply(h, sums, sqs, gamma, beta, groups, eps=1e-5):
    """GroupNorm + SiLU using precomputed per-channel sums from the conv epilogue.

    h: (N, T, H, W, C) channels-last bf16; sums/sqs: (N, 1, C) f32.
    """
    N, C = h.shape[0], h.shape[-1]
    assert C % groups == 0
    Cg = C // groups
    S = math.prod(h.shape[1:-1])
    cnt = float(S * Cg)

    # Tiny (N, G)/(N, C) group math in XLA (negligible traffic).
    gsum = sums.reshape(N, groups, Cg).sum(-1)
    gsq = sqs.reshape(N, groups, Cg).sum(-1)
    mean = gsum / cnt
    # NOTE: E[x^2] - E[x]^2 in f32 (torch-biased variance); guarded vs round-off.
    var = jnp.maximum(gsq / cnt - mean * mean, 0.0)
    rstd = lax.rsqrt(var + eps)
    mean_c = jnp.repeat(mean, Cg, axis=1)                   # (N, C)
    rstd_c = jnp.repeat(rstd, Cg, axis=1)
    a = (rstd_c * gamma[None, :]).reshape(N, 1, C).astype(jnp.float32)
    bsh = (beta[None, :] - mean_c * rstd_c * gamma[None, :]).reshape(N, 1, C)
    bsh = bsh.astype(jnp.float32)

    x3 = h.reshape(N, S, C)
    tS, nS, S_pad = _pick_s_tile(S, C, int(_VMEM_LIMIT * 0.5))
    if S_pad != S:
        x3 = jnp.pad(x3, ((0, 0), (0, S_pad - S), (0, 0)))   # zeros: sliced off

    out = pl.pallas_call(
        _gn_apply_silu_kernel,
        out_shape=jax.ShapeDtypeStruct((N, S_pad, C), h.dtype),
        grid=(N, nS),
        in_specs=[pl.BlockSpec((1, tS, C), lambda n, s: (n, s, 0)),
                  pl.BlockSpec((1, 1, C), lambda n, s: (n, 0, 0)),
                  pl.BlockSpec((1, 1, C), lambda n, s: (n, 0, 0))],
        out_specs=pl.BlockSpec((1, tS, C), lambda n, s: (n, s, 0)),
        compiler_params=pltpu.CompilerParams(
            dimension_semantics=("parallel", "parallel"),
            vmem_limit_bytes=_VMEM_LIMIT),
    )(x3, a, bsh)
    if S_pad != S:
        out = out[:, :S]
    return out.reshape(h.shape)


# ----------------------------------------------------------------------------
# EncoderBlock forward
# ----------------------------------------------------------------------------
def encoder_block_forward(x, params, stride, groups):
    """x: (N, Cin, T, H, W) f32 (NCDHW at the module boundary)."""
    # Single boundary transpose to channels-last bf16; back to NCDHW f32 once.
    # NOTE: keep channel counts a multiple of 128 in production for lane-dense
    # stores; the toy C=16 here is inherently narrow.
    h = jnp.transpose(x, (0, 2, 3, 4, 1)).astype(jnp.bfloat16)

    # Stem: strided causal conv; its epilogue emits the stats for the first GN.
    h, s, q = causal_conv3d(h, params["stem_w"], params["stem_b"], stride,
                            with_stats=True)

    nrb = len(params["resblocks"])
    for i, rb in enumerate(params["resblocks"]):
        r = h
        u = groupnorm_silu_apply(h, s, q, rb["gn1_g"], rb["gn1_b"], groups)
        u, s2, q2 = causal_conv3d(u, rb["conv1_w"], rb["conv1_b"], (1, 1, 1),
                                  with_stats=True)
        u = groupnorm_silu_apply(u, s2, q2, rb["gn2_g"], rb["gn2_b"], groups)
        if i == nrb - 1:
            h = causal_conv3d(u, rb["conv2_w"], rb["conv2_b"], (1, 1, 1),
                              residual=r)
        else:
            h, s, q = causal_conv3d(u, rb["conv2_w"], rb["conv2_b"], (1, 1, 1),
                                    residual=r, with_stats=True)

    return jnp.transpose(h.astype(jnp.float32), (0, 4, 1, 2, 3))


def init_params(key, in_channels, out_channels, nblocks, kernel_size=(3, 3, 3)):
    kt, kh, kw = kernel_size
    keys = iter(jax.random.split(key, 2 + nblocks * 8))
    scale = 0.05

    def conv_init(cin, cout, k):
        kw_, kb_ = jax.random.split(next(keys))
        w = scale * jax.random.normal(kw_, (cout, cin) + k, jnp.float32)
        b = scale * jax.random.normal(kb_, (cout,), jnp.float32)
        return w, b

    stem_w, stem_b = conv_init(in_channels, out_channels, (kt, kh, kw))
    resblocks = []
    for _ in range(nblocks):
        g1 = 1.0 + scale * jax.random.normal(next(keys), (out_channels,), jnp.float32)
        b1 = scale * jax.random.normal(next(keys), (out_channels,), jnp.float32)
        c1w, c1b = conv_init(out_channels, out_channels, (3, 3, 3))
        g2 = 1.0 + scale * jax.random.normal(next(keys), (out_channels,), jnp.float32)
        b2 = scale * jax.random.normal(next(keys), (out_channels,), jnp.float32)
        c2w, c2b = conv_init(out_channels, out_channels, (3, 3, 3))
        resblocks.append(dict(gn1_g=g1, gn1_b=b1, conv1_w=c1w, conv1_b=c1b,
                              gn2_g=g2, gn2_b=b2, conv2_w=c2w, conv2_b=c2b))
    return dict(stem_w=stem_w, stem_b=stem_b, resblocks=resblocks)


if __name__ == "__main__":
    key = jax.random.PRNGKey(0)
    k_x, k_p = jax.random.split(key)

    # Small synthetic config: EncoderBlock(in=4, out=16, nblocks=2), default
    # kernel (3,3,3), space_only=False / time_only=False -> stride (2,2,2).
    N, Cin, T, H, W = 2, 4, 5, 8, 8
    out_channels, nblocks = 16, 2
    stride = (2, 2, 2)
    groups = 4  # GroupNorm group count chosen to divide channels in this config

    x = jax.random.normal(k_x, (N, Cin, T, H, W), jnp.float32)
    params = init_params(k_p, Cin, out_channels, nblocks)

    fwd = jax.jit(functools.partial(encoder_block_forward,
                                    stride=stride, groups=groups))
    y = fwd(x, params)
    jax.block_until_ready(y)

    # Expected output spatial dims with stride (2,2,2): T'=3, H'=4, W'=4.
    assert y.shape == (N, out_channels, 3, 4, 4), y.shape
    assert bool(jnp.all(jnp.isfinite(y)))
    print("KERNEL_OK")
</pallas_src>

<mosaic_0001>
module attributes {stable_mosaic.version = 11 : i64} {
  func.func @_causal_conv_kernel(%arg0: i32, %arg1: i32, %arg2: i32, %arg3: i32, %arg4: memref<1x1x4x5x5x4xbf16, #tpu.memory_space<vmem>>, %arg5: memref<3x9x4x16xbf16, #tpu.memory_space<vmem>>, %arg6: memref<1x16xf32, #tpu.memory_space<vmem>>, %arg7: memref<1x1x16x16xbf16, #tpu.memory_space<vmem>>, %arg8: memref<1x1x16xf32, #tpu.memory_space<vmem>>, %arg9: memref<1x1x16xf32, #tpu.memory_space<vmem>>, %arg10: memref<16x16xf32, #tpu.memory_space<vmem>>) attributes {dimension_semantics = [#tpu.dimension_semantics<parallel>, #tpu.dimension_semantics<arbitrary>, #tpu.dimension_semantics<arbitrary>, #tpu.dimension_semantics<arbitrary>], iteration_bounds = array<i64: 2, 3, 1, 3>, scalar_prefetch = 0 : i64, scratch_operands = 1 : i64, tpu.core_type = #tpu.core_type<tc>, window_params = [{transform_indices = @transform_0, window_bounds = array<i64: 1, 1, 4, 5, 5, 4>}, {pipeline_mode = #tpu.pipeline_mode<synchronous>, transform_indices = @transform_1, window_bounds = array<i64: 3, 9, 4, 16>}, {pipeline_mode = #tpu.pipeline_mode<synchronous>, transform_indices = @transform_2, window_bounds = array<i64: 1, 16>}, {transform_indices = @transform_3, window_bounds = array<i64: 1, 1, 16, 16>}, {transform_indices = @transform_4, window_bounds = array<i64: 1, 1, 16>}, {transform_indices = @transform_5, window_bounds = array<i64: 1, 1, 16>}]} {
    %c0_i32 = arith.constant 0 : i32
    %0 = arith.cmpi eq, %arg3, %c0_i32 : i32
    %1 = arith.extui %0 : i1 to i32
    %c0_i32_0 = arith.constant 0 : i32
    %2 = arith.cmpi ne, %1, %c0_i32_0 : i32
    scf.if %2 {
      %cst_85 = arith.constant 0.000000e+00 : f32
      %100 = vector.broadcast %cst_85 : f32 to vector<16x16xf32>
      %c0_86 = arith.constant 0 : index
      %c0_87 = arith.constant 0 : index
      %101 = vector.load %arg10[%c0_86, %c0_87] : memref<16x16xf32, #tpu.memory_space<vmem>>, vector<16x16xf32>
      tpu.vector_store %arg10[%c0_86, %c0_87], %100 {strides = array<i32>} : memref<16x16xf32, #tpu.memory_space<vmem>>, vector<16x16xf32>,
      %c0_i32_88 = arith.constant 0 : i32
      %102 = arith.cmpi eq, %arg1, %c0_i32_88 : i32
      %c0_i32_89 = arith.constant 0 : i32
      %103 = arith.cmpi eq, %arg2, %c0_i32_89 : i32
      %104 = arith.andi %102, %103 : i1
      %105 = arith.extui %104 : i1 to i32
      %c0_i32_90 = arith.constant 0 : i32
      %106 = arith.cmpi ne, %105, %c0_i32_90 : i32
      scf.if %106 {
        %cst_91 = arith.constant 0.000000e+00 : f32
        %107 = vector.broadcast %cst_91 : f32 to vector<1x1x16xf32>
        %c0_92 = arith.constant 0 : index
        %c0_93 = arith.constant 0 : index
        %c0_94 = arith.constant 0 : index
        %108 = vector.load %arg8[%c0_92, %c0_93, %c0_94] : memref<1x1x16xf32, #tpu.memory_space<vmem>>, vector<1x1x16xf32>
        tpu.vector_store %arg8[%c0_92, %c0_93, %c0_94], %107 {strides = array<i32>} : memref<1x1x16xf32, #tpu.memory_space<vmem>>, vector<1x1x16xf32>,
        %cst_95 = arith.constant 0.000000e+00 : f32
        %109 = vector.broadcast %cst_95 : f32 to vector<1x1x16xf32>
        %c0_96 = arith.constant 0 : index
        %c0_97 = arith.constant 0 : index
        %c0_98 = arith.constant 0 : index
        %110 = vector.load %arg9[%c0_96, %c0_97, %c0_98] : memref<1x1x16xf32, #tpu.memory_space<vmem>>, vector<1x1x16xf32>
        tpu.vector_store %arg9[%c0_96, %c0_97, %c0_98], %109 {strides = array<i32>} : memref<1x1x16xf32, #tpu.memory_space<vmem>>, vector<1x1x16xf32>,
      } else {
      }
    } else {
    }
    %c4_i32 = arith.constant 4 : i32
    %3 = arith.muli %arg2, %c4_i32 : i32
    %4 = tpu.assume_multiple %3, 4 : i32
    %c0_i32_1 = arith.constant 0 : i32
    %5 = arith.addi %4, %c0_i32_1 : i32
    %c0 = arith.constant 0 : index
    %c0_2 = arith.constant 0 : index
    %c0_3 = arith.constant 0 : index
    %6 = arith.index_cast %5 : i32 to index
    %c0_4 = arith.constant 0 : index
    %c0_5 = arith.constant 0 : index
    %7 = vector.load %arg4[%c0, %c0_2, %c0_3, %6, %c0_4, %c0_5] : memref<1x1x4x5x5x4xbf16, #tpu.memory_space<vmem>>, vector<1x1x1x4x4x4xbf16>
    %8 = vector.shape_cast %7 : vector<1x1x1x4x4x4xbf16> to vector<4x4x4xbf16>
    %9 = vector.shape_cast %8 : vector<4x4x4xbf16> to vector<16x4xbf16>
    %10 = arith.index_cast %arg3 : i32 to index
    %c0_6 = arith.constant 0 : index
    %c0_7 = arith.constant 0 : index
    %c0_8 = arith.constant 0 : index
    %11 = vector.load %arg5[%10, %c0_6, %c0_7, %c0_8] : memref<3x9x4x16xbf16, #tpu.memory_space<vmem>>, vector<1x1x4x16xbf16>
    %12 = vector.shape_cast %11 : vector<1x1x4x16xbf16> to vector<4x16xbf16>
    %cst = arith.constant dense<0.000000e+00> : vector<16x16xf32>
    %13 = tpu.matmul %9, %12, %cst {dimension_numbers = #tpu.dot_dimension_numbers<[1], [0], [0], [1], [0, 0, 1, 1], [], []>} : vector<16x4xbf16>, vector<4x16xbf16>, vector<16x16xf32> -> vector<16x16xf32>
    %c0_i32_9 = arith.constant 0 : i32
    %14 = arith.addi %4, %c0_i32_9 : i32
    %c0_10 = arith.constant 0 : index
    %c0_11 = arith.constant 0 : index
    %c1 = arith.constant 1 : index
    %15 = arith.index_cast %14 : i32 to index
    %c0_12 = arith.constant 0 : index
    %c0_13 = arith.constant 0 : index
    %16 = vector.load %arg4[%c0_10, %c0_11, %c1, %15, %c0_12, %c0_13] : memref<1x1x4x5x5x4xbf16, #tpu.memory_space<vmem>>, vector<1x1x1x4x4x4xbf16>
    %17 = vector.shape_cast %16 : vector<1x1x1x4x4x4xbf16> to vector<4x4x4xbf16>
    %18 = vector.shape_cast %17 : vector<4x4x4xbf16> to vector<16x4xbf16>
    %19 = arith.index_cast %arg3 : i32 to index
    %c1_14 = arith.constant 1 : index
    %c0_15 = arith.constant 0 : index
    %c0_16 = arith.constant 0 : index
    %20 = vector.load %arg5[%19, %c1_14, %c0_15, %c0_16] : memref<3x9x4x16xbf16, #tpu.memory_space<vmem>>, vector<1x1x4x16xbf16>
    %21 = vector.shape_cast %20 : vector<1x1x4x16xbf16> to vector<4x16xbf16>
    %cst_17 = arith.constant dense<0.000000e+00> : vector<16x16xf32>
    %22 = tpu.matmul %18, %21, %cst_17 {dimension_numbers = #tpu.dot_dimension_numbers<[1], [0], [0], [1], [0, 0, 1, 1], [], []>} : vector<16x4xbf16>, vector<4x16xbf16>, vector<16x16xf32> -> vector<16x16xf32>
    %23 = arith.addf %13, %22 : vector<16x16xf32>
    %c0_i32_18 = arith.constant 0 : i32
    %24 = arith.addi %4, %c0_i32_18 : i32
    %c0_19 = arith.constant 0 : index
    %c0_20 = arith.constant 0 : index
    %c0_21 = arith.constant 0 : index
    %25 = arith.index_cast %24 : i32 to index
    %c1_22 = arith.constant 1 : index
    %c0_23 = arith.constant 0 : index
    %26 = vector.load %arg4[%c0_19, %c0_20, %c0_21, %25, %c1_22, %c0_23] : memref<1x1x4x5x5x4xbf16, #tpu.memory_space<vmem>>, vector<1x1x1x4x4x4xbf16>
    %27 = vector.shape_cast %26 : vector<1x1x1x4x4x4xbf16> to vector<4x4x4xbf16>
    %28 = vector.shape_cast %27 : vector<4x4x4xbf16> to vector<16x4xbf16>
    %29 = arith.index_cast %arg3 : i32 to index
    %c2 = arith.constant 2 : index
    %c0_24 = arith.constant 0 : index
    %c0_25 = arith.constant 0 : index
    %30 = vector.load %arg5[%29, %c2, %c0_24, %c0_25] : memref<3x9x4x16xbf16, #tpu.memory_space<vmem>>, vector<1x1x4x16xbf16>
    %31 = vector.shape_cast %30 : vector<1x1x4x16xbf16> to vector<4x16xbf16>
    %cst_26 = arith.constant dense<0.000000e+00> : vector<16x16xf32>
    %32 = tpu.matmul %28, %31, %cst_26 {dimension_numbers = #tpu.dot_dimension_numbers<[1], [0], [0], [1], [0, 0, 1, 1], [], []>} : vector<16x4xbf16>, vector<4x16xbf16>, vector<16x16xf32> -> vector<16x16xf32>
    %33 = arith.addf %23, %32 : vector<16x16xf32>
    %c0_i32_27 = arith.constant 0 : i32
    %34 = arith.addi %4, %c0_i32_27 : i32
    %c0_28 = arith.constant 0 : index
    %c0_29 = arith.constant 0 : index
    %c2_30 = arith.constant 2 : index
    %35 = arith.index_cast %34 : i32 to index
    %c0_31 = arith.constant 0 : index
    %c0_32 = arith.constant 0 : index
    %36 = vector.load %arg4[%c0_28, %c0_29, %c2_30, %35, %c0_31, %c0_32] : memref<1x1x4x5x5x4xbf16, #tpu.memory_space<vmem>>, vector<1x1x1x4x4x4xbf16>
    %37 = vector.shape_cast %36 : vector<1x1x1x4x4x4xbf16> to vector<4x4x4xbf16>
    %38 = vector.shape_cast %37 : vector<4x4x4xbf16> to vector<16x4xbf16>
    %39 = arith.index_cast %arg3 : i32 to index
    %c3 = arith.constant 3 : index
    %c0_33 = arith.constant 0 : index
    %c0_34 = arith.constant 0 : index
    %40 = vector.load %arg5[%39, %c3, %c0_33, %c0_34] : memref<3x9x4x16xbf16, #tpu.memory_space<vmem>>, vector<1x1x4x16xbf16>
    %41 = vector.shape_cast %40 : vector<1x1x4x16xbf16> to vector<4x16xbf16>
    %cst_35 = arith.constant dense<0.000000e+00> : vector<16x16xf32>
    %42 = tpu.matmul %38, %41, %cst_35 {dimension_numbers = #tpu.dot_dimension_numbers<[1], [0], [0], [1], [0, 0, 1, 1], [], []>} : vector<16x4xbf16>, vector<4x16xbf16>, vector<16x16xf32> -> vector<16x16xf32>
    %43 = arith.addf %33, %42 : vector<16x16xf32>
    %c0_i32_36 = arith.constant 0 : i32
    %44 = arith.addi %4, %c0_i32_36 : i32
    %c0_37 = arith.constant 0 : index
    %c0_38 = arith.constant 0 : index
    %c3_39 = arith.constant 3 : index
    %45 = arith.index_cast %44 : i32 to index
    %c0_40 = arith.constant 0 : index
    %c0_41 = arith.constant 0 : index
    %46 = vector.load %arg4[%c0_37, %c0_38, %c3_39, %45, %c0_40, %c0_41] : memref<1x1x4x5x5x4xbf16, #tpu.memory_space<vmem>>, vector<1x1x1x4x4x4xbf16>
    %47 = vector.shape_cast %46 : vector<1x1x1x4x4x4xbf16> to vector<4x4x4xbf16>
    %48 = vector.shape_cast %47 : vector<4x4x4xbf16> to vector<16x4xbf16>
    %49 = arith.index_cast %arg3 : i32 to index
    %c4 = arith.constant 4 : index
    %c0_42 = arith.constant 0 : index
    %c0_43 = arith.constant 0 : index
    %50 = vector.load %arg5[%49, %c4, %c0_42, %c0_43] : memref<3x9x4x16xbf16, #tpu.memory_space<vmem>>, vector<1x1x4x16xbf16>
    %51 = vector.shape_cast %50 : vector<1x1x4x16xbf16> to vector<4x16xbf16>
    %cst_44 = arith.constant dense<0.000000e+00> : vector<16x16xf32>
    %52 = tpu.matmul %48, %51, %cst_44 {dimension_numbers = #tpu.dot_dimension_numbers<[1], [0], [0], [1], [0, 0, 1, 1], [], []>} : vector<16x4xbf16>, vector<4x16xbf16>, vector<16x16xf32> -> vector<16x16xf32>
    %53 = arith.addf %43, %52 : vector<16x16xf32>
    %c0_i32_45 = arith.constant 0 : i32
    %54 = arith.addi %4, %c0_i32_45 : i32
    %c0_46 = arith.constant 0 : index
    %c0_47 = arith.constant 0 : index
    %c2_48 = arith.constant 2 : index
    %55 = arith.index_cast %54 : i32 to index
    %c1_49 = arith.constant 1 : index
    %c0_50 = arith.constant 0 : index
    %56 = vector.load %arg4[%c0_46, %c0_47, %c2_48, %55, %c1_49, %c0_50] : memref<1x1x4x5x5x4xbf16, #tpu.memory_space<vmem>>, vector<1x1x1x4x4x4xbf16>
    %57 = vector.shape_cast %56 : vector<1x1x1x4x4x4xbf16> to vector<4x4x4xbf16>
    %58 = vector.shape_cast %57 : vector<4x4x4xbf16> to vector<16x4xbf16>
    %59 = arith.index_cast %arg3 : i32 to index
    %c5 = arith.constant 5 : index
    %c0_51 = arith.constant 0 : index
    %c0_52 = arith.constant 0 : index
    %60 = vector.load %arg5[%59, %c5, %c0_51, %c0_52] : memref<3x9x4x16xbf16, #tpu.memory_space<vmem>>, vector<1x1x4x16xbf16>
    %61 = vector.shape_cast %60 : vector<1x1x4x16xbf16> to vector<4x16xbf16>
    %cst_53 = arith.constant dense<0.000000e+00> : vector<16x16xf32>
    %62 = tpu.matmul %58, %61, %cst_53 {dimension_numbers = #tpu.dot_dimension_numbers<[1], [0], [0], [1], [0, 0, 1, 1], [], []>} : vector<16x4xbf16>, vector<4x16xbf16>, vector<16x16xf32> -> vector<16x16xf32>
    %63 = arith.addf %53, %62 : vector<16x16xf32>
    %c1_i32 = arith.constant 1 : i32
    %64 = arith.addi %4, %c1_i32 : i32
    %c0_54 = arith.constant 0 : index
    %c0_55 = arith.constant 0 : index
    %c0_56 = arith.constant 0 : index
    %65 = arith.index_cast %64 : i32 to index
    %c0_57 = arith.constant 0 : index
    %c0_58 = arith.constant 0 : index
    %66 = vector.load %arg4[%c0_54, %c0_55, %c0_56, %65, %c0_57, %c0_58] : memref<1x1x4x5x5x4xbf16, #tpu.memory_space<vmem>>, vector<1x1x1x4x4x4xbf16>
    %67 = vector.shape_cast %66 : vector<1x1x1x4x4x4xbf16> to vector<4x4x4xbf16>
    %68 = vector.shape_cast %67 : vector<4x4x4xbf16> to vector<16x4xbf16>
    %69 = arith.index_cast %arg3 : i32 to index
    %c6 = arith.constant 6 : index
    %c0_59 = arith.constant 0 : index
    %c0_60 = arith.constant 0 : index
    %70 = vector.load %arg5[%69, %c6, %c0_59, %c0_60] : memref<3x9x4x16xbf16, #tpu.memory_space<vmem>>, vector<1x1x4x16xbf16>
    %71 = vector.shape_cast %70 : vector<1x1x4x16xbf16> to vector<4x16xbf16>
    %cst_61 = arith.constant dense<0.000000e+00> : vector<16x16xf32>
    %72 = tpu.matmul %68, %71, %cst_61 {dimension_numbers = #tpu.dot_dimension_numbers<[1], [0], [0], [1], [0, 0, 1, 1], [], []>} : vector<16x4xbf16>, vector<4x16xbf16>, vector<16x16xf32> -> vector<16x16xf32>
    %73 = arith.addf %63, %72 : vector<16x16xf32>
    %c1_i32_62 = arith.constant 1 : i32
    %74 = arith.addi %4, %c1_i32_62 : i32
    %c0_63 = arith.constant 0 : index
    %c0_64 = arith.constant 0 : index
    %c1_65 = arith.constant 1 : index
    %75 = arith.index_cast %74 : i32 to index
    %c0_66 = arith.constant 0 : index
    %c0_67 = arith.constant 0 : index
    %76 = vector.load %arg4[%c0_63, %c0_64, %c1_65, %75, %c0_66, %c0_67] : memref<1x1x4x5x5x4xbf16, #tpu.memory_space<vmem>>, vector<1x1x1x4x4x4xbf16>
    %77 = vector.shape_cast %76 : vector<1x1x1x4x4x4xbf16> to vector<4x4x4xbf16>
    %78 = vector.shape_cast %77 : vector<4x4x4xbf16> to vector<16x4xbf16>
    %79 = arith.index_cast %arg3 : i32 to index
    %c7 = arith.constant 7 : index
    %c0_68 = arith.constant 0 : index
    %c0_69 = arith.constant 0 : index
    %80 = vector.load %arg5[%79, %c7, %c0_68, %c0_69] : memref<3x9x4x16xbf16, #tpu.memory_space<vmem>>, vector<1x1x4x16xbf16>
    %81 = vector.shape_cast %80 : vector<1x1x4x16xbf16> to vector<4x16xbf16>
    %cst_70 = arith.constant dense<0.000000e+00> : vector<16x16xf32>
    %82 = tpu.matmul %78, %81, %cst_70 {dimension_numbers = #tpu.dot_dimension_numbers<[1], [0], [0], [1], [0, 0, 1, 1], [], []>} : vector<16x4xbf16>, vector<4x16xbf16>, vector<16x16xf32> -> vector<16x16xf32>
    %83 = arith.addf %73, %82 : vector<16x16xf32>
    %c1_i32_71 = arith.constant 1 : i32
    %84 = arith.addi %4, %c1_i32_71 : i32
    %c0_72 = arith.constant 0 : index
    %c0_73 = arith.constant 0 : index
    %c0_74 = arith.constant 0 : index
    %85 = arith.index_cast %84 : i32 to index
    %c1_75 = arith.constant 1 : index
    %c0_76 = arith.constant 0 : index
    %86 = vector.load %arg4[%c0_72, %c0_73, %c0_74, %85, %c1_75, %c0_76] : memref<1x1x4x5x5x4xbf16, #tpu.memory_space<vmem>>, vector<1x1x1x4x4x4xbf16>
    %87 = vector.shape_cast %86 : vector<1x1x1x4x4x4xbf16> to vector<4x4x4xbf16>
    %88 = vector.shape_cast %87 : vector<4x4x4xbf16> to vector<16x4xbf16>
    %89 = arith.index_cast %arg3 : i32 to index
    %c8 = arith.constant 8 : index
    %c0_77 = arith.constant 0 : index
    %c0_78 = arith.constant 0 : index
    %90 = vector.load %arg5[%89, %c8, %c0_77, %c0_78] : memref<3x9x4x16xbf16, #tpu.memory_space<vmem>>, vector<1x1x4x16xbf16>
    %91 = vector.shape_cast %90 : vector<1x1x4x16xbf16> to vector<4x16xbf16>
    %cst_79 = arith.constant dense<0.000000e+00> : vector<16x16xf32>
    %92 = tpu.matmul %88, %91, %cst_79 {dimension_numbers = #tpu.dot_dimension_numbers<[1], [0], [0], [1], [0, 0, 1, 1], [], []>} : vector<16x4xbf16>, vector<4x16xbf16>, vector<16x16xf32> -> vector<16x16xf32>
    %93 = arith.addf %83, %92 : vector<16x16xf32>
    %c0_80 = arith.constant 0 : index
    %c0_81 = arith.constant 0 : index
    %94 = vector.load %arg10[%c0_80, %c0_81] : memref<16x16xf32, #tpu.memory_space<vmem>>, vector<16x16xf32>
    %95 = arith.addf %94, %93 : vector<16x16xf32>
    %c0_82 = arith.constant 0 : index
    %c0_83 = arith.constant 0 : index
    %96 = vector.load %arg10[%c0_82, %c0_83] : memref<16x16xf32, #tpu.memory_space<vmem>>, vector<16x16xf32>
    tpu.vector_store %arg10[%c0_82, %c0_83], %95 {strides = array<i32>} : memref<16x16xf32, #tpu.memory_space<vmem>>, vector<16x16xf32>,
    %c2_i32 = arith.constant 2 : i32
    %97 = arith.cmpi eq, %arg3, %c2_i32 : i32
    %98 = arith.extui %97 : i1 to i32
    %c0_i32_84 = arith.constant 0 : i32
    %99 = arith.cmpi ne, %98, %c0_i32_84 : i32
    scf.if %99 {
      %c0_85 = arith.constant 0 : index
      %c0_86 = arith.constant 0 : index
      %100 = vector.load %arg10[%c0_85, %c0_86] : memref<16x16xf32, #tpu.memory_space<vmem>>, vector<16x16xf32>
      %c0_87 = arith.constant 0 : index
      %c0_88 = arith.constant 0 : index
      %101 = vector.load %arg6[%c0_87, %c0_88] : memref<1x16xf32, #tpu.memory_space<vmem>>, vector<1x16xf32>
      %102 = vector.broadcast %101 : vector<1x16xf32> to vector<16x16xf32>
      %103 = arith.addf %100, %102 : vector<16x16xf32>
      %104 = arith.truncf %103 : vector<16x16xf32> to vector<16x16xbf16>
      %c0_89 = arith.constant 0 : index
      %c0_90 = arith.constant 0 : index
      %c0_91 = arith.constant 0 : index
      %c0_92 = arith.constant 0 : index
      %105 = vector.load %arg7[%c0_89, %c0_90, %c0_91, %c0_92] : memref<1x1x16x16xbf16, #tpu.memory_space<vmem>>, vector<1x1x16x16xbf16>
      %106 = vector.shape_cast %105 : vector<1x1x16x16xbf16> to vector<16x16xbf16>
      %107 = vector.shape_cast %104 : vector<16x16xbf16> to vector<1x1x16x16xbf16>
      tpu.vector_store %arg7[%c0_89, %c0_90, %c0_91, %c0_92], %107 {strides = array<i32>} : memref<1x1x16x16xbf16, #tpu.memory_space<vmem>>, vector<1x1x16x16xbf16>,
      %c0_93 = arith.constant 0 : index
      %c0_94 = arith.constant 0 : index
      %c0_95 = arith.constant 0 : index
      %108 = vector.load %arg8[%c0_93, %c0_94, %c0_95] : memref<1x1x16xf32, #tpu.memory_space<vmem>>, vector<1x1x16xf32>
      %109 = vector.shape_cast %108 : vector<1x1x16xf32> to vector<1x16xf32>
      %cst_96 = arith.constant dense<0.000000e+00> : vector<16xf32>
      %110 = vector.multi_reduction <add>, %103, %cst_96 [0] : vector<16x16xf32> to vector<16xf32>
      %111 = vector.shape_cast %110 : vector<16xf32> to vector<1x16xf32>
      %112 = arith.addf %109, %111 : vector<1x16xf32>
      %c0_97 = arith.constant 0 : index
      %c0_98 = arith.constant 0 : index
      %c0_99 = arith.constant 0 : index
      %113 = vector.load %arg8[%c0_97, %c0_98, %c0_99] : memref<1x1x16xf32, #tpu.memory_space<vmem>>, vector<1x1x16xf32>
      %114 = vector.shape_cast %113 : vector<1x1x16xf32> to vector<1x16xf32>
      %115 = vector.shape_cast %112 : vector<1x16xf32> to vector<1x1x16xf32>
      tpu.vector_store %arg8[%c0_97, %c0_98, %c0_99], %115 {strides = array<i32>} : memref<1x1x16xf32, #tpu.memory_space<vmem>>, vector<1x1x16xf32>,
      %c0_100 = arith.constant 0 : index
      %c0_101 = arith.constant 0 : index
      %c0_102 = arith.constant 0 : index
      %116 = vector.load %arg9[%c0_100, %c0_101, %c0_102] : memref<1x1x16xf32, #tpu.memory_space<vmem>>, vector<1x1x16xf32>
      %117 = vector.shape_cast %116 : vector<1x1x16xf32> to vector<1x16xf32>
      %118 = arith.mulf %103, %103 : vector<16x16xf32>
      %cst_103 = arith.constant dense<0.000000e+00> : vector<16xf32>
      %119 = vector.multi_reduction <add>, %118, %cst_103 [0] : vector<16x16xf32> to vector<16xf32>
      %120 = vector.shape_cast %119 : vector<16xf32> to vector<1x16xf32>
      %121 = arith.addf %117, %120 : vector<1x16xf32>
      %c0_104 = arith.constant 0 : index
      %c0_105 = arith.constant 0 : index
      %c0_106 = arith.constant 0 : index
      %122 = vector.load %arg9[%c0_104, %c0_105, %c0_106] : memref<1x1x16xf32, #tpu.memory_space<vmem>>, vector<1x1x16xf32>
      %123 = vector.shape_cast %122 : vector<1x1x16xf32> to vector<1x16xf32>
      %124 = vector.shape_cast %121 : vector<1x16xf32> to vector<1x1x16xf32>
      tpu.vector_store %arg9[%c0_104, %c0_105, %c0_106], %124 {strides = array<i32>} : memref<1x1x16xf32, #tpu.memory_space<vmem>>, vector<1x1x16xf32>,
    } else {
    }
    return
  }
  func.func @transform_0(%arg0: i32, %arg1: i32, %arg2: i32, %arg3: i32) -> (i32, i32, i32, i32, i32, i32) {
    %c2_i32 = arith.constant 2 : i32
    %0 = arith.muli %arg1, %c2_i32 : i32
    %1 = arith.addi %0, %arg3 : i32
    %c0_i32 = arith.constant 0 : i32
    %c0_i32_0 = arith.constant 0 : i32
    %c0_i32_1 = arith.constant 0 : i32
    %c0_i32_2 = arith.constant 0 : i32
    %c0_i32_3 = arith.constant 0 : i32
    return %arg0, %1, %c0_i32, %c0_i32_0, %c0_i32_1, %c0_i32_2 : i32, i32, i32, i32, i32, i32
  }
  func.func @transform_1(%arg0: i32, %arg1: i32, %arg2: i32, %arg3: i32) -> (i32, i32, i32, i32) {
    %c0_i32 = arith.constant 0 : i32
    %c0_i32_0 = arith.constant 0 : i32
    %c0_i32_1 = arith.constant 0 : i32
    %c0_i32_2 = arith.constant 0 : i32
    %c0_i32_3 = arith.constant 0 : i32
    return %c0_i32, %c0_i32_0, %c0_i32_1, %c0_i32_2 : i32, i32, i32, i32
  }
  func.func @transform_2(%arg0: i32, %arg1: i32, %arg2: i32, %arg3: i32) -> (i32, i32) {
    %c0_i32 = arith.constant 0 : i32
    %c0_i32_0 = arith.constant 0 : i32
    %c0_i32_1 = arith.constant 0 : i32
    return %c0_i32, %c0_i32_0 : i32, i32
  }
  func.func @transform_3(%arg0: i32, %arg1: i32, %arg2: i32, %arg3: i32) -> (i32, i32, i32, i32) {
    %c0_i32 = arith.constant 0 : i32
    %c0_i32_0 = arith.constant 0 : i32
    return %arg0, %arg1, %arg2, %c0_i32 : i32, i32, i32, i32
  }
  func.func @transform_4(%arg0: i32, %arg1: i32, %arg2: i32, %arg3: i32) -> (i32, i32, i32) {
    %c0_i32 = arith.constant 0 : i32
    %c0_i32_0 = arith.constant 0 : i32
    %c0_i32_1 = arith.constant 0 : i32
    return %arg0, %c0_i32, %c0_i32_0 : i32, i32, i32
  }
  func.func @transform_5(%arg0: i32, %arg1: i32, %arg2: i32, %arg3: i32) -> (i32, i32, i32) {
    %c0_i32 = arith.constant 0 : i32
    %c0_i32_0 = arith.constant 0 : i32
    %c0_i32_1 = arith.constant 0 : i32
    return %arg0, %c0_i32, %c0_i32_0 : i32, i32, i32
  }
}

module attributes {stable_mosaic.version = 11 : i64} {
  func.func @_gn_apply_silu_kernel(%arg0: i32, %arg1: i32, %arg2: memref<1x48x16xbf16, #tpu.memory_space<vmem>>, %arg3: memref<1x1x16xf32, #tpu.memory_space<vmem>>, %arg4: memref<1x1x16xf32, #tpu.memory_space<vmem>>, %arg5: memref<1x48x16xbf16, #tpu.memory_space<vmem>>) attributes {dimension_semantics = [#tpu.dimension_semantics<parallel>, #tpu.dimension_semantics<parallel>], iteration_bounds = array<i64: 2, 1>, scalar_prefetch = 0 : i64, scratch_operands = 0 : i64, tpu.core_type = #tpu.core_type<tc>, window_params = [{transform_indices = @transform_0, window_bounds = array<i64: 1, 48, 16>}, {transform_indices = @transform_1, window_bounds = array<i64: 1, 1, 16>}, {transform_indices = @transform_2, window_bounds = array<i64: 1, 1, 16>}, {transform_indices = @transform_3, window_bounds = array<i64: 1, 48, 16>}]} {
    %c0 = arith.constant 0 : index
    %c0_0 = arith.constant 0 : index
    %c0_1 = arith.constant 0 : index
    %0 = vector.load %arg2[%c0, %c0_0, %c0_1] : memref<1x48x16xbf16, #tpu.memory_space<vmem>>, vector<1x48x16xbf16>
    %1 = arith.extf %0 : vector<1x48x16xbf16> to vector<1x48x16xf32>
    %c0_2 = arith.constant 0 : index
    %c0_3 = arith.constant 0 : index
    %c0_4 = arith.constant 0 : index
    %2 = vector.load %arg3[%c0_2, %c0_3, %c0_4] : memref<1x1x16xf32, #tpu.memory_space<vmem>>, vector<1x1x16xf32>
    %3 = vector.broadcast %2 : vector<1x1x16xf32> to vector<1x48x16xf32>
    %4 = arith.mulf %1, %3 : vector<1x48x16xf32>
    %c0_5 = arith.constant 0 : index
    %c0_6 = arith.constant 0 : index
    %c0_7 = arith.constant 0 : index
    %5 = vector.load %arg4[%c0_5, %c0_6, %c0_7] : memref<1x1x16xf32, #tpu.memory_space<vmem>>, vector<1x1x16xf32>
    %6 = vector.broadcast %5 : vector<1x1x16xf32> to vector<1x48x16xf32>
    %7 = arith.addf %4, %6 : vector<1x48x16xf32>
    %8 = arith.negf %7 : vector<1x48x16xf32>
    %9 = math.exp %8 : vector<1x48x16xf32>
    %cst = arith.constant 1.000000e+00 : f32
    %10 = vector.broadcast %cst : f32 to vector<1x48x16xf32>
    %11 = arith.addf %10, %9 : vector<1x48x16xf32>
    %12 = arith.divf %10, %11 : vector<1x48x16xf32>
    %13 = arith.mulf %7, %12 : vector<1x48x16xf32>
    %14 = arith.truncf %13 : vector<1x48x16xf32> to vector<1x48x16xbf16>
    %c0_8 = arith.constant 0 : index
    %c0_9 = arith.constant 0 : index
    %c0_10 = arith.constant 0 : index
    %15 = vector.load %arg5[%c0_8, %c0_9, %c0_10] : memref<1x48x16xbf16, #tpu.memory_space<vmem>>, vector<1x48x16xbf16>
    tpu.vector_store %arg5[%c0_8, %c0_9, %c0_10], %14 {strides = array<i32>} : memref<1x48x16xbf16, #tpu.memory_space<vmem>>, vector<1x48x16xbf16>,
    return
  }
  func.func @transform_0(%arg0: i32, %arg1: i32) -> (i32, i32, i32) {
    %c0_i32 = arith.constant 0 : i32
    %c0_i32_0 = arith.constant 0 : i32
    return %arg0, %arg1, %c0_i32 : i32, i32, i32
  }
  func.func @transform_1(%arg0: i32, %arg1: i32) -> (i32, i32, i32) {
    %c0_i32 = arith.constant 0 : i32
    %c0_i32_0 = arith.constant 0 : i32
    %c0_i32_1 = arith.constant 0 : i32
    return %arg0, %c0_i32, %c0_i32_0 : i32, i32, i32
  }
  func.func @transform_2(%arg0: i32, %arg1: i32) -> (i32, i32, i32) {
    %c0_i32 = arith.constant 0 : i32
    %c0_i32_0 = arith.constant 0 : i32
    %c0_i32_1 = arith.constant 0 : i32
    return %arg0, %c0_i32, %c0_i32_0 : i32, i32, i32
  }
  func.func @transform_3(%arg0: i32, %arg1: i32) -> (i32, i32, i32) {
    %c0_i32 = arith.constant 0 : i32
    %c0_i32_0 = arith.constant 0 : i32
    return %arg0, %arg1, %c0_i32 : i32, i32, i32
  }
}

module attributes {stable_mosaic.version = 11 : i64} {
  func.func @_causal_conv_kernel(%arg0: i32, %arg1: i32, %arg2: i32, %arg3: i32, %arg4: memref<1x1x1x6x6x16xbf16, #tpu.memory_space<vmem>>, %arg5: memref<3x9x16x16xbf16, #tpu.memory_space<vmem>>, %arg6: memref<1x16xf32, #tpu.memory_space<vmem>>, %arg7: memref<1x1x16x16xbf16, #tpu.memory_space<vmem>>, %arg8: memref<1x1x16x16xbf16, #tpu.memory_space<vmem>>, %arg9: memref<1x1x16xf32, #tpu.memory_space<vmem>>, %arg10: memref<1x1x16xf32, #tpu.memory_space<vmem>>, %arg11: memref<16x16xf32, #tpu.memory_space<vmem>>) attributes {dimension_semantics = [#tpu.dimension_semantics<parallel>, #tpu.dimension_semantics<arbitrary>, #tpu.dimension_semantics<arbitrary>, #tpu.dimension_semantics<arbitrary>], iteration_bounds = array<i64: 2, 3, 1, 3>, scalar_prefetch = 0 : i64, scratch_operands = 1 : i64, tpu.core_type = #tpu.core_type<tc>, window_params = [{transform_indices = @transform_0, window_bounds = array<i64: 1, 1, 1, 6, 6, 16>}, {pipeline_mode = #tpu.pipeline_mode<synchronous>, transform_indices = @transform_1, window_bounds = array<i64: 3, 9, 16, 16>}, {pipeline_mode = #tpu.pipeline_mode<synchronous>, transform_indices = @transform_2, window_bounds = array<i64: 1, 16>}, {transform_indices = @transform_3, window_bounds = array<i64: 1, 1, 16, 16>}, {transform_indices = @transform_4, window_bounds = array<i64: 1, 1, 16, 16>}, {transform_indices = @transform_5, window_bounds = array<i64: 1, 1, 16>}, {transform_indices = @transform_6, window_bounds = array<i64: 1, 1, 16>}]} {
    %c0_i32 = arith.constant 0 : i32
    %0 = arith.cmpi eq, %arg3, %c0_i32 : i32
    %1 = arith.extui %0 : i1 to i32
    %c0_i32_0 = arith.constant 0 : i32
    %2 = arith.cmpi ne, %1, %c0_i32_0 : i32
    scf.if %2 {
      %cst_85 = arith.constant 0.000000e+00 : f32
      %100 = vector.broadcast %cst_85 : f32 to vector<16x16xf32>
      %c0_86 = arith.constant 0 : index
      %c0_87 = arith.constant 0 : index
      %101 = vector.load %arg11[%c0_86, %c0_87] : memref<16x16xf32, #tpu.memory_space<vmem>>, vector<16x16xf32>
      tpu.vector_store %arg11[%c0_86, %c0_87], %100 {strides = array<i32>} : memref<16x16xf32, #tpu.memory_space<vmem>>, vector<16x16xf32>,
      %c0_i32_88 = arith.constant 0 : i32
      %102 = arith.cmpi eq, %arg1, %c0_i32_88 : i32
      %c0_i32_89 = arith.constant 0 : i32
      %103 = arith.cmpi eq, %arg2, %c0_i32_89 : i32
      %104 = arith.andi %102, %103 : i1
      %105 = arith.extui %104 : i1 to i32
      %c0_i32_90 = arith.constant 0 : i32
      %106 = arith.cmpi ne, %105, %c0_i32_90 : i32
      scf.if %106 {
        %cst_91 = arith.constant 0.000000e+00 : f32
        %107 = vector.broadcast %cst_91 : f32 to vector<1x1x16xf32>
        %c0_92 = arith.constant 0 : index
        %c0_93 = arith.constant 0 : index
        %c0_94 = arith.constant 0 : index
        %108 = vector.load %arg9[%c0_92, %c0_93, %c0_94] : memref<1x1x16xf32, #tpu.memory_space<vmem>>, vector<1x1x16xf32>
        tpu.vector_store %arg9[%c0_92, %c0_93, %c0_94], %107 {strides = array<i32>} : memref<1x1x16xf32, #tpu.memory_space<vmem>>, vector<1x1x16xf32>,
        %cst_95 = arith.constant 0.000000e+00 : f32
        %109 = vector.broadcast %cst_95 : f32 to vector<1x1x16xf32>
        %c0_96 = arith.constant 0 : index
        %c0_97 = arith.constant 0 : index
        %c0_98 = arith.constant 0 : index
        %110 = vector.load %arg10[%c0_96, %c0_97, %c0_98] : memref<1x1x16xf32, #tpu.memory_space<vmem>>, vector<1x1x16xf32>
        tpu.vector_store %arg10[%c0_96, %c0_97, %c0_98], %109 {strides = array<i32>} : memref<1x1x16xf32, #tpu.memory_space<vmem>>, vector<1x1x16xf32>,
      } else {
      }
    } else {
    }
    %c4_i32 = arith.constant 4 : i32
    %3 = arith.muli %arg2, %c4_i32 : i32
    %4 = tpu.assume_multiple %3, 4 : i32
    %c0_i32_1 = arith.constant 0 : i32
    %5 = arith.addi %4, %c0_i32_1 : i32
    %c0 = arith.constant 0 : index
    %c0_2 = arith.constant 0 : index
    %c0_3 = arith.constant 0 : index
    %6 = arith.index_cast %5 : i32 to index
    %c0_4 = arith.constant 0 : index
    %c0_5 = arith.constant 0 : index
    %7 = vector.load %arg4[%c0, %c0_2, %c0_3, %6, %c0_4, %c0_5] : memref<1x1x1x6x6x16xbf16, #tpu.memory_space<vmem>>, vector<1x1x1x4x4x16xbf16>
    %8 = vector.shape_cast %7 : vector<1x1x1x4x4x16xbf16> to vector<4x4x16xbf16>
    %9 = vector.shape_cast %8 : vector<4x4x16xbf16> to vector<16x16xbf16>
    %10 = arith.index_cast %arg3 : i32 to index
    %c0_6 = arith.constant 0 : index
    %c0_7 = arith.constant 0 : index
    %c0_8 = arith.constant 0 : index
    %11 = vector.load %arg5[%10, %c0_6, %c0_7, %c0_8] : memref<3x9x16x16xbf16, #tpu.memory_space<vmem>>, vector<1x1x16x16xbf16>
    %12 = vector.shape_cast %11 : vector<1x1x16x16xbf16> to vector<16x16xbf16>
    %cst = arith.constant dense<0.000000e+00> : vector<16x16xf32>
    %13 = tpu.matmul %9, %12, %cst {dimension_numbers = #tpu.dot_dimension_numbers<[1], [0], [0], [1], [0, 0, 1, 1], [], []>} : vector<16x16xbf16>, vector<16x16xbf16>, vector<16x16xf32> -> vector<16x16xf32>
    %c0_i32_9 = arith.constant 0 : i32
    %14 = arith.addi %4, %c0_i32_9 : i32
    %c0_10 = arith.constant 0 : index
    %c0_11 = arith.constant 0 : index
    %c0_12 = arith.constant 0 : index
    %15 = arith.index_cast %14 : i32 to index
    %c1 = arith.constant 1 : index
    %c0_13 = arith.constant 0 : index
    %16 = vector.load %arg4[%c0_10, %c0_11, %c0_12, %15, %c1, %c0_13] : memref<1x1x1x6x6x16xbf16, #tpu.memory_space<vmem>>, vector<1x1x1x4x4x16xbf16>
    %17 = vector.shape_cast %16 : vector<1x1x1x4x4x16xbf16> to vector<4x4x16xbf16>
    %18 = vector.shape_cast %17 : vector<4x4x16xbf16> to vector<16x16xbf16>
    %19 = arith.index_cast %arg3 : i32 to index
    %c1_14 = arith.constant 1 : index
    %c0_15 = arith.constant 0 : index
    %c0_16 = arith.constant 0 : index
    %20 = vector.load %arg5[%19, %c1_14, %c0_15, %c0_16] : memref<3x9x16x16xbf16, #tpu.memory_space<vmem>>, vector<1x1x16x16xbf16>
    %21 = vector.shape_cast %20 : vector<1x1x16x16xbf16> to vector<16x16xbf16>
    %cst_17 = arith.constant dense<0.000000e+00> : vector<16x16xf32>
    %22 = tpu.matmul %18, %21, %cst_17 {dimension_numbers = #tpu.dot_dimension_numbers<[1], [0], [0], [1], [0, 0, 1, 1], [], []>} : vector<16x16xbf16>, vector<16x16xbf16>, vector<16x16xf32> -> vector<16x16xf32>
    %23 = arith.addf %13, %22 : vector<16x16xf32>
    %c0_i32_18 = arith.constant 0 : i32
    %24 = arith.addi %4, %c0_i32_18 : i32
    %c0_19 = arith.constant 0 : index
    %c0_20 = arith.constant 0 : index
    %c0_21 = arith.constant 0 : index
    %25 = arith.index_cast %24 : i32 to index
    %c2 = arith.constant 2 : index
    %c0_22 = arith.constant 0 : index
    %26 = vector.load %arg4[%c0_19, %c0_20, %c0_21, %25, %c2, %c0_22] : memref<1x1x1x6x6x16xbf16, #tpu.memory_space<vmem>>, vector<1x1x1x4x4x16xbf16>
    %27 = vector.shape_cast %26 : vector<1x1x1x4x4x16xbf16> to vector<4x4x16xbf16>
    %28 = vector.shape_cast %27 : vector<4x4x16xbf16> to vector<16x16xbf16>
    %29 = arith.index_cast %arg3 : i32 to index
    %c2_23 = arith.constant 2 : index
    %c0_24 = arith.constant 0 : index
    %c0_25 = arith.constant 0 : index
    %30 = vector.load %arg5[%29, %c2_23, %c0_24, %c0_25] : memref<3x9x16x16xbf16, #tpu.memory_space<vmem>>, vector<1x1x16x16xbf16>
    %31 = vector.shape_cast %30 : vector<1x1x16x16xbf16> to vector<16x16xbf16>
    %cst_26 = arith.constant dense<0.000000e+00> : vector<16x16xf32>
    %32 = tpu.matmul %28, %31, %cst_26 {dimension_numbers = #tpu.dot_dimension_numbers<[1], [0], [0], [1], [0, 0, 1, 1], [], []>} : vector<16x16xbf16>, vector<16x16xbf16>, vector<16x16xf32> -> vector<16x16xf32>
    %33 = arith.addf %23, %32 : vector<16x16xf32>
    %c1_i32 = arith.constant 1 : i32
    %34 = arith.addi %4, %c1_i32 : i32
    %c0_27 = arith.constant 0 : index
    %c0_28 = arith.constant 0 : index
    %c0_29 = arith.constant 0 : index
    %35 = arith.index_cast %34 : i32 to index
    %c0_30 = arith.constant 0 : index
    %c0_31 = arith.constant 0 : index
    %36 = vector.load %arg4[%c0_27, %c0_28, %c0_29, %35, %c0_30, %c0_31] : memref<1x1x1x6x6x16xbf16, #tpu.memory_space<vmem>>, vector<1x1x1x4x4x16xbf16>
    %37 = vector.shape_cast %36 : vector<1x1x1x4x4x16xbf16> to vector<4x4x16xbf16>
    %38 = vector.shape_cast %37 : vector<4x4x16xbf16> to vector<16x16xbf16>
    %39 = arith.index_cast %arg3 : i32 to index
    %c3 = arith.constant 3 : index
    %c0_32 = arith.constant 0 : index
    %c0_33 = arith.constant 0 : index
    %40 = vector.load %arg5[%39, %c3, %c0_32, %c0_33] : memref<3x9x16x16xbf16, #tpu.memory_space<vmem>>, vector<1x1x16x16xbf16>
    %41 = vector.shape_cast %40 : vector<1x1x16x16xbf16> to vector<16x16xbf16>
    %cst_34 = arith.constant dense<0.000000e+00> : vector<16x16xf32>
    %42 = tpu.matmul %38, %41, %cst_34 {dimension_numbers = #tpu.dot_dimension_numbers<[1], [0], [0], [1], [0, 0, 1, 1], [], []>} : vector<16x16xbf16>, vector<16x16xbf16>, vector<16x16xf32> -> vector<16x16xf32>
    %43 = arith.addf %33, %42 : vector<16x16xf32>
    %c1_i32_35 = arith.constant 1 : i32
    %44 = arith.addi %4, %c1_i32_35 : i32
    %c0_36 = arith.constant 0 : index
    %c0_37 = arith.constant 0 : index
    %c0_38 = arith.constant 0 : index
    %45 = arith.index_cast %44 : i32 to index
    %c1_39 = arith.constant 1 : index
    %c0_40 = arith.constant 0 : index
    %46 = vector.load %arg4[%c0_36, %c0_37, %c0_38, %45, %c1_39, %c0_40] : memref<1x1x1x6x6x16xbf16, #tpu.memory_space<vmem>>, vector<1x1x1x4x4x16xbf16>
    %47 = vector.shape_cast %46 : vector<1x1x1x4x4x16xbf16> to vector<4x4x16xbf16>
    %48 = vector.shape_cast %47 : vector<4x4x16xbf16> to vector<16x16xbf16>
    %49 = arith.index_cast %arg3 : i32 to index
    %c4 = arith.constant 4 : index
    %c0_41 = arith.constant 0 : index
    %c0_42 = arith.constant 0 : index
    %50 = vector.load %arg5[%49, %c4, %c0_41, %c0_42] : memref<3x9x16x16xbf16, #tpu.memory_space<vmem>>, vector<1x1x16x16xbf16>
    %51 = vector.shape_cast %50 : vector<1x1x16x16xbf16> to vector<16x16xbf16>
    %cst_43 = arith.constant dense<0.000000e+00> : vector<16x16xf32>
    %52 = tpu.matmul %48, %51, %cst_43 {dimension_numbers = #tpu.dot_dimension_numbers<[1], [0], [0], [1], [0, 0, 1, 1], [], []>} : vector<16x16xbf16>, vector<16x16xbf16>, vector<16x16xf32> -> vector<16x16xf32>
    %53 = arith.addf %43, %52 : vector<16x16xf32>
    %c1_i32_44 = arith.constant 1 : i32
    %54 = arith.addi %4, %c1_i32_44 : i32
    %c0_45 = arith.constant 0 : index
    %c0_46 = arith.constant 0 : index
    %c0_47 = arith.constant 0 : index
    %55 = arith.index_cast %54 : i32 to index
    %c2_48 = arith.constant 2 : index
    %c0_49 = arith.constant 0 : index
    %56 = vector.load %arg4[%c0_45, %c0_46, %c0_47, %55, %c2_48, %c0_49] : memref<1x1x1x6x6x16xbf16, #tpu.memory_space<vmem>>, vector<1x1x1x4x4x16xbf16>
    %57 = vector.shape_cast %56 : vector<1x1x1x4x4x16xbf16> to vector<4x4x16xbf16>
    %58 = vector.shape_cast %57 : vector<4x4x16xbf16> to vector<16x16xbf16>
    %59 = arith.index_cast %arg3 : i32 to index
    %c5 = arith.constant 5 : index
    %c0_50 = arith.constant 0 : index
    %c0_51 = arith.constant 0 : index
    %60 = vector.load %arg5[%59, %c5, %c0_50, %c0_51] : memref<3x9x16x16xbf16, #tpu.memory_space<vmem>>, vector<1x1x16x16xbf16>
    %61 = vector.shape_cast %60 : vector<1x1x16x16xbf16> to vector<16x16xbf16>
    %cst_52 = arith.constant dense<0.000000e+00> : vector<16x16xf32>
    %62 = tpu.matmul %58, %61, %cst_52 {dimension_numbers = #tpu.dot_dimension_numbers<[1], [0], [0], [1], [0, 0, 1, 1], [], []>} : vector<16x16xbf16>, vector<16x16xbf16>, vector<16x16xf32> -> vector<16x16xf32>
    %63 = arith.addf %53, %62 : vector<16x16xf32>
    %c2_i32 = arith.constant 2 : i32
    %64 = arith.addi %4, %c2_i32 : i32
    %c0_53 = arith.constant 0 : index
    %c0_54 = arith.constant 0 : index
    %c0_55 = arith.constant 0 : index
    %65 = arith.index_cast %64 : i32 to index
    %c0_56 = arith.constant 0 : index
    %c0_57 = arith.constant 0 : index
    %66 = vector.load %arg4[%c0_53, %c0_54, %c0_55, %65, %c0_56, %c0_57] : memref<1x1x1x6x6x16xbf16, #tpu.memory_space<vmem>>, vector<1x1x1x4x4x16xbf16>
    %67 = vector.shape_cast %66 : vector<1x1x1x4x4x16xbf16> to vector<4x4x16xbf16>
    %68 = vector.shape_cast %67 : vector<4x4x16xbf16> to vector<16x16xbf16>
    %69 = arith.index_cast %arg3 : i32 to index
    %c6 = arith.constant 6 : index
    %c0_58 = arith.constant 0 : index
    %c0_59 = arith.constant 0 : index
    %70 = vector.load %arg5[%69, %c6, %c0_58, %c0_59] : memref<3x9x16x16xbf16, #tpu.memory_space<vmem>>, vector<1x1x16x16xbf16>
    %71 = vector.shape_cast %70 : vector<1x1x16x16xbf16> to vector<16x16xbf16>
    %cst_60 = arith.constant dense<0.000000e+00> : vector<16x16xf32>
    %72 = tpu.matmul %68, %71, %cst_60 {dimension_numbers = #tpu.dot_dimension_numbers<[1], [0], [0], [1], [0, 0, 1, 1], [], []>} : vector<16x16xbf16>, vector<16x16xbf16>, vector<16x16xf32> -> vector<16x16xf32>
    %73 = arith.addf %63, %72 : vector<16x16xf32>
    %c2_i32_61 = arith.constant 2 : i32
    %74 = arith.addi %4, %c2_i32_61 : i32
    %c0_62 = arith.constant 0 : index
    %c0_63 = arith.constant 0 : index
    %c0_64 = arith.constant 0 : index
    %75 = arith.index_cast %74 : i32 to index
    %c1_65 = arith.constant 1 : index
    %c0_66 = arith.constant 0 : index
    %76 = vector.load %arg4[%c0_62, %c0_63, %c0_64, %75, %c1_65, %c0_66] : memref<1x1x1x6x6x16xbf16, #tpu.memory_space<vmem>>, vector<1x1x1x4x4x16xbf16>
    %77 = vector.shape_cast %76 : vector<1x1x1x4x4x16xbf16> to vector<4x4x16xbf16>
    %78 = vector.shape_cast %77 : vector<4x4x16xbf16> to vector<16x16xbf16>
    %79 = arith.index_cast %arg3 : i32 to index
    %c7 = arith.constant 7 : index
    %c0_67 = arith.constant 0 : index
    %c0_68 = arith.constant 0 : index
    %80 = vector.load %arg5[%79, %c7, %c0_67, %c0_68] : memref<3x9x16x16xbf16, #tpu.memory_space<vmem>>, vector<1x1x16x16xbf16>
    %81 = vector.shape_cast %80 : vector<1x1x16x16xbf16> to vector<16x16xbf16>
    %cst_69 = arith.constant dense<0.000000e+00> : vector<16x16xf32>
    %82 = tpu.matmul %78, %81, %cst_69 {dimension_numbers = #tpu.dot_dimension_numbers<[1], [0], [0], [1], [0, 0, 1, 1], [], []>} : vector<16x16xbf16>, vector<16x16xbf16>, vector<16x16xf32> -> vector<16x16xf32>
    %83 = arith.addf %73, %82 : vector<16x16xf32>
    %c2_i32_70 = arith.constant 2 : i32
    %84 = arith.addi %4, %c2_i32_70 : i32
    %c0_71 = arith.constant 0 : index
    %c0_72 = arith.constant 0 : index
    %c0_73 = arith.constant 0 : index
    %85 = arith.index_cast %84 : i32 to index
    %c2_74 = arith.constant 2 : index
    %c0_75 = arith.constant 0 : index
    %86 = vector.load %arg4[%c0_71, %c0_72, %c0_73, %85, %c2_74, %c0_75] : memref<1x1x1x6x6x16xbf16, #tpu.memory_space<vmem>>, vector<1x1x1x4x4x16xbf16>
    %87 = vector.shape_cast %86 : vector<1x1x1x4x4x16xbf16> to vector<4x4x16xbf16>
    %88 = vector.shape_cast %87 : vector<4x4x16xbf16> to vector<16x16xbf16>
    %89 = arith.index_cast %arg3 : i32 to index
    %c8 = arith.constant 8 : index
    %c0_76 = arith.constant 0 : index
    %c0_77 = arith.constant 0 : index
    %90 = vector.load %arg5[%89, %c8, %c0_76, %c0_77] : memref<3x9x16x16xbf16, #tpu.memory_space<vmem>>, vector<1x1x16x16xbf16>
    %91 = vector.shape_cast %90 : vector<1x1x16x16xbf16> to vector<16x16xbf16>
    %cst_78 = arith.constant dense<0.000000e+00> : vector<16x16xf32>
    %92 = tpu.matmul %88, %91, %cst_78 {dimension_numbers = #tpu.dot_dimension_numbers<[1], [0], [0], [1], [0, 0, 1, 1], [], []>} : vector<16x16xbf16>, vector<16x16xbf16>, vector<16x16xf32> -> vector<16x16xf32>
    %93 = arith.addf %83, %92 : vector<16x16xf32>
    %c0_79 = arith.constant 0 : index
    %c0_80 = arith.constant 0 : index
    %94 = vector.load %arg11[%c0_79, %c0_80] : memref<16x16xf32, #tpu.memory_space<vmem>>, vector<16x16xf32>
    %95 = arith.addf %94, %93 : vector<16x16xf32>
    %c0_81 = arith.constant 0 : index
    %c0_82 = arith.constant 0 : index
    %96 = vector.load %arg11[%c0_81, %c0_82] : memref<16x16xf32, #tpu.memory_space<vmem>>, vector<16x16xf32>
    tpu.vector_store %arg11[%c0_81, %c0_82], %95 {strides = array<i32>} : memref<16x16xf32, #tpu.memory_space<vmem>>, vector<16x16xf32>,
    %c2_i32_83 = arith.constant 2 : i32
    %97 = arith.cmpi eq, %arg3, %c2_i32_83 : i32
    %98 = arith.extui %97 : i1 to i32
    %c0_i32_84 = arith.constant 0 : i32
    %99 = arith.cmpi ne, %98, %c0_i32_84 : i32
    scf.if %99 {
      %c0_85 = arith.constant 0 : index
      %c0_86 = arith.constant 0 : index
      %100 = vector.load %arg11[%c0_85, %c0_86] : memref<16x16xf32, #tpu.memory_space<vmem>>, vector<16x16xf32>
      %c0_87 = arith.constant 0 : index
      %c0_88 = arith.constant 0 : index
      %101 = vector.load %arg6[%c0_87, %c0_88] : memref<1x16xf32, #tpu.memory_space<vmem>>, vector<1x16xf32>
      %102 = vector.broadcast %101 : vector<1x16xf32> to vector<16x16xf32>
      %103 = arith.addf %100, %102 : vector<16x16xf32>
      %c0_89 = arith.constant 0 : index
      %c0_90 = arith.constant 0 : index
      %c0_91 = arith.constant 0 : index
      %c0_92 = arith.constant 0 : index
      %104 = vector.load %arg7[%c0_89, %c0_90, %c0_91, %c0_92] : memref<1x1x16x16xbf16, #tpu.memory_space<vmem>>, vector<1x1x16x16xbf16>
      %105 = vector.shape_cast %104 : vector<1x1x16x16xbf16> to vector<16x16xbf16>
      %106 = arith.extf %105 : vector<16x16xbf16> to vector<16x16xf32>
      %107 = arith.addf %103, %106 : vector<16x16xf32>
      %108 = arith.truncf %107 : vector<16x16xf32> to vector<16x16xbf16>
      %c0_93 = arith.constant 0 : index
      %c0_94 = arith.constant 0 : index
      %c0_95 = arith.constant 0 : index
      %c0_96 = arith.constant 0 : index
      %109 = vector.load %arg8[%c0_93, %c0_94, %c0_95, %c0_96] : memref<1x1x16x16xbf16, #tpu.memory_space<vmem>>, vector<1x1x16x16xbf16>
      %110 = vector.shape_cast %109 : vector<1x1x16x16xbf16> to vector<16x16xbf16>
      %111 = vector.shape_cast %108 : vector<16x16xbf16> to vector<1x1x16x16xbf16>
      tpu.vector_store %arg8[%c0_93, %c0_94, %c0_95, %c0_96], %111 {strides = array<i32>} : memref<1x1x16x16xbf16, #tpu.memory_space<vmem>>, vector<1x1x16x16xbf16>,
      %c0_97 = arith.constant 0 : index
      %c0_98 = arith.constant 0 : index
      %c0_99 = arith.constant 0 : index
      %112 = vector.load %arg9[%c0_97, %c0_98, %c0_99] : memref<1x1x16xf32, #tpu.memory_space<vmem>>, vector<1x1x16xf32>
      %113 = vector.shape_cast %112 : vector<1x1x16xf32> to vector<1x16xf32>
      %cst_100 = arith.constant dense<0.000000e+00> : vector<16xf32>
      %114 = vector.multi_reduction <add>, %107, %cst_100 [0] : vector<16x16xf32> to vector<16xf32>
      %115 = vector.shape_cast %114 : vector<16xf32> to vector<1x16xf32>
      %116 = arith.addf %113, %115 : vector<1x16xf32>
      %c0_101 = arith.constant 0 : index
      %c0_102 = arith.constant 0 : index
      %c0_103 = arith.constant 0 : index
      %117 = vector.load %arg9[%c0_101, %c0_102, %c0_103] : memref<1x1x16xf32, #tpu.memory_space<vmem>>, vector<1x1x16xf32>
      %118 = vector.shape_cast %117 : vector<1x1x16xf32> to vector<1x16xf32>
      %119 = vector.shape_cast %116 : vector<1x16xf32> to vector<1x1x16xf32>
      tpu.vector_store %arg9[%c0_101, %c0_102, %c0_103], %119 {strides = array<i32>} : memref<1x1x16xf32, #tpu.memory_space<vmem>>, vector<1x1x16xf32>,
      %c0_104 = arith.constant 0 : index
      %c0_105 = arith.constant 0 : index
      %c0_106 = arith.constant 0 : index
      %120 = vector.load %arg10[%c0_104, %c0_105, %c0_106] : memref<1x1x16xf32, #tpu.memory_space<vmem>>, vector<1x1x16xf32>
      %121 = vector.shape_cast %120 : vector<1x1x16xf32> to vector<1x16xf32>
      %122 = arith.mulf %107, %107 : vector<16x16xf32>
      %cst_107 = arith.constant dense<0.000000e+00> : vector<16xf32>
      %123 = vector.multi_reduction <add>, %122, %cst_107 [0] : vector<16x16xf32> to vector<16xf32>
      %124 = vector.shape_cast %123 : vector<16xf32> to vector<1x16xf32>
      %125 = arith.addf %121, %124 : vector<1x16xf32>
      %c0_108 = arith.constant 0 : index
      %c0_109 = arith.constant 0 : index
      %c0_110 = arith.constant 0 : index
      %126 = vector.load %arg10[%c0_108, %c0_109, %c0_110] : memref<1x1x16xf32, #tpu.memory_space<vmem>>, vector<1x1x16xf32>
      %127 = vector.shape_cast %126 : vector<1x1x16xf32> to vector<1x16xf32>
      %128 = vector.shape_cast %125 : vector<1x16xf32> to vector<1x1x16xf32>
      tpu.vector_store %arg10[%c0_108, %c0_109, %c0_110], %128 {strides = array<i32>} : memref<1x1x16xf32, #tpu.memory_space<vmem>>, vector<1x1x16xf32>,
    } else {
    }
    return
  }
  func.func @transform_0(%arg0: i32, %arg1: i32, %arg2: i32, %arg3: i32) -> (i32, i32, i32, i32, i32, i32) {
    %c1_i32 = arith.constant 1 : i32
    %0 = arith.muli %arg1, %c1_i32 : i32
    %1 = arith.addi %0, %arg3 : i32
    %c0_i32 = arith.constant 0 : i32
    %c0_i32_0 = arith.constant 0 : i32
    %c0_i32_1 = arith.constant 0 : i32
    %c0_i32_2 = arith.constant 0 : i32
    %c0_i32_3 = arith.constant 0 : i32
    return %arg0, %1, %c0_i32, %c0_i32_0, %c0_i32_1, %c0_i32_2 : i32, i32, i32, i32, i32, i32
  }
  func.func @transform_1(%arg0: i32, %arg1: i32, %arg2: i32, %arg3: i32) -> (i32, i32, i32, i32) {
    %c0_i32 = arith.constant 0 : i32
    %c0_i32_0 = arith.constant 0 : i32
    %c0_i32_1 = arith.constant 0 : i32
    %c0_i32_2 = arith.constant 0 : i32
    %c0_i32_3 = arith.constant 0 : i32
    return %c0_i32, %c0_i32_0, %c0_i32_1, %c0_i32_2 : i32, i32, i32, i32
  }
  func.func @transform_2(%arg0: i32, %arg1: i32, %arg2: i32, %arg3: i32) -> (i32, i32) {
    %c0_i32 = arith.constant 0 : i32
    %c0_i32_0 = arith.constant 0 : i32
    %c0_i32_1 = arith.constant 0 : i32
    return %c0_i32, %c0_i32_0 : i32, i32
  }
  func.func @transform_3(%arg0: i32, %arg1: i32, %arg2: i32, %arg3: i32) -> (i32, i32, i32, i32) {
    %c0_i32 = arith.constant 0 : i32
    %c0_i32_0 = arith.constant 0 : i32
    return %arg0, %arg1, %arg2, %c0_i32 : i32, i32, i32, i32
  }
  func.func @transform_4(%arg0: i32, %arg1: i32, %arg2: i32, %arg3: i32) -> (i32, i32, i32, i32) {
    %c0_i32 = arith.constant 0 : i32
    %c0_i32_0 = arith.constant 0 : i32
    return %arg0, %arg1, %arg2, %c0_i32 : i32, i32, i32, i32
  }
  func.func @transform_5(%arg0: i32, %arg1: i32, %arg2: i32, %arg3: i32) -> (i32, i32, i32) {
    %c0_i32 = arith.constant 0 : i32
    %c0_i32_0 = arith.constant 0 : i32
    %c0_i32_1 = arith.constant 0 : i32
    return %arg0, %c0_i32, %c0_i32_0 : i32, i32, i32
  }
  func.func @transform_6(%arg0: i32, %arg1: i32, %arg2: i32, %arg3: i32) -> (i32, i32, i32) {
    %c0_i32 = arith.constant 0 : i32
    %c0_i32_0 = arith.constant 0 : i32
    %c0_i32_1 = arith.constant 0 : i32
    return %arg0, %c0_i32, %c0_i32_0 : i32, i32, i32
  }
}

module attributes {stable_mosaic.version = 11 : i64} {
  func.func @_causal_conv_kernel(%arg0: i32, %arg1: i32, %arg2: i32, %arg3: i32, %arg4: memref<1x1x1x6x6x16xbf16, #tpu.memory_space<vmem>>, %arg5: memref<3x9x16x16xbf16, #tpu.memory_space<vmem>>, %arg6: memref<1x16xf32, #tpu.memory_space<vmem>>, %arg7: memref<1x1x16x16xbf16, #tpu.memory_space<vmem>>, %arg8: memref<1x1x16xf32, #tpu.memory_space<vmem>>, %arg9: memref<1x1x16xf32, #tpu.memory_space<vmem>>, %arg10: memref<16x16xf32, #tpu.memory_space<vmem>>) attributes {dimension_semantics = [#tpu.dimension_semantics<parallel>, #tpu.dimension_semantics<arbitrary>, #tpu.dimension_semantics<arbitrary>, #tpu.dimension_semantics<arbitrary>], iteration_bounds = array<i64: 2, 3, 1, 3>, scalar_prefetch = 0 : i64, scratch_operands = 1 : i64, tpu.core_type = #tpu.core_type<tc>, window_params = [{transform_indices = @transform_0, window_bounds = array<i64: 1, 1, 1, 6, 6, 16>}, {pipeline_mode = #tpu.pipeline_mode<synchronous>, transform_indices = @transform_1, window_bounds = array<i64: 3, 9, 16, 16>}, {pipeline_mode = #tpu.pipeline_mode<synchronous>, transform_indices = @transform_2, window_bounds = array<i64: 1, 16>}, {transform_indices = @transform_3, window_bounds = array<i64: 1, 1, 16, 16>}, {transform_indices = @transform_4, window_bounds = array<i64: 1, 1, 16>}, {transform_indices = @transform_5, window_bounds = array<i64: 1, 1, 16>}]} {
    %c0_i32 = arith.constant 0 : i32
    %0 = arith.cmpi eq, %arg3, %c0_i32 : i32
    %1 = arith.extui %0 : i1 to i32
    %c0_i32_0 = arith.constant 0 : i32
    %2 = arith.cmpi ne, %1, %c0_i32_0 : i32
    scf.if %2 {
      %cst_85 = arith.constant 0.000000e+00 : f32
      %100 = vector.broadcast %cst_85 : f32 to vector<16x16xf32>
      %c0_86 = arith.constant 0 : index
      %c0_87 = arith.constant 0 : index
      %101 = vector.load %arg10[%c0_86, %c0_87] : memref<16x16xf32, #tpu.memory_space<vmem>>, vector<16x16xf32>
      tpu.vector_store %arg10[%c0_86, %c0_87], %100 {strides = array<i32>} : memref<16x16xf32, #tpu.memory_space<vmem>>, vector<16x16xf32>,
      %c0_i32_88 = arith.constant 0 : i32
      %102 = arith.cmpi eq, %arg1, %c0_i32_88 : i32
      %c0_i32_89 = arith.constant 0 : i32
      %103 = arith.cmpi eq, %arg2, %c0_i32_89 : i32
      %104 = arith.andi %102, %103 : i1
      %105 = arith.extui %104 : i1 to i32
      %c0_i32_90 = arith.constant 0 : i32
      %106 = arith.cmpi ne, %105, %c0_i32_90 : i32
      scf.if %106 {
        %cst_91 = arith.constant 0.000000e+00 : f32
        %107 = vector.broadcast %cst_91 : f32 to vector<1x1x16xf32>
        %c0_92 = arith.constant 0 : index
        %c0_93 = arith.constant 0 : index
        %c0_94 = arith.constant 0 : index
        %108 = vector.load %arg8[%c0_92, %c0_93, %c0_94] : memref<1x1x16xf32, #tpu.memory_space<vmem>>, vector<1x1x16xf32>
        tpu.vector_store %arg8[%c0_92, %c0_93, %c0_94], %107 {strides = array<i32>} : memref<1x1x16xf32, #tpu.memory_space<vmem>>, vector<1x1x16xf32>,
        %cst_95 = arith.constant 0.000000e+00 : f32
        %109 = vector.broadcast %cst_95 : f32 to vector<1x1x16xf32>
        %c0_96 = arith.constant 0 : index
        %c0_97 = arith.constant 0 : index
        %c0_98 = arith.constant 0 : index
        %110 = vector.load %arg9[%c0_96, %c0_97, %c0_98] : memref<1x1x16xf32, #tpu.memory_space<vmem>>, vector<1x1x16xf32>
        tpu.vector_store %arg9[%c0_96, %c0_97, %c0_98], %109 {strides = array<i32>} : memref<1x1x16xf32, #tpu.memory_space<vmem>>, vector<1x1x16xf32>,
      } else {
      }
    } else {
    }
    %c4_i32 = arith.constant 4 : i32
    %3 = arith.muli %arg2, %c4_i32 : i32
    %4 = tpu.assume_multiple %3, 4 : i32
    %c0_i32_1 = arith.constant 0 : i32
    %5 = arith.addi %4, %c0_i32_1 : i32
    %c0 = arith.constant 0 : index
    %c0_2 = arith.constant 0 : index
    %c0_3 = arith.constant 0 : index
    %6 = arith.index_cast %5 : i32 to index
    %c0_4 = arith.constant 0 : index
    %c0_5 = arith.constant 0 : index
    %7 = vector.load %arg4[%c0, %c0_2, %c0_3, %6, %c0_4, %c0_5] : memref<1x1x1x6x6x16xbf16, #tpu.memory_space<vmem>>, vector<1x1x1x4x4x16xbf16>
    %8 = vector.shape_cast %7 : vector<1x1x1x4x4x16xbf16> to vector<4x4x16xbf16>
    %9 = vector.shape_cast %8 : vector<4x4x16xbf16> to vector<16x16xbf16>
    %10 = arith.index_cast %arg3 : i32 to index
    %c0_6 = arith.constant 0 : index
    %c0_7 = arith.constant 0 : index
    %c0_8 = arith.constant 0 : index
    %11 = vector.load %arg5[%10, %c0_6, %c0_7, %c0_8] : memref<3x9x16x16xbf16, #tpu.memory_space<vmem>>, vector<1x1x16x16xbf16>
    %12 = vector.shape_cast %11 : vector<1x1x16x16xbf16> to vector<16x16xbf16>
    %cst = arith.constant dense<0.000000e+00> : vector<16x16xf32>
    %13 = tpu.matmul %9, %12, %cst {dimension_numbers = #tpu.dot_dimension_numbers<[1], [0], [0], [1], [0, 0, 1, 1], [], []>} : vector<16x16xbf16>, vector<16x16xbf16>, vector<16x16xf32> -> vector<16x16xf32>
    %c0_i32_9 = arith.constant 0 : i32
    %14 = arith.addi %4, %c0_i32_9 : i32
    %c0_10 = arith.constant 0 : index
    %c0_11 = arith.constant 0 : index
    %c0_12 = arith.constant 0 : index
    %15 = arith.index_cast %14 : i32 to index
    %c1 = arith.constant 1 : index
    %c0_13 = arith.constant 0 : index
    %16 = vector.load %arg4[%c0_10, %c0_11, %c0_12, %15, %c1, %c0_13] : memref<1x1x1x6x6x16xbf16, #tpu.memory_space<vmem>>, vector<1x1x1x4x4x16xbf16>
    %17 = vector.shape_cast %16 : vector<1x1x1x4x4x16xbf16> to vector<4x4x16xbf16>
    %18 = vector.shape_cast %17 : vector<4x4x16xbf16> to vector<16x16xbf16>
    %19 = arith.index_cast %arg3 : i32 to index
    %c1_14 = arith.constant 1 : index
    %c0_15 = arith.constant 0 : index
    %c0_16 = arith.constant 0 : index
    %20 = vector.load %arg5[%19, %c1_14, %c0_15, %c0_16] : memref<3x9x16x16xbf16, #tpu.memory_space<vmem>>, vector<1x1x16x16xbf16>
    %21 = vector.shape_cast %20 : vector<1x1x16x16xbf16> to vector<16x16xbf16>
    %cst_17 = arith.constant dense<0.000000e+00> : vector<16x16xf32>
    %22 = tpu.matmul %18, %21, %cst_17 {dimension_numbers = #tpu.dot_dimension_numbers<[1], [0], [0], [1], [0, 0, 1, 1], [], []>} : vector<16x16xbf16>, vector<16x16xbf16>, vector<16x16xf32> -> vector<16x16xf32>
    %23 = arith.addf %13, %22 : vector<16x16xf32>
    %c0_i32_18 = arith.constant 0 : i32
    %24 = arith.addi %4, %c0_i32_18 : i32
    %c0_19 = arith.constant 0 : index
    %c0_20 = arith.constant 0 : index
    %c0_21 = arith.constant 0 : index
    %25 = arith.index_cast %24 : i32 to index
    %c2 = arith.constant 2 : index
    %c0_22 = arith.constant 0 : index
    %26 = vector.load %arg4[%c0_19, %c0_20, %c0_21, %25, %c2, %c0_22] : memref<1x1x1x6x6x16xbf16, #tpu.memory_space<vmem>>, vector<1x1x1x4x4x16xbf16>
    %27 = vector.shape_cast %26 : vector<1x1x1x4x4x16xbf16> to vector<4x4x16xbf16>
    %28 = vector.shape_cast %27 : vector<4x4x16xbf16> to vector<16x16xbf16>
    %29 = arith.index_cast %arg3 : i32 to index
    %c2_23 = arith.constant 2 : index
    %c0_24 = arith.constant 0 : index
    %c0_25 = arith.constant 0 : index
    %30 = vector.load %arg5[%29, %c2_23, %c0_24, %c0_25] : memref<3x9x16x16xbf16, #tpu.memory_space<vmem>>, vector<1x1x16x16xbf16>
    %31 = vector.shape_cast %30 : vector<1x1x16x16xbf16> to vector<16x16xbf16>
    %cst_26 = arith.constant dense<0.000000e+00> : vector<16x16xf32>
    %32 = tpu.matmul %28, %31, %cst_26 {dimension_numbers = #tpu.dot_dimension_numbers<[1], [0], [0], [1], [0, 0, 1, 1], [], []>} : vector<16x16xbf16>, vector<16x16xbf16>, vector<16x16xf32> -> vector<16x16xf32>
    %33 = arith.addf %23, %32 : vector<16x16xf32>
    %c1_i32 = arith.constant 1 : i32
    %34 = arith.addi %4, %c1_i32 : i32
    %c0_27 = arith.constant 0 : index
    %c0_28 = arith.constant 0 : index
    %c0_29 = arith.constant 0 : index
    %35 = arith.index_cast %34 : i32 to index
    %c0_30 = arith.constant 0 : index
    %c0_31 = arith.constant 0 : index
    %36 = vector.load %arg4[%c0_27, %c0_28, %c0_29, %35, %c0_30, %c0_31] : memref<1x1x1x6x6x16xbf16, #tpu.memory_space<vmem>>, vector<1x1x1x4x4x16xbf16>
    %37 = vector.shape_cast %36 : vector<1x1x1x4x4x16xbf16> to vector<4x4x16xbf16>
    %38 = vector.shape_cast %37 : vector<4x4x16xbf16> to vector<16x16xbf16>
    %39 = arith.index_cast %arg3 : i32 to index
    %c3 = arith.constant 3 : index
    %c0_32 = arith.constant 0 : index
    %c0_33 = arith.constant 0 : index
    %40 = vector.load %arg5[%39, %c3, %c0_32, %c0_33] : memref<3x9x16x16xbf16, #tpu.memory_space<vmem>>, vector<1x1x16x16xbf16>
    %41 = vector.shape_cast %40 : vector<1x1x16x16xbf16> to vector<16x16xbf16>
    %cst_34 = arith.constant dense<0.000000e+00> : vector<16x16xf32>
    %42 = tpu.matmul %38, %41, %cst_34 {dimension_numbers = #tpu.dot_dimension_numbers<[1], [0], [0], [1], [0, 0, 1, 1], [], []>} : vector<16x16xbf16>, vector<16x16xbf16>, vector<16x16xf32> -> vector<16x16xf32>
    %43 = arith.addf %33, %42 : vector<16x16xf32>
    %c1_i32_35 = arith.constant 1 : i32
    %44 = arith.addi %4, %c1_i32_35 : i32
    %c0_36 = arith.constant 0 : index
    %c0_37 = arith.constant 0 : index
    %c0_38 = arith.constant 0 : index
    %45 = arith.index_cast %44 : i32 to index
    %c1_39 = arith.constant 1 : index
    %c0_40 = arith.constant 0 : index
    %46 = vector.load %arg4[%c0_36, %c0_37, %c0_38, %45, %c1_39, %c0_40] : memref<1x1x1x6x6x16xbf16, #tpu.memory_space<vmem>>, vector<1x1x1x4x4x16xbf16>
    %47 = vector.shape_cast %46 : vector<1x1x1x4x4x16xbf16> to vector<4x4x16xbf16>
    %48 = vector.shape_cast %47 : vector<4x4x16xbf16> to vector<16x16xbf16>
    %49 = arith.index_cast %arg3 : i32 to index
    %c4 = arith.constant 4 : index
    %c0_41 = arith.constant 0 : index
    %c0_42 = arith.constant 0 : index
    %50 = vector.load %arg5[%49, %c4, %c0_41, %c0_42] : memref<3x9x16x16xbf16, #tpu.memory_space<vmem>>, vector<1x1x16x16xbf16>
    %51 = vector.shape_cast %50 : vector<1x1x16x16xbf16> to vector<16x16xbf16>
    %cst_43 = arith.constant dense<0.000000e+00> : vector<16x16xf32>
    %52 = tpu.matmul %48, %51, %cst_43 {dimension_numbers = #tpu.dot_dimension_numbers<[1], [0], [0], [1], [0, 0, 1, 1], [], []>} : vector<16x16xbf16>, vector<16x16xbf16>, vector<16x16xf32> -> vector<16x16xf32>
    %53 = arith.addf %43, %52 : vector<16x16xf32>
    %c1_i32_44 = arith.constant 1 : i32
    %54 = arith.addi %4, %c1_i32_44 : i32
    %c0_45 = arith.constant 0 : index
    %c0_46 = arith.constant 0 : index
    %c0_47 = arith.constant 0 : index
    %55 = arith.index_cast %54 : i32 to index
    %c2_48 = arith.constant 2 : index
    %c0_49 = arith.constant 0 : index
    %56 = vector.load %arg4[%c0_45, %c0_46, %c0_47, %55, %c2_48, %c0_49] : memref<1x1x1x6x6x16xbf16, #tpu.memory_space<vmem>>, vector<1x1x1x4x4x16xbf16>
    %57 = vector.shape_cast %56 : vector<1x1x1x4x4x16xbf16> to vector<4x4x16xbf16>
    %58 = vector.shape_cast %57 : vector<4x4x16xbf16> to vector<16x16xbf16>
    %59 = arith.index_cast %arg3 : i32 to index
    %c5 = arith.constant 5 : index
    %c0_50 = arith.constant 0 : index
    %c0_51 = arith.constant 0 : index
    %60 = vector.load %arg5[%59, %c5, %c0_50, %c0_51] : memref<3x9x16x16xbf16, #tpu.memory_space<vmem>>, vector<1x1x16x16xbf16>
    %61 = vector.shape_cast %60 : vector<1x1x16x16xbf16> to vector<16x16xbf16>
    %cst_52 = arith.constant dense<0.000000e+00> : vector<16x16xf32>
    %62 = tpu.matmul %58, %61, %cst_52 {dimension_numbers = #tpu.dot_dimension_numbers<[1], [0], [0], [1], [0, 0, 1, 1], [], []>} : vector<16x16xbf16>, vector<16x16xbf16>, vector<16x16xf32> -> vector<16x16xf32>
    %63 = arith.addf %53, %62 : vector<16x16xf32>
    %c2_i32 = arith.constant 2 : i32
    %64 = arith.addi %4, %c2_i32 : i32
    %c0_53 = arith.constant 0 : index
    %c0_54 = arith.constant 0 : index
    %c0_55 = arith.constant 0 : index
    %65 = arith.index_cast %64 : i32 to index
    %c0_56 = arith.constant 0 : index
    %c0_57 = arith.constant 0 : index
    %66 = vector.load %arg4[%c0_53, %c0_54, %c0_55, %65, %c0_56, %c0_57] : memref<1x1x1x6x6x16xbf16, #tpu.memory_space<vmem>>, vector<1x1x1x4x4x16xbf16>
    %67 = vector.shape_cast %66 : vector<1x1x1x4x4x16xbf16> to vector<4x4x16xbf16>
    %68 = vector.shape_cast %67 : vector<4x4x16xbf16> to vector<16x16xbf16>
    %69 = arith.index_cast %arg3 : i32 to index
    %c6 = arith.constant 6 : index
    %c0_58 = arith.constant 0 : index
    %c0_59 = arith.constant 0 : index
    %70 = vector.load %arg5[%69, %c6, %c0_58, %c0_59] : memref<3x9x16x16xbf16, #tpu.memory_space<vmem>>, vector<1x1x16x16xbf16>
    %71 = vector.shape_cast %70 : vector<1x1x16x16xbf16> to vector<16x16xbf16>
    %cst_60 = arith.constant dense<0.000000e+00> : vector<16x16xf32>
    %72 = tpu.matmul %68, %71, %cst_60 {dimension_numbers = #tpu.dot_dimension_numbers<[1], [0], [0], [1], [0, 0, 1, 1], [], []>} : vector<16x16xbf16>, vector<16x16xbf16>, vector<16x16xf32> -> vector<16x16xf32>
    %73 = arith.addf %63, %72 : vector<16x16xf32>
    %c2_i32_61 = arith.constant 2 : i32
    %74 = arith.addi %4, %c2_i32_61 : i32
    %c0_62 = arith.constant 0 : index
    %c0_63 = arith.constant 0 : index
    %c0_64 = arith.constant 0 : index
    %75 = arith.index_cast %74 : i32 to index
    %c1_65 = arith.constant 1 : index
    %c0_66 = arith.constant 0 : index
    %76 = vector.load %arg4[%c0_62, %c0_63, %c0_64, %75, %c1_65, %c0_66] : memref<1x1x1x6x6x16xbf16, #tpu.memory_space<vmem>>, vector<1x1x1x4x4x16xbf16>
    %77 = vector.shape_cast %76 : vector<1x1x1x4x4x16xbf16> to vector<4x4x16xbf16>
    %78 = vector.shape_cast %77 : vector<4x4x16xbf16> to vector<16x16xbf16>
    %79 = arith.index_cast %arg3 : i32 to index
    %c7 = arith.constant 7 : index
    %c0_67 = arith.constant 0 : index
    %c0_68 = arith.constant 0 : index
    %80 = vector.load %arg5[%79, %c7, %c0_67, %c0_68] : memref<3x9x16x16xbf16, #tpu.memory_space<vmem>>, vector<1x1x16x16xbf16>
    %81 = vector.shape_cast %80 : vector<1x1x16x16xbf16> to vector<16x16xbf16>
    %cst_69 = arith.constant dense<0.000000e+00> : vector<16x16xf32>
    %82 = tpu.matmul %78, %81, %cst_69 {dimension_numbers = #tpu.dot_dimension_numbers<[1], [0], [0], [1], [0, 0, 1, 1], [], []>} : vector<16x16xbf16>, vector<16x16xbf16>, vector<16x16xf32> -> vector<16x16xf32>
    %83 = arith.addf %73, %82 : vector<16x16xf32>
    %c2_i32_70 = arith.constant 2 : i32
    %84 = arith.addi %4, %c2_i32_70 : i32
    %c0_71 = arith.constant 0 : index
    %c0_72 = arith.constant 0 : index
    %c0_73 = arith.constant 0 : index
    %85 = arith.index_cast %84 : i32 to index
    %c2_74 = arith.constant 2 : index
    %c0_75 = arith.constant 0 : index
    %86 = vector.load %arg4[%c0_71, %c0_72, %c0_73, %85, %c2_74, %c0_75] : memref<1x1x1x6x6x16xbf16, #tpu.memory_space<vmem>>, vector<1x1x1x4x4x16xbf16>
    %87 = vector.shape_cast %86 : vector<1x1x1x4x4x16xbf16> to vector<4x4x16xbf16>
    %88 = vector.shape_cast %87 : vector<4x4x16xbf16> to vector<16x16xbf16>
    %89 = arith.index_cast %arg3 : i32 to index
    %c8 = arith.constant 8 : index
    %c0_76 = arith.constant 0 : index
    %c0_77 = arith.constant 0 : index
    %90 = vector.load %arg5[%89, %c8, %c0_76, %c0_77] : memref<3x9x16x16xbf16, #tpu.memory_space<vmem>>, vector<1x1x16x16xbf16>
    %91 = vector.shape_cast %90 : vector<1x1x16x16xbf16> to vector<16x16xbf16>
    %cst_78 = arith.constant dense<0.000000e+00> : vector<16x16xf32>
    %92 = tpu.matmul %88, %91, %cst_78 {dimension_numbers = #tpu.dot_dimension_numbers<[1], [0], [0], [1], [0, 0, 1, 1], [], []>} : vector<16x16xbf16>, vector<16x16xbf16>, vector<16x16xf32> -> vector<16x16xf32>
    %93 = arith.addf %83, %92 : vector<16x16xf32>
    %c0_79 = arith.constant 0 : index
    %c0_80 = arith.constant 0 : index
    %94 = vector.load %arg10[%c0_79, %c0_80] : memref<16x16xf32, #tpu.memory_space<vmem>>, vector<16x16xf32>
    %95 = arith.addf %94, %93 : vector<16x16xf32>
    %c0_81 = arith.constant 0 : index
    %c0_82 = arith.constant 0 : index
    %96 = vector.load %arg10[%c0_81, %c0_82] : memref<16x16xf32, #tpu.memory_space<vmem>>, vector<16x16xf32>
    tpu.vector_store %arg10[%c0_81, %c0_82], %95 {strides = array<i32>} : memref<16x16xf32, #tpu.memory_space<vmem>>, vector<16x16xf32>,
    %c2_i32_83 = arith.constant 2 : i32
    %97 = arith.cmpi eq, %arg3, %c2_i32_83 : i32
    %98 = arith.extui %97 : i1 to i32
    %c0_i32_84 = arith.constant 0 : i32
    %99 = arith.cmpi ne, %98, %c0_i32_84 : i32
    scf.if %99 {
      %c0_85 = arith.constant 0 : index
      %c0_86 = arith.constant 0 : index
      %100 = vector.load %arg10[%c0_85, %c0_86] : memref<16x16xf32, #tpu.memory_space<vmem>>, vector<16x16xf32>
      %c0_87 = arith.constant 0 : index
      %c0_88 = arith.constant 0 : index
      %101 = vector.load %arg6[%c0_87, %c0_88] : memref<1x16xf32, #tpu.memory_space<vmem>>, vector<1x16xf32>
      %102 = vector.broadcast %101 : vector<1x16xf32> to vector<16x16xf32>
      %103 = arith.addf %100, %102 : vector<16x16xf32>
      %104 = arith.truncf %103 : vector<16x16xf32> to vector<16x16xbf16>
      %c0_89 = arith.constant 0 : index
      %c0_90 = arith.constant 0 : index
      %c0_91 = arith.constant 0 : index
      %c0_92 = arith.constant 0 : index
      %105 = vector.load %arg7[%c0_89, %c0_90, %c0_91, %c0_92] : memref<1x1x16x16xbf16, #tpu.memory_space<vmem>>, vector<1x1x16x16xbf16>
      %106 = vector.shape_cast %105 : vector<1x1x16x16xbf16> to vector<16x16xbf16>
      %107 = vector.shape_cast %104 : vector<16x16xbf16> to vector<1x1x16x16xbf16>
      tpu.vector_store %arg7[%c0_89, %c0_90, %c0_91, %c0_92], %107 {strides = array<i32>} : memref<1x1x16x16xbf16, #tpu.memory_space<vmem>>, vector<1x1x16x16xbf16>,
      %c0_93 = arith.constant 0 : index
      %c0_94 = arith.constant 0 : index
      %c0_95 = arith.constant 0 : index
      %108 = vector.load %arg8[%c0_93, %c0_94, %c0_95] : memref<1x1x16xf32, #tpu.memory_space<vmem>>, vector<1x1x16xf32>
      %109 = vector.shape_cast %108 : vector<1x1x16xf32> to vector<1x16xf32>
      %cst_96 = arith.constant dense<0.000000e+00> : vector<16xf32>
      %110 = vector.multi_reduction <add>, %103, %cst_96 [0] : vector<16x16xf32> to vector<16xf32>
      %111 = vector.shape_cast %110 : vector<16xf32> to vector<1x16xf32>
      %112 = arith.addf %109, %111 : vector<1x16xf32>
      %c0_97 = arith.constant 0 : index
      %c0_98 = arith.constant 0 : index
      %c0_99 = arith.constant 0 : index
      %113 = vector.load %arg8[%c0_97, %c0_98, %c0_99] : memref<1x1x16xf32, #tpu.memory_space<vmem>>, vector<1x1x16xf32>
      %114 = vector.shape_cast %113 : vector<1x1x16xf32> to vector<1x16xf32>
      %115 = vector.shape_cast %112 : vector<1x16xf32> to vector<1x1x16xf32>
      tpu.vector_store %arg8[%c0_97, %c0_98, %c0_99], %115 {strides = array<i32>} : memref<1x1x16xf32, #tpu.memory_space<vmem>>, vector<1x1x16xf32>,
      %c0_100 = arith.constant 0 : index
      %c0_101 = arith.constant 0 : index
      %c0_102 = arith.constant 0 : index
      %116 = vector.load %arg9[%c0_100, %c0_101, %c0_102] : memref<1x1x16xf32, #tpu.memory_space<vmem>>, vector<1x1x16xf32>
      %117 = vector.shape_cast %116 : vector<1x1x16xf32> to vector<1x16xf32>
      %118 = arith.mulf %103, %103 : vector<16x16xf32>
      %cst_103 = arith.constant dense<0.000000e+00> : vector<16xf32>
      %119 = vector.multi_reduction <add>, %118, %cst_103 [0] : vector<16x16xf32> to vector<16xf32>
      %120 = vector.shape_cast %119 : vector<16xf32> to vector<1x16xf32>
      %121 = arith.addf %117, %120 : vector<1x16xf32>
      %c0_104 = arith.constant 0 : index
      %c0_105 = arith.constant 0 : index
      %c0_106 = arith.constant 0 : index
      %122 = vector.load %arg9[%c0_104, %c0_105, %c0_106] : memref<1x1x16xf32, #tpu.memory_space<vmem>>, vector<1x1x16xf32>
      %123 = vector.shape_cast %122 : vector<1x1x16xf32> to vector<1x16xf32>
      %124 = vector.shape_cast %121 : vector<1x16xf32> to vector<1x1x16xf32>
      tpu.vector_store %arg9[%c0_104, %c0_105, %c0_106], %124 {strides = array<i32>} : memref<1x1x16xf32, #tpu.memory_space<vmem>>, vector<1x1x16xf32>,
    } else {
    }
    return
  }
  func.func @transform_0(%arg0: i32, %arg1: i32, %arg2: i32, %arg3: i32) -> (i32, i32, i32, i32, i32, i32) {
    %c1_i32 = arith.constant 1 : i32
    %0 = arith.muli %arg1, %c1_i32 : i32
    %1 = arith.addi %0, %arg3 : i32
    %c0_i32 = arith.constant 0 : i32
    %c0_i32_0 = arith.constant 0 : i32
    %c0_i32_1 = arith.constant 0 : i32
    %c0_i32_2 = arith.constant 0 : i32
    %c0_i32_3 = arith.constant 0 : i32
    return %arg0, %1, %c0_i32, %c0_i32_0, %c0_i32_1, %c0_i32_2 : i32, i32, i32, i32, i32, i32
  }
  func.func @transform_1(%arg0: i32, %arg1: i32, %arg2: i32, %arg3: i32) -> (i32, i32, i32, i32) {
    %c0_i32 = arith.constant 0 : i32
    %c0_i32_0 = arith.constant 0 : i32
    %c0_i32_1 = arith.constant 0 : i32
    %c0_i32_2 = arith.constant 0 : i32
    %c0_i32_3 = arith.constant 0 : i32
    return %c0_i32, %c0_i32_0, %c0_i32_1, %c0_i32_2 : i32, i32, i32, i32
  }
  func.func @transform_2(%arg0: i32, %arg1: i32, %arg2: i32, %arg3: i32) -> (i32, i32) {
    %c0_i32 = arith.constant 0 : i32
    %c0_i32_0 = arith.constant 0 : i32
    %c0_i32_1 = arith.constant 0 : i32
    return %c0_i32, %c0_i32_0 : i32, i32
  }
  func.func @transform_3(%arg0: i32, %arg1: i32, %arg2: i32, %arg3: i32) -> (i32, i32, i32, i32) {
    %c0_i32 = arith.constant 0 : i32
    %c0_i32_0 = arith.constant 0 : i32
    return %arg0, %arg1, %arg2, %c0_i32 : i32, i32, i32, i32
  }
  func.func @transform_4(%arg0: i32, %arg1: i32, %arg2: i32, %arg3: i32) -> (i32, i32, i32) {
    %c0_i32 = arith.constant 0 : i32
    %c0_i32_0 = arith.constant 0 : i32
    %c0_i32_1 = arith.constant 0 : i32
    return %arg0, %c0_i32, %c0_i32_0 : i32, i32, i32
  }
  func.func @transform_5(%arg0: i32, %arg1: i32, %arg2: i32, %arg3: i32) -> (i32, i32, i32) {
    %c0_i32 = arith.constant 0 : i32
    %c0_i32_0 = arith.constant 0 : i32
    %c0_i32_1 = arith.constant 0 : i32
    return %arg0, %c0_i32, %c0_i32_0 : i32, i32, i32
  }
}

module attributes {stable_mosaic.version = 11 : i64} {
  func.func @_causal_conv_kernel(%arg0: i32, %arg1: i32, %arg2: i32, %arg3: i32, %arg4: memref<1x1x1x6x6x16xbf16, #tpu.memory_space<vmem>>, %arg5: memref<3x9x16x16xbf16, #tpu.memory_space<vmem>>, %arg6: memref<1x16xf32, #tpu.memory_space<vmem>>, %arg7: memref<1x1x16x16xbf16, #tpu.memory_space<vmem>>, %arg8: memref<1x1x16x16xbf16, #tpu.memory_space<vmem>>, %arg9: memref<16x16xf32, #tpu.memory_space<vmem>>) attributes {dimension_semantics = [#tpu.dimension_semantics<parallel>, #tpu.dimension_semantics<parallel>, #tpu.dimension_semantics<parallel>, #tpu.dimension_semantics<arbitrary>], iteration_bounds = array<i64: 2, 3, 1, 3>, scalar_prefetch = 0 : i64, scratch_operands = 1 : i64, tpu.core_type = #tpu.core_type<tc>, window_params = [{transform_indices = @transform_0, window_bounds = array<i64: 1, 1, 1, 6, 6, 16>}, {pipeline_mode = #tpu.pipeline_mode<synchronous>, transform_indices = @transform_1, window_bounds = array<i64: 3, 9, 16, 16>}, {pipeline_mode = #tpu.pipeline_mode<synchronous>, transform_indices = @transform_2, window_bounds = array<i64: 1, 16>}, {transform_indices = @transform_3, window_bounds = array<i64: 1, 1, 16, 16>}, {transform_indices = @transform_4, window_bounds = array<i64: 1, 1, 16, 16>}]} {
    %c0_i32 = arith.constant 0 : i32
    %0 = arith.cmpi eq, %arg3, %c0_i32 : i32
    %1 = arith.extui %0 : i1 to i32
    %c0_i32_0 = arith.constant 0 : i32
    %2 = arith.cmpi ne, %1, %c0_i32_0 : i32
    scf.if %2 {
      %cst_85 = arith.constant 0.000000e+00 : f32
      %100 = vector.broadcast %cst_85 : f32 to vector<16x16xf32>
      %c0_86 = arith.constant 0 : index
      %c0_87 = arith.constant 0 : index
      %101 = vector.load %arg9[%c0_86, %c0_87] : memref<16x16xf32, #tpu.memory_space<vmem>>, vector<16x16xf32>
      tpu.vector_store %arg9[%c0_86, %c0_87], %100 {strides = array<i32>} : memref<16x16xf32, #tpu.memory_space<vmem>>, vector<16x16xf32>,
    } else {
    }
    %c4_i32 = arith.constant 4 : i32
    %3 = arith.muli %arg2, %c4_i32 : i32
    %4 = tpu.assume_multiple %3, 4 : i32
    %c0_i32_1 = arith.constant 0 : i32
    %5 = arith.addi %4, %c0_i32_1 : i32
    %c0 = arith.constant 0 : index
    %c0_2 = arith.constant 0 : index
    %c0_3 = arith.constant 0 : index
    %6 = arith.index_cast %5 : i32 to index
    %c0_4 = arith.constant 0 : index
    %c0_5 = arith.constant 0 : index
    %7 = vector.load %arg4[%c0, %c0_2, %c0_3, %6, %c0_4, %c0_5] : memref<1x1x1x6x6x16xbf16, #tpu.memory_space<vmem>>, vector<1x1x1x4x4x16xbf16>
    %8 = vector.shape_cast %7 : vector<1x1x1x4x4x16xbf16> to vector<4x4x16xbf16>
    %9 = vector.shape_cast %8 : vector<4x4x16xbf16> to vector<16x16xbf16>
    %10 = arith.index_cast %arg3 : i32 to index
    %c0_6 = arith.constant 0 : index
    %c0_7 = arith.constant 0 : index
    %c0_8 = arith.constant 0 : index
    %11 = vector.load %arg5[%10, %c0_6, %c0_7, %c0_8] : memref<3x9x16x16xbf16, #tpu.memory_space<vmem>>, vector<1x1x16x16xbf16>
    %12 = vector.shape_cast %11 : vector<1x1x16x16xbf16> to vector<16x16xbf16>
    %cst = arith.constant dense<0.000000e+00> : vector<16x16xf32>
    %13 = tpu.matmul %9, %12, %cst {dimension_numbers = #tpu.dot_dimension_numbers<[1], [0], [0], [1], [0, 0, 1, 1], [], []>} : vector<16x16xbf16>, vector<16x16xbf16>, vector<16x16xf32> -> vector<16x16xf32>
    %c0_i32_9 = arith.constant 0 : i32
    %14 = arith.addi %4, %c0_i32_9 : i32
    %c0_10 = arith.constant 0 : index
    %c0_11 = arith.constant 0 : index
    %c0_12 = arith.constant 0 : index
    %15 = arith.index_cast %14 : i32 to index
    %c1 = arith.constant 1 : index
    %c0_13 = arith.constant 0 : index
    %16 = vector.load %arg4[%c0_10, %c0_11, %c0_12, %15, %c1, %c0_13] : memref<1x1x1x6x6x16xbf16, #tpu.memory_space<vmem>>, vector<1x1x1x4x4x16xbf16>
    %17 = vector.shape_cast %16 : vector<1x1x1x4x4x16xbf16> to vector<4x4x16xbf16>
    %18 = vector.shape_cast %17 : vector<4x4x16xbf16> to vector<16x16xbf16>
    %19 = arith.index_cast %arg3 : i32 to index
    %c1_14 = arith.constant 1 : index
    %c0_15 = arith.constant 0 : index
    %c0_16 = arith.constant 0 : index
    %20 = vector.load %arg5[%19, %c1_14, %c0_15, %c0_16] : memref<3x9x16x16xbf16, #tpu.memory_space<vmem>>, vector<1x1x16x16xbf16>
    %21 = vector.shape_cast %20 : vector<1x1x16x16xbf16> to vector<16x16xbf16>
    %cst_17 = arith.constant dense<0.000000e+00> : vector<16x16xf32>
    %22 = tpu.matmul %18, %21, %cst_17 {dimension_numbers = #tpu.dot_dimension_numbers<[1], [0], [0], [1], [0, 0, 1, 1], [], []>} : vector<16x16xbf16>, vector<16x16xbf16>, vector<16x16xf32> -> vector<16x16xf32>
    %23 = arith.addf %13, %22 : vector<16x16xf32>
    %c0_i32_18 = arith.constant 0 : i32
    %24 = arith.addi %4, %c0_i32_18 : i32
    %c0_19 = arith.constant 0 : index
    %c0_20 = arith.constant 0 : index
    %c0_21 = arith.constant 0 : index
    %25 = arith.index_cast %24 : i32 to index
    %c2 = arith.constant 2 : index
    %c0_22 = arith.constant 0 : index
    %26 = vector.load %arg4[%c0_19, %c0_20, %c0_21, %25, %c2, %c0_22] : memref<1x1x1x6x6x16xbf16, #tpu.memory_space<vmem>>, vector<1x1x1x4x4x16xbf16>
    %27 = vector.shape_cast %26 : vector<1x1x1x4x4x16xbf16> to vector<4x4x16xbf16>
    %28 = vector.shape_cast %27 : vector<4x4x16xbf16> to vector<16x16xbf16>
    %29 = arith.index_cast %arg3 : i32 to index
    %c2_23 = arith.constant 2 : index
    %c0_24 = arith.constant 0 : index
    %c0_25 = arith.constant 0 : index
    %30 = vector.load %arg5[%29, %c2_23, %c0_24, %c0_25] : memref<3x9x16x16xbf16, #tpu.memory_space<vmem>>, vector<1x1x16x16xbf16>
    %31 = vector.shape_cast %30 : vector<1x1x16x16xbf16> to vector<16x16xbf16>
    %cst_26 = arith.constant dense<0.000000e+00> : vector<16x16xf32>
    %32 = tpu.matmul %28, %31, %cst_26 {dimension_numbers = #tpu.dot_dimension_numbers<[1], [0], [0], [1], [0, 0, 1, 1], [], []>} : vector<16x16xbf16>, vector<16x16xbf16>, vector<16x16xf32> -> vector<16x16xf32>
    %33 = arith.addf %23, %32 : vector<16x16xf32>
    %c1_i32 = arith.constant 1 : i32
    %34 = arith.addi %4, %c1_i32 : i32
    %c0_27 = arith.constant 0 : index
    %c0_28 = arith.constant 0 : index
    %c0_29 = arith.constant 0 : index
    %35 = arith.index_cast %34 : i32 to index
    %c0_30 = arith.constant 0 : index
    %c0_31 = arith.constant 0 : index
    %36 = vector.load %arg4[%c0_27, %c0_28, %c0_29, %35, %c0_30, %c0_31] : memref<1x1x1x6x6x16xbf16, #tpu.memory_space<vmem>>, vector<1x1x1x4x4x16xbf16>
    %37 = vector.shape_cast %36 : vector<1x1x1x4x4x16xbf16> to vector<4x4x16xbf16>
    %38 = vector.shape_cast %37 : vector<4x4x16xbf16> to vector<16x16xbf16>
    %39 = arith.index_cast %arg3 : i32 to index
    %c3 = arith.constant 3 : index
    %c0_32 = arith.constant 0 : index
    %c0_33 = arith.constant 0 : index
    %40 = vector.load %arg5[%39, %c3, %c0_32, %c0_33] : memref<3x9x16x16xbf16, #tpu.memory_space<vmem>>, vector<1x1x16x16xbf16>
    %41 = vector.shape_cast %40 : vector<1x1x16x16xbf16> to vector<16x16xbf16>
    %cst_34 = arith.constant dense<0.000000e+00> : vector<16x16xf32>
    %42 = tpu.matmul %38, %41, %cst_34 {dimension_numbers = #tpu.dot_dimension_numbers<[1], [0], [0], [1], [0, 0, 1, 1], [], []>} : vector<16x16xbf16>, vector<16x16xbf16>, vector<16x16xf32> -> vector<16x16xf32>
    %43 = arith.addf %33, %42 : vector<16x16xf32>
    %c1_i32_35 = arith.constant 1 : i32
    %44 = arith.addi %4, %c1_i32_35 : i32
    %c0_36 = arith.constant 0 : index
    %c0_37 = arith.constant 0 : index
    %c0_38 = arith.constant 0 : index
    %45 = arith.index_cast %44 : i32 to index
    %c1_39 = arith.constant 1 : index
    %c0_40 = arith.constant 0 : index
    %46 = vector.load %arg4[%c0_36, %c0_37, %c0_38, %45, %c1_39, %c0_40] : memref<1x1x1x6x6x16xbf16, #tpu.memory_space<vmem>>, vector<1x1x1x4x4x16xbf16>
    %47 = vector.shape_cast %46 : vector<1x1x1x4x4x16xbf16> to vector<4x4x16xbf16>
    %48 = vector.shape_cast %47 : vector<4x4x16xbf16> to vector<16x16xbf16>
    %49 = arith.index_cast %arg3 : i32 to index
    %c4 = arith.constant 4 : index
    %c0_41 = arith.constant 0 : index
    %c0_42 = arith.constant 0 : index
    %50 = vector.load %arg5[%49, %c4, %c0_41, %c0_42] : memref<3x9x16x16xbf16, #tpu.memory_space<vmem>>, vector<1x1x16x16xbf16>
    %51 = vector.shape_cast %50 : vector<1x1x16x16xbf16> to vector<16x16xbf16>
    %cst_43 = arith.constant dense<0.000000e+00> : vector<16x16xf32>
    %52 = tpu.matmul %48, %51, %cst_43 {dimension_numbers = #tpu.dot_dimension_numbers<[1], [0], [0], [1], [0, 0, 1, 1], [], []>} : vector<16x16xbf16>, vector<16x16xbf16>, vector<16x16xf32> -> vector<16x16xf32>
    %53 = arith.addf %43, %52 : vector<16x16xf32>
    %c1_i32_44 = arith.constant 1 : i32
    %54 = arith.addi %4, %c1_i32_44 : i32
    %c0_45 = arith.constant 0 : index
    %c0_46 = arith.constant 0 : index
    %c0_47 = arith.constant 0 : index
    %55 = arith.index_cast %54 : i32 to index
    %c2_48 = arith.constant 2 : index
    %c0_49 = arith.constant 0 : index
    %56 = vector.load %arg4[%c0_45, %c0_46, %c0_47, %55, %c2_48, %c0_49] : memref<1x1x1x6x6x16xbf16, #tpu.memory_space<vmem>>, vector<1x1x1x4x4x16xbf16>
    %57 = vector.shape_cast %56 : vector<1x1x1x4x4x16xbf16> to vector<4x4x16xbf16>
    %58 = vector.shape_cast %57 : vector<4x4x16xbf16> to vector<16x16xbf16>
    %59 = arith.index_cast %arg3 : i32 to index
    %c5 = arith.constant 5 : index
    %c0_50 = arith.constant 0 : index
    %c0_51 = arith.constant 0 : index
    %60 = vector.load %arg5[%59, %c5, %c0_50, %c0_51] : memref<3x9x16x16xbf16, #tpu.memory_space<vmem>>, vector<1x1x16x16xbf16>
    %61 = vector.shape_cast %60 : vector<1x1x16x16xbf16> to vector<16x16xbf16>
    %cst_52 = arith.constant dense<0.000000e+00> : vector<16x16xf32>
    %62 = tpu.matmul %58, %61, %cst_52 {dimension_numbers = #tpu.dot_dimension_numbers<[1], [0], [0], [1], [0, 0, 1, 1], [], []>} : vector<16x16xbf16>, vector<16x16xbf16>, vector<16x16xf32> -> vector<16x16xf32>
    %63 = arith.addf %53, %62 : vector<16x16xf32>
    %c2_i32 = arith.constant 2 : i32
    %64 = arith.addi %4, %c2_i32 : i32
    %c0_53 = arith.constant 0 : index
    %c0_54 = arith.constant 0 : index
    %c0_55 = arith.constant 0 : index
    %65 = arith.index_cast %64 : i32 to index
    %c0_56 = arith.constant 0 : index
    %c0_57 = arith.constant 0 : index
    %66 = vector.load %arg4[%c0_53, %c0_54, %c0_55, %65, %c0_56, %c0_57] : memref<1x1x1x6x6x16xbf16, #tpu.memory_space<vmem>>, vector<1x1x1x4x4x16xbf16>
    %67 = vector.shape_cast %66 : vector<1x1x1x4x4x16xbf16> to vector<4x4x16xbf16>
    %68 = vector.shape_cast %67 : vector<4x4x16xbf16> to vector<16x16xbf16>
    %69 = arith.index_cast %arg3 : i32 to index
    %c6 = arith.constant 6 : index
    %c0_58 = arith.constant 0 : index
    %c0_59 = arith.constant 0 : index
    %70 = vector.load %arg5[%69, %c6, %c0_58, %c0_59] : memref<3x9x16x16xbf16, #tpu.memory_space<vmem>>, vector<1x1x16x16xbf16>
    %71 = vector.shape_cast %70 : vector<1x1x16x16xbf16> to vector<16x16xbf16>
    %cst_60 = arith.constant dense<0.000000e+00> : vector<16x16xf32>
    %72 = tpu.matmul %68, %71, %cst_60 {dimension_numbers = #tpu.dot_dimension_numbers<[1], [0], [0], [1], [0, 0, 1, 1], [], []>} : vector<16x16xbf16>, vector<16x16xbf16>, vector<16x16xf32> -> vector<16x16xf32>
    %73 = arith.addf %63, %72 : vector<16x16xf32>
    %c2_i32_61 = arith.constant 2 : i32
    %74 = arith.addi %4, %c2_i32_61 : i32
    %c0_62 = arith.constant 0 : index
    %c0_63 = arith.constant 0 : index
    %c0_64 = arith.constant 0 : index
    %75 = arith.index_cast %74 : i32 to index
    %c1_65 = arith.constant 1 : index
    %c0_66 = arith.constant 0 : index
    %76 = vector.load %arg4[%c0_62, %c0_63, %c0_64, %75, %c1_65, %c0_66] : memref<1x1x1x6x6x16xbf16, #tpu.memory_space<vmem>>, vector<1x1x1x4x4x16xbf16>
    %77 = vector.shape_cast %76 : vector<1x1x1x4x4x16xbf16> to vector<4x4x16xbf16>
    %78 = vector.shape_cast %77 : vector<4x4x16xbf16> to vector<16x16xbf16>
    %79 = arith.index_cast %arg3 : i32 to index
    %c7 = arith.constant 7 : index
    %c0_67 = arith.constant 0 : index
    %c0_68 = arith.constant 0 : index
    %80 = vector.load %arg5[%79, %c7, %c0_67, %c0_68] : memref<3x9x16x16xbf16, #tpu.memory_space<vmem>>, vector<1x1x16x16xbf16>
    %81 = vector.shape_cast %80 : vector<1x1x16x16xbf16> to vector<16x16xbf16>
    %cst_69 = arith.constant dense<0.000000e+00> : vector<16x16xf32>
    %82 = tpu.matmul %78, %81, %cst_69 {dimension_numbers = #tpu.dot_dimension_numbers<[1], [0], [0], [1], [0, 0, 1, 1], [], []>} : vector<16x16xbf16>, vector<16x16xbf16>, vector<16x16xf32> -> vector<16x16xf32>
    %83 = arith.addf %73, %82 : vector<16x16xf32>
    %c2_i32_70 = arith.constant 2 : i32
    %84 = arith.addi %4, %c2_i32_70 : i32
    %c0_71 = arith.constant 0 : index
    %c0_72 = arith.constant 0 : index
    %c0_73 = arith.constant 0 : index
    %85 = arith.index_cast %84 : i32 to index
    %c2_74 = arith.constant 2 : index
    %c0_75 = arith.constant 0 : index
    %86 = vector.load %arg4[%c0_71, %c0_72, %c0_73, %85, %c2_74, %c0_75] : memref<1x1x1x6x6x16xbf16, #tpu.memory_space<vmem>>, vector<1x1x1x4x4x16xbf16>
    %87 = vector.shape_cast %86 : vector<1x1x1x4x4x16xbf16> to vector<4x4x16xbf16>
    %88 = vector.shape_cast %87 : vector<4x4x16xbf16> to vector<16x16xbf16>
    %89 = arith.index_cast %arg3 : i32 to index
    %c8 = arith.constant 8 : index
    %c0_76 = arith.constant 0 : index
    %c0_77 = arith.constant 0 : index
    %90 = vector.load %arg5[%89, %c8, %c0_76, %c0_77] : memref<3x9x16x16xbf16, #tpu.memory_space<vmem>>, vector<1x1x16x16xbf16>
    %91 = vector.shape_cast %90 : vector<1x1x16x16xbf16> to vector<16x16xbf16>
    %cst_78 = arith.constant dense<0.000000e+00> : vector<16x16xf32>
    %92 = tpu.matmul %88, %91, %cst_78 {dimension_numbers = #tpu.dot_dimension_numbers<[1], [0], [0], [1], [0, 0, 1, 1], [], []>} : vector<16x16xbf16>, vector<16x16xbf16>, vector<16x16xf32> -> vector<16x16xf32>
    %93 = arith.addf %83, %92 : vector<16x16xf32>
    %c0_79 = arith.constant 0 : index
    %c0_80 = arith.constant 0 : index
    %94 = vector.load %arg9[%c0_79, %c0_80] : memref<16x16xf32, #tpu.memory_space<vmem>>, vector<16x16xf32>
    %95 = arith.addf %94, %93 : vector<16x16xf32>
    %c0_81 = arith.constant 0 : index
    %c0_82 = arith.constant 0 : index
    %96 = vector.load %arg9[%c0_81, %c0_82] : memref<16x16xf32, #tpu.memory_space<vmem>>, vector<16x16xf32>
    tpu.vector_store %arg9[%c0_81, %c0_82], %95 {strides = array<i32>} : memref<16x16xf32, #tpu.memory_space<vmem>>, vector<16x16xf32>,
    %c2_i32_83 = arith.constant 2 : i32
    %97 = arith.cmpi eq, %arg3, %c2_i32_83 : i32
    %98 = arith.extui %97 : i1 to i32
    %c0_i32_84 = arith.constant 0 : i32
    %99 = arith.cmpi ne, %98, %c0_i32_84 : i32
    scf.if %99 {
      %c0_85 = arith.constant 0 : index
      %c0_86 = arith.constant 0 : index
      %100 = vector.load %arg9[%c0_85, %c0_86] : memref<16x16xf32, #tpu.memory_space<vmem>>, vector<16x16xf32>
      %c0_87 = arith.constant 0 : index
      %c0_88 = arith.constant 0 : index
      %101 = vector.load %arg6[%c0_87, %c0_88] : memref<1x16xf32, #tpu.memory_space<vmem>>, vector<1x16xf32>
      %102 = vector.broadcast %101 : vector<1x16xf32> to vector<16x16xf32>
      %103 = arith.addf %100, %102 : vector<16x16xf32>
      %c0_89 = arith.constant 0 : index
      %c0_90 = arith.constant 0 : index
      %c0_91 = arith.constant 0 : index
      %c0_92 = arith.constant 0 : index
      %104 = vector.load %arg7[%c0_89, %c0_90, %c0_91, %c0_92] : memref<1x1x16x16xbf16, #tpu.memory_space<vmem>>, vector<1x1x16x16xbf16>
      %105 = vector.shape_cast %104 : vector<1x1x16x16xbf16> to vector<16x16xbf16>
      %106 = arith.extf %105 : vector<16x16xbf16> to vector<16x16xf32>
      %107 = arith.addf %103, %106 : vector<16x16xf32>
      %108 = arith.truncf %107 : vector<16x16xf32> to vector<16x16xbf16>
      %c0_93 = arith.constant 0 : index
      %c0_94 = arith.constant 0 : index
      %c0_95 = arith.constant 0 : index
      %c0_96 = arith.constant 0 : index
      %109 = vector.load %arg8[%c0_93, %c0_94, %c0_95, %c0_96] : memref<1x1x16x16xbf16, #tpu.memory_space<vmem>>, vector<1x1x16x16xbf16>
      %110 = vector.shape_cast %109 : vector<1x1x16x16xbf16> to vector<16x16xbf16>
      %111 = vector.shape_cast %108 : vector<16x16xbf16> to vector<1x1x16x16xbf16>
      tpu.vector_store %arg8[%c0_93, %c0_94, %c0_95, %c0_96], %111 {strides = array<i32>} : memref<1x1x16x16xbf16, #tpu.memory_space<vmem>>, vector<1x1x16x16xbf16>,
    } else {
    }
    return
  }
  func.func @transform_0(%arg0: i32, %arg1: i32, %arg2: i32, %arg3: i32) -> (i32, i32, i32, i32, i32, i32) {
    %c1_i32 = arith.constant 1 : i32
    %0 = arith.muli %arg1, %c1_i32 : i32
    %1 = arith.addi %0, %arg3 : i32
    %c0_i32 = arith.constant 0 : i32
    %c0_i32_0 = arith.constant 0 : i32
    %c0_i32_1 = arith.constant 0 : i32
    %c0_i32_2 = arith.constant 0 : i32
    %c0_i32_3 = arith.constant 0 : i32
    return %arg0, %1, %c0_i32, %c0_i32_0, %c0_i32_1, %c0_i32_2 : i32, i32, i32, i32, i32, i32
  }
  func.func @transform_1(%arg0: i32, %arg1: i32, %arg2: i32, %arg3: i32) -> (i32, i32, i32, i32) {
    %c0_i32 = arith.constant 0 : i32
    %c0_i32_0 = arith.constant 0 : i32
    %c0_i32_1 = arith.constant 0 : i32
    %c0_i32_2 = arith.constant 0 : i32
    %c0_i32_3 = arith.constant 0 : i32
    return %c0_i32, %c0_i32_0, %c0_i32_1, %c0_i32_2 : i32, i32, i32, i32
  }
  func.func @transform_2(%arg0: i32, %arg1: i32, %arg2: i32, %arg3: i32) -> (i32, i32) {
    %c0_i32 = arith.constant 0 : i32
    %c0_i32_0 = arith.constant 0 : i32
    %c0_i32_1 = arith.constant 0 : i32
    return %c0_i32, %c0_i32_0 : i32, i32
  }
  func.func @transform_3(%arg0: i32, %arg1: i32, %arg2: i32, %arg3: i32) -> (i32, i32, i32, i32) {
    %c0_i32 = arith.constant 0 : i32
    %c0_i32_0 = arith.constant 0 : i32
    return %arg0, %arg1, %arg2, %c0_i32 : i32, i32, i32, i32
  }
  func.func @transform_4(%arg0: i32, %arg1: i32, %arg2: i32, %arg3: i32) -> (i32, i32, i32, i32) {
    %c0_i32 = arith.constant 0 : i32
    %c0_i32_0 = arith.constant 0 : i32
    return %arg0, %arg1, %arg2, %c0_i32 : i32, i32, i32, i32
  }
}

</mosaic_0001>

<llo_original>
// kernel: encoder_block_forward.10
$region0: #{encoder_block_forward.10}
  #allocation0 [shape = 'u32[]', space=smem, size = 0x4, offset = 0x4, fixed_abs, tag = 'smem constant byte address 0x4 - core index']
  #allocation1 [shape = 'u32[72,128]{1,0:T(1,128)}', space=vmem, size = 0x9000, scoped, tag = 'internal scratch']
  %s0 = inlined_call_operand.vmem [shape: bf16[2,48,16], index: 0, kind: input, shape index: {}]
  %s1 = inlined_call_operand.vmem [shape: f32[2,1,16], index: 1, kind: input, shape index: {}]
  %s2 = inlined_call_operand.vmem [shape: f32[2,1,16], index: 2, kind: input, shape index: {}]
  %s3 = inlined_call_operand.vmem [shape: bf16[2,48,16], index: 3, kind: output, shape index: {}]
  %s4 = sld [smem:[#allocation0]]
  $region45: #{encoder_block_forward.10} parent=0
    _
  %s6 = ssub.s32 1, %s4
  %s7 = scalar_select 0, %s6, %s4
  loop: start=0, step=1, limit=4
  $region2: #{encoder_block_forward.10} parent=0 // loop_pre_header
    _
  $region3: #{encoder_block_forward.10} parent=0 // loop_header
    %s9 = sphi 0, %s13
    %p10 = scmp.ge.s32.totalorder %s9, 4
    %s16 = sphi 0, %s28
    %s17 = sphi 0, %s24
    %s18 = sphi 0, %s16
    %s19 = sphi 0, %s17
    %s20 = sphi 0, %s18
    %s21 = sphi 0, %s19
    %s33 = sphi 0, %s35
    %s36 = sphi 0, %s33
    %s37 = sphi 0, %s36
    %s53 = sphi 0, %s37
    %s59 = sphi 0, %s61
    %s62 = sphi 0, %s59
    %s63 = sphi 0, %s62
    %s79 = sphi 0, %s63
    %s85 = sphi 0, %s87
    %s88 = sphi 0, %s85
    %s89 = sphi 0, %s88
    %s105 = sphi 0, %s89
    %s113 = sphi 0, %s115
    %s116 = sphi 0, %s113
    %s117 = sphi 0, %s116
    %s133 = sphi 0, %s117
  $region4: #{encoder_block_forward.10} parent=0 // loop_header_branch
    %12 = sbr.rel (%p10) target = $region8
  $region5: #{encoder_block_forward.10} parent=0 // loop_body
    %s14 = ssub.s32 %s9, 1
    %s15 = ssub.s32 %s9, 2
    %s22 = sadd.s32 1, %s17
    %p23 = scmp.ge.s32.totalorder %s22, 1
    %s24 = scalar_select %p23, 0, %s22
    %s25 = sadd.s32 1, %s16
    %s26 = scalar_select %p23, %s25, %s16
    %p27 = scmp.ge.s32.totalorder %s26, 2
    %s28 = scalar_select %p27, 0, %s26
    %s29 = ssub.s32 %s16, %s28
    %s30 = ssub.s32 %s17, %s24
    %s31 = sor.u32 %s29, %s30
    %p32 = scmp.eq.s32.totalorder %s31, 0
    %s34 = sadd.s32 %s33, 1
    %s35 = scalar_select %p32, %s33, %s34
    %p38 = pneg %p32
    %p39 = scmp.eq.s32.totalorder %s9, 1
    %p40 = por %p38, %p39
    %p41 = scmp.ne.s32.totalorder %s33, %s36
    %p42 = scmp.eq.s32.totalorder %s9, 0
    %p43 = por %p41, %p42
    %p44 = scmp.ne.s32.totalorder %s33, %s36
    %p45 = scmp.eq.s32.totalorder %s14, 1
    %p46 = por %p44, %p45
    %p47 = scmp.ne.s32.totalorder %s36, %s37
    %p48 = scmp.eq.s32.totalorder %s14, 0
    %p49 = por %p47, %p48
    %p50 = scmp.ne.s32.totalorder %s36, %s37
    %p51 = scmp.eq.s32.totalorder %s15, 1
    %p52 = por %p50, %p51
    %p54 = scmp.ne.s32.totalorder %s37, %s53
    %p55 = scmp.eq.s32.totalorder %s15, 0
    %p56 = por %p54, %p55
    %s57 = ssub.s32 %s16, %s28
    %p58 = scmp.eq.s32.totalorder %s57, 0
    %s60 = sadd.s32 %s59, 1
    %s61 = scalar_select %p58, %s59, %s60
    %p64 = pneg %p58
    %p65 = scmp.eq.s32.totalorder %s9, 1
    %p66 = por %p64, %p65
    %p67 = scmp.ne.s32.totalorder %s59, %s62
    %p68 = scmp.eq.s32.totalorder %s9, 0
    %p69 = por %p67, %p68
    %p70 = scmp.ne.s32.totalorder %s59, %s62
    %p71 = scmp.eq.s32.totalorder %s14, 1
    %p72 = por %p70, %p71
    %p73 = scmp.ne.s32.totalorder %s62, %s63
    %p74 = scmp.eq.s32.totalorder %s14, 0
    %p75 = por %p73, %p74
    %p76 = scmp.ne.s32.totalorder %s62, %s63
    %p77 = scmp.eq.s32.totalorder %s15, 1
    %p78 = por %p76, %p77
    %p80 = scmp.ne.s32.totalorder %s63, %s79
    %p81 = scmp.eq.s32.totalorder %s15, 0
    %p82 = por %p80, %p81
    %s83 = ssub.s32 %s16, %s28
    %p84 = scmp.eq.s32.totalorder %s83, 0
    %s86 = sadd.s32 %s85, 1
    %s87 = scalar_select %p84, %s85, %s86
    %p90 = pneg %p84
    %p91 = scmp.eq.s32.totalorder %s9, 1
    %p92 = por %p90, %p91
    %p93 = scmp.ne.s32.totalorder %s85, %s88
    %p94 = scmp.eq.s32.totalorder %s9, 0
    %p95 = por %p93, %p94
    %p96 = scmp.ne.s32.totalorder %s85, %s88
    %p97 = scmp.eq.s32.totalorder %s14, 1
    %p98 = por %p96, %p97
    %p99 = scmp.ne.s32.totalorder %s88, %s89
    %p100 = scmp.eq.s32.totalorder %s14, 0
    %p101 = por %p99, %p100
    %p102 = scmp.ne.s32.totalorder %s88, %s89
    %p103 = scmp.eq.s32.totalorder %s15, 1
    %p104 = por %p102, %p103
    %p106 = scmp.ne.s32.totalorder %s89, %s105
    %p107 = scmp.eq.s32.totalorder %s15, 0
    %p108 = por %p106, %p107
    %s109 = ssub.s32 %s16, %s28
    %s110 = ssub.s32 %s17, %s24
    %s111 = sor.u32 %s109, %s110
    %p112 = scmp.eq.s32.totalorder %s111, 0
    %s114 = sadd.s32 %s113, 1
    %s115 = scalar_select %p112, %s113, %s114
    %p118 = pneg %p112
    %p119 = scmp.eq.s32.totalorder %s9, 1
    %p120 = por %p118, %p119
    %p121 = scmp.ne.s32.totalorder %s113, %s116
    %p122 = scmp.eq.s32.totalorder %s9, 0
    %p123 = por %p121, %p122
    %p124 = scmp.ne.s32.totalorder %s113, %s116
    %p125 = scmp.eq.s32.totalorder %s14, 1
    %p126 = por %p124, %p125
    %p127 = scmp.ne.s32.totalorder %s116, %s117
    %p128 = scmp.eq.s32.totalorder %s14, 0
    %p129 = por %p127, %p128
    %p130 = scmp.ne.s32.totalorder %s116, %s117
    %p131 = scmp.eq.s32.totalorder %s15, 1
    %p132 = por %p130, %p131
    %p134 = scmp.ne.s32.totalorder %s117, %s133
    %p135 = scmp.eq.s32.totalorder %s15, 0
    %p136 = por %p134, %p135
    %p137 = scmp.le.s32.totalorder 1, %s9
    %p138 = scmp.lt.s32.totalorder %s9, 3
    %p139 = pnand %p137, %p138
    %p140 = pneg %p139
    // Predicated region
    $region9: #{encoder_block_forward.10} parent=5 // pred_check
      _
    $region10: #{encoder_block_forward.10} parent=5 // pred_check_branch
      %142 = sbr.rel (%p139) target = $region12
    $region11: #{encoder_block_forward.10} parent=5 // pred_region
      %s143 = ssub.s32 %s9, 1
    $region12: #{encoder_block_forward.10} parent=5 // pred_fallthru
      _
    %p144 = scmp.lt.s32.totalorder %s9, 2
    // Predicated region
    $region13: #{encoder_block_forward.10} parent=5 // pred_check
      %p145 = pneg %p144
    $region14: #{encoder_block_forward.10} parent=5 // pred_check_branch
      %147 = sbr.rel (%p145) target = $region16
    $region15: #{encoder_block_forward.10} parent=5 // pred_region
      // Predicated region
      $region17: #{encoder_block_forward.10} parent=15 // pred_check
        %p148 = pneg %p43
      $region18: #{encoder_block_forward.10} parent=15 // pred_check_branch
        %150 = sbr.rel (%p148) target = $region20
      $region19: #{encoder_block_forward.10} parent=15 // pred_region
        %s151 = smul.u32 6, %s17
        %p152 = scmp.lt.s32.totalorder %s16, 1
        %s153 = scalar_select %p152, %s16, 1
        %p154 = scmp.lt.s32.totalorder %s151, 5
        %s155 = scalar_select %p154, %s151, 5
        %s156 = smul.addr %s153, 6
        %s157 = sadd.s32 %s155, %s156
        %s158 = smul.addr %s157, 4
        %s159 = scalar_lea.vmem %s0, %s158
        %s160 = smul.u32 6, %s17
      $region20: #{encoder_block_forward.10} parent=15 // pred_fallthru
        _
      // Predicated region
      $region21: #{encoder_block_forward.10} parent=15 // pred_check
        %p161 = pneg %p69
      $region22: #{encoder_block_forward.10} parent=15 // pred_check_branch
        %163 = sbr.rel (%p161) target = $region24
      $region23: #{encoder_block_forward.10} parent=15 // pred_region
        %p164 = scmp.lt.s32.totalorder %s16, 1
        %s165 = scalar_select %p164, %s16, 1
        %s166 = scalar_lea.vmem %s1, %s165
      $region24: #{encoder_block_forward.10} parent=15 // pred_fallthru
        _
      // Predicated region
      $region25: #{encoder_block_forward.10} parent=15 // pred_check
        %p167 = pneg %p95
      $region26: #{encoder_block_forward.10} parent=15 // pred_check_branch
        %169 = sbr.rel (%p167) target = $region28
      $region27: #{encoder_block_forward.10} parent=15 // pred_region
        %p170 = scmp.lt.s32.totalorder %s16, 1
        %s171 = scalar_select %p170, %s16, 1
        %s172 = scalar_lea.vmem %s2, %s171
      $region28: #{encoder_block_forward.10} parent=15 // pred_fallthru
        _
    $region16: #{encoder_block_forward.10} parent=5 // pred_fallthru
      _
    %p173 = scmp.le.s32.totalorder 1, %s9
    %p174 = scmp.lt.s32.totalorder %s9, 3
    %p175 = pnand %p173, %p174
    %p176 = pneg %p175
    // Predicated region
    $region29: #{encoder_block_forward.10} parent=5 // pred_check
      _
    $region30: #{encoder_block_forward.10} parent=5 // pred_check_branch
      %178 = sbr.rel (%p175) target = $region32
    $region31: #{encoder_block_forward.10} parent=5 // pred_region
      %s179 = ssub.s32 %s9, 1
      %s180 = smul.u32 6, %s19
      %p181 = scmp.lt.s32.totalorder %s18, 1
      %s182 = scalar_select %p181, %s18, 1
      %p183 = scmp.lt.s32.totalorder %s180, 5
      %s184 = scalar_select %p183, %s180, 5
      %s185 = smul.addr %s182, 6
      %s186 = sadd.s32 %s184, %s185
      %s187 = smul.addr %s186, 4
      %s188 = scalar_lea.vmem %s0, %s187
      %p189 = pneg %p49
      %p190 = pneg %p46
      %p191 = scmp.lt.s32.totalorder %s18, 1
      %s192 = scalar_select %p191, %s18, 1
      %s193 = scalar_lea.vmem %s1, %s192
      %p194 = pneg %p75
      %p195 = pneg %p72
      %p196 = scmp.lt.s32.totalorder %s18, 1
      %s197 = scalar_select %p196, %s18, 1
      %s198 = scalar_lea.vmem %s2, %s197
      %p199 = pneg %p101
      %p200 = pneg %p98
      %p201 = pneg %p129
      %p202 = pneg %p126
      %s203 = smul.u32 6, %s19
      %p204 = scmp.lt.s32.totalorder %s18, 1
      %s205 = scalar_select %p204, %s18, 1
      %p206 = scmp.lt.s32.totalorder %s203, 5
      %s207 = scalar_select %p206, %s203, 5
      %s208 = smul.addr %s205, 6
      %s209 = sadd.s32 %s207, %s208
      %s210 = smul.addr %s209, 4
      %s211 = scalar_lea.vmem %s3, %s210
      %s212 = smul.u32 6, %s19
      %p213 = scmp.lt.s32.totalorder %s18, 1
      %s214 = scalar_select %p213, %s18, 1
      %p215 = scmp.lt.s32.totalorder %s212, 5
      %s216 = scalar_select %p215, %s212, 5
      %s217 = smul.addr %s214, 6
      %s218 = sadd.s32 %s216, %s217
      %s219 = smul.addr %s218, 4
      %s220 = scalar_lea.vmem %s0, %s219
      %s221 = smul.u32 6, %s19
      %p222 = scmp.lt.s32.totalorder %s18, 1
      %s223 = scalar_select %p222, %s18, 1
      %s224 = scalar_lea.vmem %s1, %s223
      %p225 = scmp.lt.s32.totalorder %s18, 1
      %s226 = scalar_select %p225, %s18, 1
      %s227 = scalar_lea.vmem %s2, %s226
      %s228 = smul.u32 6, %s19
      %p229 = scmp.lt.s32.totalorder %s18, 1
      %s230 = scalar_select %p229, %s18, 1
      %p231 = scmp.lt.s32.totalorder %s228, 5
      %s232 = scalar_select %p231, %s228, 5
      %s233 = smul.addr %s230, 6
      %s234 = sadd.s32 %s232, %s233
      %s235 = smul.addr %s234, 4
      %s236 = scalar_lea.vmem %s3, %s235
      %s237 = smul.u32 6, %s19
      %v238 = vld [vmem:[%s220] sm:$0xf]
      %v239 = vld [vmem:[%s220 + $0x4] sm:$0xf]
      %v240 = vld [vmem:[%s220 + $0x8] sm:$0xf]
      %v241 = vld [vmem:[%s220 + $0xc] sm:$0xf]
      %v242 = vld [vmem:[%s220 + $0x10] sm:$0xf]
      %v243 = vld [vmem:[%s220 + $0x14] sm:$0xf]
      %v244 = vunpack.c.l.bf16 %v238
      %v245 = vunpack.c.l.bf16 %v239
      %v246 = vunpack.c.l.bf16 %v240
      %v247 = vunpack.c.l.bf16 %v241
      %v248 = vunpack.c.l.bf16 %v242
      %v249 = vunpack.c.l.bf16 %v243
      %v250 = vld [vmem:[%s224] sm:$0x1]
      %v252 = vperm.slane %v250, 0
      %v254 = vmul.f32 %v244, %v252
      %v255 = vmul.f32 %v245, %v252
      %v256 = vmul.f32 %v246, %v252
      %v257 = vmul.f32 %v247, %v252
      %v258 = vmul.f32 %v248, %v252
      %v259 = vmul.f32 %v249, %v252
      %v260 = vld [vmem:[%s227] sm:$0x1]
      %v262 = vperm.slane %v260, 0
      %v264 = vadd.f32 %v254, %v262
      %v265 = vadd.f32 %v255, %v262
      %v266 = vadd.f32 %v256, %v262
      %v267 = vadd.f32 %v257, %v262
      %v268 = vadd.f32 %v258, %v262
      %v269 = vadd.f32 %v259, %v262
      %v270 = vxor.u32 %v264, 2147483648
      %v271 = vxor.u32 %v265, 2147483648
      %v272 = vxor.u32 %v266, 2147483648
      %v273 = vxor.u32 %v267, 2147483648
      %v274 = vxor.u32 %v268, 2147483648
      %v275 = vxor.u32 %v269, 2147483648
      %v276 = vmul.f32 %v270, 1.442695
      %v277 = vpow.pop %v276
      %v278 = vmul.f32 %v271, 1.442695
      %v279 = vpow.pop %v278
      %v280 = vmul.f32 %v272, 1.442695
      %v281 = vpow.pop %v280
      %v282 = vmul.f32 %v273, 1.442695
      %v283 = vpow.pop %v282
      %v284 = vmul.f32 %v274, 1.442695
      %v285 = vpow.pop %v284
      %v286 = vmul.f32 %v275, 1.442695
      %v287 = vpow.pop %v286
      %v288 = vadd.f32 %v277, 1.0
      %v289 = vadd.f32 %v279, 1.0
      %v290 = vadd.f32 %v281, 1.0
      %v291 = vadd.f32 %v283, 1.0
      %v292 = vadd.f32 %v285, 1.0
      %v293 = vadd.f32 %v287, 1.0
      %v294 = vrcp.pop %v288
      %v295 = vmul.f32 %v288, %v294
      %v296 = vsub.f32 1.0, %v295
      %v297 = vmul.f32 %v294, %v296
      %v298 = vadd.f32 %v294, %v297
      %vm299 = vweird.f32 %v288
      %vm300 = vweird.f32 %v294
      %vm301 = vmor %vm299, %vm300
      %v302 = vsel %vm301, %v294, %v298
      %v303 = vand.u32 2147483647, %v288
      %vm304 = vcmp.eq.f32.partialorder %v303, 8.507059e+37
      %v305 = vand.u32 %v288, 2147483648
      %v306 = vor.u32 1.1754944e-38, %v305
      %v307 = vsel %vm304, %v306, %v302
      %v308 = vmul.f32 1.0, %v307
      %v309 = vrcp.pop %v289
      %v310 = vmul.f32 %v289, %v309
      %v311 = vsub.f32 1.0, %v310
      %v312 = vmul.f32 %v309, %v311
      %v313 = vadd.f32 %v309, %v312
      %vm314 = vweird.f32 %v289
      %vm315 = vweird.f32 %v309
      %vm316 = vmor %vm314, %vm315
      %v317 = vsel %vm316, %v309, %v313
      %v318 = vand.u32 2147483647, %v289
      %vm319 = vcmp.eq.f32.partialorder %v318, 8.507059e+37
      %v320 = vand.u32 %v289, 2147483648
      %v321 = vor.u32 1.1754944e-38, %v320
      %v322 = vsel %vm319, %v321, %v317
      %v323 = vmul.f32 1.0, %v322
      %v324 = vrcp.pop %v290
      %v325 = vmul.f32 %v290, %v324
      %v326 = vsub.f32 1.0, %v325
      %v327 = vmul.f32 %v324, %v326
      %v328 = vadd.f32 %v324, %v327
      %vm329 = vweird.f32 %v290
      %vm330 = vweird.f32 %v324
      %vm331 = vmor %vm329, %vm330
      %v332 = vsel %vm331, %v324, %v328
      %v333 = vand.u32 2147483647, %v290
      %vm334 = vcmp.eq.f32.partialorder %v333, 8.507059e+37
      %v335 = vand.u32 %v290, 2147483648
      %v336 = vor.u32 1.1754944e-38, %v335
      %v337 = vsel %vm334, %v336, %v332
      %v338 = vmul.f32 1.0, %v337
      %v339 = vrcp.pop %v291
      %v340 = vmul.f32 %v291, %v339
      %v341 = vsub.f32 1.0, %v340
      %v342 = vmul.f32 %v339, %v341
      %v343 = vadd.f32 %v339, %v342
      %vm344 = vweird.f32 %v291
      %vm345 = vweird.f32 %v339
      %vm346 = vmor %vm344, %vm345
      %v347 = vsel %vm346, %v339, %v343
      %v348 = vand.u32 2147483647, %v291
      %vm349 = vcmp.eq.f32.partialorder %v348, 8.507059e+37
      %v350 = vand.u32 %v291, 2147483648
      %v351 = vor.u32 1.1754944e-38, %v350
      %v352 = vsel %vm349, %v351, %v347
      %v353 = vmul.f32 1.0, %v352
      %v354 = vrcp.pop %v292
      %v355 = vmul.f32 %v292, %v354
      %v356 = vsub.f32 1.0, %v355
      %v357 = vmul.f32 %v354, %v356
      %v358 = vadd.f32 %v354, %v357
      %vm359 = vweird.f32 %v292
      %vm360 = vweird.f32 %v354
      %vm361 = vmor %vm359, %vm360
      %v362 = vsel %vm361, %v354, %v358
      %v363 = vand.u32 2147483647, %v292
      %vm364 = vcmp.eq.f32.partialorder %v363, 8.507059e+37
      %v365 = vand.u32 %v292, 2147483648
      %v366 = vor.u32 1.1754944e-38, %v365
      %v367 = vsel %vm364, %v366, %v362
      %v368 = vmul.f32 1.0, %v367
      %v369 = vrcp.pop %v293
      %v370 = vmul.f32 %v293, %v369
      %v371 = vsub.f32 1.0, %v370
      %v372 = vmul.f32 %v369, %v371
      %v373 = vadd.f32 %v369, %v372
      %vm374 = vweird.f32 %v293
      %vm375 = vweird.f32 %v369
      %vm376 = vmor %vm374, %vm375
      %v377 = vsel %vm376, %v369, %v373
      %v378 = vand.u32 2147483647, %v293
      %vm379 = vcmp.eq.f32.partialorder %v378, 8.507059e+37
      %v380 = vand.u32 %v293, 2147483648
      %v381 = vor.u32 1.1754944e-38, %v380
      %v382 = vsel %vm379, %v381, %v377
      %v383 = vmul.f32 1.0, %v382
      %v384 = vmul.f32 %v264, %v308
      %v385 = vmul.f32 %v265, %v323
      %v386 = vmul.f32 %v266, %v338
      %v387 = vmul.f32 %v267, %v353
      %v388 = vmul.f32 %v268, %v368
      %v389 = vmul.f32 %v269, %v383
      %v390 = vpack.c.bf16 %v384, %v384
      %v391 = vpack.c.bf16 %v385, %v385
      %v392 = vpack.c.bf16 %v386, %v386
      %v393 = vpack.c.bf16 %v387, %v387
      %v394 = vpack.c.bf16 %v388, %v388
      %v395 = vpack.c.bf16 %v389, %v389
      %vm396 = vcmask 125952
      %397 = vst.msk [vmem:[%s236] sm:$0xf] %vm396, %v390
      %398 = vst.msk [vmem:[%s236 + $0x4] sm:$0xf] %vm396, %v391
      %399 = vst.msk [vmem:[%s236 + $0x8] sm:$0xf] %vm396, %v392
      %400 = vst.msk [vmem:[%s236 + $0xc] sm:$0xf] %vm396, %v393
      %401 = vst.msk [vmem:[%s236 + $0x10] sm:$0xf] %vm396, %v394
      %402 = vst.msk [vmem:[%s236 + $0x14] sm:$0xf] %vm396, %v395
      %s403 = smul.u32 6, %s19
      %p404 = scmp.lt.s32.totalorder %s18, 1
      %s405 = scalar_select %p404, %s18, 1
      %p406 = scmp.lt.s32.totalorder %s403, 5
      %s407 = scalar_select %p406, %s403, 5
      %s408 = smul.addr %s405, 6
      %s409 = sadd.s32 %s407, %s408
      %s410 = smul.addr %s409, 4
      %s411 = scalar_lea.vmem %s3, %s410
      // Predicated region
      $region33: #{encoder_block_forward.10} parent=31 // pred_check
        %p412 = pneg %p126
      $region34: #{encoder_block_forward.10} parent=31 // pred_check_branch
        %414 = sbr.rel (%p412) target = $region36
      $region35: #{encoder_block_forward.10} parent=31 // pred_region
        %s415 = smul.u32 6, %s19
      $region36: #{encoder_block_forward.10} parent=31 // pred_fallthru
        _
    $region32: #{encoder_block_forward.10} parent=5 // pred_fallthru
      _
    %p416 = scmp.le.s32.totalorder 2, %s9
    // Predicated region
    $region37: #{encoder_block_forward.10} parent=5 // pred_check
      %p417 = pneg %p416
    $region38: #{encoder_block_forward.10} parent=5 // pred_check_branch
      %419 = sbr.rel (%p417) target = $region40
    $region39: #{encoder_block_forward.10} parent=5 // pred_region
      %s420 = ssub.s32 %s9, 2
      // Predicated region
      $region41: #{encoder_block_forward.10} parent=39 // pred_check
        %p421 = pneg %p132
      $region42: #{encoder_block_forward.10} parent=39 // pred_check_branch
        %423 = sbr.rel (%p421) target = $region44
      $region43: #{encoder_block_forward.10} parent=39 // pred_region
        %s424 = smul.u32 6, %s21
        %p425 = scmp.lt.s32.totalorder %s20, 1
        %s426 = scalar_select %p425, %s20, 1
        %p427 = scmp.lt.s32.totalorder %s424, 5
        %s428 = scalar_select %p427, %s424, 5
        %s429 = smul.addr %s426, 6
        %s430 = sadd.s32 %s428, %s429
        %s431 = smul.addr %s430, 4
        %s432 = scalar_lea.vmem %s3, %s431
      $region44: #{encoder_block_forward.10} parent=39 // pred_fallthru
        _
    $region40: #{encoder_block_forward.10} parent=5 // pred_fallthru
      _
  $region6: #{encoder_block_forward.10} parent=0 // loop_footer
    %s13 = sadd.s32 1, %s9
  $region7: #{encoder_block_forward.10} parent=0 // loop_footer_branch
    %8 = sbr.rel target = $region3
  $region8: #{encoder_block_forward.10} parent=0 // loop_exit
    _

// kernel: encoder_block_forward.9
$region0: #{encoder_block_forward.9}
  #allocation0 [shape = 'u32[]', space=smem, size = 0x4, offset = 0x4, fixed_abs, tag = 'smem constant byte address 0x4 - core index']
  #allocation1 [shape = 'u32[72,128]{1,0:T(1,128)}', space=vmem, size = 0x9000, scoped, tag = 'internal scratch']
  #allocation2 [shape = 'f32[16,16]{1,0:T(8,128)}', space=vmem, size = 0x2000, scoped, tag = 'scratch operand']
  %s0 = inlined_call_operand.vmem [shape: bf16[2,7,4,5,5,4], index: 0, kind: input, shape index: {}]
  %s1 = inlined_call_operand.vmem [shape: bf16[3,9,4,16], index: 1, kind: input, shape index: {}]
  %s2 = inlined_call_operand.vmem [shape: f32[1,16], index: 2, kind: input, shape index: {}]
  %s3 = inlined_call_operand.vmem [shape: bf16[2,3,16,16], index: 3, kind: output, shape index: {0}]
  %s4 = inlined_call_operand.vmem [shape: f32[2,1,16], index: 4, kind: output, shape index: {1}]
  %s5 = inlined_call_operand.vmem [shape: f32[2,1,16], index: 5, kind: output, shape index: {2}]
  %6 = xla_tuple %s3, %s4, %s5
  %s7 = sld [smem:[#allocation0]]
  $region73: #{encoder_block_forward.9} parent=0
    _
  %s9 = ssub.s32 1, %s7
  %s10 = scalar_select 0, %s9, %s7
  loop: start=0, step=1, limit=20
  $region2: #{encoder_block_forward.9} parent=0 // loop_pre_header
    _
  $region3: #{encoder_block_forward.9} parent=0 // loop_header
    %s12 = sphi 0, %s16
    %p13 = scmp.ge.s32.totalorder %s12, 20
    %s19 = sphi 0, %s45
    %s20 = sphi 0, %s41
    %s21 = sphi 0, %s37
    %s22 = sphi 0, %s33
    %s23 = sphi 0, %s19
    %s24 = sphi 0, %s20
    %s25 = sphi 0, %s21
    %s26 = sphi 0, %s22
    %s27 = sphi 0, %s23
    %s28 = sphi 0, %s24
    %s29 = sphi 0, %s25
    %s30 = sphi 0, %s26
    %s54 = sphi 0, %s56
    %s57 = sphi 0, %s54
    %s58 = sphi 0, %s57
    %s74 = sphi 0, %s58
    %s78 = sphi 0, %s78
    %s80 = sphi 0, %s78
    %s81 = sphi 0, %s80
    %s95 = sphi 0, %s81
    %s99 = sphi 0, %s99
    %s101 = sphi 0, %s99
    %s102 = sphi 0, %s101
    %s116 = sphi 0, %s102
    %s126 = sphi 0, %s128
    %s129 = sphi 0, %s126
    %s130 = sphi 0, %s129
    %s146 = sphi 0, %s130
    %s152 = sphi 0, %s154
    %s155 = sphi 0, %s152
    %s156 = sphi 0, %s155
    %s172 = sphi 0, %s156
    %s178 = sphi 0, %s180
    %s181 = sphi 0, %s178
    %s182 = sphi 0, %s181
    %s198 = sphi 0, %s182
  $region4: #{encoder_block_forward.9} parent=0 // loop_header_branch
    %15 = sbr.rel (%p13) target = $region8
  $region5: #{encoder_block_forward.9} parent=0 // loop_body
    %s17 = ssub.s32 %s12, 1
    %s18 = ssub.s32 %s12, 2
    %s31 = sadd.s32 1, %s22
    %p32 = scmp.ge.s32.totalorder %s31, 3
    %s33 = scalar_select %p32, 0, %s31
    %s34 = sadd.s32 1, %s21
    %s35 = scalar_select %p32, %s34, %s21
    %p36 = scmp.ge.s32.totalorder %s35, 1
    %s37 = scalar_select %p36, 0, %s35
    %s38 = sadd.s32 1, %s20
    %s39 = scalar_select %p36, %s38, %s20
    %p40 = scmp.ge.s32.totalorder %s39, 3
    %s41 = scalar_select %p40, 0, %s39
    %s42 = sadd.s32 1, %s19
    %s43 = scalar_select %p40, %s42, %s19
    %p44 = scmp.ge.s32.totalorder %s43, 2
    %s45 = scalar_select %p44, 0, %s43
    %s46 = smul.u32 %s20, 2
    %s47 = sadd.s32 %s46, %s22
    %s48 = smul.u32 %s41, 2
    %s49 = sadd.s32 %s48, %s33
    %s50 = ssub.s32 %s19, %s45
    %s51 = ssub.s32 %s47, %s49
    %s52 = sor.u32 %s50, %s51
    %p53 = scmp.eq.s32.totalorder %s52, 0
    %s55 = sadd.s32 %s54, 1
    %s56 = scalar_select %p53, %s54, %s55
    %p59 = pneg %p53
    %p60 = scmp.eq.s32.totalorder %s12, 17
    %p61 = por %p59, %p60
    %p62 = scmp.ne.s32.totalorder %s54, %s57
    %p63 = scmp.eq.s32.totalorder %s12, 0
    %p64 = por %p62, %p63
    %p65 = scmp.ne.s32.totalorder %s54, %s57
    %p66 = scmp.eq.s32.totalorder %s17, 17
    %p67 = por %p65, %p66
    %p68 = scmp.ne.s32.totalorder %s57, %s58
    %p69 = scmp.eq.s32.totalorder %s17, 0
    %p70 = por %p68, %p69
    %p71 = scmp.ne.s32.totalorder %s57, %s58
    %p72 = scmp.eq.s32.totalorder %s18, 17
    %p73 = por %p71, %p72
    %p75 = scmp.ne.s32.totalorder %s58, %s74
    %p76 = scmp.eq.s32.totalorder %s18, 0
    %p77 = por %p75, %p76
    %s79 = sadd.s32 %s78, 1
    %p82 = scmp.eq.s32.totalorder %s12, 17
    %p83 = scmp.ne.s32.totalorder %s78, %s80
    %p84 = scmp.eq.s32.totalorder %s12, 0
    %p85 = por %p83, %p84
    %p86 = scmp.ne.s32.totalorder %s78, %s80
    %p87 = scmp.eq.s32.totalorder %s17, 17
    %p88 = por %p86, %p87
    %p89 = scmp.ne.s32.totalorder %s80, %s81
    %p90 = scmp.eq.s32.totalorder %s17, 0
    %p91 = por %p89, %p90
    %p92 = scmp.ne.s32.totalorder %s80, %s81
    %p93 = scmp.eq.s32.totalorder %s18, 17
    %p94 = por %p92, %p93
    %p96 = scmp.ne.s32.totalorder %s81, %s95
    %p97 = scmp.eq.s32.totalorder %s18, 0
    %p98 = por %p96, %p97
    %s100 = sadd.s32 %s99, 1
    %p103 = scmp.eq.s32.totalorder %s12, 17
    %p104 = scmp.ne.s32.totalorder %s99, %s101
    %p105 = scmp.eq.s32.totalorder %s12, 0
    %p106 = por %p104, %p105
    %p107 = scmp.ne.s32.totalorder %s99, %s101
    %p108 = scmp.eq.s32.totalorder %s17, 17
    %p109 = por %p107, %p108
    %p110 = scmp.ne.s32.totalorder %s101, %s102
    %p111 = scmp.eq.s32.totalorder %s17, 0
    %p112 = por %p110, %p111
    %p113 = scmp.ne.s32.totalorder %s101, %s102
    %p114 = scmp.eq.s32.totalorder %s18, 17
    %p115 = por %p113, %p114
    %p117 = scmp.ne.s32.totalorder %s102, %s116
    %p118 = scmp.eq.s32.totalorder %s18, 0
    %p119 = por %p117, %p118
    %s120 = ssub.s32 %s19, %s45
    %s121 = ssub.s32 %s20, %s41
    %s122 = sor.u32 %s120, %s121
    %s123 = ssub.s32 %s21, %s37
    %s124 = sor.u32 %s122, %s123
    %p125 = scmp.eq.s32.totalorder %s124, 0
    %s127 = sadd.s32 %s126, 1
    %s128 = scalar_select %p125, %s126, %s127
    %p131 = pneg %p125
    %p132 = scmp.eq.s32.totalorder %s12, 17
    %p133 = por %p131, %p132
    %p134 = scmp.ne.s32.totalorder %s126, %s129
    %p135 = scmp.eq.s32.totalorder %s12, 0
    %p136 = por %p134, %p135
    %p137 = scmp.ne.s32.totalorder %s126, %s129
    %p138 = scmp.eq.s32.totalorder %s17, 17
    %p139 = por %p137, %p138
    %p140 = scmp.ne.s32.totalorder %s129, %s130
    %p141 = scmp.eq.s32.totalorder %s17, 0
    %p142 = por %p140, %p141
    %p143 = scmp.ne.s32.totalorder %s129, %s130
    %p144 = scmp.eq.s32.totalorder %s18, 17
    %p145 = por %p143, %p144
    %p147 = scmp.ne.s32.totalorder %s130, %s146
    %p148 = scmp.eq.s32.totalorder %s18, 0
    %p149 = por %p147, %p148
    %s150 = ssub.s32 %s19, %s45
    %p151 = scmp.eq.s32.totalorder %s150, 0
    %s153 = sadd.s32 %s152, 1
    %s154 = scalar_select %p151, %s152, %s153
    %p157 = pneg %p151
    %p158 = scmp.eq.s32.totalorder %s12, 17
    %p159 = por %p157, %p158
    %p160 = scmp.ne.s32.totalorder %s152, %s155
    %p161 = scmp.eq.s32.totalorder %s12, 0
    %p162 = por %p160, %p161
    %p163 = scmp.ne.s32.totalorder %s152, %s155
    %p164 = scmp.eq.s32.totalorder %s17, 17
    %p165 = por %p163, %p164
    %p166 = scmp.ne.s32.totalorder %s155, %s156
    %p167 = scmp.eq.s32.totalorder %s17, 0
    %p168 = por %p166, %p167
    %p169 = scmp.ne.s32.totalorder %s155, %s156
    %p170 = scmp.eq.s32.totalorder %s18, 17
    %p171 = por %p169, %p170
    %p173 = scmp.ne.s32.totalorder %s156, %s172
    %p174 = scmp.eq.s32.totalorder %s18, 0
    %p175 = por %p173, %p174
    %s176 = ssub.s32 %s19, %s45
    %p177 = scmp.eq.s32.totalorder %s176, 0
    %s179 = sadd.s32 %s178, 1
    %s180 = scalar_select %p177, %s178, %s179
    %p183 = pneg %p177
    %p184 = scmp.eq.s32.totalorder %s12, 17
    %p185 = por %p183, %p184
    %p186 = scmp.ne.s32.totalorder %s178, %s181
    %p187 = scmp.eq.s32.totalorder %s12, 0
    %p188 = por %p186, %p187
    %p189 = scmp.ne.s32.totalorder %s178, %s181
    %p190 = scmp.eq.s32.totalorder %s17, 17
    %p191 = por %p189, %p190
    %p192 = scmp.ne.s32.totalorder %s181, %s182
    %p193 = scmp.eq.s32.totalorder %s17, 0
    %p194 = por %p192, %p193
    %p195 = scmp.ne.s32.totalorder %s181, %s182
    %p196 = scmp.eq.s32.totalorder %s18, 17
    %p197 = por %p195, %p196
    %p199 = scmp.ne.s32.totalorder %s182, %s198
    %p200 = scmp.eq.s32.totalorder %s18, 0
    %p201 = por %p199, %p200
    %p202 = scmp.le.s32.totalorder 1, %s12
    %p203 = scmp.lt.s32.totalorder %s12, 19
    %p204 = pnand %p202, %p203
    %p205 = pneg %p204
    // Predicated region
    $region9: #{encoder_block_forward.9} parent=5 // pred_check
      _
    $region10: #{encoder_block_forward.9} parent=5 // pred_check_branch
      %207 = sbr.rel (%p204) target = $region12
    $region11: #{encoder_block_forward.9} parent=5 // pred_region
      %s208 = ssub.s32 %s12, 1
      // Predicated region
      $region13: #{encoder_block_forward.9} parent=11 // pred_check
        %p209 = pneg %p91
      $region14: #{encoder_block_forward.9} parent=11 // pred_check_branch
        %211 = sbr.rel (%p209) target = $region16
      $region15: #{encoder_block_forward.9} parent=11 // pred_region
        _
      $region16: #{encoder_block_forward.9} parent=11 // pred_fallthru
        _
      // Predicated region
      $region17: #{encoder_block_forward.9} parent=11 // pred_check
        %p212 = pneg %p112
      $region18: #{encoder_block_forward.9} parent=11 // pred_check_branch
        %214 = sbr.rel (%p212) target = $region20
      $region19: #{encoder_block_forward.9} parent=11 // pred_region
        _
      $region20: #{encoder_block_forward.9} parent=11 // pred_fallthru
        _
    $region12: #{encoder_block_forward.9} parent=5 // pred_fallthru
      _
    %p215 = scmp.lt.s32.totalorder %s12, 18
    // Predicated region
    $region21: #{encoder_block_forward.9} parent=5 // pred_check
      %p216 = pneg %p215
    $region22: #{encoder_block_forward.9} parent=5 // pred_check_branch
      %218 = sbr.rel (%p216) target = $region24
    $region23: #{encoder_block_forward.9} parent=5 // pred_region
      // Predicated region
      $region25: #{encoder_block_forward.9} parent=23 // pred_check
        %p219 = pneg %p64
      $region26: #{encoder_block_forward.9} parent=23 // pred_check_branch
        %221 = sbr.rel (%p219) target = $region28
      $region27: #{encoder_block_forward.9} parent=23 // pred_region
        %s222 = smul.u32 %s20, 2
        %s223 = sadd.s32 %s222, %s22
        %p224 = scmp.lt.s32.totalorder %s19, 1
        %s225 = scalar_select %p224, %s19, 1
        %p226 = scmp.lt.s32.totalorder %s223, 6
        %s227 = scalar_select %p226, %s223, 6
        %s228 = smul.addr %s227, 20
        %s229 = smul.addr %s225, 140
        %s230 = sadd.s32 %s228, %s229
        %s231 = smul.addr %s230, 4
        %s232 = scalar_lea.vmem %s0, %s231
        %s233 = smul.u32 %s20, 2
        %s234 = sadd.s32 %s233, %s22
      $region28: #{encoder_block_forward.9} parent=23 // pred_fallthru
        _
    $region24: #{encoder_block_forward.9} parent=5 // pred_fallthru
      _
    %p235 = scmp.le.s32.totalorder 1, %s12
    %p236 = scmp.lt.s32.totalorder %s12, 19
    %p237 = pnand %p235, %p236
    %p238 = pneg %p237
    // Predicated region
    $region29: #{encoder_block_forward.9} parent=5 // pred_check
      _
    $region30: #{encoder_block_forward.9} parent=5 // pred_check_branch
      %240 = sbr.rel (%p237) target = $region32
    $region31: #{encoder_block_forward.9} parent=5 // pred_region
      %s241 = ssub.s32 %s12, 1
      %s242 = smul.u32 %s24, 2
      %s243 = sadd.s32 %s242, %s26
      %p244 = scmp.lt.s32.totalorder %s23, 1
      %s245 = scalar_select %p244, %s23, 1
      %p246 = scmp.lt.s32.totalorder %s243, 6
      %s247 = scalar_select %p246, %s243, 6
      %s248 = smul.addr %s247, 20
      %s249 = smul.addr %s245, 140
      %s250 = sadd.s32 %s248, %s249
      %s251 = smul.addr %s250, 4
      %s252 = scalar_lea.vmem %s0, %s251
      %p253 = pneg %p70
      %p254 = pneg %p67
      %p255 = pneg %p91
      %p256 = pneg %p88
      %p257 = pneg %p112
      %p258 = pneg %p109
      %p259 = pneg %p142
      %p260 = pneg %p139
      %s261 = smul.u32 2, %s25
      %p262 = scmp.lt.s32.totalorder %s23, 1
      %s263 = scalar_select %p262, %s23, 1
      %p264 = scmp.lt.s32.totalorder %s24, 2
      %s265 = scalar_select %p264, %s24, 2
      %p266 = scmp.lt.s32.totalorder %s261, 1
      %s267 = scalar_select %p266, %s261, 1
      %s268 = smul.addr %s265, 2
      %s269 = sadd.s32 %s267, %s268
      %s270 = smul.addr %s263, 6
      %s271 = sadd.s32 %s269, %s270
      %s272 = smul.addr %s271, 4
      %s273 = scalar_lea.vmem %s3, %s272
      %p274 = pneg %p168
      %p275 = pneg %p165
      %p276 = scmp.lt.s32.totalorder %s23, 1
      %s277 = scalar_select %p276, %s23, 1
      %s278 = scalar_lea.vmem %s4, %s277
      %p279 = pneg %p194
      %p280 = pneg %p191
      %p281 = scmp.lt.s32.totalorder %s23, 1
      %s282 = scalar_select %p281, %s23, 1
      %s283 = scalar_lea.vmem %s5, %s282
      %s284 = smul.u32 %s24, 2
      %s285 = sadd.s32 %s284, %s26
      %p286 = scmp.lt.s32.totalorder %s23, 1
      %s287 = scalar_select %p286, %s23, 1
      %p288 = scmp.lt.s32.totalorder %s285, 6
      %s289 = scalar_select %p288, %s285, 6
      %s290 = smul.addr %s289, 20
      %s291 = smul.addr %s287, 140
      %s292 = sadd.s32 %s290, %s291
      %s293 = smul.addr %s292, 4
      %s294 = scalar_lea.vmem %s0, %s293
      %s295 = smul.u32 %s24, 2
      %s296 = sadd.s32 %s295, %s26
      %s297 = smul.u32 2, %s25
      %p298 = scmp.lt.s32.totalorder %s23, 1
      %s299 = scalar_select %p298, %s23, 1
      %p300 = scmp.lt.s32.totalorder %s24, 2
      %s301 = scalar_select %p300, %s24, 2
      %p302 = scmp.lt.s32.totalorder %s297, 1
      %s303 = scalar_select %p302, %s297, 1
      %s304 = smul.addr %s301, 2
      %s305 = sadd.s32 %s303, %s304
      %s306 = smul.addr %s299, 6
      %s307 = sadd.s32 %s305, %s306
      %s308 = smul.addr %s307, 4
      %s309 = scalar_lea.vmem %s3, %s308
      %s310 = smul.u32 2, %s25
      %p311 = scmp.lt.s32.totalorder %s23, 1
      %s312 = scalar_select %p311, %s23, 1
      %s313 = scalar_lea.vmem %s4, %s312
      %p314 = scmp.lt.s32.totalorder %s23, 1
      %s315 = scalar_select %p314, %s23, 1
      %s316 = scalar_lea.vmem %s5, %s315
      %p318 = scmp.eq.s32.totalorder %s26, 0
      // Predicated region
      $region33: #{encoder_block_forward.9} parent=31 // pred_check
        %p319 = pneg %p318
      $region34: #{encoder_block_forward.9} parent=31 // pred_check_branch
        %321 = sbr.rel (%p319) target = $region36
      $region35: #{encoder_block_forward.9} parent=31 // pred_region
        %vm322 = vcmask 130048
        %323 = vst.msk [vmem:[#allocation2] sm:$0xff] %vm322, 0.0
        %324 = vst.msk [vmem:[#allocation2 + $0x8] sm:$0xff] %vm322, 0.0
        %p325 = scmp.eq.s32.totalorder %s24, 0
        %p326 = scmp.eq.s32.totalorder %s25, 0
        %p327 = pnand %p325, %p326
        %p328 = pneg %p327
        // Predicated region
        $region37: #{encoder_block_forward.9} parent=35 // pred_check
          _
        $region38: #{encoder_block_forward.9} parent=35 // pred_check_branch
          %330 = sbr.rel (%p327) target = $region40
        $region39: #{encoder_block_forward.9} parent=35 // pred_region
          %vm331 = vcmask 122880
          %332 = vst.msk [vmem:[%s313] sm:$0x1] %vm331, 0.0
          %333 = vst.msk [vmem:[%s316] sm:$0x1] %vm331, 0.0
        $region40: #{encoder_block_forward.9} parent=35 // pred_fallthru
          _
      $region36: #{encoder_block_forward.9} parent=31 // pred_fallthru
        _
      %s334 = smul.u32 %s25, 4
      %s335 = smul.addr %s334, 4
      %s336 = scalar_lea.vmem %s294, %s335
      %v337 = vld [vmem:[%s336] sm:$0x3]
      %v338 = vld [vmem:[%s336 + $0x4] sm:$0x3]
      %v339 = vld [vmem:[%s336 + $0x8] sm:$0x3]
      %v340 = vld [vmem:[%s336 + $0xc] sm:$0x3]
      %s341 = smul.u32 %s26, 9
      %s342 = smul.addr %s341, 2
      %s343 = scalar_lea.vmem %s1, %s342
      %v344 = vld [vmem:[%s343] sm:$0x3]
      %s345 = sadd.s32 %s334, 5
      %s346 = smul.addr %s345, 4
      %s347 = scalar_lea.vmem %s294, %s346
      %v348 = vld [vmem:[%s347] sm:$0x3]
      %v349 = vld [vmem:[%s347 + $0x4] sm:$0x3]
      %v350 = vld [vmem:[%s347 + $0x8] sm:$0x3]
      %v351 = vld [vmem:[%s347 + $0xc] sm:$0x3]
      %s352 = sadd.s32 1, %s341
      %s353 = smul.addr %s352, 2
      %s354 = scalar_lea.vmem %s1, %s353
      %v355 = vld [vmem:[%s354] sm:$0x3]
      %357 = vst [vmem:[#allocation1] ss:$4 sm:$0xff] %v348
      %s359 = scalar_lea.vmem [#allocation1], 1
      %360 = vst [vmem:[%s359] ss:$4 sm:$0xff] %v349
      %s362 = scalar_lea.vmem [#allocation1], 2
      %363 = vst [vmem:[%s362] ss:$4 sm:$0xff] %v350
      %s365 = scalar_lea.vmem [#allocation1], 3
      %366 = vst [vmem:[%s365] ss:$4 sm:$0xff] %v351
      %v367 = vld.sshfl [vmem:[#allocation1] sm:$0xff pattern:$0x73625140]
      %vm368 = vcmask 31744
      %v369 = vsel %vm368, %v367, 0
      %vm371 = vcmask 1041408
      %v373 = vsel %vm371, %v355, 0
      %375 = vmatpush.bf16.msra.mxu0 0
      %376 = vmatpush.bf16.msra.mxu0 0
      %377 = vmatpush.bf16.msra.mxu0 0
      %378 = vmatpush.bf16.msra.mxu0 0
      %379 = vmatpush.bf16.msra.mxu0 0
      %380 = vmatpush.bf16.msra.mxu0 0
      %381 = vmatpush.bf16.msra.mxu0 0
      %382 = vmatpush.bf16.msra.mxu0 %v373
      %383 = vmatmul.bf16.gmra.mxu0 %v369
      %v384 = vpop.f32.mrf.mxu0
      %v385 = vadd.f32 0.0, %v384
      %v386 = vpop.f32.mrf.mxu0
      %v387 = vadd.f32 0.0, %v386
      %388 = vdwg.mxu0
      %390 = vst [vmem:[#allocation1] ss:$4 sm:$0xff] %v337
      %s392 = scalar_lea.vmem [#allocation1], 1
      %393 = vst [vmem:[%s392] ss:$4 sm:$0xff] %v338
      %s395 = scalar_lea.vmem [#allocation1], 2
      %396 = vst [vmem:[%s395] ss:$4 sm:$0xff] %v339
      %s398 = scalar_lea.vmem [#allocation1], 3
      %399 = vst [vmem:[%s398] ss:$4 sm:$0xff] %v340
      %v400 = vld.sshfl [vmem:[#allocation1] sm:$0xff pattern:$0x73625140]
      %v401 = vsel %vm368, %v400, 0
      %v404 = vsel %vm371, %v344, 0
      %406 = vmatpush.bf16.msra.mxu0 0
      %407 = vmatpush.bf16.msra.mxu0 0
      %408 = vmatpush.bf16.msra.mxu0 0
      %409 = vmatpush.bf16.msra.mxu0 0
      %410 = vmatpush.bf16.msra.mxu0 0
      %411 = vmatpush.bf16.msra.mxu0 0
      %412 = vmatpush.bf16.msra.mxu0 0
      %413 = vmatpush.bf16.msra.mxu0 %v404
      %414 = vmatmul.bf16.gmra.mxu0 %v401
      %v415 = vpop.f32.mrf.mxu0
      %v416 = vadd.f32 %v385, %v415
      %v417 = vpop.f32.mrf.mxu0
      %v418 = vadd.f32 %v387, %v417
      %419 = vdwg.mxu0
      %v420 = vld [vmem:[%s336] sm:$0x7]
      %v421 = vld [vmem:[%s336 + $0x4] sm:$0x7]
      %v422 = vld [vmem:[%s336 + $0x8] sm:$0x7]
      %v423 = vld [vmem:[%s336 + $0xc] sm:$0x7]
      %v428 = vrot.slane %v420, 2
      %v429 = vrot.slane %v421, 2
      %v430 = vrot.slane %v422, 2
      %v431 = vrot.slane %v423, 2
      %v434 = vsel %vm371, %v420, %v428
      %vm435 = vcmask 1043458
      %v436 = vsel %vm435, %v420, %v428
      %v438 = vrot.slane %v436, 2
      %v441 = vsel %vm371, %v421, %v429
      %v442 = vsel %vm435, %v421, %v429
      %v444 = vrot.slane %v442, 2
      %v447 = vsel %vm371, %v422, %v430
      %v448 = vsel %vm435, %v422, %v430
      %v450 = vrot.slane %v448, 2
      %v453 = vsel %vm371, %v423, %v431
      %v454 = vsel %vm435, %v423, %v431
      %v456 = vrot.slane %v454, 2
      %vm457 = vsmask.f32 1280
      %vm458 = vsmask.f32 3336
      %vm459 = vmor %vm457, %vm458
      %vm460 = vsmask.f32 5392
      %vm461 = vmor %vm459, %vm460
      %vm462 = vsmask.f32 7448
      %vm463 = vmor %vm461, %vm462
      %v464 = vshrl.u32 %v434, 16
      %v466 = vrot.slane %v464, 6
      %v467 = vshll.u32 %v434, 16
      %v469 = vrot.slane %v467, 7
      %v470 = vor.u32 %v466, %v469
      %v471 = vrot.slane %v470, 2
      %v473 = vshll.u32 %v438, 16
      %v475 = vrot.slane %v473, 7
      %v476 = vsel %vm463, %v471, %v475
      %v477 = vshrl.u32 %v441, 16
      %v479 = vrot.slane %v477, 6
      %v480 = vshll.u32 %v441, 16
      %v482 = vrot.slane %v480, 7
      %v483 = vor.u32 %v479, %v482
      %v484 = vrot.slane %v483, 2
      %v486 = vshll.u32 %v444, 16
      %v488 = vrot.slane %v486, 7
      %v489 = vsel %vm463, %v484, %v488
      %v490 = vshrl.u32 %v447, 16
      %v492 = vrot.slane %v490, 6
      %v493 = vshll.u32 %v447, 16
      %v495 = vrot.slane %v493, 7
      %v496 = vor.u32 %v492, %v495
      %v497 = vrot.slane %v496, 2
      %v499 = vshll.u32 %v450, 16
      %v501 = vrot.slane %v499, 7
      %v502 = vsel %vm463, %v497, %v501
      %v503 = vshrl.u32 %v453, 16
      %v505 = vrot.slane %v503, 6
      %v506 = vshll.u32 %v453, 16
      %v508 = vrot.slane %v506, 7
      %v509 = vor.u32 %v505, %v508
      %v510 = vrot.slane %v509, 2
      %v512 = vshll.u32 %v456, 16
      %v514 = vrot.slane %v512, 7
      %v515 = vsel %vm463, %v510, %v514
      %s516 = sadd.s32 2, %s341
      %s517 = smul.addr %s516, 2
      %s518 = scalar_lea.vmem %s1, %s517
      %v519 = vld [vmem:[%s518] sm:$0x3]
      %521 = vst [vmem:[#allocation1] ss:$4 sm:$0xff] %v476
      %s523 = scalar_lea.vmem [#allocation1], 1
      %524 = vst [vmem:[%s523] ss:$4 sm:$0xff] %v489
      %s526 = scalar_lea.vmem [#allocation1], 2
      %527 = vst [vmem:[%s526] ss:$4 sm:$0xff] %v502
      %s529 = scalar_lea.vmem [#allocation1], 3
      %530 = vst [vmem:[%s529] ss:$4 sm:$0xff] %v515
      %v531 = vld.sshfl [vmem:[#allocation1] sm:$0xff pattern:$0x73625140]
      %v532 = vsel %vm368, %v531, 0
      %v535 = vsel %vm371, %v519, 0
      %537 = vmatpush.bf16.msra.mxu0 0
      %538 = vmatpush.bf16.msra.mxu0 0
      %539 = vmatpush.bf16.msra.mxu0 0
      %540 = vmatpush.bf16.msra.mxu0 0
      %541 = vmatpush.bf16.msra.mxu0 0
      %542 = vmatpush.bf16.msra.mxu0 0
      %543 = vmatpush.bf16.msra.mxu0 0
      %544 = vmatpush.bf16.msra.mxu0 %v535
      %545 = vmatmul.bf16.gmra.mxu0 %v532
      %v546 = vpop.f32.mrf.mxu0
      %v547 = vadd.f32 0.0, %v546
      %v548 = vpop.f32.mrf.mxu0
      %v549 = vadd.f32 0.0, %v548
      %550 = vdwg.mxu0
      %v551 = vadd.f32 %v416, %v547
      %v552 = vadd.f32 %v418, %v549
      %s553 = sadd.s32 %s334, 10
      %s554 = smul.addr %s553, 4
      %s555 = scalar_lea.vmem %s294, %s554
      %v556 = vld [vmem:[%s555] sm:$0x3]
      %v557 = vld [vmem:[%s555 + $0x4] sm:$0x3]
      %v558 = vld [vmem:[%s555 + $0x8] sm:$0x3]
      %v559 = vld [vmem:[%s555 + $0xc] sm:$0x3]
      %s560 = sadd.s32 3, %s341
      %s561 = smul.addr %s560, 2
      %s562 = scalar_lea.vmem %s1, %s561
      %v563 = vld [vmem:[%s562] sm:$0x3]
      %565 = vst [vmem:[#allocation1] ss:$4 sm:$0xff] %v556
      %s567 = scalar_lea.vmem [#allocation1], 1
      %568 = vst [vmem:[%s567] ss:$4 sm:$0xff] %v557
      %s570 = scalar_lea.vmem [#allocation1], 2
      %571 = vst [vmem:[%s570] ss:$4 sm:$0xff] %v558
      %s573 = scalar_lea.vmem [#allocation1], 3
      %574 = vst [vmem:[%s573] ss:$4 sm:$0xff] %v559
      %v575 = vld.sshfl [vmem:[#allocation1] sm:$0xff pattern:$0x73625140]
      %v576 = vsel %vm368, %v575, 0
      %v579 = vsel %vm371, %v563, 0
      %581 = vmatpush.bf16.msra.mxu0 0
      %582 = vmatpush.bf16.msra.mxu0 0
      %583 = vmatpush.bf16.msra.mxu0 0
      %584 = vmatpush.bf16.msra.mxu0 0
      %585 = vmatpush.bf16.msra.mxu0 0
      %586 = vmatpush.bf16.msra.mxu0 0
      %587 = vmatpush.bf16.msra.mxu0 0
      %588 = vmatpush.bf16.msra.mxu0 %v579
      %589 = vmatmul.bf16.gmra.mxu0 %v576
      %v590 = vpop.f32.mrf.mxu0
      %v591 = vadd.f32 0.0, %v590
      %v592 = vpop.f32.mrf.mxu0
      %v593 = vadd.f32 0.0, %v592
      %594 = vdwg.mxu0
      %v595 = vadd.f32 %v551, %v591
      %v596 = vadd.f32 %v552, %v593
      %s597 = sadd.s32 %s334, 15
      %s598 = smul.addr %s597, 4
      %s599 = scalar_lea.vmem %s294, %s598
      %v600 = vld [vmem:[%s599] sm:$0x3]
      %v601 = vld [vmem:[%s599 + $0x4] sm:$0x3]
      %v602 = vld [vmem:[%s599 + $0x8] sm:$0x3]
      %v603 = vld [vmem:[%s599 + $0xc] sm:$0x3]
      %s604 = sadd.s32 4, %s341
      %s605 = smul.addr %s604, 2
      %s606 = scalar_lea.vmem %s1, %s605
      %v607 = vld [vmem:[%s606] sm:$0x3]
      %609 = vst [vmem:[#allocation1] ss:$4 sm:$0xff] %v600
      %s611 = scalar_lea.vmem [#allocation1], 1
      %612 = vst [vmem:[%s611] ss:$4 sm:$0xff] %v601
      %s614 = scalar_lea.vmem [#allocation1], 2
      %615 = vst [vmem:[%s614] ss:$4 sm:$0xff] %v602
      %s617 = scalar_lea.vmem [#allocation1], 3
      %618 = vst [vmem:[%s617] ss:$4 sm:$0xff] %v603
      %v619 = vld.sshfl [vmem:[#allocation1] sm:$0xff pattern:$0x73625140]
      %v620 = vsel %vm368, %v619, 0
      %v623 = vsel %vm371, %v607, 0
      %625 = vmatpush.bf16.msra.mxu0 0
      %626 = vmatpush.bf16.msra.mxu0 0
      %627 = vmatpush.bf16.msra.mxu0 0
      %628 = vmatpush.bf16.msra.mxu0 0
      %629 = vmatpush.bf16.msra.mxu0 0
      %630 = vmatpush.bf16.msra.mxu0 0
      %631 = vmatpush.bf16.msra.mxu0 0
      %632 = vmatpush.bf16.msra.mxu0 %v623
      %633 = vmatmul.bf16.gmra.mxu0 %v620
      %v634 = vpop.f32.mrf.mxu0
      %v635 = vadd.f32 0.0, %v634
      %v636 = vpop.f32.mrf.mxu0
      %v637 = vadd.f32 0.0, %v636
      %638 = vdwg.mxu0
      %v639 = vadd.f32 %v595, %v635
      %v640 = vadd.f32 %v596, %v637
      %v641 = vld [vmem:[%s555] sm:$0x7]
      %v642 = vld [vmem:[%s555 + $0x4] sm:$0x7]
      %v643 = vld [vmem:[%s555 + $0x8] sm:$0x7]
      %v644 = vld [vmem:[%s555 + $0xc] sm:$0x7]
      %v649 = vrot.slane %v641, 2
      %v650 = vrot.slane %v642, 2
      %v651 = vrot.slane %v643, 2
      %v652 = vrot.slane %v644, 2
      %v655 = vsel %vm371, %v641, %v649
      %v656 = vsel %vm435, %v641, %v649
      %v658 = vrot.slane %v656, 2
      %v661 = vsel %vm371, %v642, %v650
      %v662 = vsel %vm435, %v642, %v650
      %v664 = vrot.slane %v662, 2
      %v667 = vsel %vm371, %v643, %v651
      %v668 = vsel %vm435, %v643, %v651
      %v670 = vrot.slane %v668, 2
      %v673 = vsel %vm371, %v644, %v652
      %v674 = vsel %vm435, %v644, %v652
      %v676 = vrot.slane %v674, 2
      %v677 = vshrl.u32 %v655, 16
      %v679 = vrot.slane %v677, 6
      %v680 = vshll.u32 %v655, 16
      %v682 = vrot.slane %v680, 7
      %v683 = vor.u32 %v679, %v682
      %v684 = vrot.slane %v683, 2
      %v686 = vshll.u32 %v658, 16
      %v688 = vrot.slane %v686, 7
      %v689 = vsel %vm463, %v684, %v688
      %v690 = vshrl.u32 %v661, 16
      %v692 = vrot.slane %v690, 6
      %v693 = vshll.u32 %v661, 16
      %v695 = vrot.slane %v693, 7
      %v696 = vor.u32 %v692, %v695
      %v697 = vrot.slane %v696, 2
      %v699 = vshll.u32 %v664, 16
      %v701 = vrot.slane %v699, 7
      %v702 = vsel %vm463, %v697, %v701
      %v703 = vshrl.u32 %v667, 16
      %v705 = vrot.slane %v703, 6
      %v706 = vshll.u32 %v667, 16
      %v708 = vrot.slane %v706, 7
      %v709 = vor.u32 %v705, %v708
      %v710 = vrot.slane %v709, 2
      %v712 = vshll.u32 %v670, 16
      %v714 = vrot.slane %v712, 7
      %v715 = vsel %vm463, %v710, %v714
      %v716 = vshrl.u32 %v673, 16
      %v718 = vrot.slane %v716, 6
      %v719 = vshll.u32 %v673, 16
      %v721 = vrot.slane %v719, 7
      %v722 = vor.u32 %v718, %v721
      %v723 = vrot.slane %v722, 2
      %v725 = vshll.u32 %v676, 16
      %v727 = vrot.slane %v725, 7
      %v728 = vsel %vm463, %v723, %v727
      %s729 = sadd.s32 5, %s341
      %s730 = smul.addr %s729, 2
      %s731 = scalar_lea.vmem %s1, %s730
      %v732 = vld [vmem:[%s731] sm:$0x3]
      %734 = vst [vmem:[#allocation1] ss:$4 sm:$0xff] %v689
      %s736 = scalar_lea.vmem [#allocation1], 1
      %737 = vst [vmem:[%s736] ss:$4 sm:$0xff] %v702
      %s739 = scalar_lea.vmem [#allocation1], 2
      %740 = vst [vmem:[%s739] ss:$4 sm:$0xff] %v715
      %s742 = scalar_lea.vmem [#allocation1], 3
      %743 = vst [vmem:[%s742] ss:$4 sm:$0xff] %v728
      %v744 = vld.sshfl [vmem:[#allocation1] sm:$0xff pattern:$0x73625140]
      %v745 = vsel %vm368, %v744, 0
      %v748 = vsel %vm371, %v732, 0
      %750 = vmatpush.bf16.msra.mxu0 0
      %751 = vmatpush.bf16.msra.mxu0 0
      %752 = vmatpush.bf16.msra.mxu0 0
      %753 = vmatpush.bf16.msra.mxu0 0
      %754 = vmatpush.bf16.msra.mxu0 0
      %755 = vmatpush.bf16.msra.mxu0 0
      %756 = vmatpush.bf16.msra.mxu0 0
      %757 = vmatpush.bf16.msra.mxu0 %v748
      %758 = vmatmul.bf16.gmra.mxu0 %v745
      %v759 = vpop.f32.mrf.mxu0
      %v760 = vadd.f32 0.0, %v759
      %v761 = vpop.f32.mrf.mxu0
      %v762 = vadd.f32 0.0, %v761
      %763 = vdwg.mxu0
      %v764 = vadd.f32 %v639, %v760
      %v765 = vadd.f32 %v640, %v762
      %s766 = sadd.s32 %s334, 1
      %s767 = smul.addr %s766, 4
      %s768 = scalar_lea.vmem %s294, %s767
      %v769 = vld [vmem:[%s768] sm:$0x3]
      %v770 = vld [vmem:[%s768 + $0x4] sm:$0x3]
      %v771 = vld [vmem:[%s768 + $0x8] sm:$0x3]
      %v772 = vld [vmem:[%s768 + $0xc] sm:$0x3]
      %s773 = sadd.s32 6, %s341
      %s774 = smul.addr %s773, 2
      %s775 = scalar_lea.vmem %s1, %s774
      %v776 = vld [vmem:[%s775] sm:$0x3]
      %778 = vst [vmem:[#allocation1] ss:$4 sm:$0xff] %v769
      %s780 = scalar_lea.vmem [#allocation1], 1
      %781 = vst [vmem:[%s780] ss:$4 sm:$0xff] %v770
      %s783 = scalar_lea.vmem [#allocation1], 2
      %784 = vst [vmem:[%s783] ss:$4 sm:$0xff] %v771
      %s786 = scalar_lea.vmem [#allocation1], 3
      %787 = vst [vmem:[%s786] ss:$4 sm:$0xff] %v772
      %v788 = vld.sshfl [vmem:[#allocation1] sm:$0xff pattern:$0x73625140]
      %v789 = vsel %vm368, %v788, 0
      %v792 = vsel %vm371, %v776, 0
      %794 = vmatpush.bf16.msra.mxu0 0
      %795 = vmatpush.bf16.msra.mxu0 0
      %796 = vmatpush.bf16.msra.mxu0 0
      %797 = vmatpush.bf16.msra.mxu0 0
      %798 = vmatpush.bf16.msra.mxu0 0
      %799 = vmatpush.bf16.msra.mxu0 0
      %800 = vmatpush.bf16.msra.mxu0 0
      %801 = vmatpush.bf16.msra.mxu0 %v792
      %802 = vmatmul.bf16.gmra.mxu0 %v789
      %v803 = vpop.f32.mrf.mxu0
      %v804 = vadd.f32 0.0, %v803
      %v805 = vpop.f32.mrf.mxu0
      %v806 = vadd.f32 0.0, %v805
      %807 = vdwg.mxu0
      %v808 = vadd.f32 %v764, %v804
      %v809 = vadd.f32 %v765, %v806
      %s810 = sadd.s32 %s766, 5
      %s811 = smul.addr %s810, 4
      %s812 = scalar_lea.vmem %s294, %s811
      %v813 = vld [vmem:[%s812] sm:$0x3]
      %v814 = vld [vmem:[%s812 + $0x4] sm:$0x3]
      %v815 = vld [vmem:[%s812 + $0x8] sm:$0x3]
      %v816 = vld [vmem:[%s812 + $0xc] sm:$0x3]
      %s817 = sadd.s32 7, %s341
      %s818 = smul.addr %s817, 2
      %s819 = scalar_lea.vmem %s1, %s818
      %v820 = vld [vmem:[%s819] sm:$0x3]
      %822 = vst [vmem:[#allocation1] ss:$4 sm:$0xff] %v813
      %s824 = scalar_lea.vmem [#allocation1], 1
      %825 = vst [vmem:[%s824] ss:$4 sm:$0xff] %v814
      %s827 = scalar_lea.vmem [#allocation1], 2
      %828 = vst [vmem:[%s827] ss:$4 sm:$0xff] %v815
      %s830 = scalar_lea.vmem [#allocation1], 3
      %831 = vst [vmem:[%s830] ss:$4 sm:$0xff] %v816
      %v832 = vld.sshfl [vmem:[#allocation1] sm:$0xff pattern:$0x73625140]
      %v833 = vsel %vm368, %v832, 0
      %v836 = vsel %vm371, %v820, 0
      %838 = vmatpush.bf16.msra.mxu0 0
      %839 = vmatpush.bf16.msra.mxu0 0
      %840 = vmatpush.bf16.msra.mxu0 0
      %841 = vmatpush.bf16.msra.mxu0 0
      %842 = vmatpush.bf16.msra.mxu0 0
      %843 = vmatpush.bf16.msra.mxu0 0
      %844 = vmatpush.bf16.msra.mxu0 0
      %845 = vmatpush.bf16.msra.mxu0 %v836
      %846 = vmatmul.bf16.gmra.mxu0 %v833
      %v847 = vpop.f32.mrf.mxu0
      %v848 = vadd.f32 0.0, %v847
      %v849 = vpop.f32.mrf.mxu0
      %v850 = vadd.f32 0.0, %v849
      %851 = vdwg.mxu0
      %v852 = vadd.f32 %v808, %v848
      %v853 = vadd.f32 %v809, %v850
      %v854 = vld [vmem:[%s768] sm:$0x7]
      %v855 = vld [vmem:[%s768 + $0x4] sm:$0x7]
      %v856 = vld [vmem:[%s768 + $0x8] sm:$0x7]
      %v857 = vld [vmem:[%s768 + $0xc] sm:$0x7]
      %v862 = vrot.slane %v854, 2
      %v863 = vrot.slane %v855, 2
      %v864 = vrot.slane %v856, 2
      %v865 = vrot.slane %v857, 2
      %v868 = vsel %vm371, %v854, %v862
      %v869 = vsel %vm435, %v854, %v862
      %v871 = vrot.slane %v869, 2
      %v874 = vsel %vm371, %v855, %v863
      %v875 = vsel %vm435, %v855, %v863
      %v877 = vrot.slane %v875, 2
      %v880 = vsel %vm371, %v856, %v864
      %v881 = vsel %vm435, %v856, %v864
      %v883 = vrot.slane %v881, 2
      %v886 = vsel %vm371, %v857, %v865
      %v887 = vsel %vm435, %v857, %v865
      %v889 = vrot.slane %v887, 2
      %v890 = vshrl.u32 %v868, 16
      %v892 = vrot.slane %v890, 6
      %v893 = vshll.u32 %v868, 16
      %v895 = vrot.slane %v893, 7
      %v896 = vor.u32 %v892, %v895
      %v897 = vrot.slane %v896, 2
      %v899 = vshll.u32 %v871, 16
      %v901 = vrot.slane %v899, 7
      %v902 = vsel %vm463, %v897, %v901
      %v903 = vshrl.u32 %v874, 16
      %v905 = vrot.slane %v903, 6
      %v906 = vshll.u32 %v874, 16
      %v908 = vrot.slane %v906, 7
      %v909 = vor.u32 %v905, %v908
      %v910 = vrot.slane %v909, 2
      %v912 = vshll.u32 %v877, 16
      %v914 = vrot.slane %v912, 7
      %v915 = vsel %vm463, %v910, %v914
      %v916 = vshrl.u32 %v880, 16
      %v918 = vrot.slane %v916, 6
      %v919 = vshll.u32 %v880, 16
      %v921 = vrot.slane %v919, 7
      %v922 = vor.u32 %v918, %v921
      %v923 = vrot.slane %v922, 2
      %v925 = vshll.u32 %v883, 16
      %v927 = vrot.slane %v925, 7
      %v928 = vsel %vm463, %v923, %v927
      %v929 = vshrl.u32 %v886, 16
      %v931 = vrot.slane %v929, 6
      %v932 = vshll.u32 %v886, 16
      %v934 = vrot.slane %v932, 7
      %v935 = vor.u32 %v931, %v934
      %v936 = vrot.slane %v935, 2
      %v938 = vshll.u32 %v889, 16
      %v940 = vrot.slane %v938, 7
      %v941 = vsel %vm463, %v936, %v940
      %s942 = sadd.s32 8, %s341
      %s943 = smul.addr %s942, 2
      %s944 = scalar_lea.vmem %s1, %s943
      %v945 = vld [vmem:[%s944] sm:$0x3]
      %947 = vst [vmem:[#allocation1] ss:$4 sm:$0xff] %v902
      %s949 = scalar_lea.vmem [#allocation1], 1
      %950 = vst [vmem:[%s949] ss:$4 sm:$0xff] %v915
      %s952 = scalar_lea.vmem [#allocation1], 2
      %953 = vst [vmem:[%s952] ss:$4 sm:$0xff] %v928
      %s955 = scalar_lea.vmem [#allocation1], 3
      %956 = vst [vmem:[%s955] ss:$4 sm:$0xff] %v941
      %v957 = vld.sshfl [vmem:[#allocation1] sm:$0xff pattern:$0x73625140]
      %v958 = vsel %vm368, %v957, 0
      %v961 = vsel %vm371, %v945, 0
      %963 = vmatpush.bf16.msra.mxu0 0
      %964 = vmatpush.bf16.msra.mxu0 0
      %965 = vmatpush.bf16.msra.mxu0 0
      %966 = vmatpush.bf16.msra.mxu0 0
      %967 = vmatpush.bf16.msra.mxu0 0
      %968 = vmatpush.bf16.msra.mxu0 0
      %969 = vmatpush.bf16.msra.mxu0 0
      %970 = vmatpush.bf16.msra.mxu0 %v961
      %971 = vmatmul.bf16.gmra.mxu0 %v958
      %v972 = vpop.f32.mrf.mxu0
      %v973 = vadd.f32 0.0, %v972
      %v974 = vpop.f32.mrf.mxu0
      %v975 = vadd.f32 0.0, %v974
      %976 = vdwg.mxu0
      %v977 = vadd.f32 %v852, %v973
      %v978 = vadd.f32 %v853, %v975
      %v979 = vld [vmem:[#allocation2] sm:$0xff]
      %v980 = vld [vmem:[#allocation2 + $0x8] sm:$0xff]
      %v981 = vadd.f32 %v979, %v977
      %v982 = vadd.f32 %v980, %v978
      %vm983 = vcmask 130048
      %984 = vst.msk [vmem:[#allocation2] sm:$0xff] %vm983, %v981
      %985 = vst.msk [vmem:[#allocation2 + $0x8] sm:$0xff] %vm983, %v982
      %p986 = scmp.eq.s32.totalorder %s26, 2
      // Predicated region
      $region41: #{encoder_block_forward.9} parent=31 // pred_check
        %p987 = pneg %p986
      $region42: #{encoder_block_forward.9} parent=31 // pred_check_branch
        %989 = sbr.rel (%p987) target = $region44
      $region43: #{encoder_block_forward.9} parent=31 // pred_region
        %v990 = vld [vmem:[#allocation2] sm:$0xff]
        %v991 = vld [vmem:[#allocation2 + $0x8] sm:$0xff]
        %v992 = vld [vmem:[%s2] sm:$0x1]
        %v994 = vperm.slane %v992, 0
        %v996 = vadd.f32 %v990, %v994
        %v997 = vadd.f32 %v991, %v994
        %v998 = vpack.c.bf16 %v996, %v996
        %v999 = vpack.c.bf16 %v997, %v997
        %vm1000 = vcmask 125952
        %1001 = vst.msk [vmem:[%s309] sm:$0xf] %vm1000, %v998
        %1002 = vst.msk [vmem:[%s309 + $0x4] sm:$0xf] %vm1000, %v999
        %v1003 = vld [vmem:[%s313] sm:$0x1]
        %v1004 = vsel %vm983, %v996, 0.0
        %v1005 = vsel %vm983, %v997, 0.0
        %v1006 = vadd.f32 %v1004, %v1005
        %v1007 = vrot.slane %v1006, 4
        %v1008 = vadd.f32 %v1006, %v1007
        %v1009 = vrot.slane %v1008, 2
        %v1010 = vadd.f32 %v1008, %v1009
        %v1011 = vrot.slane %v1010, 1
        %v1012 = vadd.f32 %v1010, %v1011
        %v1013 = vadd.f32 %v1003, %v1012
        %vm1014 = vcmask 122880
        %1015 = vst.msk [vmem:[%s313] sm:$0x1] %vm1014, %v1013
        %v1016 = vld [vmem:[%s316] sm:$0x1]
        %v1017 = vmul.f32 %v996, %v996
        %v1018 = vmul.f32 %v997, %v997
        %v1019 = vsel %vm983, %v1017, 0.0
        %v1020 = vsel %vm983, %v1018, 0.0
        %v1021 = vadd.f32 %v1019, %v1020
        %v1022 = vrot.slane %v1021, 4
        %v1023 = vadd.f32 %v1021, %v1022
        %v1024 = vrot.slane %v1023, 2
        %v1025 = vadd.f32 %v1023, %v1024
        %v1026 = vrot.slane %v1025, 1
        %v1027 = vadd.f32 %v1025, %v1026
        %v1028 = vadd.f32 %v1016, %v1027
        %1029 = vst.msk [vmem:[%s316] sm:$0x1] %vm1014, %v1028
      $region44: #{encoder_block_forward.9} parent=31 // pred_fallthru
        _
      %s1030 = smul.u32 2, %s25
      %p1031 = scmp.lt.s32.totalorder %s23, 1
      %s1032 = scalar_select %p1031, %s23, 1
      %p1033 = scmp.lt.s32.totalorder %s24, 2
      %s1034 = scalar_select %p1033, %s24, 2
      %p1035 = scmp.lt.s32.totalorder %s1030, 1
      %s1036 = scalar_select %p1035, %s1030, 1
      %s1037 = smul.addr %s1034, 2
      %s1038 = sadd.s32 %s1036, %s1037
      %s1039 = smul.addr %s1032, 6
      %s1040 = sadd.s32 %s1038, %s1039
      %s1041 = smul.addr %s1040, 4
      %s1042 = scalar_lea.vmem %s3, %s1041
      %p1043 = scmp.lt.s32.totalorder %s23, 1
      %s1044 = scalar_select %p1043, %s23, 1
      %s1045 = scalar_lea.vmem %s4, %s1044
      %p1046 = scmp.lt.s32.totalorder %s23, 1
      %s1047 = scalar_select %p1046, %s23, 1
      %s1048 = scalar_lea.vmem %s5, %s1047
      // Predicated region
      $region45: #{encoder_block_forward.9} parent=31 // pred_check
        %p1049 = pneg %p139
      $region46: #{encoder_block_forward.9} parent=31 // pred_check_branch
        %1051 = sbr.rel (%p1049) target = $region48
      $region47: #{encoder_block_forward.9} parent=31 // pred_region
        %s1052 = smul.u32 2, %s25
      $region48: #{encoder_block_forward.9} parent=31 // pred_fallthru
        _
      // Predicated region
      $region49: #{encoder_block_forward.9} parent=31 // pred_check
        %p1053 = pneg %p165
      $region50: #{encoder_block_forward.9} parent=31 // pred_check_branch
        %1055 = sbr.rel (%p1053) target = $region52
      $region51: #{encoder_block_forward.9} parent=31 // pred_region
        _
      $region52: #{encoder_block_forward.9} parent=31 // pred_fallthru
        _
      // Predicated region
      $region53: #{encoder_block_forward.9} parent=31 // pred_check
        %p1056 = pneg %p191
      $region54: #{encoder_block_forward.9} parent=31 // pred_check_branch
        %1058 = sbr.rel (%p1056) target = $region56
      $region55: #{encoder_block_forward.9} parent=31 // pred_region
        _
      $region56: #{encoder_block_forward.9} parent=31 // pred_fallthru
        _
    $region32: #{encoder_block_forward.9} parent=5 // pred_fallthru
      _
    %p1059 = scmp.le.s32.totalorder 2, %s12
    // Predicated region
    $region57: #{encoder_block_forward.9} parent=5 // pred_check
      %p1060 = pneg %p1059
    $region58: #{encoder_block_forward.9} parent=5 // pred_check_branch
      %1062 = sbr.rel (%p1060) target = $region60
    $region59: #{encoder_block_forward.9} parent=5 // pred_region
      %s1063 = ssub.s32 %s12, 2
      // Predicated region
      $region61: #{encoder_block_forward.9} parent=59 // pred_check
        %p1064 = pneg %p145
      $region62: #{encoder_block_forward.9} parent=59 // pred_check_branch
        %1066 = sbr.rel (%p1064) target = $region64
      $region63: #{encoder_block_forward.9} parent=59 // pred_region
        %s1067 = smul.u32 2, %s29
        %p1068 = scmp.lt.s32.totalorder %s27, 1
        %s1069 = scalar_select %p1068, %s27, 1
        %p1070 = scmp.lt.s32.totalorder %s28, 2
        %s1071 = scalar_select %p1070, %s28, 2
        %p1072 = scmp.lt.s32.totalorder %s1067, 1
        %s1073 = scalar_select %p1072, %s1067, 1
        %s1074 = smul.addr %s1071, 2
        %s1075 = sadd.s32 %s1073, %s1074
        %s1076 = smul.addr %s1069, 6
        %s1077 = sadd.s32 %s1075, %s1076
        %s1078 = smul.addr %s1077, 4
        %s1079 = scalar_lea.vmem %s3, %s1078
      $region64: #{encoder_block_forward.9} parent=59 // pred_fallthru
        _
      // Predicated region
      $region65: #{encoder_block_forward.9} parent=59 // pred_check
        %p1080 = pneg %p171
      $region66: #{encoder_block_forward.9} parent=59 // pred_check_branch
        %1082 = sbr.rel (%p1080) target = $region68
      $region67: #{encoder_block_forward.9} parent=59 // pred_region
        %p1083 = scmp.lt.s32.totalorder %s27, 1
        %s1084 = scalar_select %p1083, %s27, 1
        %s1085 = scalar_lea.vmem %s4, %s1084
      $region68: #{encoder_block_forward.9} parent=59 // pred_fallthru
        _
      // Predicated region
      $region69: #{encoder_block_forward.9} parent=59 // pred_check
        %p1086 = pneg %p197
      $region70: #{encoder_block_forward.9} parent=59 // pred_check_branch
        %1088 = sbr.rel (%p1086) target = $region72
      $region71: #{encoder_block_forward.9} parent=59 // pred_region
        %p1089 = scmp.lt.s32.totalorder %s27, 1
        %s1090 = scalar_select %p1089, %s27, 1
        %s1091 = scalar_lea.vmem %s5, %s1090
      $region72: #{encoder_block_forward.9} parent=59 // pred_fallthru
        _
    $region60: #{encoder_block_forward.9} parent=5 // pred_fallthru
      _
  $region6: #{encoder_block_forward.9} parent=0 // loop_footer
    %s16 = sadd.s32 1, %s12
  $region7: #{encoder_block_forward.9} parent=0 // loop_footer_branch
    %11 = sbr.rel target = $region3
  $region8: #{encoder_block_forward.9} parent=0 // loop_exit
    _

// kernel: encoder_block_forward.13
$region0: #{encoder_block_forward.13}
  #allocation0 [shape = 'u32[]', space=smem, size = 0x4, offset = 0x4, fixed_abs, tag = 'smem constant byte address 0x4 - core index']
  #allocation1 [shape = 'u32[72,128]{1,0:T(1,128)}', space=vmem, size = 0x9000, scoped, tag = 'internal scratch']
  #allocation2 [shape = 'f32[16,16]{1,0:T(8,128)}', space=vmem, size = 0x2000, scoped, tag = 'scratch operand']
  %s0 = inlined_call_operand.vmem [shape: bf16[2,5,1,6,6,16], index: 0, kind: input, shape index: {}]
  %s1 = inlined_call_operand.vmem [shape: bf16[3,9,16,16], index: 1, kind: input, shape index: {}]
  %s2 = inlined_call_operand.vmem [shape: f32[1,16], index: 2, kind: input, shape index: {}]
  %s3 = inlined_call_operand.vmem [shape: bf16[2,3,16,16], index: 3, kind: input, shape index: {}]
  %s4 = inlined_call_operand.vmem [shape: bf16[2,3,16,16], index: 4, kind: output, shape index: {0}]
  %s5 = inlined_call_operand.vmem [shape: f32[2,1,16], index: 5, kind: output, shape index: {1}]
  %s6 = inlined_call_operand.vmem [shape: f32[2,1,16], index: 6, kind: output, shape index: {2}]
  %7 = xla_tuple %s4, %s5, %s6
  %s8 = sld [smem:[#allocation0]]
  $region77: #{encoder_block_forward.13} parent=0
    _
  %s10 = ssub.s32 1, %s8
  %s11 = scalar_select 0, %s10, %s8
  loop: start=0, step=1, limit=20
  $region2: #{encoder_block_forward.13} parent=0 // loop_pre_header
    _
  $region3: #{encoder_block_forward.13} parent=0 // loop_header
    %s13 = sphi 0, %s17
    %p14 = scmp.ge.s32.totalorder %s13, 20
    %s20 = sphi 0, %s46
    %s21 = sphi 0, %s42
    %s22 = sphi 0, %s38
    %s23 = sphi 0, %s34
    %s24 = sphi 0, %s20
    %s25 = sphi 0, %s21
    %s26 = sphi 0, %s22
    %s27 = sphi 0, %s23
    %s28 = sphi 0, %s24
    %s29 = sphi 0, %s25
    %s30 = sphi 0, %s26
    %s31 = sphi 0, %s27
    %s53 = sphi 0, %s55
    %s56 = sphi 0, %s53
    %s57 = sphi 0, %s56
    %s73 = sphi 0, %s57
    %s77 = sphi 0, %s77
    %s79 = sphi 0, %s77
    %s80 = sphi 0, %s79
    %s94 = sphi 0, %s80
    %s98 = sphi 0, %s98
    %s100 = sphi 0, %s98
    %s101 = sphi 0, %s100
    %s115 = sphi 0, %s101
    %s125 = sphi 0, %s127
    %s128 = sphi 0, %s125
    %s129 = sphi 0, %s128
    %s145 = sphi 0, %s129
    %s155 = sphi 0, %s157
    %s158 = sphi 0, %s155
    %s159 = sphi 0, %s158
    %s175 = sphi 0, %s159
    %s181 = sphi 0, %s183
    %s184 = sphi 0, %s181
    %s185 = sphi 0, %s184
    %s201 = sphi 0, %s185
    %s207 = sphi 0, %s209
    %s210 = sphi 0, %s207
    %s211 = sphi 0, %s210
    %s227 = sphi 0, %s211
  $region4: #{encoder_block_forward.13} parent=0 // loop_header_branch
    %16 = sbr.rel (%p14) target = $region8
  $region5: #{encoder_block_forward.13} parent=0 // loop_body
    %s18 = ssub.s32 %s13, 1
    %s19 = ssub.s32 %s13, 2
    %s32 = sadd.s32 1, %s23
    %p33 = scmp.ge.s32.totalorder %s32, 3
    %s34 = scalar_select %p33, 0, %s32
    %s35 = sadd.s32 1, %s22
    %s36 = scalar_select %p33, %s35, %s22
    %p37 = scmp.ge.s32.totalorder %s36, 1
    %s38 = scalar_select %p37, 0, %s36
    %s39 = sadd.s32 1, %s21
    %s40 = scalar_select %p37, %s39, %s21
    %p41 = scmp.ge.s32.totalorder %s40, 3
    %s42 = scalar_select %p41, 0, %s40
    %s43 = sadd.s32 1, %s20
    %s44 = scalar_select %p41, %s43, %s20
    %p45 = scmp.ge.s32.totalorder %s44, 2
    %s46 = scalar_select %p45, 0, %s44
    %s47 = sadd.s32 %s21, %s23
    %s48 = sadd.s32 %s42, %s34
    %s49 = ssub.s32 %s20, %s46
    %s50 = ssub.s32 %s47, %s48
    %s51 = sor.u32 %s49, %s50
    %p52 = scmp.eq.s32.totalorder %s51, 0
    %s54 = sadd.s32 %s53, 1
    %s55 = scalar_select %p52, %s53, %s54
    %p58 = pneg %p52
    %p59 = scmp.eq.s32.totalorder %s13, 17
    %p60 = por %p58, %p59
    %p61 = scmp.ne.s32.totalorder %s53, %s56
    %p62 = scmp.eq.s32.totalorder %s13, 0
    %p63 = por %p61, %p62
    %p64 = scmp.ne.s32.totalorder %s53, %s56
    %p65 = scmp.eq.s32.totalorder %s18, 17
    %p66 = por %p64, %p65
    %p67 = scmp.ne.s32.totalorder %s56, %s57
    %p68 = scmp.eq.s32.totalorder %s18, 0
    %p69 = por %p67, %p68
    %p70 = scmp.ne.s32.totalorder %s56, %s57
    %p71 = scmp.eq.s32.totalorder %s19, 17
    %p72 = por %p70, %p71
    %p74 = scmp.ne.s32.totalorder %s57, %s73
    %p75 = scmp.eq.s32.totalorder %s19, 0
    %p76 = por %p74, %p75
    %s78 = sadd.s32 %s77, 1
    %p81 = scmp.eq.s32.totalorder %s13, 17
    %p82 = scmp.ne.s32.totalorder %s77, %s79
    %p83 = scmp.eq.s32.totalorder %s13, 0
    %p84 = por %p82, %p83
    %p85 = scmp.ne.s32.totalorder %s77, %s79
    %p86 = scmp.eq.s32.totalorder %s18, 17
    %p87 = por %p85, %p86
    %p88 = scmp.ne.s32.totalorder %s79, %s80
    %p89 = scmp.eq.s32.totalorder %s18, 0
    %p90 = por %p88, %p89
    %p91 = scmp.ne.s32.totalorder %s79, %s80
    %p92 = scmp.eq.s32.totalorder %s19, 17
    %p93 = por %p91, %p92
    %p95 = scmp.ne.s32.totalorder %s80, %s94
    %p96 = scmp.eq.s32.totalorder %s19, 0
    %p97 = por %p95, %p96
    %s99 = sadd.s32 %s98, 1
    %p102 = scmp.eq.s32.totalorder %s13, 17
    %p103 = scmp.ne.s32.totalorder %s98, %s100
    %p104 = scmp.eq.s32.totalorder %s13, 0
    %p105 = por %p103, %p104
    %p106 = scmp.ne.s32.totalorder %s98, %s100
    %p107 = scmp.eq.s32.totalorder %s18, 17
    %p108 = por %p106, %p107
    %p109 = scmp.ne.s32.totalorder %s100, %s101
    %p110 = scmp.eq.s32.totalorder %s18, 0
    %p111 = por %p109, %p110
    %p112 = scmp.ne.s32.totalorder %s100, %s101
    %p113 = scmp.eq.s32.totalorder %s19, 17
    %p114 = por %p112, %p113
    %p116 = scmp.ne.s32.totalorder %s101, %s115
    %p117 = scmp.eq.s32.totalorder %s19, 0
    %p118 = por %p116, %p117
    %s119 = ssub.s32 %s20, %s46
    %s120 = ssub.s32 %s21, %s42
    %s121 = sor.u32 %s119, %s120
    %s122 = ssub.s32 %s22, %s38
    %s123 = sor.u32 %s121, %s122
    %p124 = scmp.eq.s32.totalorder %s123, 0
    %s126 = sadd.s32 %s125, 1
    %s127 = scalar_select %p124, %s125, %s126
    %p130 = pneg %p124
    %p131 = scmp.eq.s32.totalorder %s13, 17
    %p132 = por %p130, %p131
    %p133 = scmp.ne.s32.totalorder %s125, %s128
    %p134 = scmp.eq.s32.totalorder %s13, 0
    %p135 = por %p133, %p134
    %p136 = scmp.ne.s32.totalorder %s125, %s128
    %p137 = scmp.eq.s32.totalorder %s18, 17
    %p138 = por %p136, %p137
    %p139 = scmp.ne.s32.totalorder %s128, %s129
    %p140 = scmp.eq.s32.totalorder %s18, 0
    %p141 = por %p139, %p140
    %p142 = scmp.ne.s32.totalorder %s128, %s129
    %p143 = scmp.eq.s32.totalorder %s19, 17
    %p144 = por %p142, %p143
    %p146 = scmp.ne.s32.totalorder %s129, %s145
    %p147 = scmp.eq.s32.totalorder %s19, 0
    %p148 = por %p146, %p147
    %s149 = ssub.s32 %s20, %s46
    %s150 = ssub.s32 %s21, %s42
    %s151 = sor.u32 %s149, %s150
    %s152 = ssub.s32 %s22, %s38
    %s153 = sor.u32 %s151, %s152
    %p154 = scmp.eq.s32.totalorder %s153, 0
    %s156 = sadd.s32 %s155, 1
    %s157 = scalar_select %p154, %s155, %s156
    %p160 = pneg %p154
    %p161 = scmp.eq.s32.totalorder %s13, 17
    %p162 = por %p160, %p161
    %p163 = scmp.ne.s32.totalorder %s155, %s158
    %p164 = scmp.eq.s32.totalorder %s13, 0
    %p165 = por %p163, %p164
    %p166 = scmp.ne.s32.totalorder %s155, %s158
    %p167 = scmp.eq.s32.totalorder %s18, 17
    %p168 = por %p166, %p167
    %p169 = scmp.ne.s32.totalorder %s158, %s159
    %p170 = scmp.eq.s32.totalorder %s18, 0
    %p171 = por %p169, %p170
    %p172 = scmp.ne.s32.totalorder %s158, %s159
    %p173 = scmp.eq.s32.totalorder %s19, 17
    %p174 = por %p172, %p173
    %p176 = scmp.ne.s32.totalorder %s159, %s175
    %p177 = scmp.eq.s32.totalorder %s19, 0
    %p178 = por %p176, %p177
    %s179 = ssub.s32 %s20, %s46
    %p180 = scmp.eq.s32.totalorder %s179, 0
    %s182 = sadd.s32 %s181, 1
    %s183 = scalar_select %p180, %s181, %s182
    %p186 = pneg %p180
    %p187 = scmp.eq.s32.totalorder %s13, 17
    %p188 = por %p186, %p187
    %p189 = scmp.ne.s32.totalorder %s181, %s184
    %p190 = scmp.eq.s32.totalorder %s13, 0
    %p191 = por %p189, %p190
    %p192 = scmp.ne.s32.totalorder %s181, %s184
    %p193 = scmp.eq.s32.totalorder %s18, 17
    %p194 = por %p192, %p193
    %p195 = scmp.ne.s32.totalorder %s184, %s185
    %p196 = scmp.eq.s32.totalorder %s18, 0
    %p197 = por %p195, %p196
    %p198 = scmp.ne.s32.totalorder %s184, %s185
    %p199 = scmp.eq.s32.totalorder %s19, 17
    %p200 = por %p198, %p199
    %p202 = scmp.ne.s32.totalorder %s185, %s201
    %p203 = scmp.eq.s32.totalorder %s19, 0
    %p204 = por %p202, %p203
    %s205 = ssub.s32 %s20, %s46
    %p206 = scmp.eq.s32.totalorder %s205, 0
    %s208 = sadd.s32 %s207, 1
    %s209 = scalar_select %p206, %s207, %s208
    %p212 = pneg %p206
    %p213 = scmp.eq.s32.totalorder %s13, 17
    %p214 = por %p212, %p213
    %p215 = scmp.ne.s32.totalorder %s207, %s210
    %p216 = scmp.eq.s32.totalorder %s13, 0
    %p217 = por %p215, %p216
    %p218 = scmp.ne.s32.totalorder %s207, %s210
    %p219 = scmp.eq.s32.totalorder %s18, 17
    %p220 = por %p218, %p219
    %p221 = scmp.ne.s32.totalorder %s210, %s211
    %p222 = scmp.eq.s32.totalorder %s18, 0
    %p223 = por %p221, %p222
    %p224 = scmp.ne.s32.totalorder %s210, %s211
    %p225 = scmp.eq.s32.totalorder %s19, 17
    %p226 = por %p224, %p225
    %p228 = scmp.ne.s32.totalorder %s211, %s227
    %p229 = scmp.eq.s32.totalorder %s19, 0
    %p230 = por %p228, %p229
    %p231 = scmp.le.s32.totalorder 1, %s13
    %p232 = scmp.lt.s32.totalorder %s13, 19
    %p233 = pnand %p231, %p232
    %p234 = pneg %p233
    // Predicated region
    $region9: #{encoder_block_forward.13} parent=5 // pred_check
      _
    $region10: #{encoder_block_forward.13} parent=5 // pred_check_branch
      %236 = sbr.rel (%p233) target = $region12
    $region11: #{encoder_block_forward.13} parent=5 // pred_region
      %s237 = ssub.s32 %s13, 1
      // Predicated region
      $region13: #{encoder_block_forward.13} parent=11 // pred_check
        %p238 = pneg %p90
      $region14: #{encoder_block_forward.13} parent=11 // pred_check_branch
        %240 = sbr.rel (%p238) target = $region16
      $region15: #{encoder_block_forward.13} parent=11 // pred_region
        _
      $region16: #{encoder_block_forward.13} parent=11 // pred_fallthru
        _
      // Predicated region
      $region17: #{encoder_block_forward.13} parent=11 // pred_check
        %p241 = pneg %p111
      $region18: #{encoder_block_forward.13} parent=11 // pred_check_branch
        %243 = sbr.rel (%p241) target = $region20
      $region19: #{encoder_block_forward.13} parent=11 // pred_region
        _
      $region20: #{encoder_block_forward.13} parent=11 // pred_fallthru
        _
    $region12: #{encoder_block_forward.13} parent=5 // pred_fallthru
      _
    %p244 = scmp.lt.s32.totalorder %s13, 18
    // Predicated region
    $region21: #{encoder_block_forward.13} parent=5 // pred_check
      %p245 = pneg %p244
    $region22: #{encoder_block_forward.13} parent=5 // pred_check_branch
      %247 = sbr.rel (%p245) target = $region24
    $region23: #{encoder_block_forward.13} parent=5 // pred_region
      // Predicated region
      $region25: #{encoder_block_forward.13} parent=23 // pred_check
        %p248 = pneg %p63
      $region26: #{encoder_block_forward.13} parent=23 // pred_check_branch
        %250 = sbr.rel (%p248) target = $region28
      $region27: #{encoder_block_forward.13} parent=23 // pred_region
        %s251 = sadd.s32 %s21, %s23
        %p252 = scmp.lt.s32.totalorder %s20, 1
        %s253 = scalar_select %p252, %s20, 1
        %p254 = scmp.lt.s32.totalorder %s251, 4
        %s255 = scalar_select %p254, %s251, 4
        %s256 = smul.addr %s255, 6
        %s257 = smul.addr %s253, 30
        %s258 = sadd.s32 %s256, %s257
        %s259 = smul.addr %s258, 4
        %s260 = scalar_lea.vmem %s0, %s259
        %s261 = sadd.s32 %s21, %s23
      $region28: #{encoder_block_forward.13} parent=23 // pred_fallthru
        _
      // Predicated region
      $region29: #{encoder_block_forward.13} parent=23 // pred_check
        %p262 = pneg %p135
      $region30: #{encoder_block_forward.13} parent=23 // pred_check_branch
        %264 = sbr.rel (%p262) target = $region32
      $region31: #{encoder_block_forward.13} parent=23 // pred_region
        %s265 = smul.u32 2, %s22
        %p266 = scmp.lt.s32.totalorder %s20, 1
        %s267 = scalar_select %p266, %s20, 1
        %p268 = scmp.lt.s32.totalorder %s21, 2
        %s269 = scalar_select %p268, %s21, 2
        %p270 = scmp.lt.s32.totalorder %s265, 1
        %s271 = scalar_select %p270, %s265, 1
        %s272 = smul.addr %s269, 2
        %s273 = sadd.s32 %s271, %s272
        %s274 = smul.addr %s267, 6
        %s275 = sadd.s32 %s273, %s274
        %s276 = smul.addr %s275, 4
        %s277 = scalar_lea.vmem %s3, %s276
        %s278 = smul.u32 2, %s22
      $region32: #{encoder_block_forward.13} parent=23 // pred_fallthru
        _
    $region24: #{encoder_block_forward.13} parent=5 // pred_fallthru
      _
    %p279 = scmp.le.s32.totalorder 1, %s13
    %p280 = scmp.lt.s32.totalorder %s13, 19
    %p281 = pnand %p279, %p280
    %p282 = pneg %p281
    // Predicated region
    $region33: #{encoder_block_forward.13} parent=5 // pred_check
      _
    $region34: #{encoder_block_forward.13} parent=5 // pred_check_branch
      %284 = sbr.rel (%p281) target = $region36
    $region35: #{encoder_block_forward.13} parent=5 // pred_region
      %s285 = ssub.s32 %s13, 1
      %s286 = sadd.s32 %s25, %s27
      %p287 = scmp.lt.s32.totalorder %s24, 1
      %s288 = scalar_select %p287, %s24, 1
      %p289 = scmp.lt.s32.totalorder %s286, 4
      %s290 = scalar_select %p289, %s286, 4
      %s291 = smul.addr %s290, 6
      %s292 = smul.addr %s288, 30
      %s293 = sadd.s32 %s291, %s292
      %s294 = smul.addr %s293, 4
      %s295 = scalar_lea.vmem %s0, %s294
      %p296 = pneg %p69
      %p297 = pneg %p66
      %p298 = pneg %p90
      %p299 = pneg %p87
      %p300 = pneg %p111
      %p301 = pneg %p108
      %s302 = smul.u32 2, %s26
      %p303 = scmp.lt.s32.totalorder %s24, 1
      %s304 = scalar_select %p303, %s24, 1
      %p305 = scmp.lt.s32.totalorder %s25, 2
      %s306 = scalar_select %p305, %s25, 2
      %p307 = scmp.lt.s32.totalorder %s302, 1
      %s308 = scalar_select %p307, %s302, 1
      %s309 = smul.addr %s306, 2
      %s310 = sadd.s32 %s308, %s309
      %s311 = smul.addr %s304, 6
      %s312 = sadd.s32 %s310, %s311
      %s313 = smul.addr %s312, 4
      %s314 = scalar_lea.vmem %s3, %s313
      %p315 = pneg %p141
      %p316 = pneg %p138
      %p317 = pneg %p171
      %p318 = pneg %p168
      %s319 = smul.u32 2, %s26
      %p320 = scmp.lt.s32.totalorder %s24, 1
      %s321 = scalar_select %p320, %s24, 1
      %p322 = scmp.lt.s32.totalorder %s25, 2
      %s323 = scalar_select %p322, %s25, 2
      %p324 = scmp.lt.s32.totalorder %s319, 1
      %s325 = scalar_select %p324, %s319, 1
      %s326 = smul.addr %s323, 2
      %s327 = sadd.s32 %s325, %s326
      %s328 = smul.addr %s321, 6
      %s329 = sadd.s32 %s327, %s328
      %s330 = smul.addr %s329, 4
      %s331 = scalar_lea.vmem %s4, %s330
      %p332 = pneg %p197
      %p333 = pneg %p194
      %p334 = scmp.lt.s32.totalorder %s24, 1
      %s335 = scalar_select %p334, %s24, 1
      %s336 = scalar_lea.vmem %s5, %s335
      %p337 = pneg %p223
      %p338 = pneg %p220
      %p339 = scmp.lt.s32.totalorder %s24, 1
      %s340 = scalar_select %p339, %s24, 1
      %s341 = scalar_lea.vmem %s6, %s340
      %s342 = sadd.s32 %s25, %s27
      %p343 = scmp.lt.s32.totalorder %s24, 1
      %s344 = scalar_select %p343, %s24, 1
      %p345 = scmp.lt.s32.totalorder %s342, 4
      %s346 = scalar_select %p345, %s342, 4
      %s347 = smul.addr %s346, 6
      %s348 = smul.addr %s344, 30
      %s349 = sadd.s32 %s347, %s348
      %s350 = smul.addr %s349, 4
      %s351 = scalar_lea.vmem %s0, %s350
      %s352 = sadd.s32 %s25, %s27
      %s353 = smul.u32 2, %s26
      %p354 = scmp.lt.s32.totalorder %s24, 1
      %s355 = scalar_select %p354, %s24, 1
      %p356 = scmp.lt.s32.totalorder %s25, 2
      %s357 = scalar_select %p356, %s25, 2
      %p358 = scmp.lt.s32.totalorder %s353, 1
      %s359 = scalar_select %p358, %s353, 1
      %s360 = smul.addr %s357, 2
      %s361 = sadd.s32 %s359, %s360
      %s362 = smul.addr %s355, 6
      %s363 = sadd.s32 %s361, %s362
      %s364 = smul.addr %s363, 4
      %s365 = scalar_lea.vmem %s3, %s364
      %s366 = smul.u32 2, %s26
      %s367 = smul.u32 2, %s26
      %p368 = scmp.lt.s32.totalorder %s24, 1
      %s369 = scalar_select %p368, %s24, 1
      %p370 = scmp.lt.s32.totalorder %s25, 2
      %s371 = scalar_select %p370, %s25, 2
      %p372 = scmp.lt.s32.totalorder %s367, 1
      %s373 = scalar_select %p372, %s367, 1
      %s374 = smul.addr %s371, 2
      %s375 = sadd.s32 %s373, %s374
      %s376 = smul.addr %s369, 6
      %s377 = sadd.s32 %s375, %s376
      %s378 = smul.addr %s377, 4
      %s379 = scalar_lea.vmem %s4, %s378
      %s380 = smul.u32 2, %s26
      %p381 = scmp.lt.s32.totalorder %s24, 1
      %s382 = scalar_select %p381, %s24, 1
      %s383 = scalar_lea.vmem %s5, %s382
      %p384 = scmp.lt.s32.totalorder %s24, 1
      %s385 = scalar_select %p384, %s24, 1
      %s386 = scalar_lea.vmem %s6, %s385
      %p388 = scmp.eq.s32.totalorder %s27, 0
      // Predicated region
      $region37: #{encoder_block_forward.13} parent=35 // pred_check
        %p389 = pneg %p388
      $region38: #{encoder_block_forward.13} parent=35 // pred_check_branch
        %391 = sbr.rel (%p389) target = $region40
      $region39: #{encoder_block_forward.13} parent=35 // pred_region
        %vm392 = vcmask 130048
        %393 = vst.msk [vmem:[#allocation2] sm:$0xff] %vm392, 0.0
        %394 = vst.msk [vmem:[#allocation2 + $0x8] sm:$0xff] %vm392, 0.0
        %p395 = scmp.eq.s32.totalorder %s25, 0
        %p396 = scmp.eq.s32.totalorder %s26, 0
        %p397 = pnand %p395, %p396
        %p398 = pneg %p397
        // Predicated region
        $region41: #{encoder_block_forward.13} parent=39 // pred_check
          _
        $region42: #{encoder_block_forward.13} parent=39 // pred_check_branch
          %400 = sbr.rel (%p397) target = $region44
        $region43: #{encoder_block_forward.13} parent=39 // pred_region
          %vm401 = vcmask 122880
          %402 = vst.msk [vmem:[%s383] sm:$0x1] %vm401, 0.0
          %403 = vst.msk [vmem:[%s386] sm:$0x1] %vm401, 0.0
        $region44: #{encoder_block_forward.13} parent=39 // pred_fallthru
          _
      $region40: #{encoder_block_forward.13} parent=35 // pred_fallthru
        _
      %s404 = smul.u32 %s26, 4
      %s405 = smul.addr %s404, 4
      %s406 = scalar_lea.vmem %s351, %s405
      %v407 = vld [vmem:[%s406] sm:$0x3]
      %v408 = vld [vmem:[%s406 + $0x4] sm:$0x3]
      %v409 = vld [vmem:[%s406 + $0x8] sm:$0x3]
      %v410 = vld [vmem:[%s406 + $0xc] sm:$0x3]
      %s411 = smul.u32 %s27, 18
      %s412 = smul.addr %s411, 4
      %s413 = scalar_lea.vmem %s1, %s412
      %v414 = vld [vmem:[%s413] sm:$0xf]
      %v415 = vld [vmem:[%s413 + $0x4] sm:$0xf]
      %v416 = vld [vmem:[%s406] sm:$0x7]
      %v417 = vld [vmem:[%s406 + $0x4] sm:$0x7]
      %v418 = vld [vmem:[%s406 + $0x8] sm:$0x7]
      %v419 = vld [vmem:[%s406 + $0xc] sm:$0x7]
      %v424 = vrot.slane %v416, 2
      %v425 = vrot.slane %v417, 2
      %v426 = vrot.slane %v418, 2
      %v427 = vrot.slane %v419, 2
      %vm428 = vcmask 1041408
      %v431 = vsel %vm428, %v416, %v424
      %vm432 = vcmask 1043458
      %v433 = vsel %vm432, %v416, %v424
      %v435 = vrot.slane %v433, 2
      %v438 = vsel %vm428, %v417, %v425
      %v439 = vsel %vm432, %v417, %v425
      %v441 = vrot.slane %v439, 2
      %v444 = vsel %vm428, %v418, %v426
      %v445 = vsel %vm432, %v418, %v426
      %v447 = vrot.slane %v445, 2
      %v450 = vsel %vm428, %v419, %v427
      %v451 = vsel %vm432, %v419, %v427
      %v453 = vrot.slane %v451, 2
      %vm454 = vsmask.f32 1280
      %vm455 = vsmask.f32 3336
      %vm456 = vmor %vm454, %vm455
      %vm457 = vsmask.f32 5392
      %vm458 = vmor %vm456, %vm457
      %vm459 = vsmask.f32 7448
      %vm460 = vmor %vm458, %vm459
      %v461 = vshrl.u32 %v431, 16
      %v463 = vrot.slane %v461, 6
      %v464 = vshll.u32 %v431, 16
      %v466 = vrot.slane %v464, 7
      %v467 = vor.u32 %v463, %v466
      %v468 = vrot.slane %v467, 2
      %v470 = vshll.u32 %v435, 16
      %v472 = vrot.slane %v470, 7
      %v473 = vsel %vm460, %v468, %v472
      %v474 = vshrl.u32 %v438, 16
      %v476 = vrot.slane %v474, 6
      %v477 = vshll.u32 %v438, 16
      %v479 = vrot.slane %v477, 7
      %v480 = vor.u32 %v476, %v479
      %v481 = vrot.slane %v480, 2
      %v483 = vshll.u32 %v441, 16
      %v485 = vrot.slane %v483, 7
      %v486 = vsel %vm460, %v481, %v485
      %v487 = vshrl.u32 %v444, 16
      %v489 = vrot.slane %v487, 6
      %v490 = vshll.u32 %v444, 16
      %v492 = vrot.slane %v490, 7
      %v493 = vor.u32 %v489, %v492
      %v494 = vrot.slane %v493, 2
      %v496 = vshll.u32 %v447, 16
      %v498 = vrot.slane %v496, 7
      %v499 = vsel %vm460, %v494, %v498
      %v500 = vshrl.u32 %v450, 16
      %v502 = vrot.slane %v500, 6
      %v503 = vshll.u32 %v450, 16
      %v505 = vrot.slane %v503, 7
      %v506 = vor.u32 %v502, %v505
      %v507 = vrot.slane %v506, 2
      %v509 = vshll.u32 %v453, 16
      %v511 = vrot.slane %v509, 7
      %v512 = vsel %vm460, %v507, %v511
      %s513 = sadd.s32 2, %s411
      %s514 = smul.addr %s513, 4
      %s515 = scalar_lea.vmem %s1, %s514
      %v516 = vld [vmem:[%s515] sm:$0xf]
      %v517 = vld [vmem:[%s515 + $0x4] sm:$0xf]
      %519 = vst [vmem:[#allocation1] ss:$4 sm:$0xff] %v473
      %s521 = scalar_lea.vmem [#allocation1], 1
      %522 = vst [vmem:[%s521] ss:$4 sm:$0xff] %v486
      %s524 = scalar_lea.vmem [#allocation1], 2
      %525 = vst [vmem:[%s524] ss:$4 sm:$0xff] %v499
      %s527 = scalar_lea.vmem [#allocation1], 3
      %528 = vst [vmem:[%s527] ss:$4 sm:$0xff] %v512
      %v529 = vld.sshfl [vmem:[#allocation1] sm:$0xff pattern:$0x73625140]
      %v532 = vunpack.c.l.b16 %v516
      %v533 = vunpack.c.l.b16 %v517
      %v534 = vpack.c.b16 %v533, %v532
      %vm536 = vcmask 130048
      %v537 = vsel %vm536, %v529, 0
      %539 = vmatpush.bf16.msra.mxu0 0
      %540 = vmatpush.bf16.msra.mxu0 0
      %541 = vmatpush.bf16.msra.mxu0 0
      %542 = vmatpush.bf16.msra.mxu0 0
      %543 = vmatpush.bf16.msra.mxu0 0
      %544 = vmatpush.bf16.msra.mxu0 0
      %545 = vmatpush.bf16.msra.mxu0 0
      %546 = vmatpush.bf16.msra.mxu0 %v534
      %547 = vmatmul.bf16.gmra.mxu0 %v537
      %v548 = vpop.f32.mrf.mxu0
      %v549 = vadd.f32 0.0, %v548
      %v550 = vpop.f32.mrf.mxu0
      %v551 = vadd.f32 0.0, %v550
      %552 = vdwg.mxu0
      %554 = vst [vmem:[#allocation1] ss:$4 sm:$0xff] %v407
      %s556 = scalar_lea.vmem [#allocation1], 1
      %557 = vst [vmem:[%s556] ss:$4 sm:$0xff] %v408
      %s559 = scalar_lea.vmem [#allocation1], 2
      %560 = vst [vmem:[%s559] ss:$4 sm:$0xff] %v409
      %s562 = scalar_lea.vmem [#allocation1], 3
      %563 = vst [vmem:[%s562] ss:$4 sm:$0xff] %v410
      %v564 = vld.sshfl [vmem:[#allocation1] sm:$0xff pattern:$0x73625140]
      %v567 = vunpack.c.l.b16 %v414
      %v568 = vunpack.c.l.b16 %v415
      %v569 = vpack.c.b16 %v568, %v567
      %v571 = vsel %vm536, %v564, 0
      %573 = vmatpush.bf16.msra.mxu0 0
      %574 = vmatpush.bf16.msra.mxu0 0
      %575 = vmatpush.bf16.msra.mxu0 0
      %576 = vmatpush.bf16.msra.mxu0 0
      %577 = vmatpush.bf16.msra.mxu0 0
      %578 = vmatpush.bf16.msra.mxu0 0
      %579 = vmatpush.bf16.msra.mxu0 0
      %580 = vmatpush.bf16.msra.mxu0 %v569
      %581 = vmatmul.bf16.gmra.mxu0 %v571
      %v582 = vpop.f32.mrf.mxu0
      %v583 = vadd.f32 %v549, %v582
      %v584 = vpop.f32.mrf.mxu0
      %v585 = vadd.f32 %v551, %v584
      %586 = vdwg.mxu0
      %v587 = vld [vmem:[%s406] sm:$0x6]
      %v588 = vld [vmem:[%s406 + $0x4] sm:$0x6]
      %v589 = vld [vmem:[%s406 + $0x8] sm:$0x6]
      %v590 = vld [vmem:[%s406 + $0xc] sm:$0x6]
      %v595 = vrot.slane %v587, 2
      %v596 = vrot.slane %v588, 2
      %v597 = vrot.slane %v589, 2
      %v598 = vrot.slane %v590, 2
      %v601 = vsel %vm428, %v587, %v595
      %v603 = vsel %vm432, %v587, %v595
      %v605 = vrot.slane %v603, 2
      %v608 = vsel %vm428, %v588, %v596
      %v610 = vsel %vm432, %v588, %v596
      %v612 = vrot.slane %v610, 2
      %v615 = vsel %vm428, %v589, %v597
      %v617 = vsel %vm432, %v589, %v597
      %v619 = vrot.slane %v617, 2
      %v622 = vsel %vm428, %v590, %v598
      %v624 = vsel %vm432, %v590, %v598
      %v626 = vrot.slane %v624, 2
      %vm627 = vcmask 1040384
      %vm628 = vcmask 1042434
      %vm629 = vmor %vm627, %vm628
      %vm630 = vcmask 1044484
      %vm631 = vmor %vm629, %vm630
      %vm632 = vcmask 1046534
      %vm633 = vmor %vm631, %vm632
      %v634 = vrot.slane %v601, 7
      %v635 = vrot.slane %v634, 2
      %v636 = vrot.slane %v605, 7
      %v637 = vsel %vm633, %v635, %v636
      %v638 = vrot.slane %v608, 7
      %v639 = vrot.slane %v638, 2
      %v640 = vrot.slane %v612, 7
      %v641 = vsel %vm633, %v639, %v640
      %v642 = vrot.slane %v615, 7
      %v643 = vrot.slane %v642, 2
      %v644 = vrot.slane %v619, 7
      %v645 = vsel %vm633, %v643, %v644
      %v646 = vrot.slane %v622, 7
      %v647 = vrot.slane %v646, 2
      %v648 = vrot.slane %v626, 7
      %v649 = vsel %vm633, %v647, %v648
      %s650 = sadd.s32 4, %s411
      %s651 = smul.addr %s650, 4
      %s652 = scalar_lea.vmem %s1, %s651
      %v653 = vld [vmem:[%s652] sm:$0xf]
      %v654 = vld [vmem:[%s652 + $0x4] sm:$0xf]
      %656 = vst [vmem:[#allocation1] ss:$4 sm:$0xff] %v637
      %s658 = scalar_lea.vmem [#allocation1], 1
      %659 = vst [vmem:[%s658] ss:$4 sm:$0xff] %v641
      %s661 = scalar_lea.vmem [#allocation1], 2
      %662 = vst [vmem:[%s661] ss:$4 sm:$0xff] %v645
      %s664 = scalar_lea.vmem [#allocation1], 3
      %665 = vst [vmem:[%s664] ss:$4 sm:$0xff] %v649
      %v666 = vld.sshfl [vmem:[#allocation1] sm:$0xff pattern:$0x73625140]
      %v669 = vunpack.c.l.b16 %v653
      %v670 = vunpack.c.l.b16 %v654
      %v671 = vpack.c.b16 %v670, %v669
      %v673 = vsel %vm536, %v666, 0
      %675 = vmatpush.bf16.msra.mxu0 0
      %676 = vmatpush.bf16.msra.mxu0 0
      %677 = vmatpush.bf16.msra.mxu0 0
      %678 = vmatpush.bf16.msra.mxu0 0
      %679 = vmatpush.bf16.msra.mxu0 0
      %680 = vmatpush.bf16.msra.mxu0 0
      %681 = vmatpush.bf16.msra.mxu0 0
      %682 = vmatpush.bf16.msra.mxu0 %v671
      %683 = vmatmul.bf16.gmra.mxu0 %v673
      %v684 = vpop.f32.mrf.mxu0
      %v685 = vadd.f32 0.0, %v684
      %v686 = vpop.f32.mrf.mxu0
      %v687 = vadd.f32 0.0, %v686
      %688 = vdwg.mxu0
      %v689 = vadd.f32 %v583, %v685
      %v690 = vadd.f32 %v585, %v687
      %s691 = sadd.s32 %s404, 1
      %s692 = smul.addr %s691, 4
      %s693 = scalar_lea.vmem %s351, %s692
      %v694 = vld [vmem:[%s693] sm:$0x3]
      %v695 = vld [vmem:[%s693 + $0x4] sm:$0x3]
      %v696 = vld [vmem:[%s693 + $0x8] sm:$0x3]
      %v697 = vld [vmem:[%s693 + $0xc] sm:$0x3]
      %s698 = sadd.s32 6, %s411
      %s699 = smul.addr %s698, 4
      %s700 = scalar_lea.vmem %s1, %s699
      %v701 = vld [vmem:[%s700] sm:$0xf]
      %v702 = vld [vmem:[%s700 + $0x4] sm:$0xf]
      %704 = vst [vmem:[#allocation1] ss:$4 sm:$0xff] %v694
      %s706 = scalar_lea.vmem [#allocation1], 1
      %707 = vst [vmem:[%s706] ss:$4 sm:$0xff] %v695
      %s709 = scalar_lea.vmem [#allocation1], 2
      %710 = vst [vmem:[%s709] ss:$4 sm:$0xff] %v696
      %s712 = scalar_lea.vmem [#allocation1], 3
      %713 = vst [vmem:[%s712] ss:$4 sm:$0xff] %v697
      %v714 = vld.sshfl [vmem:[#allocation1] sm:$0xff pattern:$0x73625140]
      %v717 = vunpack.c.l.b16 %v701
      %v718 = vunpack.c.l.b16 %v702
      %v719 = vpack.c.b16 %v718, %v717
      %v721 = vsel %vm536, %v714, 0
      %723 = vmatpush.bf16.msra.mxu0 0
      %724 = vmatpush.bf16.msra.mxu0 0
      %725 = vmatpush.bf16.msra.mxu0 0
      %726 = vmatpush.bf16.msra.mxu0 0
      %727 = vmatpush.bf16.msra.mxu0 0
      %728 = vmatpush.bf16.msra.mxu0 0
      %729 = vmatpush.bf16.msra.mxu0 0
      %730 = vmatpush.bf16.msra.mxu0 %v719
      %731 = vmatmul.bf16.gmra.mxu0 %v721
      %v732 = vpop.f32.mrf.mxu0
      %v733 = vadd.f32 0.0, %v732
      %v734 = vpop.f32.mrf.mxu0
      %v735 = vadd.f32 0.0, %v734
      %736 = vdwg.mxu0
      %v737 = vadd.f32 %v689, %v733
      %v738 = vadd.f32 %v690, %v735
      %v739 = vld [vmem:[%s693] sm:$0x7]
      %v740 = vld [vmem:[%s693 + $0x4] sm:$0x7]
      %v741 = vld [vmem:[%s693 + $0x8] sm:$0x7]
      %v742 = vld [vmem:[%s693 + $0xc] sm:$0x7]
      %v747 = vrot.slane %v739, 2
      %v748 = vrot.slane %v740, 2
      %v749 = vrot.slane %v741, 2
      %v750 = vrot.slane %v742, 2
      %v753 = vsel %vm428, %v739, %v747
      %v754 = vsel %vm432, %v739, %v747
      %v756 = vrot.slane %v754, 2
      %v759 = vsel %vm428, %v740, %v748
      %v760 = vsel %vm432, %v740, %v748
      %v762 = vrot.slane %v760, 2
      %v765 = vsel %vm428, %v741, %v749
      %v766 = vsel %vm432, %v741, %v749
      %v768 = vrot.slane %v766, 2
      %v771 = vsel %vm428, %v742, %v750
      %v772 = vsel %vm432, %v742, %v750
      %v774 = vrot.slane %v772, 2
      %v775 = vshrl.u32 %v753, 16
      %v777 = vrot.slane %v775, 6
      %v778 = vshll.u32 %v753, 16
      %v780 = vrot.slane %v778, 7
      %v781 = vor.u32 %v777, %v780
      %v782 = vrot.slane %v781, 2
      %v784 = vshll.u32 %v756, 16
      %v786 = vrot.slane %v784, 7
      %v787 = vsel %vm460, %v782, %v786
      %v788 = vshrl.u32 %v759, 16
      %v790 = vrot.slane %v788, 6
      %v791 = vshll.u32 %v759, 16
      %v793 = vrot.slane %v791, 7
      %v794 = vor.u32 %v790, %v793
      %v795 = vrot.slane %v794, 2
      %v797 = vshll.u32 %v762, 16
      %v799 = vrot.slane %v797, 7
      %v800 = vsel %vm460, %v795, %v799
      %v801 = vshrl.u32 %v765, 16
      %v803 = vrot.slane %v801, 6
      %v804 = vshll.u32 %v765, 16
      %v806 = vrot.slane %v804, 7
      %v807 = vor.u32 %v803, %v806
      %v808 = vrot.slane %v807, 2
      %v810 = vshll.u32 %v768, 16
      %v812 = vrot.slane %v810, 7
      %v813 = vsel %vm460, %v808, %v812
      %v814 = vshrl.u32 %v771, 16
      %v816 = vrot.slane %v814, 6
      %v817 = vshll.u32 %v771, 16
      %v819 = vrot.slane %v817, 7
      %v820 = vor.u32 %v816, %v819
      %v821 = vrot.slane %v820, 2
      %v823 = vshll.u32 %v774, 16
      %v825 = vrot.slane %v823, 7
      %v826 = vsel %vm460, %v821, %v825
      %s827 = sadd.s32 8, %s411
      %s828 = smul.addr %s827, 4
      %s829 = scalar_lea.vmem %s1, %s828
      %v830 = vld [vmem:[%s829] sm:$0xf]
      %v831 = vld [vmem:[%s829 + $0x4] sm:$0xf]
      %833 = vst [vmem:[#allocation1] ss:$4 sm:$0xff] %v787
      %s835 = scalar_lea.vmem [#allocation1], 1
      %836 = vst [vmem:[%s835] ss:$4 sm:$0xff] %v800
      %s838 = scalar_lea.vmem [#allocation1], 2
      %839 = vst [vmem:[%s838] ss:$4 sm:$0xff] %v813
      %s841 = scalar_lea.vmem [#allocation1], 3
      %842 = vst [vmem:[%s841] ss:$4 sm:$0xff] %v826
      %v843 = vld.sshfl [vmem:[#allocation1] sm:$0xff pattern:$0x73625140]
      %v846 = vunpack.c.l.b16 %v830
      %v847 = vunpack.c.l.b16 %v831
      %v848 = vpack.c.b16 %v847, %v846
      %v850 = vsel %vm536, %v843, 0
      %852 = vmatpush.bf16.msra.mxu0 0
      %853 = vmatpush.bf16.msra.mxu0 0
      %854 = vmatpush.bf16.msra.mxu0 0
      %855 = vmatpush.bf16.msra.mxu0 0
      %856 = vmatpush.bf16.msra.mxu0 0
      %857 = vmatpush.bf16.msra.mxu0 0
      %858 = vmatpush.bf16.msra.mxu0 0
      %859 = vmatpush.bf16.msra.mxu0 %v848
      %860 = vmatmul.bf16.gmra.mxu0 %v850
      %v861 = vpop.f32.mrf.mxu0
      %v862 = vadd.f32 0.0, %v861
      %v863 = vpop.f32.mrf.mxu0
      %v864 = vadd.f32 0.0, %v863
      %865 = vdwg.mxu0
      %v866 = vadd.f32 %v737, %v862
      %v867 = vadd.f32 %v738, %v864
      %v868 = vld [vmem:[%s693] sm:$0x6]
      %v869 = vld [vmem:[%s693 + $0x4] sm:$0x6]
      %v870 = vld [vmem:[%s693 + $0x8] sm:$0x6]
      %v871 = vld [vmem:[%s693 + $0xc] sm:$0x6]
      %v876 = vrot.slane %v868, 2
      %v877 = vrot.slane %v869, 2
      %v878 = vrot.slane %v870, 2
      %v879 = vrot.slane %v871, 2
      %v882 = vsel %vm428, %v868, %v876
      %v884 = vsel %vm432, %v868, %v876
      %v886 = vrot.slane %v884, 2
      %v889 = vsel %vm428, %v869, %v877
      %v891 = vsel %vm432, %v869, %v877
      %v893 = vrot.slane %v891, 2
      %v896 = vsel %vm428, %v870, %v878
      %v898 = vsel %vm432, %v870, %v878
      %v900 = vrot.slane %v898, 2
      %v903 = vsel %vm428, %v871, %v879
      %v905 = vsel %vm432, %v871, %v879
      %v907 = vrot.slane %v905, 2
      %v908 = vrot.slane %v882, 7
      %v909 = vrot.slane %v908, 2
      %v910 = vrot.slane %v886, 7
      %v911 = vsel %vm633, %v909, %v910
      %v912 = vrot.slane %v889, 7
      %v913 = vrot.slane %v912, 2
      %v914 = vrot.slane %v893, 7
      %v915 = vsel %vm633, %v913, %v914
      %v916 = vrot.slane %v896, 7
      %v917 = vrot.slane %v916, 2
      %v918 = vrot.slane %v900, 7
      %v919 = vsel %vm633, %v917, %v918
      %v920 = vrot.slane %v903, 7
      %v921 = vrot.slane %v920, 2
      %v922 = vrot.slane %v907, 7
      %v923 = vsel %vm633, %v921, %v922
      %s924 = sadd.s32 10, %s411
      %s925 = smul.addr %s924, 4
      %s926 = scalar_lea.vmem %s1, %s925
      %v927 = vld [vmem:[%s926] sm:$0xf]
      %v928 = vld [vmem:[%s926 + $0x4] sm:$0xf]
      %930 = vst [vmem:[#allocation1] ss:$4 sm:$0xff] %v911
      %s932 = scalar_lea.vmem [#allocation1], 1
      %933 = vst [vmem:[%s932] ss:$4 sm:$0xff] %v915
      %s935 = scalar_lea.vmem [#allocation1], 2
      %936 = vst [vmem:[%s935] ss:$4 sm:$0xff] %v919
      %s938 = scalar_lea.vmem [#allocation1], 3
      %939 = vst [vmem:[%s938] ss:$4 sm:$0xff] %v923
      %v940 = vld.sshfl [vmem:[#allocation1] sm:$0xff pattern:$0x73625140]
      %v943 = vunpack.c.l.b16 %v927
      %v944 = vunpack.c.l.b16 %v928
      %v945 = vpack.c.b16 %v944, %v943
      %v947 = vsel %vm536, %v940, 0
      %949 = vmatpush.bf16.msra.mxu0 0
      %950 = vmatpush.bf16.msra.mxu0 0
      %951 = vmatpush.bf16.msra.mxu0 0
      %952 = vmatpush.bf16.msra.mxu0 0
      %953 = vmatpush.bf16.msra.mxu0 0
      %954 = vmatpush.bf16.msra.mxu0 0
      %955 = vmatpush.bf16.msra.mxu0 0
      %956 = vmatpush.bf16.msra.mxu0 %v945
      %957 = vmatmul.bf16.gmra.mxu0 %v947
      %v958 = vpop.f32.mrf.mxu0
      %v959 = vadd.f32 0.0, %v958
      %v960 = vpop.f32.mrf.mxu0
      %v961 = vadd.f32 0.0, %v960
      %962 = vdwg.mxu0
      %v963 = vadd.f32 %v866, %v959
      %v964 = vadd.f32 %v867, %v961
      %s965 = sadd.s32 %s404, 2
      %s966 = smul.addr %s965, 4
      %s967 = scalar_lea.vmem %s351, %s966
      %v968 = vld [vmem:[%s967] sm:$0x3]
      %v969 = vld [vmem:[%s967 + $0x4] sm:$0x3]
      %v970 = vld [vmem:[%s967 + $0x8] sm:$0x3]
      %v971 = vld [vmem:[%s967 + $0xc] sm:$0x3]
      %s972 = sadd.s32 12, %s411
      %s973 = smul.addr %s972, 4
      %s974 = scalar_lea.vmem %s1, %s973
      %v975 = vld [vmem:[%s974] sm:$0xf]
      %v976 = vld [vmem:[%s974 + $0x4] sm:$0xf]
      %978 = vst [vmem:[#allocation1] ss:$4 sm:$0xff] %v968
      %s980 = scalar_lea.vmem [#allocation1], 1
      %981 = vst [vmem:[%s980] ss:$4 sm:$0xff] %v969
      %s983 = scalar_lea.vmem [#allocation1], 2
      %984 = vst [vmem:[%s983] ss:$4 sm:$0xff] %v970
      %s986 = scalar_lea.vmem [#allocation1], 3
      %987 = vst [vmem:[%s986] ss:$4 sm:$0xff] %v971
      %v988 = vld.sshfl [vmem:[#allocation1] sm:$0xff pattern:$0x73625140]
      %v991 = vunpack.c.l.b16 %v975
      %v992 = vunpack.c.l.b16 %v976
      %v993 = vpack.c.b16 %v992, %v991
      %v995 = vsel %vm536, %v988, 0
      %997 = vmatpush.bf16.msra.mxu0 0
      %998 = vmatpush.bf16.msra.mxu0 0
      %999 = vmatpush.bf16.msra.mxu0 0
      %1000 = vmatpush.bf16.msra.mxu0 0
      %1001 = vmatpush.bf16.msra.mxu0 0
      %1002 = vmatpush.bf16.msra.mxu0 0
      %1003 = vmatpush.bf16.msra.mxu0 0
      %1004 = vmatpush.bf16.msra.mxu0 %v993
      %1005 = vmatmul.bf16.gmra.mxu0 %v995
      %v1006 = vpop.f32.mrf.mxu0
      %v1007 = vadd.f32 0.0, %v1006
      %v1008 = vpop.f32.mrf.mxu0
      %v1009 = vadd.f32 0.0, %v1008
      %1010 = vdwg.mxu0
      %v1011 = vadd.f32 %v963, %v1007
      %v1012 = vadd.f32 %v964, %v1009
      %v1013 = vld [vmem:[%s967] sm:$0x7]
      %v1014 = vld [vmem:[%s967 + $0x4] sm:$0x7]
      %v1015 = vld [vmem:[%s967 + $0x8] sm:$0x7]
      %v1016 = vld [vmem:[%s967 + $0xc] sm:$0x7]
      %v1021 = vrot.slane %v1013, 2
      %v1022 = vrot.slane %v1014, 2
      %v1023 = vrot.slane %v1015, 2
      %v1024 = vrot.slane %v1016, 2
      %v1027 = vsel %vm428, %v1013, %v1021
      %v1028 = vsel %vm432, %v1013, %v1021
      %v1030 = vrot.slane %v1028, 2
      %v1033 = vsel %vm428, %v1014, %v1022
      %v1034 = vsel %vm432, %v1014, %v1022
      %v1036 = vrot.slane %v1034, 2
      %v1039 = vsel %vm428, %v1015, %v1023
      %v1040 = vsel %vm432, %v1015, %v1023
      %v1042 = vrot.slane %v1040, 2
      %v1045 = vsel %vm428, %v1016, %v1024
      %v1046 = vsel %vm432, %v1016, %v1024
      %v1048 = vrot.slane %v1046, 2
      %v1049 = vshrl.u32 %v1027, 16
      %v1051 = vrot.slane %v1049, 6
      %v1052 = vshll.u32 %v1027, 16
      %v1054 = vrot.slane %v1052, 7
      %v1055 = vor.u32 %v1051, %v1054
      %v1056 = vrot.slane %v1055, 2
      %v1058 = vshll.u32 %v1030, 16
      %v1060 = vrot.slane %v1058, 7
      %v1061 = vsel %vm460, %v1056, %v1060
      %v1062 = vshrl.u32 %v1033, 16
      %v1064 = vrot.slane %v1062, 6
      %v1065 = vshll.u32 %v1033, 16
      %v1067 = vrot.slane %v1065, 7
      %v1068 = vor.u32 %v1064, %v1067
      %v1069 = vrot.slane %v1068, 2
      %v1071 = vshll.u32 %v1036, 16
      %v1073 = vrot.slane %v1071, 7
      %v1074 = vsel %vm460, %v1069, %v1073
      %v1075 = vshrl.u32 %v1039, 16
      %v1077 = vrot.slane %v1075, 6
      %v1078 = vshll.u32 %v1039, 16
      %v1080 = vrot.slane %v1078, 7
      %v1081 = vor.u32 %v1077, %v1080
      %v1082 = vrot.slane %v1081, 2
      %v1084 = vshll.u32 %v1042, 16
      %v1086 = vrot.slane %v1084, 7
      %v1087 = vsel %vm460, %v1082, %v1086
      %v1088 = vshrl.u32 %v1045, 16
      %v1090 = vrot.slane %v1088, 6
      %v1091 = vshll.u32 %v1045, 16
      %v1093 = vrot.slane %v1091, 7
      %v1094 = vor.u32 %v1090, %v1093
      %v1095 = vrot.slane %v1094, 2
      %v1097 = vshll.u32 %v1048, 16
      %v1099 = vrot.slane %v1097, 7
      %v1100 = vsel %vm460, %v1095, %v1099
      %s1101 = sadd.s32 14, %s411
      %s1102 = smul.addr %s1101, 4
      %s1103 = scalar_lea.vmem %s1, %s1102
      %v1104 = vld [vmem:[%s1103] sm:$0xf]
      %v1105 = vld [vmem:[%s1103 + $0x4] sm:$0xf]
      %1107 = vst [vmem:[#allocation1] ss:$4 sm:$0xff] %v1061
      %s1109 = scalar_lea.vmem [#allocation1], 1
      %1110 = vst [vmem:[%s1109] ss:$4 sm:$0xff] %v1074
      %s1112 = scalar_lea.vmem [#allocation1], 2
      %1113 = vst [vmem:[%s1112] ss:$4 sm:$0xff] %v1087
      %s1115 = scalar_lea.vmem [#allocation1], 3
      %1116 = vst [vmem:[%s1115] ss:$4 sm:$0xff] %v1100
      %v1117 = vld.sshfl [vmem:[#allocation1] sm:$0xff pattern:$0x73625140]
      %v1120 = vunpack.c.l.b16 %v1104
      %v1121 = vunpack.c.l.b16 %v1105
      %v1122 = vpack.c.b16 %v1121, %v1120
      %v1124 = vsel %vm536, %v1117, 0
      %1126 = vmatpush.bf16.msra.mxu0 0
      %1127 = vmatpush.bf16.msra.mxu0 0
      %1128 = vmatpush.bf16.msra.mxu0 0
      %1129 = vmatpush.bf16.msra.mxu0 0
      %1130 = vmatpush.bf16.msra.mxu0 0
      %1131 = vmatpush.bf16.msra.mxu0 0
      %1132 = vmatpush.bf16.msra.mxu0 0
      %1133 = vmatpush.bf16.msra.mxu0 %v1122
      %1134 = vmatmul.bf16.gmra.mxu0 %v1124
      %v1135 = vpop.f32.mrf.mxu0
      %v1136 = vadd.f32 0.0, %v1135
      %v1137 = vpop.f32.mrf.mxu0
      %v1138 = vadd.f32 0.0, %v1137
      %1139 = vdwg.mxu0
      %v1140 = vadd.f32 %v1011, %v1136
      %v1141 = vadd.f32 %v1012, %v1138
      %v1142 = vld [vmem:[%s967] sm:$0x6]
      %v1143 = vld [vmem:[%s967 + $0x4] sm:$0x6]
      %v1144 = vld [vmem:[%s967 + $0x8] sm:$0x6]
      %v1145 = vld [vmem:[%s967 + $0xc] sm:$0x6]
      %v1150 = vrot.slane %v1142, 2
      %v1151 = vrot.slane %v1143, 2
      %v1152 = vrot.slane %v1144, 2
      %v1153 = vrot.slane %v1145, 2
      %v1156 = vsel %vm428, %v1142, %v1150
      %v1158 = vsel %vm432, %v1142, %v1150
      %v1160 = vrot.slane %v1158, 2
      %v1163 = vsel %vm428, %v1143, %v1151
      %v1165 = vsel %vm432, %v1143, %v1151
      %v1167 = vrot.slane %v1165, 2
      %v1170 = vsel %vm428, %v1144, %v1152
      %v1172 = vsel %vm432, %v1144, %v1152
      %v1174 = vrot.slane %v1172, 2
      %v1177 = vsel %vm428, %v1145, %v1153
      %v1179 = vsel %vm432, %v1145, %v1153
      %v1181 = vrot.slane %v1179, 2
      %v1182 = vrot.slane %v1156, 7
      %v1183 = vrot.slane %v1182, 2
      %v1184 = vrot.slane %v1160, 7
      %v1185 = vsel %vm633, %v1183, %v1184
      %v1186 = vrot.slane %v1163, 7
      %v1187 = vrot.slane %v1186, 2
      %v1188 = vrot.slane %v1167, 7
      %v1189 = vsel %vm633, %v1187, %v1188
      %v1190 = vrot.slane %v1170, 7
      %v1191 = vrot.slane %v1190, 2
      %v1192 = vrot.slane %v1174, 7
      %v1193 = vsel %vm633, %v1191, %v1192
      %v1194 = vrot.slane %v1177, 7
      %v1195 = vrot.slane %v1194, 2
      %v1196 = vrot.slane %v1181, 7
      %v1197 = vsel %vm633, %v1195, %v1196
      %s1198 = sadd.s32 16, %s411
      %s1199 = smul.addr %s1198, 4
      %s1200 = scalar_lea.vmem %s1, %s1199
      %v1201 = vld [vmem:[%s1200] sm:$0xf]
      %v1202 = vld [vmem:[%s1200 + $0x4] sm:$0xf]
      %1204 = vst [vmem:[#allocation1] ss:$4 sm:$0xff] %v1185
      %s1206 = scalar_lea.vmem [#allocation1], 1
      %1207 = vst [vmem:[%s1206] ss:$4 sm:$0xff] %v1189
      %s1209 = scalar_lea.vmem [#allocation1], 2
      %1210 = vst [vmem:[%s1209] ss:$4 sm:$0xff] %v1193
      %s1212 = scalar_lea.vmem [#allocation1], 3
      %1213 = vst [vmem:[%s1212] ss:$4 sm:$0xff] %v1197
      %v1214 = vld.sshfl [vmem:[#allocation1] sm:$0xff pattern:$0x73625140]
      %v1217 = vunpack.c.l.b16 %v1201
      %v1218 = vunpack.c.l.b16 %v1202
      %v1219 = vpack.c.b16 %v1218, %v1217
      %v1221 = vsel %vm536, %v1214, 0
      %1223 = vmatpush.bf16.msra.mxu0 0
      %1224 = vmatpush.bf16.msra.mxu0 0
      %1225 = vmatpush.bf16.msra.mxu0 0
      %1226 = vmatpush.bf16.msra.mxu0 0
      %1227 = vmatpush.bf16.msra.mxu0 0
      %1228 = vmatpush.bf16.msra.mxu0 0
      %1229 = vmatpush.bf16.msra.mxu0 0
      %1230 = vmatpush.bf16.msra.mxu0 %v1219
      %1231 = vmatmul.bf16.gmra.mxu0 %v1221
      %v1232 = vpop.f32.mrf.mxu0
      %v1233 = vadd.f32 0.0, %v1232
      %v1234 = vpop.f32.mrf.mxu0
      %v1235 = vadd.f32 0.0, %v1234
      %1236 = vdwg.mxu0
      %v1237 = vadd.f32 %v1140, %v1233
      %v1238 = vadd.f32 %v1141, %v1235
      %v1239 = vld [vmem:[#allocation2] sm:$0xff]
      %v1240 = vld [vmem:[#allocation2 + $0x8] sm:$0xff]
      %v1241 = vadd.f32 %v1239, %v1237
      %v1242 = vadd.f32 %v1240, %v1238
      %1243 = vst.msk [vmem:[#allocation2] sm:$0xff] %vm536, %v1241
      %1244 = vst.msk [vmem:[#allocation2 + $0x8] sm:$0xff] %vm536, %v1242
      %p1245 = scmp.eq.s32.totalorder %s27, 2
      // Predicated region
      $region45: #{encoder_block_forward.13} parent=35 // pred_check
        %p1246 = pneg %p1245
      $region46: #{encoder_block_forward.13} parent=35 // pred_check_branch
        %1248 = sbr.rel (%p1246) target = $region48
      $region47: #{encoder_block_forward.13} parent=35 // pred_region
        %v1249 = vld [vmem:[#allocation2] sm:$0xff]
        %v1250 = vld [vmem:[#allocation2 + $0x8] sm:$0xff]
        %v1251 = vld [vmem:[%s2] sm:$0x1]
        %v1253 = vperm.slane %v1251, 0
        %v1255 = vadd.f32 %v1249, %v1253
        %v1256 = vadd.f32 %v1250, %v1253
        %v1257 = vld [vmem:[%s365] sm:$0xf]
        %v1258 = vld [vmem:[%s365 + $0x4] sm:$0xf]
        %v1259 = vunpack.c.l.bf16 %v1257
        %v1260 = vunpack.c.l.bf16 %v1258
        %v1261 = vadd.f32 %v1255, %v1259
        %v1262 = vadd.f32 %v1256, %v1260
        %v1263 = vpack.c.bf16 %v1261, %v1261
        %v1264 = vpack.c.bf16 %v1262, %v1262
        %vm1265 = vcmask 125952
        %1266 = vst.msk [vmem:[%s379] sm:$0xf] %vm1265, %v1263
        %1267 = vst.msk [vmem:[%s379 + $0x4] sm:$0xf] %vm1265, %v1264
        %v1268 = vld [vmem:[%s383] sm:$0x1]
        %v1269 = vsel %vm536, %v1261, 0.0
        %v1270 = vsel %vm536, %v1262, 0.0
        %v1271 = vadd.f32 %v1269, %v1270
        %v1272 = vrot.slane %v1271, 4
        %v1273 = vadd.f32 %v1271, %v1272
        %v1274 = vrot.slane %v1273, 2
        %v1275 = vadd.f32 %v1273, %v1274
        %v1276 = vrot.slane %v1275, 1
        %v1277 = vadd.f32 %v1275, %v1276
        %v1278 = vadd.f32 %v1268, %v1277
        %vm1279 = vcmask 122880
        %1280 = vst.msk [vmem:[%s383] sm:$0x1] %vm1279, %v1278
        %v1281 = vld [vmem:[%s386] sm:$0x1]
        %v1282 = vmul.f32 %v1261, %v1261
        %v1283 = vmul.f32 %v1262, %v1262
        %v1284 = vsel %vm536, %v1282, 0.0
        %v1285 = vsel %vm536, %v1283, 0.0
        %v1286 = vadd.f32 %v1284, %v1285
        %v1287 = vrot.slane %v1286, 4
        %v1288 = vadd.f32 %v1286, %v1287
        %v1289 = vrot.slane %v1288, 2
        %v1290 = vadd.f32 %v1288, %v1289
        %v1291 = vrot.slane %v1290, 1
        %v1292 = vadd.f32 %v1290, %v1291
        %v1293 = vadd.f32 %v1281, %v1292
        %1294 = vst.msk [vmem:[%s386] sm:$0x1] %vm1279, %v1293
      $region48: #{encoder_block_forward.13} parent=35 // pred_fallthru
        _
      %s1295 = smul.u32 2, %s26
      %p1296 = scmp.lt.s32.totalorder %s24, 1
      %s1297 = scalar_select %p1296, %s24, 1
      %p1298 = scmp.lt.s32.totalorder %s25, 2
      %s1299 = scalar_select %p1298, %s25, 2
      %p1300 = scmp.lt.s32.totalorder %s1295, 1
      %s1301 = scalar_select %p1300, %s1295, 1
      %s1302 = smul.addr %s1299, 2
      %s1303 = sadd.s32 %s1301, %s1302
      %s1304 = smul.addr %s1297, 6
      %s1305 = sadd.s32 %s1303, %s1304
      %s1306 = smul.addr %s1305, 4
      %s1307 = scalar_lea.vmem %s4, %s1306
      %p1308 = scmp.lt.s32.totalorder %s24, 1
      %s1309 = scalar_select %p1308, %s24, 1
      %s1310 = scalar_lea.vmem %s5, %s1309
      %p1311 = scmp.lt.s32.totalorder %s24, 1
      %s1312 = scalar_select %p1311, %s24, 1
      %s1313 = scalar_lea.vmem %s6, %s1312
      // Predicated region
      $region49: #{encoder_block_forward.13} parent=35 // pred_check
        %p1314 = pneg %p168
      $region50: #{encoder_block_forward.13} parent=35 // pred_check_branch
        %1316 = sbr.rel (%p1314) target = $region52
      $region51: #{encoder_block_forward.13} parent=35 // pred_region
        %s1317 = smul.u32 2, %s26
      $region52: #{encoder_block_forward.13} parent=35 // pred_fallthru
        _
      // Predicated region
      $region53: #{encoder_block_forward.13} parent=35 // pred_check
        %p1318 = pneg %p194
      $region54: #{encoder_block_forward.13} parent=35 // pred_check_branch
        %1320 = sbr.rel (%p1318) target = $region56
      $region55: #{encoder_block_forward.13} parent=35 // pred_region
        _
      $region56: #{encoder_block_forward.13} parent=35 // pred_fallthru
        _
      // Predicated region
      $region57: #{encoder_block_forward.13} parent=35 // pred_check
        %p1321 = pneg %p220
      $region58: #{encoder_block_forward.13} parent=35 // pred_check_branch
        %1323 = sbr.rel (%p1321) target = $region60
      $region59: #{encoder_block_forward.13} parent=35 // pred_region
        _
      $region60: #{encoder_block_forward.13} parent=35 // pred_fallthru
        _
    $region36: #{encoder_block_forward.13} parent=5 // pred_fallthru
      _
    %p1324 = scmp.le.s32.totalorder 2, %s13
    // Predicated region
    $region61: #{encoder_block_forward.13} parent=5 // pred_check
      %p1325 = pneg %p1324
    $region62: #{encoder_block_forward.13} parent=5 // pred_check_branch
      %1327 = sbr.rel (%p1325) target = $region64
    $region63: #{encoder_block_forward.13} parent=5 // pred_region
      %s1328 = ssub.s32 %s13, 2
      // Predicated region
      $region65: #{encoder_block_forward.13} parent=63 // pred_check
        %p1329 = pneg %p174
      $region66: #{encoder_block_forward.13} parent=63 // pred_check_branch
        %1331 = sbr.rel (%p1329) target = $region68
      $region67: #{encoder_block_forward.13} parent=63 // pred_region
        %s1332 = smul.u32 2, %s30
        %p1333 = scmp.lt.s32.totalorder %s28, 1
        %s1334 = scalar_select %p1333, %s28, 1
        %p1335 = scmp.lt.s32.totalorder %s29, 2
        %s1336 = scalar_select %p1335, %s29, 2
        %p1337 = scmp.lt.s32.totalorder %s1332, 1
        %s1338 = scalar_select %p1337, %s1332, 1
        %s1339 = smul.addr %s1336, 2
        %s1340 = sadd.s32 %s1338, %s1339
        %s1341 = smul.addr %s1334, 6
        %s1342 = sadd.s32 %s1340, %s1341
        %s1343 = smul.addr %s1342, 4
        %s1344 = scalar_lea.vmem %s4, %s1343
      $region68: #{encoder_block_forward.13} parent=63 // pred_fallthru
        _
      // Predicated region
      $region69: #{encoder_block_forward.13} parent=63 // pred_check
        %p1345 = pneg %p200
      $region70: #{encoder_block_forward.13} parent=63 // pred_check_branch
        %1347 = sbr.rel (%p1345) target = $region72
      $region71: #{encoder_block_forward.13} parent=63 // pred_region
        %p1348 = scmp.lt.s32.totalorder %s28, 1
        %s1349 = scalar_select %p1348, %s28, 1
        %s1350 = scalar_lea.vmem %s5, %s1349
      $region72: #{encoder_block_forward.13} parent=63 // pred_fallthru
        _
      // Predicated region
      $region73: #{encoder_block_forward.13} parent=63 // pred_check
        %p1351 = pneg %p226
      $region74: #{encoder_block_forward.13} parent=63 // pred_check_branch
        %1353 = sbr.rel (%p1351) target = $region76
      $region75: #{encoder_block_forward.13} parent=63 // pred_region
        %p1354 = scmp.lt.s32.totalorder %s28, 1
        %s1355 = scalar_select %p1354, %s28, 1
        %s1356 = scalar_lea.vmem %s6, %s1355
      $region76: #{encoder_block_forward.13} parent=63 // pred_fallthru
        _
    $region64: #{encoder_block_forward.13} parent=5 // pred_fallthru
      _
  $region6: #{encoder_block_forward.13} parent=0 // loop_footer
    %s17 = sadd.s32 1, %s13
  $region7: #{encoder_block_forward.13} parent=0 // loop_footer_branch
    %12 = sbr.rel target = $region3
  $region8: #{encoder_block_forward.13} parent=0 // loop_exit
    _

// kernel: encoder_block_forward.11
$region0: #{encoder_block_forward.11}
  #allocation0 [shape = 'u32[]', space=smem, size = 0x4, offset = 0x4, fixed_abs, tag = 'smem constant byte address 0x4 - core index']
  #allocation1 [shape = 'u32[72,128]{1,0:T(1,128)}', space=vmem, size = 0x9000, scoped, tag = 'internal scratch']
  #allocation2 [shape = 'f32[16,16]{1,0:T(8,128)}', space=vmem, size = 0x2000, scoped, tag = 'scratch operand']
  %s0 = inlined_call_operand.vmem [shape: bf16[2,5,1,6,6,16], index: 0, kind: input, shape index: {}]
  %s1 = inlined_call_operand.vmem [shape: bf16[3,9,16,16], index: 1, kind: input, shape index: {}]
  %s2 = inlined_call_operand.vmem [shape: f32[1,16], index: 2, kind: input, shape index: {}]
  %s3 = inlined_call_operand.vmem [shape: bf16[2,3,16,16], index: 3, kind: output, shape index: {0}]
  %s4 = inlined_call_operand.vmem [shape: f32[2,1,16], index: 4, kind: output, shape index: {1}]
  %s5 = inlined_call_operand.vmem [shape: f32[2,1,16], index: 5, kind: output, shape index: {2}]
  %6 = xla_tuple %s3, %s4, %s5
  %s7 = sld [smem:[#allocation0]]
  $region73: #{encoder_block_forward.11} parent=0
    _
  %s9 = ssub.s32 1, %s7
  %s10 = scalar_select 0, %s9, %s7
  loop: start=0, step=1, limit=20
  $region2: #{encoder_block_forward.11} parent=0 // loop_pre_header
    _
  $region3: #{encoder_block_forward.11} parent=0 // loop_header
    %s12 = sphi 0, %s16
    %p13 = scmp.ge.s32.totalorder %s12, 20
    %s19 = sphi 0, %s45
    %s20 = sphi 0, %s41
    %s21 = sphi 0, %s37
    %s22 = sphi 0, %s33
    %s23 = sphi 0, %s19
    %s24 = sphi 0, %s20
    %s25 = sphi 0, %s21
    %s26 = sphi 0, %s22
    %s27 = sphi 0, %s23
    %s28 = sphi 0, %s24
    %s29 = sphi 0, %s25
    %s30 = sphi 0, %s26
    %s52 = sphi 0, %s54
    %s55 = sphi 0, %s52
    %s56 = sphi 0, %s55
    %s72 = sphi 0, %s56
    %s76 = sphi 0, %s76
    %s78 = sphi 0, %s76
    %s79 = sphi 0, %s78
    %s93 = sphi 0, %s79
    %s97 = sphi 0, %s97
    %s99 = sphi 0, %s97
    %s100 = sphi 0, %s99
    %s114 = sphi 0, %s100
    %s124 = sphi 0, %s126
    %s127 = sphi 0, %s124
    %s128 = sphi 0, %s127
    %s144 = sphi 0, %s128
    %s150 = sphi 0, %s152
    %s153 = sphi 0, %s150
    %s154 = sphi 0, %s153
    %s170 = sphi 0, %s154
    %s176 = sphi 0, %s178
    %s179 = sphi 0, %s176
    %s180 = sphi 0, %s179
    %s196 = sphi 0, %s180
  $region4: #{encoder_block_forward.11} parent=0 // loop_header_branch
    %15 = sbr.rel (%p13) target = $region8
  $region5: #{encoder_block_forward.11} parent=0 // loop_body
    %s17 = ssub.s32 %s12, 1
    %s18 = ssub.s32 %s12, 2
    %s31 = sadd.s32 1, %s22
    %p32 = scmp.ge.s32.totalorder %s31, 3
    %s33 = scalar_select %p32, 0, %s31
    %s34 = sadd.s32 1, %s21
    %s35 = scalar_select %p32, %s34, %s21
    %p36 = scmp.ge.s32.totalorder %s35, 1
    %s37 = scalar_select %p36, 0, %s35
    %s38 = sadd.s32 1, %s20
    %s39 = scalar_select %p36, %s38, %s20
    %p40 = scmp.ge.s32.totalorder %s39, 3
    %s41 = scalar_select %p40, 0, %s39
    %s42 = sadd.s32 1, %s19
    %s43 = scalar_select %p40, %s42, %s19
    %p44 = scmp.ge.s32.totalorder %s43, 2
    %s45 = scalar_select %p44, 0, %s43
    %s46 = sadd.s32 %s20, %s22
    %s47 = sadd.s32 %s41, %s33
    %s48 = ssub.s32 %s19, %s45
    %s49 = ssub.s32 %s46, %s47
    %s50 = sor.u32 %s48, %s49
    %p51 = scmp.eq.s32.totalorder %s50, 0
    %s53 = sadd.s32 %s52, 1
    %s54 = scalar_select %p51, %s52, %s53
    %p57 = pneg %p51
    %p58 = scmp.eq.s32.totalorder %s12, 17
    %p59 = por %p57, %p58
    %p60 = scmp.ne.s32.totalorder %s52, %s55
    %p61 = scmp.eq.s32.totalorder %s12, 0
    %p62 = por %p60, %p61
    %p63 = scmp.ne.s32.totalorder %s52, %s55
    %p64 = scmp.eq.s32.totalorder %s17, 17
    %p65 = por %p63, %p64
    %p66 = scmp.ne.s32.totalorder %s55, %s56
    %p67 = scmp.eq.s32.totalorder %s17, 0
    %p68 = por %p66, %p67
    %p69 = scmp.ne.s32.totalorder %s55, %s56
    %p70 = scmp.eq.s32.totalorder %s18, 17
    %p71 = por %p69, %p70
    %p73 = scmp.ne.s32.totalorder %s56, %s72
    %p74 = scmp.eq.s32.totalorder %s18, 0
    %p75 = por %p73, %p74
    %s77 = sadd.s32 %s76, 1
    %p80 = scmp.eq.s32.totalorder %s12, 17
    %p81 = scmp.ne.s32.totalorder %s76, %s78
    %p82 = scmp.eq.s32.totalorder %s12, 0
    %p83 = por %p81, %p82
    %p84 = scmp.ne.s32.totalorder %s76, %s78
    %p85 = scmp.eq.s32.totalorder %s17, 17
    %p86 = por %p84, %p85
    %p87 = scmp.ne.s32.totalorder %s78, %s79
    %p88 = scmp.eq.s32.totalorder %s17, 0
    %p89 = por %p87, %p88
    %p90 = scmp.ne.s32.totalorder %s78, %s79
    %p91 = scmp.eq.s32.totalorder %s18, 17
    %p92 = por %p90, %p91
    %p94 = scmp.ne.s32.totalorder %s79, %s93
    %p95 = scmp.eq.s32.totalorder %s18, 0
    %p96 = por %p94, %p95
    %s98 = sadd.s32 %s97, 1
    %p101 = scmp.eq.s32.totalorder %s12, 17
    %p102 = scmp.ne.s32.totalorder %s97, %s99
    %p103 = scmp.eq.s32.totalorder %s12, 0
    %p104 = por %p102, %p103
    %p105 = scmp.ne.s32.totalorder %s97, %s99
    %p106 = scmp.eq.s32.totalorder %s17, 17
    %p107 = por %p105, %p106
    %p108 = scmp.ne.s32.totalorder %s99, %s100
    %p109 = scmp.eq.s32.totalorder %s17, 0
    %p110 = por %p108, %p109
    %p111 = scmp.ne.s32.totalorder %s99, %s100
    %p112 = scmp.eq.s32.totalorder %s18, 17
    %p113 = por %p111, %p112
    %p115 = scmp.ne.s32.totalorder %s100, %s114
    %p116 = scmp.eq.s32.totalorder %s18, 0
    %p117 = por %p115, %p116
    %s118 = ssub.s32 %s19, %s45
    %s119 = ssub.s32 %s20, %s41
    %s120 = sor.u32 %s118, %s119
    %s121 = ssub.s32 %s21, %s37
    %s122 = sor.u32 %s120, %s121
    %p123 = scmp.eq.s32.totalorder %s122, 0
    %s125 = sadd.s32 %s124, 1
    %s126 = scalar_select %p123, %s124, %s125
    %p129 = pneg %p123
    %p130 = scmp.eq.s32.totalorder %s12, 17
    %p131 = por %p129, %p130
    %p132 = scmp.ne.s32.totalorder %s124, %s127
    %p133 = scmp.eq.s32.totalorder %s12, 0
    %p134 = por %p132, %p133
    %p135 = scmp.ne.s32.totalorder %s124, %s127
    %p136 = scmp.eq.s32.totalorder %s17, 17
    %p137 = por %p135, %p136
    %p138 = scmp.ne.s32.totalorder %s127, %s128
    %p139 = scmp.eq.s32.totalorder %s17, 0
    %p140 = por %p138, %p139
    %p141 = scmp.ne.s32.totalorder %s127, %s128
    %p142 = scmp.eq.s32.totalorder %s18, 17
    %p143 = por %p141, %p142
    %p145 = scmp.ne.s32.totalorder %s128, %s144
    %p146 = scmp.eq.s32.totalorder %s18, 0
    %p147 = por %p145, %p146
    %s148 = ssub.s32 %s19, %s45
    %p149 = scmp.eq.s32.totalorder %s148, 0
    %s151 = sadd.s32 %s150, 1
    %s152 = scalar_select %p149, %s150, %s151
    %p155 = pneg %p149
    %p156 = scmp.eq.s32.totalorder %s12, 17
    %p157 = por %p155, %p156
    %p158 = scmp.ne.s32.totalorder %s150, %s153
    %p159 = scmp.eq.s32.totalorder %s12, 0
    %p160 = por %p158, %p159
    %p161 = scmp.ne.s32.totalorder %s150, %s153
    %p162 = scmp.eq.s32.totalorder %s17, 17
    %p163 = por %p161, %p162
    %p164 = scmp.ne.s32.totalorder %s153, %s154
    %p165 = scmp.eq.s32.totalorder %s17, 0
    %p166 = por %p164, %p165
    %p167 = scmp.ne.s32.totalorder %s153, %s154
    %p168 = scmp.eq.s32.totalorder %s18, 17
    %p169 = por %p167, %p168
    %p171 = scmp.ne.s32.totalorder %s154, %s170
    %p172 = scmp.eq.s32.totalorder %s18, 0
    %p173 = por %p171, %p172
    %s174 = ssub.s32 %s19, %s45
    %p175 = scmp.eq.s32.totalorder %s174, 0
    %s177 = sadd.s32 %s176, 1
    %s178 = scalar_select %p175, %s176, %s177
    %p181 = pneg %p175
    %p182 = scmp.eq.s32.totalorder %s12, 17
    %p183 = por %p181, %p182
    %p184 = scmp.ne.s32.totalorder %s176, %s179
    %p185 = scmp.eq.s32.totalorder %s12, 0
    %p186 = por %p184, %p185
    %p187 = scmp.ne.s32.totalorder %s176, %s179
    %p188 = scmp.eq.s32.totalorder %s17, 17
    %p189 = por %p187, %p188
    %p190 = scmp.ne.s32.totalorder %s179, %s180
    %p191 = scmp.eq.s32.totalorder %s17, 0
    %p192 = por %p190, %p191
    %p193 = scmp.ne.s32.totalorder %s179, %s180
    %p194 = scmp.eq.s32.totalorder %s18, 17
    %p195 = por %p193, %p194
    %p197 = scmp.ne.s32.totalorder %s180, %s196
    %p198 = scmp.eq.s32.totalorder %s18, 0
    %p199 = por %p197, %p198
    %p200 = scmp.le.s32.totalorder 1, %s12
    %p201 = scmp.lt.s32.totalorder %s12, 19
    %p202 = pnand %p200, %p201
    %p203 = pneg %p202
    // Predicated region
    $region9: #{encoder_block_forward.11} parent=5 // pred_check
      _
    $region10: #{encoder_block_forward.11} parent=5 // pred_check_branch
      %205 = sbr.rel (%p202) target = $region12
    $region11: #{encoder_block_forward.11} parent=5 // pred_region
      %s206 = ssub.s32 %s12, 1
      // Predicated region
      $region13: #{encoder_block_forward.11} parent=11 // pred_check
        %p207 = pneg %p89
      $region14: #{encoder_block_forward.11} parent=11 // pred_check_branch
        %209 = sbr.rel (%p207) target = $region16
      $region15: #{encoder_block_forward.11} parent=11 // pred_region
        _
      $region16: #{encoder_block_forward.11} parent=11 // pred_fallthru
        _
      // Predicated region
      $region17: #{encoder_block_forward.11} parent=11 // pred_check
        %p210 = pneg %p110
      $region18: #{encoder_block_forward.11} parent=11 // pred_check_branch
        %212 = sbr.rel (%p210) target = $region20
      $region19: #{encoder_block_forward.11} parent=11 // pred_region
        _
      $region20: #{encoder_block_forward.11} parent=11 // pred_fallthru
        _
    $region12: #{encoder_block_forward.11} parent=5 // pred_fallthru
      _
    %p213 = scmp.lt.s32.totalorder %s12, 18
    // Predicated region
    $region21: #{encoder_block_forward.11} parent=5 // pred_check
      %p214 = pneg %p213
    $region22: #{encoder_block_forward.11} parent=5 // pred_check_branch
      %216 = sbr.rel (%p214) target = $region24
    $region23: #{encoder_block_forward.11} parent=5 // pred_region
      // Predicated region
      $region25: #{encoder_block_forward.11} parent=23 // pred_check
        %p217 = pneg %p62
      $region26: #{encoder_block_forward.11} parent=23 // pred_check_branch
        %219 = sbr.rel (%p217) target = $region28
      $region27: #{encoder_block_forward.11} parent=23 // pred_region
        %s220 = sadd.s32 %s20, %s22
        %p221 = scmp.lt.s32.totalorder %s19, 1
        %s222 = scalar_select %p221, %s19, 1
        %p223 = scmp.lt.s32.totalorder %s220, 4
        %s224 = scalar_select %p223, %s220, 4
        %s225 = smul.addr %s224, 6
        %s226 = smul.addr %s222, 30
        %s227 = sadd.s32 %s225, %s226
        %s228 = smul.addr %s227, 4
        %s229 = scalar_lea.vmem %s0, %s228
        %s230 = sadd.s32 %s20, %s22
      $region28: #{encoder_block_forward.11} parent=23 // pred_fallthru
        _
    $region24: #{encoder_block_forward.11} parent=5 // pred_fallthru
      _
    %p231 = scmp.le.s32.totalorder 1, %s12
    %p232 = scmp.lt.s32.totalorder %s12, 19
    %p233 = pnand %p231, %p232
    %p234 = pneg %p233
    // Predicated region
    $region29: #{encoder_block_forward.11} parent=5 // pred_check
      _
    $region30: #{encoder_block_forward.11} parent=5 // pred_check_branch
      %236 = sbr.rel (%p233) target = $region32
    $region31: #{encoder_block_forward.11} parent=5 // pred_region
      %s237 = ssub.s32 %s12, 1
      %s238 = sadd.s32 %s24, %s26
      %p239 = scmp.lt.s32.totalorder %s23, 1
      %s240 = scalar_select %p239, %s23, 1
      %p241 = scmp.lt.s32.totalorder %s238, 4
      %s242 = scalar_select %p241, %s238, 4
      %s243 = smul.addr %s242, 6
      %s244 = smul.addr %s240, 30
      %s245 = sadd.s32 %s243, %s244
      %s246 = smul.addr %s245, 4
      %s247 = scalar_lea.vmem %s0, %s246
      %p248 = pneg %p68
      %p249 = pneg %p65
      %p250 = pneg %p89
      %p251 = pneg %p86
      %p252 = pneg %p110
      %p253 = pneg %p107
      %p254 = pneg %p140
      %p255 = pneg %p137
      %s256 = smul.u32 2, %s25
      %p257 = scmp.lt.s32.totalorder %s23, 1
      %s258 = scalar_select %p257, %s23, 1
      %p259 = scmp.lt.s32.totalorder %s24, 2
      %s260 = scalar_select %p259, %s24, 2
      %p261 = scmp.lt.s32.totalorder %s256, 1
      %s262 = scalar_select %p261, %s256, 1
      %s263 = smul.addr %s260, 2
      %s264 = sadd.s32 %s262, %s263
      %s265 = smul.addr %s258, 6
      %s266 = sadd.s32 %s264, %s265
      %s267 = smul.addr %s266, 4
      %s268 = scalar_lea.vmem %s3, %s267
      %p269 = pneg %p166
      %p270 = pneg %p163
      %p271 = scmp.lt.s32.totalorder %s23, 1
      %s272 = scalar_select %p271, %s23, 1
      %s273 = scalar_lea.vmem %s4, %s272
      %p274 = pneg %p192
      %p275 = pneg %p189
      %p276 = scmp.lt.s32.totalorder %s23, 1
      %s277 = scalar_select %p276, %s23, 1
      %s278 = scalar_lea.vmem %s5, %s277
      %s279 = sadd.s32 %s24, %s26
      %p280 = scmp.lt.s32.totalorder %s23, 1
      %s281 = scalar_select %p280, %s23, 1
      %p282 = scmp.lt.s32.totalorder %s279, 4
      %s283 = scalar_select %p282, %s279, 4
      %s284 = smul.addr %s283, 6
      %s285 = smul.addr %s281, 30
      %s286 = sadd.s32 %s284, %s285
      %s287 = smul.addr %s286, 4
      %s288 = scalar_lea.vmem %s0, %s287
      %s289 = sadd.s32 %s24, %s26
      %s290 = smul.u32 2, %s25
      %p291 = scmp.lt.s32.totalorder %s23, 1
      %s292 = scalar_select %p291, %s23, 1
      %p293 = scmp.lt.s32.totalorder %s24, 2
      %s294 = scalar_select %p293, %s24, 2
      %p295 = scmp.lt.s32.totalorder %s290, 1
      %s296 = scalar_select %p295, %s290, 1
      %s297 = smul.addr %s294, 2
      %s298 = sadd.s32 %s296, %s297
      %s299 = smul.addr %s292, 6
      %s300 = sadd.s32 %s298, %s299
      %s301 = smul.addr %s300, 4
      %s302 = scalar_lea.vmem %s3, %s301
      %s303 = smul.u32 2, %s25
      %p304 = scmp.lt.s32.totalorder %s23, 1
      %s305 = scalar_select %p304, %s23, 1
      %s306 = scalar_lea.vmem %s4, %s305
      %p307 = scmp.lt.s32.totalorder %s23, 1
      %s308 = scalar_select %p307, %s23, 1
      %s309 = scalar_lea.vmem %s5, %s308
      %p311 = scmp.eq.s32.totalorder %s26, 0
      // Predicated region
      $region33: #{encoder_block_forward.11} parent=31 // pred_check
        %p312 = pneg %p311
      $region34: #{encoder_block_forward.11} parent=31 // pred_check_branch
        %314 = sbr.rel (%p312) target = $region36
      $region35: #{encoder_block_forward.11} parent=31 // pred_region
        %vm315 = vcmask 130048
        %316 = vst.msk [vmem:[#allocation2] sm:$0xff] %vm315, 0.0
        %317 = vst.msk [vmem:[#allocation2 + $0x8] sm:$0xff] %vm315, 0.0
        %p318 = scmp.eq.s32.totalorder %s24, 0
        %p319 = scmp.eq.s32.totalorder %s25, 0
        %p320 = pnand %p318, %p319
        %p321 = pneg %p320
        // Predicated region
        $region37: #{encoder_block_forward.11} parent=35 // pred_check
          _
        $region38: #{encoder_block_forward.11} parent=35 // pred_check_branch
          %323 = sbr.rel (%p320) target = $region40
        $region39: #{encoder_block_forward.11} parent=35 // pred_region
          %vm324 = vcmask 122880
          %325 = vst.msk [vmem:[%s306] sm:$0x1] %vm324, 0.0
          %326 = vst.msk [vmem:[%s309] sm:$0x1] %vm324, 0.0
        $region40: #{encoder_block_forward.11} parent=35 // pred_fallthru
          _
      $region36: #{encoder_block_forward.11} parent=31 // pred_fallthru
        _
      %s327 = smul.u32 %s25, 4
      %s328 = smul.addr %s327, 4
      %s329 = scalar_lea.vmem %s288, %s328
      %v330 = vld [vmem:[%s329] sm:$0x3]
      %v331 = vld [vmem:[%s329 + $0x4] sm:$0x3]
      %v332 = vld [vmem:[%s329 + $0x8] sm:$0x3]
      %v333 = vld [vmem:[%s329 + $0xc] sm:$0x3]
      %s334 = smul.u32 %s26, 18
      %s335 = smul.addr %s334, 4
      %s336 = scalar_lea.vmem %s1, %s335
      %v337 = vld [vmem:[%s336] sm:$0xf]
      %v338 = vld [vmem:[%s336 + $0x4] sm:$0xf]
      %v339 = vld [vmem:[%s329] sm:$0x7]
      %v340 = vld [vmem:[%s329 + $0x4] sm:$0x7]
      %v341 = vld [vmem:[%s329 + $0x8] sm:$0x7]
      %v342 = vld [vmem:[%s329 + $0xc] sm:$0x7]
      %v347 = vrot.slane %v339, 2
      %v348 = vrot.slane %v340, 2
      %v349 = vrot.slane %v341, 2
      %v350 = vrot.slane %v342, 2
      %vm351 = vcmask 1041408
      %v354 = vsel %vm351, %v339, %v347
      %vm355 = vcmask 1043458
      %v356 = vsel %vm355, %v339, %v347
      %v358 = vrot.slane %v356, 2
      %v361 = vsel %vm351, %v340, %v348
      %v362 = vsel %vm355, %v340, %v348
      %v364 = vrot.slane %v362, 2
      %v367 = vsel %vm351, %v341, %v349
      %v368 = vsel %vm355, %v341, %v349
      %v370 = vrot.slane %v368, 2
      %v373 = vsel %vm351, %v342, %v350
      %v374 = vsel %vm355, %v342, %v350
      %v376 = vrot.slane %v374, 2
      %vm377 = vsmask.f32 1280
      %vm378 = vsmask.f32 3336
      %vm379 = vmor %vm377, %vm378
      %vm380 = vsmask.f32 5392
      %vm381 = vmor %vm379, %vm380
      %vm382 = vsmask.f32 7448
      %vm383 = vmor %vm381, %vm382
      %v384 = vshrl.u32 %v354, 16
      %v386 = vrot.slane %v384, 6
      %v387 = vshll.u32 %v354, 16
      %v389 = vrot.slane %v387, 7
      %v390 = vor.u32 %v386, %v389
      %v391 = vrot.slane %v390, 2
      %v393 = vshll.u32 %v358, 16
      %v395 = vrot.slane %v393, 7
      %v396 = vsel %vm383, %v391, %v395
      %v397 = vshrl.u32 %v361, 16
      %v399 = vrot.slane %v397, 6
      %v400 = vshll.u32 %v361, 16
      %v402 = vrot.slane %v400, 7
      %v403 = vor.u32 %v399, %v402
      %v404 = vrot.slane %v403, 2
      %v406 = vshll.u32 %v364, 16
      %v408 = vrot.slane %v406, 7
      %v409 = vsel %vm383, %v404, %v408
      %v410 = vshrl.u32 %v367, 16
      %v412 = vrot.slane %v410, 6
      %v413 = vshll.u32 %v367, 16
      %v415 = vrot.slane %v413, 7
      %v416 = vor.u32 %v412, %v415
      %v417 = vrot.slane %v416, 2
      %v419 = vshll.u32 %v370, 16
      %v421 = vrot.slane %v419, 7
      %v422 = vsel %vm383, %v417, %v421
      %v423 = vshrl.u32 %v373, 16
      %v425 = vrot.slane %v423, 6
      %v426 = vshll.u32 %v373, 16
      %v428 = vrot.slane %v426, 7
      %v429 = vor.u32 %v425, %v428
      %v430 = vrot.slane %v429, 2
      %v432 = vshll.u32 %v376, 16
      %v434 = vrot.slane %v432, 7
      %v435 = vsel %vm383, %v430, %v434
      %s436 = sadd.s32 2, %s334
      %s437 = smul.addr %s436, 4
      %s438 = scalar_lea.vmem %s1, %s437
      %v439 = vld [vmem:[%s438] sm:$0xf]
      %v440 = vld [vmem:[%s438 + $0x4] sm:$0xf]
      %442 = vst [vmem:[#allocation1] ss:$4 sm:$0xff] %v396
      %s444 = scalar_lea.vmem [#allocation1], 1
      %445 = vst [vmem:[%s444] ss:$4 sm:$0xff] %v409
      %s447 = scalar_lea.vmem [#allocation1], 2
      %448 = vst [vmem:[%s447] ss:$4 sm:$0xff] %v422
      %s450 = scalar_lea.vmem [#allocation1], 3
      %451 = vst [vmem:[%s450] ss:$4 sm:$0xff] %v435
      %v452 = vld.sshfl [vmem:[#allocation1] sm:$0xff pattern:$0x73625140]
      %v455 = vunpack.c.l.b16 %v439
      %v456 = vunpack.c.l.b16 %v440
      %v457 = vpack.c.b16 %v456, %v455
      %vm459 = vcmask 130048
      %v460 = vsel %vm459, %v452, 0
      %462 = vmatpush.bf16.msra.mxu0 0
      %463 = vmatpush.bf16.msra.mxu0 0
      %464 = vmatpush.bf16.msra.mxu0 0
      %465 = vmatpush.bf16.msra.mxu0 0
      %466 = vmatpush.bf16.msra.mxu0 0
      %467 = vmatpush.bf16.msra.mxu0 0
      %468 = vmatpush.bf16.msra.mxu0 0
      %469 = vmatpush.bf16.msra.mxu0 %v457
      %470 = vmatmul.bf16.gmra.mxu0 %v460
      %v471 = vpop.f32.mrf.mxu0
      %v472 = vadd.f32 0.0, %v471
      %v473 = vpop.f32.mrf.mxu0
      %v474 = vadd.f32 0.0, %v473
      %475 = vdwg.mxu0
      %477 = vst [vmem:[#allocation1] ss:$4 sm:$0xff] %v330
      %s479 = scalar_lea.vmem [#allocation1], 1
      %480 = vst [vmem:[%s479] ss:$4 sm:$0xff] %v331
      %s482 = scalar_lea.vmem [#allocation1], 2
      %483 = vst [vmem:[%s482] ss:$4 sm:$0xff] %v332
      %s485 = scalar_lea.vmem [#allocation1], 3
      %486 = vst [vmem:[%s485] ss:$4 sm:$0xff] %v333
      %v487 = vld.sshfl [vmem:[#allocation1] sm:$0xff pattern:$0x73625140]
      %v490 = vunpack.c.l.b16 %v337
      %v491 = vunpack.c.l.b16 %v338
      %v492 = vpack.c.b16 %v491, %v490
      %v494 = vsel %vm459, %v487, 0
      %496 = vmatpush.bf16.msra.mxu0 0
      %497 = vmatpush.bf16.msra.mxu0 0
      %498 = vmatpush.bf16.msra.mxu0 0
      %499 = vmatpush.bf16.msra.mxu0 0
      %500 = vmatpush.bf16.msra.mxu0 0
      %501 = vmatpush.bf16.msra.mxu0 0
      %502 = vmatpush.bf16.msra.mxu0 0
      %503 = vmatpush.bf16.msra.mxu0 %v492
      %504 = vmatmul.bf16.gmra.mxu0 %v494
      %v505 = vpop.f32.mrf.mxu0
      %v506 = vadd.f32 %v472, %v505
      %v507 = vpop.f32.mrf.mxu0
      %v508 = vadd.f32 %v474, %v507
      %509 = vdwg.mxu0
      %v510 = vld [vmem:[%s329] sm:$0x6]
      %v511 = vld [vmem:[%s329 + $0x4] sm:$0x6]
      %v512 = vld [vmem:[%s329 + $0x8] sm:$0x6]
      %v513 = vld [vmem:[%s329 + $0xc] sm:$0x6]
      %v518 = vrot.slane %v510, 2
      %v519 = vrot.slane %v511, 2
      %v520 = vrot.slane %v512, 2
      %v521 = vrot.slane %v513, 2
      %v524 = vsel %vm351, %v510, %v518
      %v526 = vsel %vm355, %v510, %v518
      %v528 = vrot.slane %v526, 2
      %v531 = vsel %vm351, %v511, %v519
      %v533 = vsel %vm355, %v511, %v519
      %v535 = vrot.slane %v533, 2
      %v538 = vsel %vm351, %v512, %v520
      %v540 = vsel %vm355, %v512, %v520
      %v542 = vrot.slane %v540, 2
      %v545 = vsel %vm351, %v513, %v521
      %v547 = vsel %vm355, %v513, %v521
      %v549 = vrot.slane %v547, 2
      %vm550 = vcmask 1040384
      %vm551 = vcmask 1042434
      %vm552 = vmor %vm550, %vm551
      %vm553 = vcmask 1044484
      %vm554 = vmor %vm552, %vm553
      %vm555 = vcmask 1046534
      %vm556 = vmor %vm554, %vm555
      %v557 = vrot.slane %v524, 7
      %v558 = vrot.slane %v557, 2
      %v559 = vrot.slane %v528, 7
      %v560 = vsel %vm556, %v558, %v559
      %v561 = vrot.slane %v531, 7
      %v562 = vrot.slane %v561, 2
      %v563 = vrot.slane %v535, 7
      %v564 = vsel %vm556, %v562, %v563
      %v565 = vrot.slane %v538, 7
      %v566 = vrot.slane %v565, 2
      %v567 = vrot.slane %v542, 7
      %v568 = vsel %vm556, %v566, %v567
      %v569 = vrot.slane %v545, 7
      %v570 = vrot.slane %v569, 2
      %v571 = vrot.slane %v549, 7
      %v572 = vsel %vm556, %v570, %v571
      %s573 = sadd.s32 4, %s334
      %s574 = smul.addr %s573, 4
      %s575 = scalar_lea.vmem %s1, %s574
      %v576 = vld [vmem:[%s575] sm:$0xf]
      %v577 = vld [vmem:[%s575 + $0x4] sm:$0xf]
      %579 = vst [vmem:[#allocation1] ss:$4 sm:$0xff] %v560
      %s581 = scalar_lea.vmem [#allocation1], 1
      %582 = vst [vmem:[%s581] ss:$4 sm:$0xff] %v564
      %s584 = scalar_lea.vmem [#allocation1], 2
      %585 = vst [vmem:[%s584] ss:$4 sm:$0xff] %v568
      %s587 = scalar_lea.vmem [#allocation1], 3
      %588 = vst [vmem:[%s587] ss:$4 sm:$0xff] %v572
      %v589 = vld.sshfl [vmem:[#allocation1] sm:$0xff pattern:$0x73625140]
      %v592 = vunpack.c.l.b16 %v576
      %v593 = vunpack.c.l.b16 %v577
      %v594 = vpack.c.b16 %v593, %v592
      %v596 = vsel %vm459, %v589, 0
      %598 = vmatpush.bf16.msra.mxu0 0
      %599 = vmatpush.bf16.msra.mxu0 0
      %600 = vmatpush.bf16.msra.mxu0 0
      %601 = vmatpush.bf16.msra.mxu0 0
      %602 = vmatpush.bf16.msra.mxu0 0
      %603 = vmatpush.bf16.msra.mxu0 0
      %604 = vmatpush.bf16.msra.mxu0 0
      %605 = vmatpush.bf16.msra.mxu0 %v594
      %606 = vmatmul.bf16.gmra.mxu0 %v596
      %v607 = vpop.f32.mrf.mxu0
      %v608 = vadd.f32 0.0, %v607
      %v609 = vpop.f32.mrf.mxu0
      %v610 = vadd.f32 0.0, %v609
      %611 = vdwg.mxu0
      %v612 = vadd.f32 %v506, %v608
      %v613 = vadd.f32 %v508, %v610
      %s614 = sadd.s32 %s327, 1
      %s615 = smul.addr %s614, 4
      %s616 = scalar_lea.vmem %s288, %s615
      %v617 = vld [vmem:[%s616] sm:$0x3]
      %v618 = vld [vmem:[%s616 + $0x4] sm:$0x3]
      %v619 = vld [vmem:[%s616 + $0x8] sm:$0x3]
      %v620 = vld [vmem:[%s616 + $0xc] sm:$0x3]
      %s621 = sadd.s32 6, %s334
      %s622 = smul.addr %s621, 4
      %s623 = scalar_lea.vmem %s1, %s622
      %v624 = vld [vmem:[%s623] sm:$0xf]
      %v625 = vld [vmem:[%s623 + $0x4] sm:$0xf]
      %627 = vst [vmem:[#allocation1] ss:$4 sm:$0xff] %v617
      %s629 = scalar_lea.vmem [#allocation1], 1
      %630 = vst [vmem:[%s629] ss:$4 sm:$0xff] %v618
      %s632 = scalar_lea.vmem [#allocation1], 2
      %633 = vst [vmem:[%s632] ss:$4 sm:$0xff] %v619
      %s635 = scalar_lea.vmem [#allocation1], 3
      %636 = vst [vmem:[%s635] ss:$4 sm:$0xff] %v620
      %v637 = vld.sshfl [vmem:[#allocation1] sm:$0xff pattern:$0x73625140]
      %v640 = vunpack.c.l.b16 %v624
      %v641 = vunpack.c.l.b16 %v625
      %v642 = vpack.c.b16 %v641, %v640
      %v644 = vsel %vm459, %v637, 0
      %646 = vmatpush.bf16.msra.mxu0 0
      %647 = vmatpush.bf16.msra.mxu0 0
      %648 = vmatpush.bf16.msra.mxu0 0
      %649 = vmatpush.bf16.msra.mxu0 0
      %650 = vmatpush.bf16.msra.mxu0 0
      %651 = vmatpush.bf16.msra.mxu0 0
      %652 = vmatpush.bf16.msra.mxu0 0
      %653 = vmatpush.bf16.msra.mxu0 %v642
      %654 = vmatmul.bf16.gmra.mxu0 %v644
      %v655 = vpop.f32.mrf.mxu0
      %v656 = vadd.f32 0.0, %v655
      %v657 = vpop.f32.mrf.mxu0
      %v658 = vadd.f32 0.0, %v657
      %659 = vdwg.mxu0
      %v660 = vadd.f32 %v612, %v656
      %v661 = vadd.f32 %v613, %v658
      %v662 = vld [vmem:[%s616] sm:$0x7]
      %v663 = vld [vmem:[%s616 + $0x4] sm:$0x7]
      %v664 = vld [vmem:[%s616 + $0x8] sm:$0x7]
      %v665 = vld [vmem:[%s616 + $0xc] sm:$0x7]
      %v670 = vrot.slane %v662, 2
      %v671 = vrot.slane %v663, 2
      %v672 = vrot.slane %v664, 2
      %v673 = vrot.slane %v665, 2
      %v676 = vsel %vm351, %v662, %v670
      %v677 = vsel %vm355, %v662, %v670
      %v679 = vrot.slane %v677, 2
      %v682 = vsel %vm351, %v663, %v671
      %v683 = vsel %vm355, %v663, %v671
      %v685 = vrot.slane %v683, 2
      %v688 = vsel %vm351, %v664, %v672
      %v689 = vsel %vm355, %v664, %v672
      %v691 = vrot.slane %v689, 2
      %v694 = vsel %vm351, %v665, %v673
      %v695 = vsel %vm355, %v665, %v673
      %v697 = vrot.slane %v695, 2
      %v698 = vshrl.u32 %v676, 16
      %v700 = vrot.slane %v698, 6
      %v701 = vshll.u32 %v676, 16
      %v703 = vrot.slane %v701, 7
      %v704 = vor.u32 %v700, %v703
      %v705 = vrot.slane %v704, 2
      %v707 = vshll.u32 %v679, 16
      %v709 = vrot.slane %v707, 7
      %v710 = vsel %vm383, %v705, %v709
      %v711 = vshrl.u32 %v682, 16
      %v713 = vrot.slane %v711, 6
      %v714 = vshll.u32 %v682, 16
      %v716 = vrot.slane %v714, 7
      %v717 = vor.u32 %v713, %v716
      %v718 = vrot.slane %v717, 2
      %v720 = vshll.u32 %v685, 16
      %v722 = vrot.slane %v720, 7
      %v723 = vsel %vm383, %v718, %v722
      %v724 = vshrl.u32 %v688, 16
      %v726 = vrot.slane %v724, 6
      %v727 = vshll.u32 %v688, 16
      %v729 = vrot.slane %v727, 7
      %v730 = vor.u32 %v726, %v729
      %v731 = vrot.slane %v730, 2
      %v733 = vshll.u32 %v691, 16
      %v735 = vrot.slane %v733, 7
      %v736 = vsel %vm383, %v731, %v735
      %v737 = vshrl.u32 %v694, 16
      %v739 = vrot.slane %v737, 6
      %v740 = vshll.u32 %v694, 16
      %v742 = vrot.slane %v740, 7
      %v743 = vor.u32 %v739, %v742
      %v744 = vrot.slane %v743, 2
      %v746 = vshll.u32 %v697, 16
      %v748 = vrot.slane %v746, 7
      %v749 = vsel %vm383, %v744, %v748
      %s750 = sadd.s32 8, %s334
      %s751 = smul.addr %s750, 4
      %s752 = scalar_lea.vmem %s1, %s751
      %v753 = vld [vmem:[%s752] sm:$0xf]
      %v754 = vld [vmem:[%s752 + $0x4] sm:$0xf]
      %756 = vst [vmem:[#allocation1] ss:$4 sm:$0xff] %v710
      %s758 = scalar_lea.vmem [#allocation1], 1
      %759 = vst [vmem:[%s758] ss:$4 sm:$0xff] %v723
      %s761 = scalar_lea.vmem [#allocation1], 2
      %762 = vst [vmem:[%s761] ss:$4 sm:$0xff] %v736
      %s764 = scalar_lea.vmem [#allocation1], 3
      %765 = vst [vmem:[%s764] ss:$4 sm:$0xff] %v749
      %v766 = vld.sshfl [vmem:[#allocation1] sm:$0xff pattern:$0x73625140]
      %v769 = vunpack.c.l.b16 %v753
      %v770 = vunpack.c.l.b16 %v754
      %v771 = vpack.c.b16 %v770, %v769
      %v773 = vsel %vm459, %v766, 0
      %775 = vmatpush.bf16.msra.mxu0 0
      %776 = vmatpush.bf16.msra.mxu0 0
      %777 = vmatpush.bf16.msra.mxu0 0
      %778 = vmatpush.bf16.msra.mxu0 0
      %779 = vmatpush.bf16.msra.mxu0 0
      %780 = vmatpush.bf16.msra.mxu0 0
      %781 = vmatpush.bf16.msra.mxu0 0
      %782 = vmatpush.bf16.msra.mxu0 %v771
      %783 = vmatmul.bf16.gmra.mxu0 %v773
      %v784 = vpop.f32.mrf.mxu0
      %v785 = vadd.f32 0.0, %v784
      %v786 = vpop.f32.mrf.mxu0
      %v787 = vadd.f32 0.0, %v786
      %788 = vdwg.mxu0
      %v789 = vadd.f32 %v660, %v785
      %v790 = vadd.f32 %v661, %v787
      %v791 = vld [vmem:[%s616] sm:$0x6]
      %v792 = vld [vmem:[%s616 + $0x4] sm:$0x6]
      %v793 = vld [vmem:[%s616 + $0x8] sm:$0x6]
      %v794 = vld [vmem:[%s616 + $0xc] sm:$0x6]
      %v799 = vrot.slane %v791, 2
      %v800 = vrot.slane %v792, 2
      %v801 = vrot.slane %v793, 2
      %v802 = vrot.slane %v794, 2
      %v805 = vsel %vm351, %v791, %v799
      %v807 = vsel %vm355, %v791, %v799
      %v809 = vrot.slane %v807, 2
      %v812 = vsel %vm351, %v792, %v800
      %v814 = vsel %vm355, %v792, %v800
      %v816 = vrot.slane %v814, 2
      %v819 = vsel %vm351, %v793, %v801
      %v821 = vsel %vm355, %v793, %v801
      %v823 = vrot.slane %v821, 2
      %v826 = vsel %vm351, %v794, %v802
      %v828 = vsel %vm355, %v794, %v802
      %v830 = vrot.slane %v828, 2
      %v831 = vrot.slane %v805, 7
      %v832 = vrot.slane %v831, 2
      %v833 = vrot.slane %v809, 7
      %v834 = vsel %vm556, %v832, %v833
      %v835 = vrot.slane %v812, 7
      %v836 = vrot.slane %v835, 2
      %v837 = vrot.slane %v816, 7
      %v838 = vsel %vm556, %v836, %v837
      %v839 = vrot.slane %v819, 7
      %v840 = vrot.slane %v839, 2
      %v841 = vrot.slane %v823, 7
      %v842 = vsel %vm556, %v840, %v841
      %v843 = vrot.slane %v826, 7
      %v844 = vrot.slane %v843, 2
      %v845 = vrot.slane %v830, 7
      %v846 = vsel %vm556, %v844, %v845
      %s847 = sadd.s32 10, %s334
      %s848 = smul.addr %s847, 4
      %s849 = scalar_lea.vmem %s1, %s848
      %v850 = vld [vmem:[%s849] sm:$0xf]
      %v851 = vld [vmem:[%s849 + $0x4] sm:$0xf]
      %853 = vst [vmem:[#allocation1] ss:$4 sm:$0xff] %v834
      %s855 = scalar_lea.vmem [#allocation1], 1
      %856 = vst [vmem:[%s855] ss:$4 sm:$0xff] %v838
      %s858 = scalar_lea.vmem [#allocation1], 2
      %859 = vst [vmem:[%s858] ss:$4 sm:$0xff] %v842
      %s861 = scalar_lea.vmem [#allocation1], 3
      %862 = vst [vmem:[%s861] ss:$4 sm:$0xff] %v846
      %v863 = vld.sshfl [vmem:[#allocation1] sm:$0xff pattern:$0x73625140]
      %v866 = vunpack.c.l.b16 %v850
      %v867 = vunpack.c.l.b16 %v851
      %v868 = vpack.c.b16 %v867, %v866
      %v870 = vsel %vm459, %v863, 0
      %872 = vmatpush.bf16.msra.mxu0 0
      %873 = vmatpush.bf16.msra.mxu0 0
      %874 = vmatpush.bf16.msra.mxu0 0
      %875 = vmatpush.bf16.msra.mxu0 0
      %876 = vmatpush.bf16.msra.mxu0 0
      %877 = vmatpush.bf16.msra.mxu0 0
      %878 = vmatpush.bf16.msra.mxu0 0
      %879 = vmatpush.bf16.msra.mxu0 %v868
      %880 = vmatmul.bf16.gmra.mxu0 %v870
      %v881 = vpop.f32.mrf.mxu0
      %v882 = vadd.f32 0.0, %v881
      %v883 = vpop.f32.mrf.mxu0
      %v884 = vadd.f32 0.0, %v883
      %885 = vdwg.mxu0
      %v886 = vadd.f32 %v789, %v882
      %v887 = vadd.f32 %v790, %v884
      %s888 = sadd.s32 %s327, 2
      %s889 = smul.addr %s888, 4
      %s890 = scalar_lea.vmem %s288, %s889
      %v891 = vld [vmem:[%s890] sm:$0x3]
      %v892 = vld [vmem:[%s890 + $0x4] sm:$0x3]
      %v893 = vld [vmem:[%s890 + $0x8] sm:$0x3]
      %v894 = vld [vmem:[%s890 + $0xc] sm:$0x3]
      %s895 = sadd.s32 12, %s334
      %s896 = smul.addr %s895, 4
      %s897 = scalar_lea.vmem %s1, %s896
      %v898 = vld [vmem:[%s897] sm:$0xf]
      %v899 = vld [vmem:[%s897 + $0x4] sm:$0xf]
      %901 = vst [vmem:[#allocation1] ss:$4 sm:$0xff] %v891
      %s903 = scalar_lea.vmem [#allocation1], 1
      %904 = vst [vmem:[%s903] ss:$4 sm:$0xff] %v892
      %s906 = scalar_lea.vmem [#allocation1], 2
      %907 = vst [vmem:[%s906] ss:$4 sm:$0xff] %v893
      %s909 = scalar_lea.vmem [#allocation1], 3
      %910 = vst [vmem:[%s909] ss:$4 sm:$0xff] %v894
      %v911 = vld.sshfl [vmem:[#allocation1] sm:$0xff pattern:$0x73625140]
      %v914 = vunpack.c.l.b16 %v898
      %v915 = vunpack.c.l.b16 %v899
      %v916 = vpack.c.b16 %v915, %v914
      %v918 = vsel %vm459, %v911, 0
      %920 = vmatpush.bf16.msra.mxu0 0
      %921 = vmatpush.bf16.msra.mxu0 0
      %922 = vmatpush.bf16.msra.mxu0 0
      %923 = vmatpush.bf16.msra.mxu0 0
      %924 = vmatpush.bf16.msra.mxu0 0
      %925 = vmatpush.bf16.msra.mxu0 0
      %926 = vmatpush.bf16.msra.mxu0 0
      %927 = vmatpush.bf16.msra.mxu0 %v916
      %928 = vmatmul.bf16.gmra.mxu0 %v918
      %v929 = vpop.f32.mrf.mxu0
      %v930 = vadd.f32 0.0, %v929
      %v931 = vpop.f32.mrf.mxu0
      %v932 = vadd.f32 0.0, %v931
      %933 = vdwg.mxu0
      %v934 = vadd.f32 %v886, %v930
      %v935 = vadd.f32 %v887, %v932
      %v936 = vld [vmem:[%s890] sm:$0x7]
      %v937 = vld [vmem:[%s890 + $0x4] sm:$0x7]
      %v938 = vld [vmem:[%s890 + $0x8] sm:$0x7]
      %v939 = vld [vmem:[%s890 + $0xc] sm:$0x7]
      %v944 = vrot.slane %v936, 2
      %v945 = vrot.slane %v937, 2
      %v946 = vrot.slane %v938, 2
      %v947 = vrot.slane %v939, 2
      %v950 = vsel %vm351, %v936, %v944
      %v951 = vsel %vm355, %v936, %v944
      %v953 = vrot.slane %v951, 2
      %v956 = vsel %vm351, %v937, %v945
      %v957 = vsel %vm355, %v937, %v945
      %v959 = vrot.slane %v957, 2
      %v962 = vsel %vm351, %v938, %v946
      %v963 = vsel %vm355, %v938, %v946
      %v965 = vrot.slane %v963, 2
      %v968 = vsel %vm351, %v939, %v947
      %v969 = vsel %vm355, %v939, %v947
      %v971 = vrot.slane %v969, 2
      %v972 = vshrl.u32 %v950, 16
      %v974 = vrot.slane %v972, 6
      %v975 = vshll.u32 %v950, 16
      %v977 = vrot.slane %v975, 7
      %v978 = vor.u32 %v974, %v977
      %v979 = vrot.slane %v978, 2
      %v981 = vshll.u32 %v953, 16
      %v983 = vrot.slane %v981, 7
      %v984 = vsel %vm383, %v979, %v983
      %v985 = vshrl.u32 %v956, 16
      %v987 = vrot.slane %v985, 6
      %v988 = vshll.u32 %v956, 16
      %v990 = vrot.slane %v988, 7
      %v991 = vor.u32 %v987, %v990
      %v992 = vrot.slane %v991, 2
      %v994 = vshll.u32 %v959, 16
      %v996 = vrot.slane %v994, 7
      %v997 = vsel %vm383, %v992, %v996
      %v998 = vshrl.u32 %v962, 16
      %v1000 = vrot.slane %v998, 6
      %v1001 = vshll.u32 %v962, 16
      %v1003 = vrot.slane %v1001, 7
      %v1004 = vor.u32 %v1000, %v1003
      %v1005 = vrot.slane %v1004, 2
      %v1007 = vshll.u32 %v965, 16
      %v1009 = vrot.slane %v1007, 7
      %v1010 = vsel %vm383, %v1005, %v1009
      %v1011 = vshrl.u32 %v968, 16
      %v1013 = vrot.slane %v1011, 6
      %v1014 = vshll.u32 %v968, 16
      %v1016 = vrot.slane %v1014, 7
      %v1017 = vor.u32 %v1013, %v1016
      %v1018 = vrot.slane %v1017, 2
      %v1020 = vshll.u32 %v971, 16
      %v1022 = vrot.slane %v1020, 7
      %v1023 = vsel %vm383, %v1018, %v1022
      %s1024 = sadd.s32 14, %s334
      %s1025 = smul.addr %s1024, 4
      %s1026 = scalar_lea.vmem %s1, %s1025
      %v1027 = vld [vmem:[%s1026] sm:$0xf]
      %v1028 = vld [vmem:[%s1026 + $0x4] sm:$0xf]
      %1030 = vst [vmem:[#allocation1] ss:$4 sm:$0xff] %v984
      %s1032 = scalar_lea.vmem [#allocation1], 1
      %1033 = vst [vmem:[%s1032] ss:$4 sm:$0xff] %v997
      %s1035 = scalar_lea.vmem [#allocation1], 2
      %1036 = vst [vmem:[%s1035] ss:$4 sm:$0xff] %v1010
      %s1038 = scalar_lea.vmem [#allocation1], 3
      %1039 = vst [vmem:[%s1038] ss:$4 sm:$0xff] %v1023
      %v1040 = vld.sshfl [vmem:[#allocation1] sm:$0xff pattern:$0x73625140]
      %v1043 = vunpack.c.l.b16 %v1027
      %v1044 = vunpack.c.l.b16 %v1028
      %v1045 = vpack.c.b16 %v1044, %v1043
      %v1047 = vsel %vm459, %v1040, 0
      %1049 = vmatpush.bf16.msra.mxu0 0
      %1050 = vmatpush.bf16.msra.mxu0 0
      %1051 = vmatpush.bf16.msra.mxu0 0
      %1052 = vmatpush.bf16.msra.mxu0 0
      %1053 = vmatpush.bf16.msra.mxu0 0
      %1054 = vmatpush.bf16.msra.mxu0 0
      %1055 = vmatpush.bf16.msra.mxu0 0
      %1056 = vmatpush.bf16.msra.mxu0 %v1045
      %1057 = vmatmul.bf16.gmra.mxu0 %v1047
      %v1058 = vpop.f32.mrf.mxu0
      %v1059 = vadd.f32 0.0, %v1058
      %v1060 = vpop.f32.mrf.mxu0
      %v1061 = vadd.f32 0.0, %v1060
      %1062 = vdwg.mxu0
      %v1063 = vadd.f32 %v934, %v1059
      %v1064 = vadd.f32 %v935, %v1061
      %v1065 = vld [vmem:[%s890] sm:$0x6]
      %v1066 = vld [vmem:[%s890 + $0x4] sm:$0x6]
      %v1067 = vld [vmem:[%s890 + $0x8] sm:$0x6]
      %v1068 = vld [vmem:[%s890 + $0xc] sm:$0x6]
      %v1073 = vrot.slane %v1065, 2
      %v1074 = vrot.slane %v1066, 2
      %v1075 = vrot.slane %v1067, 2
      %v1076 = vrot.slane %v1068, 2
      %v1079 = vsel %vm351, %v1065, %v1073
      %v1081 = vsel %vm355, %v1065, %v1073
      %v1083 = vrot.slane %v1081, 2
      %v1086 = vsel %vm351, %v1066, %v1074
      %v1088 = vsel %vm355, %v1066, %v1074
      %v1090 = vrot.slane %v1088, 2
      %v1093 = vsel %vm351, %v1067, %v1075
      %v1095 = vsel %vm355, %v1067, %v1075
      %v1097 = vrot.slane %v1095, 2
      %v1100 = vsel %vm351, %v1068, %v1076
      %v1102 = vsel %vm355, %v1068, %v1076
      %v1104 = vrot.slane %v1102, 2
      %v1105 = vrot.slane %v1079, 7
      %v1106 = vrot.slane %v1105, 2
      %v1107 = vrot.slane %v1083, 7
      %v1108 = vsel %vm556, %v1106, %v1107
      %v1109 = vrot.slane %v1086, 7
      %v1110 = vrot.slane %v1109, 2
      %v1111 = vrot.slane %v1090, 7
      %v1112 = vsel %vm556, %v1110, %v1111
      %v1113 = vrot.slane %v1093, 7
      %v1114 = vrot.slane %v1113, 2
      %v1115 = vrot.slane %v1097, 7
      %v1116 = vsel %vm556, %v1114, %v1115
      %v1117 = vrot.slane %v1100, 7
      %v1118 = vrot.slane %v1117, 2
      %v1119 = vrot.slane %v1104, 7
      %v1120 = vsel %vm556, %v1118, %v1119
      %s1121 = sadd.s32 16, %s334
      %s1122 = smul.addr %s1121, 4
      %s1123 = scalar_lea.vmem %s1, %s1122
      %v1124 = vld [vmem:[%s1123] sm:$0xf]
      %v1125 = vld [vmem:[%s1123 + $0x4] sm:$0xf]
      %1127 = vst [vmem:[#allocation1] ss:$4 sm:$0xff] %v1108
      %s1129 = scalar_lea.vmem [#allocation1], 1
      %1130 = vst [vmem:[%s1129] ss:$4 sm:$0xff] %v1112
      %s1132 = scalar_lea.vmem [#allocation1], 2
      %1133 = vst [vmem:[%s1132] ss:$4 sm:$0xff] %v1116
      %s1135 = scalar_lea.vmem [#allocation1], 3
      %1136 = vst [vmem:[%s1135] ss:$4 sm:$0xff] %v1120
      %v1137 = vld.sshfl [vmem:[#allocation1] sm:$0xff pattern:$0x73625140]
      %v1140 = vunpack.c.l.b16 %v1124
      %v1141 = vunpack.c.l.b16 %v1125
      %v1142 = vpack.c.b16 %v1141, %v1140
      %v1144 = vsel %vm459, %v1137, 0
      %1146 = vmatpush.bf16.msra.mxu0 0
      %1147 = vmatpush.bf16.msra.mxu0 0
      %1148 = vmatpush.bf16.msra.mxu0 0
      %1149 = vmatpush.bf16.msra.mxu0 0
      %1150 = vmatpush.bf16.msra.mxu0 0
      %1151 = vmatpush.bf16.msra.mxu0 0
      %1152 = vmatpush.bf16.msra.mxu0 0
      %1153 = vmatpush.bf16.msra.mxu0 %v1142
      %1154 = vmatmul.bf16.gmra.mxu0 %v1144
      %v1155 = vpop.f32.mrf.mxu0
      %v1156 = vadd.f32 0.0, %v1155
      %v1157 = vpop.f32.mrf.mxu0
      %v1158 = vadd.f32 0.0, %v1157
      %1159 = vdwg.mxu0
      %v1160 = vadd.f32 %v1063, %v1156
      %v1161 = vadd.f32 %v1064, %v1158
      %v1162 = vld [vmem:[#allocation2] sm:$0xff]
      %v1163 = vld [vmem:[#allocation2 + $0x8] sm:$0xff]
      %v1164 = vadd.f32 %v1162, %v1160
      %v1165 = vadd.f32 %v1163, %v1161
      %1166 = vst.msk [vmem:[#allocation2] sm:$0xff] %vm459, %v1164
      %1167 = vst.msk [vmem:[#allocation2 + $0x8] sm:$0xff] %vm459, %v1165
      %p1168 = scmp.eq.s32.totalorder %s26, 2
      // Predicated region
      $region41: #{encoder_block_forward.11} parent=31 // pred_check
        %p1169 = pneg %p1168
      $region42: #{encoder_block_forward.11} parent=31 // pred_check_branch
        %1171 = sbr.rel (%p1169) target = $region44
      $region43: #{encoder_block_forward.11} parent=31 // pred_region
        %v1172 = vld [vmem:[#allocation2] sm:$0xff]
        %v1173 = vld [vmem:[#allocation2 + $0x8] sm:$0xff]
        %v1174 = vld [vmem:[%s2] sm:$0x1]
        %v1176 = vperm.slane %v1174, 0
        %v1178 = vadd.f32 %v1172, %v1176
        %v1179 = vadd.f32 %v1173, %v1176
        %v1180 = vpack.c.bf16 %v1178, %v1178
        %v1181 = vpack.c.bf16 %v1179, %v1179
        %vm1182 = vcmask 125952
        %1183 = vst.msk [vmem:[%s302] sm:$0xf] %vm1182, %v1180
        %1184 = vst.msk [vmem:[%s302 + $0x4] sm:$0xf] %vm1182, %v1181
        %v1185 = vld [vmem:[%s306] sm:$0x1]
        %v1186 = vsel %vm459, %v1178, 0.0
        %v1187 = vsel %vm459, %v1179, 0.0
        %v1188 = vadd.f32 %v1186, %v1187
        %v1189 = vrot.slane %v1188, 4
        %v1190 = vadd.f32 %v1188, %v1189
        %v1191 = vrot.slane %v1190, 2
        %v1192 = vadd.f32 %v1190, %v1191
        %v1193 = vrot.slane %v1192, 1
        %v1194 = vadd.f32 %v1192, %v1193
        %v1195 = vadd.f32 %v1185, %v1194
        %vm1196 = vcmask 122880
        %1197 = vst.msk [vmem:[%s306] sm:$0x1] %vm1196, %v1195
        %v1198 = vld [vmem:[%s309] sm:$0x1]
        %v1199 = vmul.f32 %v1178, %v1178
        %v1200 = vmul.f32 %v1179, %v1179
        %v1201 = vsel %vm459, %v1199, 0.0
        %v1202 = vsel %vm459, %v1200, 0.0
        %v1203 = vadd.f32 %v1201, %v1202
        %v1204 = vrot.slane %v1203, 4
        %v1205 = vadd.f32 %v1203, %v1204
        %v1206 = vrot.slane %v1205, 2
        %v1207 = vadd.f32 %v1205, %v1206
        %v1208 = vrot.slane %v1207, 1
        %v1209 = vadd.f32 %v1207, %v1208
        %v1210 = vadd.f32 %v1198, %v1209
        %1211 = vst.msk [vmem:[%s309] sm:$0x1] %vm1196, %v1210
      $region44: #{encoder_block_forward.11} parent=31 // pred_fallthru
        _
      %s1212 = smul.u32 2, %s25
      %p1213 = scmp.lt.s32.totalorder %s23, 1
      %s1214 = scalar_select %p1213, %s23, 1
      %p1215 = scmp.lt.s32.totalorder %s24, 2
      %s1216 = scalar_select %p1215, %s24, 2
      %p1217 = scmp.lt.s32.totalorder %s1212, 1
      %s1218 = scalar_select %p1217, %s1212, 1
      %s1219 = smul.addr %s1216, 2
      %s1220 = sadd.s32 %s1218, %s1219
      %s1221 = smul.addr %s1214, 6
      %s1222 = sadd.s32 %s1220, %s1221
      %s1223 = smul.addr %s1222, 4
      %s1224 = scalar_lea.vmem %s3, %s1223
      %p1225 = scmp.lt.s32.totalorder %s23, 1
      %s1226 = scalar_select %p1225, %s23, 1
      %s1227 = scalar_lea.vmem %s4, %s1226
      %p1228 = scmp.lt.s32.totalorder %s23, 1
      %s1229 = scalar_select %p1228, %s23, 1
      %s1230 = scalar_lea.vmem %s5, %s1229
      // Predicated region
      $region45: #{encoder_block_forward.11} parent=31 // pred_check
        %p1231 = pneg %p137
      $region46: #{encoder_block_forward.11} parent=31 // pred_check_branch
        %1233 = sbr.rel (%p1231) target = $region48
      $region47: #{encoder_block_forward.11} parent=31 // pred_region
        %s1234 = smul.u32 2, %s25
      $region48: #{encoder_block_forward.11} parent=31 // pred_fallthru
        _
      // Predicated region
      $region49: #{encoder_block_forward.11} parent=31 // pred_check
        %p1235 = pneg %p163
      $region50: #{encoder_block_forward.11} parent=31 // pred_check_branch
        %1237 = sbr.rel (%p1235) target = $region52
      $region51: #{encoder_block_forward.11} parent=31 // pred_region
        _
      $region52: #{encoder_block_forward.11} parent=31 // pred_fallthru
        _
      // Predicated region
      $region53: #{encoder_block_forward.11} parent=31 // pred_check
        %p1238 = pneg %p189
      $region54: #{encoder_block_forward.11} parent=31 // pred_check_branch
        %1240 = sbr.rel (%p1238) target = $region56
      $region55: #{encoder_block_forward.11} parent=31 // pred_region
        _
      $region56: #{encoder_block_forward.11} parent=31 // pred_fallthru
        _
    $region32: #{encoder_block_forward.11} parent=5 // pred_fallthru
      _
    %p1241 = scmp.le.s32.totalorder 2, %s12
    // Predicated region
    $region57: #{encoder_block_forward.11} parent=5 // pred_check
      %p1242 = pneg %p1241
    $region58: #{encoder_block_forward.11} parent=5 // pred_check_branch
      %1244 = sbr.rel (%p1242) target = $region60
    $region59: #{encoder_block_forward.11} parent=5 // pred_region
      %s1245 = ssub.s32 %s12, 2
      // Predicated region
      $region61: #{encoder_block_forward.11} parent=59 // pred_check
        %p1246 = pneg %p143
      $region62: #{encoder_block_forward.11} parent=59 // pred_check_branch
        %1248 = sbr.rel (%p1246) target = $region64
      $region63: #{encoder_block_forward.11} parent=59 // pred_region
        %s1249 = smul.u32 2, %s29
        %p1250 = scmp.lt.s32.totalorder %s27, 1
        %s1251 = scalar_select %p1250, %s27, 1
        %p1252 = scmp.lt.s32.totalorder %s28, 2
        %s1253 = scalar_select %p1252, %s28, 2
        %p1254 = scmp.lt.s32.totalorder %s1249, 1
        %s1255 = scalar_select %p1254, %s1249, 1
        %s1256 = smul.addr %s1253, 2
        %s1257 = sadd.s32 %s1255, %s1256
        %s1258 = smul.addr %s1251, 6
        %s1259 = sadd.s32 %s1257, %s1258
        %s1260 = smul.addr %s1259, 4
        %s1261 = scalar_lea.vmem %s3, %s1260
      $region64: #{encoder_block_forward.11} parent=59 // pred_fallthru
        _
      // Predicated region
      $region65: #{encoder_block_forward.11} parent=59 // pred_check
        %p1262 = pneg %p169
      $region66: #{encoder_block_forward.11} parent=59 // pred_check_branch
        %1264 = sbr.rel (%p1262) target = $region68
      $region67: #{encoder_block_forward.11} parent=59 // pred_region
        %p1265 = scmp.lt.s32.totalorder %s27, 1
        %s1266 = scalar_select %p1265, %s27, 1
        %s1267 = scalar_lea.vmem %s4, %s1266
      $region68: #{encoder_block_forward.11} parent=59 // pred_fallthru
        _
      // Predicated region
      $region69: #{encoder_block_forward.11} parent=59 // pred_check
        %p1268 = pneg %p195
      $region70: #{encoder_block_forward.11} parent=59 // pred_check_branch
        %1270 = sbr.rel (%p1268) target = $region72
      $region71: #{encoder_block_forward.11} parent=59 // pred_region
        %p1271 = scmp.lt.s32.totalorder %s27, 1
        %s1272 = scalar_select %p1271, %s27, 1
        %s1273 = scalar_lea.vmem %s5, %s1272
      $region72: #{encoder_block_forward.11} parent=59 // pred_fallthru
        _
    $region60: #{encoder_block_forward.11} parent=5 // pred_fallthru
      _
  $region6: #{encoder_block_forward.11} parent=0 // loop_footer
    %s16 = sadd.s32 1, %s12
  $region7: #{encoder_block_forward.11} parent=0 // loop_footer_branch
    %11 = sbr.rel target = $region3
  $region8: #{encoder_block_forward.11} parent=0 // loop_exit
    _

// kernel: encoder_block_forward.17
$region0: #{encoder_block_forward.17}
  #allocation0 [shape = 'u32[]', space=smem, size = 0x4, offset = 0x4, fixed_abs, tag = 'smem constant byte address 0x4 - core index']
  #allocation1 [shape = 'u32[72,128]{1,0:T(1,128)}', space=vmem, size = 0x9000, scoped, tag = 'internal scratch']
  #allocation2 [shape = 'f32[16,16]{1,0:T(8,128)}', space=vmem, size = 0x2000, scoped, tag = 'scratch operand']
  %s0 = inlined_call_operand.vmem [shape: bf16[2,5,1,6,6,16], index: 0, kind: input, shape index: {}]
  %s1 = inlined_call_operand.vmem [shape: bf16[3,9,16,16], index: 1, kind: input, shape index: {}]
  %s2 = inlined_call_operand.vmem [shape: f32[1,16], index: 2, kind: input, shape index: {}]
  %s3 = inlined_call_operand.vmem [shape: bf16[2,3,16,16], index: 3, kind: input, shape index: {}]
  %s4 = inlined_call_operand.vmem [shape: bf16[2,3,16,16], index: 4, kind: output, shape index: {}]
  %s5 = sld [smem:[#allocation0]]
  $region57: #{encoder_block_forward.17} parent=0
    _
  %s7 = ssub.s32 1, %s5
  %s8 = scalar_select 0, %s7, %s5
  loop: start=0, step=1, limit=20
  $region2: #{encoder_block_forward.17} parent=0 // loop_pre_header
    _
  $region3: #{encoder_block_forward.17} parent=0 // loop_header
    %s10 = sphi 0, %s14
    %p11 = scmp.ge.s32.totalorder %s10, 20
    %s17 = sphi 0, %s43
    %s18 = sphi 0, %s39
    %s19 = sphi 0, %s35
    %s20 = sphi 0, %s31
    %s21 = sphi 0, %s17
    %s22 = sphi 0, %s18
    %s23 = sphi 0, %s19
    %s24 = sphi 0, %s20
    %s25 = sphi 0, %s21
    %s26 = sphi 0, %s22
    %s27 = sphi 0, %s23
    %s28 = sphi 0, %s24
    %s50 = sphi 0, %s52
    %s53 = sphi 0, %s50
    %s54 = sphi 0, %s53
    %s70 = sphi 0, %s54
    %s74 = sphi 0, %s74
    %s76 = sphi 0, %s74
    %s77 = sphi 0, %s76
    %s91 = sphi 0, %s77
    %s95 = sphi 0, %s95
    %s97 = sphi 0, %s95
    %s98 = sphi 0, %s97
    %s112 = sphi 0, %s98
    %s122 = sphi 0, %s124
    %s125 = sphi 0, %s122
    %s126 = sphi 0, %s125
    %s142 = sphi 0, %s126
    %s152 = sphi 0, %s154
    %s155 = sphi 0, %s152
    %s156 = sphi 0, %s155
    %s172 = sphi 0, %s156
  $region4: #{encoder_block_forward.17} parent=0 // loop_header_branch
    %13 = sbr.rel (%p11) target = $region8
  $region5: #{encoder_block_forward.17} parent=0 // loop_body
    %s15 = ssub.s32 %s10, 1
    %s16 = ssub.s32 %s10, 2
    %s29 = sadd.s32 1, %s20
    %p30 = scmp.ge.s32.totalorder %s29, 3
    %s31 = scalar_select %p30, 0, %s29
    %s32 = sadd.s32 1, %s19
    %s33 = scalar_select %p30, %s32, %s19
    %p34 = scmp.ge.s32.totalorder %s33, 1
    %s35 = scalar_select %p34, 0, %s33
    %s36 = sadd.s32 1, %s18
    %s37 = scalar_select %p34, %s36, %s18
    %p38 = scmp.ge.s32.totalorder %s37, 3
    %s39 = scalar_select %p38, 0, %s37
    %s40 = sadd.s32 1, %s17
    %s41 = scalar_select %p38, %s40, %s17
    %p42 = scmp.ge.s32.totalorder %s41, 2
    %s43 = scalar_select %p42, 0, %s41
    %s44 = sadd.s32 %s18, %s20
    %s45 = sadd.s32 %s39, %s31
    %s46 = ssub.s32 %s17, %s43
    %s47 = ssub.s32 %s44, %s45
    %s48 = sor.u32 %s46, %s47
    %p49 = scmp.eq.s32.totalorder %s48, 0
    %s51 = sadd.s32 %s50, 1
    %s52 = scalar_select %p49, %s50, %s51
    %p55 = pneg %p49
    %p56 = scmp.eq.s32.totalorder %s10, 17
    %p57 = por %p55, %p56
    %p58 = scmp.ne.s32.totalorder %s50, %s53
    %p59 = scmp.eq.s32.totalorder %s10, 0
    %p60 = por %p58, %p59
    %p61 = scmp.ne.s32.totalorder %s50, %s53
    %p62 = scmp.eq.s32.totalorder %s15, 17
    %p63 = por %p61, %p62
    %p64 = scmp.ne.s32.totalorder %s53, %s54
    %p65 = scmp.eq.s32.totalorder %s15, 0
    %p66 = por %p64, %p65
    %p67 = scmp.ne.s32.totalorder %s53, %s54
    %p68 = scmp.eq.s32.totalorder %s16, 17
    %p69 = por %p67, %p68
    %p71 = scmp.ne.s32.totalorder %s54, %s70
    %p72 = scmp.eq.s32.totalorder %s16, 0
    %p73 = por %p71, %p72
    %s75 = sadd.s32 %s74, 1
    %p78 = scmp.eq.s32.totalorder %s10, 17
    %p79 = scmp.ne.s32.totalorder %s74, %s76
    %p80 = scmp.eq.s32.totalorder %s10, 0
    %p81 = por %p79, %p80
    %p82 = scmp.ne.s32.totalorder %s74, %s76
    %p83 = scmp.eq.s32.totalorder %s15, 17
    %p84 = por %p82, %p83
    %p85 = scmp.ne.s32.totalorder %s76, %s77
    %p86 = scmp.eq.s32.totalorder %s15, 0
    %p87 = por %p85, %p86
    %p88 = scmp.ne.s32.totalorder %s76, %s77
    %p89 = scmp.eq.s32.totalorder %s16, 17
    %p90 = por %p88, %p89
    %p92 = scmp.ne.s32.totalorder %s77, %s91
    %p93 = scmp.eq.s32.totalorder %s16, 0
    %p94 = por %p92, %p93
    %s96 = sadd.s32 %s95, 1
    %p99 = scmp.eq.s32.totalorder %s10, 17
    %p100 = scmp.ne.s32.totalorder %s95, %s97
    %p101 = scmp.eq.s32.totalorder %s10, 0
    %p102 = por %p100, %p101
    %p103 = scmp.ne.s32.totalorder %s95, %s97
    %p104 = scmp.eq.s32.totalorder %s15, 17
    %p105 = por %p103, %p104
    %p106 = scmp.ne.s32.totalorder %s97, %s98
    %p107 = scmp.eq.s32.totalorder %s15, 0
    %p108 = por %p106, %p107
    %p109 = scmp.ne.s32.totalorder %s97, %s98
    %p110 = scmp.eq.s32.totalorder %s16, 17
    %p111 = por %p109, %p110
    %p113 = scmp.ne.s32.totalorder %s98, %s112
    %p114 = scmp.eq.s32.totalorder %s16, 0
    %p115 = por %p113, %p114
    %s116 = ssub.s32 %s17, %s43
    %s117 = ssub.s32 %s18, %s39
    %s118 = sor.u32 %s116, %s117
    %s119 = ssub.s32 %s19, %s35
    %s120 = sor.u32 %s118, %s119
    %p121 = scmp.eq.s32.totalorder %s120, 0
    %s123 = sadd.s32 %s122, 1
    %s124 = scalar_select %p121, %s122, %s123
    %p127 = pneg %p121
    %p128 = scmp.eq.s32.totalorder %s10, 17
    %p129 = por %p127, %p128
    %p130 = scmp.ne.s32.totalorder %s122, %s125
    %p131 = scmp.eq.s32.totalorder %s10, 0
    %p132 = por %p130, %p131
    %p133 = scmp.ne.s32.totalorder %s122, %s125
    %p134 = scmp.eq.s32.totalorder %s15, 17
    %p135 = por %p133, %p134
    %p136 = scmp.ne.s32.totalorder %s125, %s126
    %p137 = scmp.eq.s32.totalorder %s15, 0
    %p138 = por %p136, %p137
    %p139 = scmp.ne.s32.totalorder %s125, %s126
    %p140 = scmp.eq.s32.totalorder %s16, 17
    %p141 = por %p139, %p140
    %p143 = scmp.ne.s32.totalorder %s126, %s142
    %p144 = scmp.eq.s32.totalorder %s16, 0
    %p145 = por %p143, %p144
    %s146 = ssub.s32 %s17, %s43
    %s147 = ssub.s32 %s18, %s39
    %s148 = sor.u32 %s146, %s147
    %s149 = ssub.s32 %s19, %s35
    %s150 = sor.u32 %s148, %s149
    %p151 = scmp.eq.s32.totalorder %s150, 0
    %s153 = sadd.s32 %s152, 1
    %s154 = scalar_select %p151, %s152, %s153
    %p157 = pneg %p151
    %p158 = scmp.eq.s32.totalorder %s10, 17
    %p159 = por %p157, %p158
    %p160 = scmp.ne.s32.totalorder %s152, %s155
    %p161 = scmp.eq.s32.totalorder %s10, 0
    %p162 = por %p160, %p161
    %p163 = scmp.ne.s32.totalorder %s152, %s155
    %p164 = scmp.eq.s32.totalorder %s15, 17
    %p165 = por %p163, %p164
    %p166 = scmp.ne.s32.totalorder %s155, %s156
    %p167 = scmp.eq.s32.totalorder %s15, 0
    %p168 = por %p166, %p167
    %p169 = scmp.ne.s32.totalorder %s155, %s156
    %p170 = scmp.eq.s32.totalorder %s16, 17
    %p171 = por %p169, %p170
    %p173 = scmp.ne.s32.totalorder %s156, %s172
    %p174 = scmp.eq.s32.totalorder %s16, 0
    %p175 = por %p173, %p174
    %p176 = scmp.le.s32.totalorder 1, %s10
    %p177 = scmp.lt.s32.totalorder %s10, 19
    %p178 = pnand %p176, %p177
    %p179 = pneg %p178
    // Predicated region
    $region9: #{encoder_block_forward.17} parent=5 // pred_check
      _
    $region10: #{encoder_block_forward.17} parent=5 // pred_check_branch
      %181 = sbr.rel (%p178) target = $region12
    $region11: #{encoder_block_forward.17} parent=5 // pred_region
      %s182 = ssub.s32 %s10, 1
      // Predicated region
      $region13: #{encoder_block_forward.17} parent=11 // pred_check
        %p183 = pneg %p87
      $region14: #{encoder_block_forward.17} parent=11 // pred_check_branch
        %185 = sbr.rel (%p183) target = $region16
      $region15: #{encoder_block_forward.17} parent=11 // pred_region
        _
      $region16: #{encoder_block_forward.17} parent=11 // pred_fallthru
        _
      // Predicated region
      $region17: #{encoder_block_forward.17} parent=11 // pred_check
        %p186 = pneg %p108
      $region18: #{encoder_block_forward.17} parent=11 // pred_check_branch
        %188 = sbr.rel (%p186) target = $region20
      $region19: #{encoder_block_forward.17} parent=11 // pred_region
        _
      $region20: #{encoder_block_forward.17} parent=11 // pred_fallthru
        _
    $region12: #{encoder_block_forward.17} parent=5 // pred_fallthru
      _
    %p189 = scmp.lt.s32.totalorder %s10, 18
    // Predicated region
    $region21: #{encoder_block_forward.17} parent=5 // pred_check
      %p190 = pneg %p189
    $region22: #{encoder_block_forward.17} parent=5 // pred_check_branch
      %192 = sbr.rel (%p190) target = $region24
    $region23: #{encoder_block_forward.17} parent=5 // pred_region
      // Predicated region
      $region25: #{encoder_block_forward.17} parent=23 // pred_check
        %p193 = pneg %p60
      $region26: #{encoder_block_forward.17} parent=23 // pred_check_branch
        %195 = sbr.rel (%p193) target = $region28
      $region27: #{encoder_block_forward.17} parent=23 // pred_region
        %s196 = sadd.s32 %s18, %s20
        %p197 = scmp.lt.s32.totalorder %s17, 1
        %s198 = scalar_select %p197, %s17, 1
        %p199 = scmp.lt.s32.totalorder %s196, 4
        %s200 = scalar_select %p199, %s196, 4
        %s201 = smul.addr %s200, 6
        %s202 = smul.addr %s198, 30
        %s203 = sadd.s32 %s201, %s202
        %s204 = smul.addr %s203, 4
        %s205 = scalar_lea.vmem %s0, %s204
        %s206 = sadd.s32 %s18, %s20
      $region28: #{encoder_block_forward.17} parent=23 // pred_fallthru
        _
      // Predicated region
      $region29: #{encoder_block_forward.17} parent=23 // pred_check
        %p207 = pneg %p132
      $region30: #{encoder_block_forward.17} parent=23 // pred_check_branch
        %209 = sbr.rel (%p207) target = $region32
      $region31: #{encoder_block_forward.17} parent=23 // pred_region
        %s210 = smul.u32 2, %s19
        %p211 = scmp.lt.s32.totalorder %s17, 1
        %s212 = scalar_select %p211, %s17, 1
        %p213 = scmp.lt.s32.totalorder %s18, 2
        %s214 = scalar_select %p213, %s18, 2
        %p215 = scmp.lt.s32.totalorder %s210, 1
        %s216 = scalar_select %p215, %s210, 1
        %s217 = smul.addr %s214, 2
        %s218 = sadd.s32 %s216, %s217
        %s219 = smul.addr %s212, 6
        %s220 = sadd.s32 %s218, %s219
        %s221 = smul.addr %s220, 4
        %s222 = scalar_lea.vmem %s3, %s221
        %s223 = smul.u32 2, %s19
      $region32: #{encoder_block_forward.17} parent=23 // pred_fallthru
        _
    $region24: #{encoder_block_forward.17} parent=5 // pred_fallthru
      _
    %p224 = scmp.le.s32.totalorder 1, %s10
    %p225 = scmp.lt.s32.totalorder %s10, 19
    %p226 = pnand %p224, %p225
    %p227 = pneg %p226
    // Predicated region
    $region33: #{encoder_block_forward.17} parent=5 // pred_check
      _
    $region34: #{encoder_block_forward.17} parent=5 // pred_check_branch
      %229 = sbr.rel (%p226) target = $region36
    $region35: #{encoder_block_forward.17} parent=5 // pred_region
      %s230 = ssub.s32 %s10, 1
      %s231 = sadd.s32 %s22, %s24
      %p232 = scmp.lt.s32.totalorder %s21, 1
      %s233 = scalar_select %p232, %s21, 1
      %p234 = scmp.lt.s32.totalorder %s231, 4
      %s235 = scalar_select %p234, %s231, 4
      %s236 = smul.addr %s235, 6
      %s237 = smul.addr %s233, 30
      %s238 = sadd.s32 %s236, %s237
      %s239 = smul.addr %s238, 4
      %s240 = scalar_lea.vmem %s0, %s239
      %p241 = pneg %p66
      %p242 = pneg %p63
      %p243 = pneg %p87
      %p244 = pneg %p84
      %p245 = pneg %p108
      %p246 = pneg %p105
      %s247 = smul.u32 2, %s23
      %p248 = scmp.lt.s32.totalorder %s21, 1
      %s249 = scalar_select %p248, %s21, 1
      %p250 = scmp.lt.s32.totalorder %s22, 2
      %s251 = scalar_select %p250, %s22, 2
      %p252 = scmp.lt.s32.totalorder %s247, 1
      %s253 = scalar_select %p252, %s247, 1
      %s254 = smul.addr %s251, 2
      %s255 = sadd.s32 %s253, %s254
      %s256 = smul.addr %s249, 6
      %s257 = sadd.s32 %s255, %s256
      %s258 = smul.addr %s257, 4
      %s259 = scalar_lea.vmem %s3, %s258
      %p260 = pneg %p138
      %p261 = pneg %p135
      %p262 = pneg %p168
      %p263 = pneg %p165
      %s264 = smul.u32 2, %s23
      %p265 = scmp.lt.s32.totalorder %s21, 1
      %s266 = scalar_select %p265, %s21, 1
      %p267 = scmp.lt.s32.totalorder %s22, 2
      %s268 = scalar_select %p267, %s22, 2
      %p269 = scmp.lt.s32.totalorder %s264, 1
      %s270 = scalar_select %p269, %s264, 1
      %s271 = smul.addr %s268, 2
      %s272 = sadd.s32 %s270, %s271
      %s273 = smul.addr %s266, 6
      %s274 = sadd.s32 %s272, %s273
      %s275 = smul.addr %s274, 4
      %s276 = scalar_lea.vmem %s4, %s275
      %s277 = sadd.s32 %s22, %s24
      %p278 = scmp.lt.s32.totalorder %s21, 1
      %s279 = scalar_select %p278, %s21, 1
      %p280 = scmp.lt.s32.totalorder %s277, 4
      %s281 = scalar_select %p280, %s277, 4
      %s282 = smul.addr %s281, 6
      %s283 = smul.addr %s279, 30
      %s284 = sadd.s32 %s282, %s283
      %s285 = smul.addr %s284, 4
      %s286 = scalar_lea.vmem %s0, %s285
      %s287 = sadd.s32 %s22, %s24
      %s288 = smul.u32 2, %s23
      %p289 = scmp.lt.s32.totalorder %s21, 1
      %s290 = scalar_select %p289, %s21, 1
      %p291 = scmp.lt.s32.totalorder %s22, 2
      %s292 = scalar_select %p291, %s22, 2
      %p293 = scmp.lt.s32.totalorder %s288, 1
      %s294 = scalar_select %p293, %s288, 1
      %s295 = smul.addr %s292, 2
      %s296 = sadd.s32 %s294, %s295
      %s297 = smul.addr %s290, 6
      %s298 = sadd.s32 %s296, %s297
      %s299 = smul.addr %s298, 4
      %s300 = scalar_lea.vmem %s3, %s299
      %s301 = smul.u32 2, %s23
      %s302 = smul.u32 2, %s23
      %p303 = scmp.lt.s32.totalorder %s21, 1
      %s304 = scalar_select %p303, %s21, 1
      %p305 = scmp.lt.s32.totalorder %s22, 2
      %s306 = scalar_select %p305, %s22, 2
      %p307 = scmp.lt.s32.totalorder %s302, 1
      %s308 = scalar_select %p307, %s302, 1
      %s309 = smul.addr %s306, 2
      %s310 = sadd.s32 %s308, %s309
      %s311 = smul.addr %s304, 6
      %s312 = sadd.s32 %s310, %s311
      %s313 = smul.addr %s312, 4
      %s314 = scalar_lea.vmem %s4, %s313
      %s315 = smul.u32 2, %s23
      %p317 = scmp.eq.s32.totalorder %s24, 0
      // Predicated region
      $region37: #{encoder_block_forward.17} parent=35 // pred_check
        %p318 = pneg %p317
      $region38: #{encoder_block_forward.17} parent=35 // pred_check_branch
        %320 = sbr.rel (%p318) target = $region40
      $region39: #{encoder_block_forward.17} parent=35 // pred_region
        %vm321 = vcmask 130048
        %322 = vst.msk [vmem:[#allocation2] sm:$0xff] %vm321, 0.0
        %323 = vst.msk [vmem:[#allocation2 + $0x8] sm:$0xff] %vm321, 0.0
      $region40: #{encoder_block_forward.17} parent=35 // pred_fallthru
        _
      %s324 = smul.u32 %s23, 4
      %s325 = smul.addr %s324, 4
      %s326 = scalar_lea.vmem %s286, %s325
      %v327 = vld [vmem:[%s326] sm:$0x3]
      %v328 = vld [vmem:[%s326 + $0x4] sm:$0x3]
      %v329 = vld [vmem:[%s326 + $0x8] sm:$0x3]
      %v330 = vld [vmem:[%s326 + $0xc] sm:$0x3]
      %s331 = smul.u32 %s24, 18
      %s332 = smul.addr %s331, 4
      %s333 = scalar_lea.vmem %s1, %s332
      %v334 = vld [vmem:[%s333] sm:$0xf]
      %v335 = vld [vmem:[%s333 + $0x4] sm:$0xf]
      %v336 = vld [vmem:[%s326] sm:$0x7]
      %v337 = vld [vmem:[%s326 + $0x4] sm:$0x7]
      %v338 = vld [vmem:[%s326 + $0x8] sm:$0x7]
      %v339 = vld [vmem:[%s326 + $0xc] sm:$0x7]
      %v344 = vrot.slane %v336, 2
      %v345 = vrot.slane %v337, 2
      %v346 = vrot.slane %v338, 2
      %v347 = vrot.slane %v339, 2
      %vm348 = vcmask 1041408
      %v351 = vsel %vm348, %v336, %v344
      %vm352 = vcmask 1043458
      %v353 = vsel %vm352, %v336, %v344
      %v355 = vrot.slane %v353, 2
      %v358 = vsel %vm348, %v337, %v345
      %v359 = vsel %vm352, %v337, %v345
      %v361 = vrot.slane %v359, 2
      %v364 = vsel %vm348, %v338, %v346
      %v365 = vsel %vm352, %v338, %v346
      %v367 = vrot.slane %v365, 2
      %v370 = vsel %vm348, %v339, %v347
      %v371 = vsel %vm352, %v339, %v347
      %v373 = vrot.slane %v371, 2
      %vm374 = vsmask.f32 1280
      %vm375 = vsmask.f32 3336
      %vm376 = vmor %vm374, %vm375
      %vm377 = vsmask.f32 5392
      %vm378 = vmor %vm376, %vm377
      %vm379 = vsmask.f32 7448
      %vm380 = vmor %vm378, %vm379
      %v381 = vshrl.u32 %v351, 16
      %v383 = vrot.slane %v381, 6
      %v384 = vshll.u32 %v351, 16
      %v386 = vrot.slane %v384, 7
      %v387 = vor.u32 %v383, %v386
      %v388 = vrot.slane %v387, 2
      %v390 = vshll.u32 %v355, 16
      %v392 = vrot.slane %v390, 7
      %v393 = vsel %vm380, %v388, %v392
      %v394 = vshrl.u32 %v358, 16
      %v396 = vrot.slane %v394, 6
      %v397 = vshll.u32 %v358, 16
      %v399 = vrot.slane %v397, 7
      %v400 = vor.u32 %v396, %v399
      %v401 = vrot.slane %v400, 2
      %v403 = vshll.u32 %v361, 16
      %v405 = vrot.slane %v403, 7
      %v406 = vsel %vm380, %v401, %v405
      %v407 = vshrl.u32 %v364, 16
      %v409 = vrot.slane %v407, 6
      %v410 = vshll.u32 %v364, 16
      %v412 = vrot.slane %v410, 7
      %v413 = vor.u32 %v409, %v412
      %v414 = vrot.slane %v413, 2
      %v416 = vshll.u32 %v367, 16
      %v418 = vrot.slane %v416, 7
      %v419 = vsel %vm380, %v414, %v418
      %v420 = vshrl.u32 %v370, 16
      %v422 = vrot.slane %v420, 6
      %v423 = vshll.u32 %v370, 16
      %v425 = vrot.slane %v423, 7
      %v426 = vor.u32 %v422, %v425
      %v427 = vrot.slane %v426, 2
      %v429 = vshll.u32 %v373, 16
      %v431 = vrot.slane %v429, 7
      %v432 = vsel %vm380, %v427, %v431
      %s433 = sadd.s32 2, %s331
      %s434 = smul.addr %s433, 4
      %s435 = scalar_lea.vmem %s1, %s434
      %v436 = vld [vmem:[%s435] sm:$0xf]
      %v437 = vld [vmem:[%s435 + $0x4] sm:$0xf]
      %439 = vst [vmem:[#allocation1] ss:$4 sm:$0xff] %v393
      %s441 = scalar_lea.vmem [#allocation1], 1
      %442 = vst [vmem:[%s441] ss:$4 sm:$0xff] %v406
      %s444 = scalar_lea.vmem [#allocation1], 2
      %445 = vst [vmem:[%s444] ss:$4 sm:$0xff] %v419
      %s447 = scalar_lea.vmem [#allocation1], 3
      %448 = vst [vmem:[%s447] ss:$4 sm:$0xff] %v432
      %v449 = vld.sshfl [vmem:[#allocation1] sm:$0xff pattern:$0x73625140]
      %v452 = vunpack.c.l.b16 %v436
      %v453 = vunpack.c.l.b16 %v437
      %v454 = vpack.c.b16 %v453, %v452
      %vm456 = vcmask 130048
      %v457 = vsel %vm456, %v449, 0
      %459 = vmatpush.bf16.msra.mxu0 0
      %460 = vmatpush.bf16.msra.mxu0 0
      %461 = vmatpush.bf16.msra.mxu0 0
      %462 = vmatpush.bf16.msra.mxu0 0
      %463 = vmatpush.bf16.msra.mxu0 0
      %464 = vmatpush.bf16.msra.mxu0 0
      %465 = vmatpush.bf16.msra.mxu0 0
      %466 = vmatpush.bf16.msra.mxu0 %v454
      %467 = vmatmul.bf16.gmra.mxu0 %v457
      %v468 = vpop.f32.mrf.mxu0
      %v469 = vadd.f32 0.0, %v468
      %v470 = vpop.f32.mrf.mxu0
      %v471 = vadd.f32 0.0, %v470
      %472 = vdwg.mxu0
      %474 = vst [vmem:[#allocation1] ss:$4 sm:$0xff] %v327
      %s476 = scalar_lea.vmem [#allocation1], 1
      %477 = vst [vmem:[%s476] ss:$4 sm:$0xff] %v328
      %s479 = scalar_lea.vmem [#allocation1], 2
      %480 = vst [vmem:[%s479] ss:$4 sm:$0xff] %v329
      %s482 = scalar_lea.vmem [#allocation1], 3
      %483 = vst [vmem:[%s482] ss:$4 sm:$0xff] %v330
      %v484 = vld.sshfl [vmem:[#allocation1] sm:$0xff pattern:$0x73625140]
      %v487 = vunpack.c.l.b16 %v334
      %v488 = vunpack.c.l.b16 %v335
      %v489 = vpack.c.b16 %v488, %v487
      %v491 = vsel %vm456, %v484, 0
      %493 = vmatpush.bf16.msra.mxu0 0
      %494 = vmatpush.bf16.msra.mxu0 0
      %495 = vmatpush.bf16.msra.mxu0 0
      %496 = vmatpush.bf16.msra.mxu0 0
      %497 = vmatpush.bf16.msra.mxu0 0
      %498 = vmatpush.bf16.msra.mxu0 0
      %499 = vmatpush.bf16.msra.mxu0 0
      %500 = vmatpush.bf16.msra.mxu0 %v489
      %501 = vmatmul.bf16.gmra.mxu0 %v491
      %v502 = vpop.f32.mrf.mxu0
      %v503 = vadd.f32 %v469, %v502
      %v504 = vpop.f32.mrf.mxu0
      %v505 = vadd.f32 %v471, %v504
      %506 = vdwg.mxu0
      %v507 = vld [vmem:[%s326] sm:$0x6]
      %v508 = vld [vmem:[%s326 + $0x4] sm:$0x6]
      %v509 = vld [vmem:[%s326 + $0x8] sm:$0x6]
      %v510 = vld [vmem:[%s326 + $0xc] sm:$0x6]
      %v515 = vrot.slane %v507, 2
      %v516 = vrot.slane %v508, 2
      %v517 = vrot.slane %v509, 2
      %v518 = vrot.slane %v510, 2
      %v521 = vsel %vm348, %v507, %v515
      %v523 = vsel %vm352, %v507, %v515
      %v525 = vrot.slane %v523, 2
      %v528 = vsel %vm348, %v508, %v516
      %v530 = vsel %vm352, %v508, %v516
      %v532 = vrot.slane %v530, 2
      %v535 = vsel %vm348, %v509, %v517
      %v537 = vsel %vm352, %v509, %v517
      %v539 = vrot.slane %v537, 2
      %v542 = vsel %vm348, %v510, %v518
      %v544 = vsel %vm352, %v510, %v518
      %v546 = vrot.slane %v544, 2
      %vm547 = vcmask 1040384
      %vm548 = vcmask 1042434
      %vm549 = vmor %vm547, %vm548
      %vm550 = vcmask 1044484
      %vm551 = vmor %vm549, %vm550
      %vm552 = vcmask 1046534
      %vm553 = vmor %vm551, %vm552
      %v554 = vrot.slane %v521, 7
      %v555 = vrot.slane %v554, 2
      %v556 = vrot.slane %v525, 7
      %v557 = vsel %vm553, %v555, %v556
      %v558 = vrot.slane %v528, 7
      %v559 = vrot.slane %v558, 2
      %v560 = vrot.slane %v532, 7
      %v561 = vsel %vm553, %v559, %v560
      %v562 = vrot.slane %v535, 7
      %v563 = vrot.slane %v562, 2
      %v564 = vrot.slane %v539, 7
      %v565 = vsel %vm553, %v563, %v564
      %v566 = vrot.slane %v542, 7
      %v567 = vrot.slane %v566, 2
      %v568 = vrot.slane %v546, 7
      %v569 = vsel %vm553, %v567, %v568
      %s570 = sadd.s32 4, %s331
      %s571 = smul.addr %s570, 4
      %s572 = scalar_lea.vmem %s1, %s571
      %v573 = vld [vmem:[%s572] sm:$0xf]
      %v574 = vld [vmem:[%s572 + $0x4] sm:$0xf]
      %576 = vst [vmem:[#allocation1] ss:$4 sm:$0xff] %v557
      %s578 = scalar_lea.vmem [#allocation1], 1
      %579 = vst [vmem:[%s578] ss:$4 sm:$0xff] %v561
      %s581 = scalar_lea.vmem [#allocation1], 2
      %582 = vst [vmem:[%s581] ss:$4 sm:$0xff] %v565
      %s584 = scalar_lea.vmem [#allocation1], 3
      %585 = vst [vmem:[%s584] ss:$4 sm:$0xff] %v569
      %v586 = vld.sshfl [vmem:[#allocation1] sm:$0xff pattern:$0x73625140]
      %v589 = vunpack.c.l.b16 %v573
      %v590 = vunpack.c.l.b16 %v574
      %v591 = vpack.c.b16 %v590, %v589
      %v593 = vsel %vm456, %v586, 0
      %595 = vmatpush.bf16.msra.mxu0 0
      %596 = vmatpush.bf16.msra.mxu0 0
      %597 = vmatpush.bf16.msra.mxu0 0
      %598 = vmatpush.bf16.msra.mxu0 0
      %599 = vmatpush.bf16.msra.mxu0 0
      %600 = vmatpush.bf16.msra.mxu0 0
      %601 = vmatpush.bf16.msra.mxu0 0
      %602 = vmatpush.bf16.msra.mxu0 %v591
      %603 = vmatmul.bf16.gmra.mxu0 %v593
      %v604 = vpop.f32.mrf.mxu0
      %v605 = vadd.f32 0.0, %v604
      %v606 = vpop.f32.mrf.mxu0
      %v607 = vadd.f32 0.0, %v606
      %608 = vdwg.mxu0
      %v609 = vadd.f32 %v503, %v605
      %v610 = vadd.f32 %v505, %v607
      %s611 = sadd.s32 %s324, 1
      %s612 = smul.addr %s611, 4
      %s613 = scalar_lea.vmem %s286, %s612
      %v614 = vld [vmem:[%s613] sm:$0x3]
      %v615 = vld [vmem:[%s613 + $0x4] sm:$0x3]
      %v616 = vld [vmem:[%s613 + $0x8] sm:$0x3]
      %v617 = vld [vmem:[%s613 + $0xc] sm:$0x3]
      %s618 = sadd.s32 6, %s331
      %s619 = smul.addr %s618, 4
      %s620 = scalar_lea.vmem %s1, %s619
      %v621 = vld [vmem:[%s620] sm:$0xf]
      %v622 = vld [vmem:[%s620 + $0x4] sm:$0xf]
      %624 = vst [vmem:[#allocation1] ss:$4 sm:$0xff] %v614
      %s626 = scalar_lea.vmem [#allocation1], 1
      %627 = vst [vmem:[%s626] ss:$4 sm:$0xff] %v615
      %s629 = scalar_lea.vmem [#allocation1], 2
      %630 = vst [vmem:[%s629] ss:$4 sm:$0xff] %v616
      %s632 = scalar_lea.vmem [#allocation1], 3
      %633 = vst [vmem:[%s632] ss:$4 sm:$0xff] %v617
      %v634 = vld.sshfl [vmem:[#allocation1] sm:$0xff pattern:$0x73625140]
      %v637 = vunpack.c.l.b16 %v621
      %v638 = vunpack.c.l.b16 %v622
      %v639 = vpack.c.b16 %v638, %v637
      %v641 = vsel %vm456, %v634, 0
      %643 = vmatpush.bf16.msra.mxu0 0
      %644 = vmatpush.bf16.msra.mxu0 0
      %645 = vmatpush.bf16.msra.mxu0 0
      %646 = vmatpush.bf16.msra.mxu0 0
      %647 = vmatpush.bf16.msra.mxu0 0
      %648 = vmatpush.bf16.msra.mxu0 0
      %649 = vmatpush.bf16.msra.mxu0 0
      %650 = vmatpush.bf16.msra.mxu0 %v639
      %651 = vmatmul.bf16.gmra.mxu0 %v641
      %v652 = vpop.f32.mrf.mxu0
      %v653 = vadd.f32 0.0, %v652
      %v654 = vpop.f32.mrf.mxu0
      %v655 = vadd.f32 0.0, %v654
      %656 = vdwg.mxu0
      %v657 = vadd.f32 %v609, %v653
      %v658 = vadd.f32 %v610, %v655
      %v659 = vld [vmem:[%s613] sm:$0x7]
      %v660 = vld [vmem:[%s613 + $0x4] sm:$0x7]
      %v661 = vld [vmem:[%s613 + $0x8] sm:$0x7]
      %v662 = vld [vmem:[%s613 + $0xc] sm:$0x7]
      %v667 = vrot.slane %v659, 2
      %v668 = vrot.slane %v660, 2
      %v669 = vrot.slane %v661, 2
      %v670 = vrot.slane %v662, 2
      %v673 = vsel %vm348, %v659, %v667
      %v674 = vsel %vm352, %v659, %v667
      %v676 = vrot.slane %v674, 2
      %v679 = vsel %vm348, %v660, %v668
      %v680 = vsel %vm352, %v660, %v668
      %v682 = vrot.slane %v680, 2
      %v685 = vsel %vm348, %v661, %v669
      %v686 = vsel %vm352, %v661, %v669
      %v688 = vrot.slane %v686, 2
      %v691 = vsel %vm348, %v662, %v670
      %v692 = vsel %vm352, %v662, %v670
      %v694 = vrot.slane %v692, 2
      %v695 = vshrl.u32 %v673, 16
      %v697 = vrot.slane %v695, 6
      %v698 = vshll.u32 %v673, 16
      %v700 = vrot.slane %v698, 7
      %v701 = vor.u32 %v697, %v700
      %v702 = vrot.slane %v701, 2
      %v704 = vshll.u32 %v676, 16
      %v706 = vrot.slane %v704, 7
      %v707 = vsel %vm380, %v702, %v706
      %v708 = vshrl.u32 %v679, 16
      %v710 = vrot.slane %v708, 6
      %v711 = vshll.u32 %v679, 16
      %v713 = vrot.slane %v711, 7
      %v714 = vor.u32 %v710, %v713
      %v715 = vrot.slane %v714, 2
      %v717 = vshll.u32 %v682, 16
      %v719 = vrot.slane %v717, 7
      %v720 = vsel %vm380, %v715, %v719
      %v721 = vshrl.u32 %v685, 16
      %v723 = vrot.slane %v721, 6
      %v724 = vshll.u32 %v685, 16
      %v726 = vrot.slane %v724, 7
      %v727 = vor.u32 %v723, %v726
      %v728 = vrot.slane %v727, 2
      %v730 = vshll.u32 %v688, 16
      %v732 = vrot.slane %v730, 7
      %v733 = vsel %vm380, %v728, %v732
      %v734 = vshrl.u32 %v691, 16
      %v736 = vrot.slane %v734, 6
      %v737 = vshll.u32 %v691, 16
      %v739 = vrot.slane %v737, 7
      %v740 = vor.u32 %v736, %v739
      %v741 = vrot.slane %v740, 2
      %v743 = vshll.u32 %v694, 16
      %v745 = vrot.slane %v743, 7
      %v746 = vsel %vm380, %v741, %v745
      %s747 = sadd.s32 8, %s331
      %s748 = smul.addr %s747, 4
      %s749 = scalar_lea.vmem %s1, %s748
      %v750 = vld [vmem:[%s749] sm:$0xf]
      %v751 = vld [vmem:[%s749 + $0x4] sm:$0xf]
      %753 = vst [vmem:[#allocation1] ss:$4 sm:$0xff] %v707
      %s755 = scalar_lea.vmem [#allocation1], 1
      %756 = vst [vmem:[%s755] ss:$4 sm:$0xff] %v720
      %s758 = scalar_lea.vmem [#allocation1], 2
      %759 = vst [vmem:[%s758] ss:$4 sm:$0xff] %v733
      %s761 = scalar_lea.vmem [#allocation1], 3
      %762 = vst [vmem:[%s761] ss:$4 sm:$0xff] %v746
      %v763 = vld.sshfl [vmem:[#allocation1] sm:$0xff pattern:$0x73625140]
      %v766 = vunpack.c.l.b16 %v750
      %v767 = vunpack.c.l.b16 %v751
      %v768 = vpack.c.b16 %v767, %v766
      %v770 = vsel %vm456, %v763, 0
      %772 = vmatpush.bf16.msra.mxu0 0
      %773 = vmatpush.bf16.msra.mxu0 0
      %774 = vmatpush.bf16.msra.mxu0 0
      %775 = vmatpush.bf16.msra.mxu0 0
      %776 = vmatpush.bf16.msra.mxu0 0
      %777 = vmatpush.bf16.msra.mxu0 0
      %778 = vmatpush.bf16.msra.mxu0 0
      %779 = vmatpush.bf16.msra.mxu0 %v768
      %780 = vmatmul.bf16.gmra.mxu0 %v770
      %v781 = vpop.f32.mrf.mxu0
      %v782 = vadd.f32 0.0, %v781
      %v783 = vpop.f32.mrf.mxu0
      %v784 = vadd.f32 0.0, %v783
      %785 = vdwg.mxu0
      %v786 = vadd.f32 %v657, %v782
      %v787 = vadd.f32 %v658, %v784
      %v788 = vld [vmem:[%s613] sm:$0x6]
      %v789 = vld [vmem:[%s613 + $0x4] sm:$0x6]
      %v790 = vld [vmem:[%s613 + $0x8] sm:$0x6]
      %v791 = vld [vmem:[%s613 + $0xc] sm:$0x6]
      %v796 = vrot.slane %v788, 2
      %v797 = vrot.slane %v789, 2
      %v798 = vrot.slane %v790, 2
      %v799 = vrot.slane %v791, 2
      %v802 = vsel %vm348, %v788, %v796
      %v804 = vsel %vm352, %v788, %v796
      %v806 = vrot.slane %v804, 2
      %v809 = vsel %vm348, %v789, %v797
      %v811 = vsel %vm352, %v789, %v797
      %v813 = vrot.slane %v811, 2
      %v816 = vsel %vm348, %v790, %v798
      %v818 = vsel %vm352, %v790, %v798
      %v820 = vrot.slane %v818, 2
      %v823 = vsel %vm348, %v791, %v799
      %v825 = vsel %vm352, %v791, %v799
      %v827 = vrot.slane %v825, 2
      %v828 = vrot.slane %v802, 7
      %v829 = vrot.slane %v828, 2
      %v830 = vrot.slane %v806, 7
      %v831 = vsel %vm553, %v829, %v830
      %v832 = vrot.slane %v809, 7
      %v833 = vrot.slane %v832, 2
      %v834 = vrot.slane %v813, 7
      %v835 = vsel %vm553, %v833, %v834
      %v836 = vrot.slane %v816, 7
      %v837 = vrot.slane %v836, 2
      %v838 = vrot.slane %v820, 7
      %v839 = vsel %vm553, %v837, %v838
      %v840 = vrot.slane %v823, 7
      %v841 = vrot.slane %v840, 2
      %v842 = vrot.slane %v827, 7
      %v843 = vsel %vm553, %v841, %v842
      %s844 = sadd.s32 10, %s331
      %s845 = smul.addr %s844, 4
      %s846 = scalar_lea.vmem %s1, %s845
      %v847 = vld [vmem:[%s846] sm:$0xf]
      %v848 = vld [vmem:[%s846 + $0x4] sm:$0xf]
      %850 = vst [vmem:[#allocation1] ss:$4 sm:$0xff] %v831
      %s852 = scalar_lea.vmem [#allocation1], 1
      %853 = vst [vmem:[%s852] ss:$4 sm:$0xff] %v835
      %s855 = scalar_lea.vmem [#allocation1], 2
      %856 = vst [vmem:[%s855] ss:$4 sm:$0xff] %v839
      %s858 = scalar_lea.vmem [#allocation1], 3
      %859 = vst [vmem:[%s858] ss:$4 sm:$0xff] %v843
      %v860 = vld.sshfl [vmem:[#allocation1] sm:$0xff pattern:$0x73625140]
      %v863 = vunpack.c.l.b16 %v847
      %v864 = vunpack.c.l.b16 %v848
      %v865 = vpack.c.b16 %v864, %v863
      %v867 = vsel %vm456, %v860, 0
      %869 = vmatpush.bf16.msra.mxu0 0
      %870 = vmatpush.bf16.msra.mxu0 0
      %871 = vmatpush.bf16.msra.mxu0 0
      %872 = vmatpush.bf16.msra.mxu0 0
      %873 = vmatpush.bf16.msra.mxu0 0
      %874 = vmatpush.bf16.msra.mxu0 0
      %875 = vmatpush.bf16.msra.mxu0 0
      %876 = vmatpush.bf16.msra.mxu0 %v865
      %877 = vmatmul.bf16.gmra.mxu0 %v867
      %v878 = vpop.f32.mrf.mxu0
      %v879 = vadd.f32 0.0, %v878
      %v880 = vpop.f32.mrf.mxu0
      %v881 = vadd.f32 0.0, %v880
      %882 = vdwg.mxu0
      %v883 = vadd.f32 %v786, %v879
      %v884 = vadd.f32 %v787, %v881
      %s885 = sadd.s32 %s324, 2
      %s886 = smul.addr %s885, 4
      %s887 = scalar_lea.vmem %s286, %s886
      %v888 = vld [vmem:[%s887] sm:$0x3]
      %v889 = vld [vmem:[%s887 + $0x4] sm:$0x3]
      %v890 = vld [vmem:[%s887 + $0x8] sm:$0x3]
      %v891 = vld [vmem:[%s887 + $0xc] sm:$0x3]
      %s892 = sadd.s32 12, %s331
      %s893 = smul.addr %s892, 4
      %s894 = scalar_lea.vmem %s1, %s893
      %v895 = vld [vmem:[%s894] sm:$0xf]
      %v896 = vld [vmem:[%s894 + $0x4] sm:$0xf]
      %898 = vst [vmem:[#allocation1] ss:$4 sm:$0xff] %v888
      %s900 = scalar_lea.vmem [#allocation1], 1
      %901 = vst [vmem:[%s900] ss:$4 sm:$0xff] %v889
      %s903 = scalar_lea.vmem [#allocation1], 2
      %904 = vst [vmem:[%s903] ss:$4 sm:$0xff] %v890
      %s906 = scalar_lea.vmem [#allocation1], 3
      %907 = vst [vmem:[%s906] ss:$4 sm:$0xff] %v891
      %v908 = vld.sshfl [vmem:[#allocation1] sm:$0xff pattern:$0x73625140]
      %v911 = vunpack.c.l.b16 %v895
      %v912 = vunpack.c.l.b16 %v896
      %v913 = vpack.c.b16 %v912, %v911
      %v915 = vsel %vm456, %v908, 0
      %917 = vmatpush.bf16.msra.mxu0 0
      %918 = vmatpush.bf16.msra.mxu0 0
      %919 = vmatpush.bf16.msra.mxu0 0
      %920 = vmatpush.bf16.msra.mxu0 0
      %921 = vmatpush.bf16.msra.mxu0 0
      %922 = vmatpush.bf16.msra.mxu0 0
      %923 = vmatpush.bf16.msra.mxu0 0
      %924 = vmatpush.bf16.msra.mxu0 %v913
      %925 = vmatmul.bf16.gmra.mxu0 %v915
      %v926 = vpop.f32.mrf.mxu0
      %v927 = vadd.f32 0.0, %v926
      %v928 = vpop.f32.mrf.mxu0
      %v929 = vadd.f32 0.0, %v928
      %930 = vdwg.mxu0
      %v931 = vadd.f32 %v883, %v927
      %v932 = vadd.f32 %v884, %v929
      %v933 = vld [vmem:[%s887] sm:$0x7]
      %v934 = vld [vmem:[%s887 + $0x4] sm:$0x7]
      %v935 = vld [vmem:[%s887 + $0x8] sm:$0x7]
      %v936 = vld [vmem:[%s887 + $0xc] sm:$0x7]
      %v941 = vrot.slane %v933, 2
      %v942 = vrot.slane %v934, 2
      %v943 = vrot.slane %v935, 2
      %v944 = vrot.slane %v936, 2
      %v947 = vsel %vm348, %v933, %v941
      %v948 = vsel %vm352, %v933, %v941
      %v950 = vrot.slane %v948, 2
      %v953 = vsel %vm348, %v934, %v942
      %v954 = vsel %vm352, %v934, %v942
      %v956 = vrot.slane %v954, 2
      %v959 = vsel %vm348, %v935, %v943
      %v960 = vsel %vm352, %v935, %v943
      %v962 = vrot.slane %v960, 2
      %v965 = vsel %vm348, %v936, %v944
      %v966 = vsel %vm352, %v936, %v944
      %v968 = vrot.slane %v966, 2
      %v969 = vshrl.u32 %v947, 16
      %v971 = vrot.slane %v969, 6
      %v972 = vshll.u32 %v947, 16
      %v974 = vrot.slane %v972, 7
      %v975 = vor.u32 %v971, %v974
      %v976 = vrot.slane %v975, 2
      %v978 = vshll.u32 %v950, 16
      %v980 = vrot.slane %v978, 7
      %v981 = vsel %vm380, %v976, %v980
      %v982 = vshrl.u32 %v953, 16
      %v984 = vrot.slane %v982, 6
      %v985 = vshll.u32 %v953, 16
      %v987 = vrot.slane %v985, 7
      %v988 = vor.u32 %v984, %v987
      %v989 = vrot.slane %v988, 2
      %v991 = vshll.u32 %v956, 16
      %v993 = vrot.slane %v991, 7
      %v994 = vsel %vm380, %v989, %v993
      %v995 = vshrl.u32 %v959, 16
      %v997 = vrot.slane %v995, 6
      %v998 = vshll.u32 %v959, 16
      %v1000 = vrot.slane %v998, 7
      %v1001 = vor.u32 %v997, %v1000
      %v1002 = vrot.slane %v1001, 2
      %v1004 = vshll.u32 %v962, 16
      %v1006 = vrot.slane %v1004, 7
      %v1007 = vsel %vm380, %v1002, %v1006
      %v1008 = vshrl.u32 %v965, 16
      %v1010 = vrot.slane %v1008, 6
      %v1011 = vshll.u32 %v965, 16
      %v1013 = vrot.slane %v1011, 7
      %v1014 = vor.u32 %v1010, %v1013
      %v1015 = vrot.slane %v1014, 2
      %v1017 = vshll.u32 %v968, 16
      %v1019 = vrot.slane %v1017, 7
      %v1020 = vsel %vm380, %v1015, %v1019
      %s1021 = sadd.s32 14, %s331
      %s1022 = smul.addr %s1021, 4
      %s1023 = scalar_lea.vmem %s1, %s1022
      %v1024 = vld [vmem:[%s1023] sm:$0xf]
      %v1025 = vld [vmem:[%s1023 + $0x4] sm:$0xf]
      %1027 = vst [vmem:[#allocation1] ss:$4 sm:$0xff] %v981
      %s1029 = scalar_lea.vmem [#allocation1], 1
      %1030 = vst [vmem:[%s1029] ss:$4 sm:$0xff] %v994
      %s1032 = scalar_lea.vmem [#allocation1], 2
      %1033 = vst [vmem:[%s1032] ss:$4 sm:$0xff] %v1007
      %s1035 = scalar_lea.vmem [#allocation1], 3
      %1036 = vst [vmem:[%s1035] ss:$4 sm:$0xff] %v1020
      %v1037 = vld.sshfl [vmem:[#allocation1] sm:$0xff pattern:$0x73625140]
      %v1040 = vunpack.c.l.b16 %v1024
      %v1041 = vunpack.c.l.b16 %v1025
      %v1042 = vpack.c.b16 %v1041, %v1040
      %v1044 = vsel %vm456, %v1037, 0
      %1046 = vmatpush.bf16.msra.mxu0 0
      %1047 = vmatpush.bf16.msra.mxu0 0
      %1048 = vmatpush.bf16.msra.mxu0 0
      %1049 = vmatpush.bf16.msra.mxu0 0
      %1050 = vmatpush.bf16.msra.mxu0 0
      %1051 = vmatpush.bf16.msra.mxu0 0
      %1052 = vmatpush.bf16.msra.mxu0 0
      %1053 = vmatpush.bf16.msra.mxu0 %v1042
      %1054 = vmatmul.bf16.gmra.mxu0 %v1044
      %v1055 = vpop.f32.mrf.mxu0
      %v1056 = vadd.f32 0.0, %v1055
      %v1057 = vpop.f32.mrf.mxu0
      %v1058 = vadd.f32 0.0, %v1057
      %1059 = vdwg.mxu0
      %v1060 = vadd.f32 %v931, %v1056
      %v1061 = vadd.f32 %v932, %v1058
      %v1062 = vld [vmem:[%s887] sm:$0x6]
      %v1063 = vld [vmem:[%s887 + $0x4] sm:$0x6]
      %v1064 = vld [vmem:[%s887 + $0x8] sm:$0x6]
      %v1065 = vld [vmem:[%s887 + $0xc] sm:$0x6]
      %v1070 = vrot.slane %v1062, 2
      %v1071 = vrot.slane %v1063, 2
      %v1072 = vrot.slane %v1064, 2
      %v1073 = vrot.slane %v1065, 2
      %v1076 = vsel %vm348, %v1062, %v1070
      %v1078 = vsel %vm352, %v1062, %v1070
      %v1080 = vrot.slane %v1078, 2
      %v1083 = vsel %vm348, %v1063, %v1071
      %v1085 = vsel %vm352, %v1063, %v1071
      %v1087 = vrot.slane %v1085, 2
      %v1090 = vsel %vm348, %v1064, %v1072
      %v1092 = vsel %vm352, %v1064, %v1072
      %v1094 = vrot.slane %v1092, 2
      %v1097 = vsel %vm348, %v1065, %v1073
      %v1099 = vsel %vm352, %v1065, %v1073
      %v1101 = vrot.slane %v1099, 2
      %v1102 = vrot.slane %v1076, 7
      %v1103 = vrot.slane %v1102, 2
      %v1104 = vrot.slane %v1080, 7
      %v1105 = vsel %vm553, %v1103, %v1104
      %v1106 = vrot.slane %v1083, 7
      %v1107 = vrot.slane %v1106, 2
      %v1108 = vrot.slane %v1087, 7
      %v1109 = vsel %vm553, %v1107, %v1108
      %v1110 = vrot.slane %v1090, 7
      %v1111 = vrot.slane %v1110, 2
      %v1112 = vrot.slane %v1094, 7
      %v1113 = vsel %vm553, %v1111, %v1112
      %v1114 = vrot.slane %v1097, 7
      %v1115 = vrot.slane %v1114, 2
      %v1116 = vrot.slane %v1101, 7
      %v1117 = vsel %vm553, %v1115, %v1116
      %s1118 = sadd.s32 16, %s331
      %s1119 = smul.addr %s1118, 4
      %s1120 = scalar_lea.vmem %s1, %s1119
      %v1121 = vld [vmem:[%s1120] sm:$0xf]
      %v1122 = vld [vmem:[%s1120 + $0x4] sm:$0xf]
      %1124 = vst [vmem:[#allocation1] ss:$4 sm:$0xff] %v1105
      %s1126 = scalar_lea.vmem [#allocation1], 1
      %1127 = vst [vmem:[%s1126] ss:$4 sm:$0xff] %v1109
      %s1129 = scalar_lea.vmem [#allocation1], 2
      %1130 = vst [vmem:[%s1129] ss:$4 sm:$0xff] %v1113
      %s1132 = scalar_lea.vmem [#allocation1], 3
      %1133 = vst [vmem:[%s1132] ss:$4 sm:$0xff] %v1117
      %v1134 = vld.sshfl [vmem:[#allocation1] sm:$0xff pattern:$0x73625140]
      %v1137 = vunpack.c.l.b16 %v1121
      %v1138 = vunpack.c.l.b16 %v1122
      %v1139 = vpack.c.b16 %v1138, %v1137
      %v1141 = vsel %vm456, %v1134, 0
      %1143 = vmatpush.bf16.msra.mxu0 0
      %1144 = vmatpush.bf16.msra.mxu0 0
      %1145 = vmatpush.bf16.msra.mxu0 0
      %1146 = vmatpush.bf16.msra.mxu0 0
      %1147 = vmatpush.bf16.msra.mxu0 0
      %1148 = vmatpush.bf16.msra.mxu0 0
      %1149 = vmatpush.bf16.msra.mxu0 0
      %1150 = vmatpush.bf16.msra.mxu0 %v1139
      %1151 = vmatmul.bf16.gmra.mxu0 %v1141
      %v1152 = vpop.f32.mrf.mxu0
      %v1153 = vadd.f32 0.0, %v1152
      %v1154 = vpop.f32.mrf.mxu0
      %v1155 = vadd.f32 0.0, %v1154
      %1156 = vdwg.mxu0
      %v1157 = vadd.f32 %v1060, %v1153
      %v1158 = vadd.f32 %v1061, %v1155
      %v1159 = vld [vmem:[#allocation2] sm:$0xff]
      %v1160 = vld [vmem:[#allocation2 + $0x8] sm:$0xff]
      %v1161 = vadd.f32 %v1159, %v1157
      %v1162 = vadd.f32 %v1160, %v1158
      %1163 = vst.msk [vmem:[#allocation2] sm:$0xff] %vm456, %v1161
      %1164 = vst.msk [vmem:[#allocation2 + $0x8] sm:$0xff] %vm456, %v1162
      %p1165 = scmp.eq.s32.totalorder %s24, 2
      // Predicated region
      $region41: #{encoder_block_forward.17} parent=35 // pred_check
        %p1166 = pneg %p1165
      $region42: #{encoder_block_forward.17} parent=35 // pred_check_branch
        %1168 = sbr.rel (%p1166) target = $region44
      $region43: #{encoder_block_forward.17} parent=35 // pred_region
        %v1169 = vld [vmem:[#allocation2] sm:$0xff]
        %v1170 = vld [vmem:[#allocation2 + $0x8] sm:$0xff]
        %v1171 = vld [vmem:[%s2] sm:$0x1]
        %v1173 = vperm.slane %v1171, 0
        %v1175 = vadd.f32 %v1169, %v1173
        %v1176 = vadd.f32 %v1170, %v1173
        %v1177 = vld [vmem:[%s300] sm:$0xf]
        %v1178 = vld [vmem:[%s300 + $0x4] sm:$0xf]
        %v1179 = vunpack.c.l.bf16 %v1177
        %v1180 = vunpack.c.l.bf16 %v1178
        %v1181 = vadd.f32 %v1175, %v1179
        %v1182 = vadd.f32 %v1176, %v1180
        %v1183 = vpack.c.bf16 %v1181, %v1181
        %v1184 = vpack.c.bf16 %v1182, %v1182
        %vm1185 = vcmask 125952
        %1186 = vst.msk [vmem:[%s314] sm:$0xf] %vm1185, %v1183
        %1187 = vst.msk [vmem:[%s314 + $0x4] sm:$0xf] %vm1185, %v1184
      $region44: #{encoder_block_forward.17} parent=35 // pred_fallthru
        _
      %s1188 = smul.u32 2, %s23
      %p1189 = scmp.lt.s32.totalorder %s21, 1
      %s1190 = scalar_select %p1189, %s21, 1
      %p1191 = scmp.lt.s32.totalorder %s22, 2
      %s1192 = scalar_select %p1191, %s22, 2
      %p1193 = scmp.lt.s32.totalorder %s1188, 1
      %s1194 = scalar_select %p1193, %s1188, 1
      %s1195 = smul.addr %s1192, 2
      %s1196 = sadd.s32 %s1194, %s1195
      %s1197 = smul.addr %s1190, 6
      %s1198 = sadd.s32 %s1196, %s1197
      %s1199 = smul.addr %s1198, 4
      %s1200 = scalar_lea.vmem %s4, %s1199
      // Predicated region
      $region45: #{encoder_block_forward.17} parent=35 // pred_check
        %p1201 = pneg %p165
      $region46: #{encoder_block_forward.17} parent=35 // pred_check_branch
        %1203 = sbr.rel (%p1201) target = $region48
      $region47: #{encoder_block_forward.17} parent=35 // pred_region
        %s1204 = smul.u32 2, %s23
      $region48: #{encoder_block_forward.17} parent=35 // pred_fallthru
        _
    $region36: #{encoder_block_forward.17} parent=5 // pred_fallthru
      _
    %p1205 = scmp.le.s32.totalorder 2, %s10
    // Predicated region
    $region49: #{encoder_block_forward.17} parent=5 // pred_check
      %p1206 = pneg %p1205
    $region50: #{encoder_block_forward.17} parent=5 // pred_check_branch
      %1208 = sbr.rel (%p1206) target = $region52
    $region51: #{encoder_block_forward.17} parent=5 // pred_region
      %s1209 = ssub.s32 %s10, 2
      // Predicated region
      $region53: #{encoder_block_forward.17} parent=51 // pred_check
        %p1210 = pneg %p171
      $region54: #{encoder_block_forward.17} parent=51 // pred_check_branch
        %1212 = sbr.rel (%p1210) target = $region56
      $region55: #{encoder_block_forward.17} parent=51 // pred_region
        %s1213 = smul.u32 2, %s27
        %p1214 = scmp.lt.s32.totalorder %s25, 1
        %s1215 = scalar_select %p1214, %s25, 1
        %p1216 = scmp.lt.s32.totalorder %s26, 2
        %s1217 = scalar_select %p1216, %s26, 2
        %p1218 = scmp.lt.s32.totalorder %s1213, 1
        %s1219 = scalar_select %p1218, %s1213, 1
        %s1220 = smul.addr %s1217, 2
        %s1221 = sadd.s32 %s1219, %s1220
        %s1222 = smul.addr %s1215, 6
        %s1223 = sadd.s32 %s1221, %s1222
        %s1224 = smul.addr %s1223, 4
        %s1225 = scalar_lea.vmem %s4, %s1224
      $region56: #{encoder_block_forward.17} parent=51 // pred_fallthru
        _
    $region52: #{encoder_block_forward.17} parent=5 // pred_fallthru
      _
  $region6: #{encoder_block_forward.17} parent=0 // loop_footer
    %s14 = sadd.s32 1, %s10
  $region7: #{encoder_block_forward.17} parent=0 // loop_footer_branch
    %9 = sbr.rel target = $region3
  $region8: #{encoder_block_forward.17} parent=0 // loop_exit
    _

</llo_original>
